<compile_context>
chip_gen: v7x
topology: tpu7x:2x2x1
jax: 0.10.0
libtpu: 0.0.40
codegen_flags: <defaults>
</compile_context>

<pallas_src>
import functools

import jax
import jax.numpy as jnp
from jax.experimental import pallas as pl
from jax.experimental.pallas import tpu as pltpu


HP = 128  # lane-aligned padded hidden size (H=48 -> 128)


def _lstm_classifier_kernel(
    x_ref,        # [T*Bp, Dp]       f32, time-major flattened (row = t*Bp + b)
    wih_fb_ref,   # [Dp, 8*HP]       bf16, lstm1 fwd|bwd W_ih fused, gate-padded
    w_rec_ref,    # [3, HP, 4*HP]    bf16, {whh_f, whh_b, whh_2}
    wih2_ref,     # [2*HP, 4*HP]     bf16, lstm2 W_ih (fwd rows 0:HP, bwd HP:2HP)
    misc_ref,     # [8, 8*HP]        f32, row0 b_f|b_b, row1 b_2, row2 wfc, row3[0] bfc
    out_ref,      # [Bp, 1]          f32 logits (padded batch rows are junk)
    gx1_ref,      # scratch [T*Bp, 8*HP] f32
    out1_ref,     # scratch [T*Bp, 2*HP] f32
    gx2_ref,      # scratch [T*Bp, 4*HP] f32
    *,
    seq_len: int,
    batch_pad: int,
    hidden_pad: int,
):
    T, Bp, P = seq_len, batch_pad, hidden_pad
    G = 4 * P

    # --- Fused layer-1 input-to-hidden precompute (one K=Dp matmul) ---------
    # Spilled to VMEM scratch so the unrolled recurrence streams [Bp, G] tiles
    # via vld instead of pinning ~16 vregs across the whole loop.
    xb = x_ref[...].astype(jnp.bfloat16)
    gx1_ref[...] = (
        jnp.dot(xb, wih_fb_ref[...], preferred_element_type=jnp.float32)
        + misc_ref[0:1, :]
    )

    def cell(gates, c_prev):
        # Gate blocks are on 128-lane boundaries: full-vreg VPU/EUP work.
        i = jax.nn.sigmoid(gates[:, 0 * P:1 * P])
        f = jax.nn.sigmoid(gates[:, 1 * P:2 * P])
        g = jnp.tanh(gates[:, 2 * P:3 * P])
        o = jax.nn.sigmoid(gates[:, 3 * P:4 * P])
        c = f * c_prev + i * g
        h = o * jnp.tanh(c)
        return h, c

    zeros = jnp.zeros((Bp, P), jnp.float32)
    h_f, c_f = zeros, zeros
    h_b, c_b = zeros, zeros

    # --- Layer 1: fused fwd + bwd recurrences, fully unrolled (T static) ----
    for t in range(T):
        tb = T - 1 - t
        rf = slice(t * Bp, (t + 1) * Bp)     # sublane-aligned (Bp = 8)
        rb = slice(tb * Bp, (tb + 1) * Bp)
        gates_f = gx1_ref[rf, 0:G] + jnp.dot(
            h_f.astype(jnp.bfloat16), w_rec_ref[0],
            preferred_element_type=jnp.float32)
        gates_b = gx1_ref[rb, G:2 * G] + jnp.dot(
            h_b.astype(jnp.bfloat16), w_rec_ref[1],
            preferred_element_type=jnp.float32)
        h_f, c_f = cell(gates_f, c_f)
        h_b, c_b = cell(gates_b, c_b)
        # Lane-aligned (offsets 0 / 128), unmasked (8,128) stores.
        out1_ref[rf, 0:P] = h_f
        out1_ref[rb, P:2 * P] = h_b

    # --- Layer 2 input projection: single K=2*HP=256 matmul -----------------
    gx2_ref[...] = (
        jnp.dot(out1_ref[...].astype(jnp.bfloat16), wih2_ref[...],
                preferred_element_type=jnp.float32)
        + misc_ref[1:2, 0:G]
    )

    # --- Layer 2 (unidirectional) recurrence ---------------------------------
    h2, c2 = zeros, zeros
    for t in range(T):
        r = slice(t * Bp, (t + 1) * Bp)
        gates = gx2_ref[r, :] + jnp.dot(
            h2.astype(jnp.bfloat16), w_rec_ref[2],
            preferred_element_type=jnp.float32)
        h2, c2 = cell(gates, c2)                     # h2 == hn[-1]

    # --- Final Linear(H, 1) on VPU/XLU: multiply + lane reduce ---------------
    wfc = misc_ref[2:3, 0:P]
    bfc = misc_ref[3:4, 0:1]
    logits = jnp.sum(h2 * wfc, axis=-1, keepdims=True) + bfc
    out_ref[...] = logits.astype(out_ref.dtype)


# ---------------- wrapper-side (one-time, XLA) weight layout work ----------------

def _pack_gate_weight(w, H, hp, k_rows):
    """w: [4H, K] gate-stacked (i,f,g,o) PyTorch weight.

    Returns [k_rows, 4*hp]: transposed, each gate's H columns at a 128-lane
    boundary; all padded rows/columns are exactly zero (preserved under the
    later bf16 cast, keeping padded h/c lanes exactly 0 in the kernel).
    """
    K = w.shape[1]
    out = jnp.zeros((k_rows, 4 * hp), jnp.float32)
    for g in range(4):
        out = out.at[:K, g * hp:g * hp + H].set(w[g * H:(g + 1) * H, :].T)
    return out


def _pack_gate_bias(b, H, hp):
    """b: [1, 4H] -> [1, 4*hp], each gate block at a 128-lane boundary."""
    out = jnp.zeros((1, 4 * hp), jnp.float32)
    for g in range(4):
        out = out.at[:, g * hp:g * hp + H].set(b[:, g * H:(g + 1) * H])
    return out


def lstm_classifier_forward(x, params, hidden_size):
    """x: [B, T, D] float32. Returns logits [B, 1]."""
    B, T, D = x.shape
    H = hidden_size
    Bp = max(8, ((B + 7) // 8) * 8)          # sublane-aligned batch
    Dp = max(8, ((D + 7) // 8) * 8)          # sublane-aligned input width

    # ---- Pack weights once (transpose + gate-pad), then cast to bf16 -------
    wih_f = _pack_gate_weight(params["wih_f"], H, HP, Dp)
    wih_b = _pack_gate_weight(params["wih_b"], H, HP, Dp)
    wih_fb = jnp.concatenate([wih_f, wih_b], axis=1).astype(jnp.bfloat16)   # [Dp, 8*HP]

    whh_f = _pack_gate_weight(params["whh_f"], H, HP, HP)
    whh_b = _pack_gate_weight(params["whh_b"], H, HP, HP)
    whh_2 = _pack_gate_weight(params["whh_2"], H, HP, HP)
    w_rec = jnp.stack([whh_f, whh_b, whh_2], axis=0).astype(jnp.bfloat16)   # [3, HP, 4*HP]

    # lstm2 W_ih: columns 0:H act on the fwd half of out1, H:2H on the bwd half.
    wih2_f = _pack_gate_weight(params["wih_2"][:, :H], H, HP, HP)
    wih2_b = _pack_gate_weight(params["wih_2"][:, H:], H, HP, HP)
    wih2 = jnp.concatenate([wih2_f, wih2_b], axis=0).astype(jnp.bfloat16)   # [2*HP, 4*HP]

    # ---- Misc slab (f32): biases + fc weight/bias ---------------------------
    misc = jnp.zeros((8, 8 * HP), jnp.float32)
    misc = misc.at[0:1, 0:4 * HP].set(_pack_gate_bias(params["b_f"], H, HP))
    misc = misc.at[0:1, 4 * HP:8 * HP].set(_pack_gate_bias(params["b_b"], H, HP))
    misc = misc.at[1:2, 0:4 * HP].set(_pack_gate_bias(params["b_2"], H, HP))
    misc = misc.at[2:3, 0:H].set(params["wfc"])
    misc = misc.at[3, 0].set(params["bfc"][0, 0])

    # ---- Input: time-major, batch & feature padded, flattened ---------------
    x_tm = jnp.transpose(x, (1, 0, 2))                               # [T, B, D]
    x_tm = jnp.pad(x_tm, ((0, 0), (0, Bp - B), (0, Dp - D)))         # [T, Bp, Dp]
    x2d = x_tm.reshape(T * Bp, Dp)

    inputs = (x2d, wih_fb, w_rec, wih2, misc)
    vmem = pl.BlockSpec(memory_space=pltpu.MemorySpace.VMEM)

    gate = 4 * HP
    flops = int(
        2 * (T * Bp) * Dp * (2 * gate)            # fused layer-1 input projection
        + 2 * (T * Bp) * (2 * HP) * gate          # layer-2 input projection (K=256)
        + 3 * T * (2 * Bp * HP * gate)            # 3 recurrent chains, T steps each
        + 30 * T * Bp * HP * 3                    # elementwise cell work
    )
    transcendentals = int(5 * T * Bp * HP * 3)
    bytes_accessed = int(sum(a.size * a.dtype.itemsize for a in inputs) + Bp * 4)

    out = pl.pallas_call(
        functools.partial(_lstm_classifier_kernel,
                          seq_len=T, batch_pad=Bp, hidden_pad=HP),
        out_shape=jax.ShapeDtypeStruct((Bp, 1), jnp.float32),
        in_specs=[vmem] * len(inputs),
        out_specs=vmem,
        scratch_shapes=[
            pltpu.VMEM((T * Bp, 8 * HP), jnp.float32),   # gx1
            pltpu.VMEM((T * Bp, 2 * HP), jnp.float32),   # out1
            pltpu.VMEM((T * Bp, 4 * HP), jnp.float32),   # gx2
        ],
        cost_estimate=pl.CostEstimate(flops=flops,
                                      transcendentals=transcendentals,
                                      bytes_accessed=bytes_accessed),
    )(*inputs)
    return out[:B]


# ---------------- parameter init (PyTorch-style) & pure-JAX reference ----------------

def init_params(key, input_size, hidden_size):
    """Deterministic PyTorch-style uniform(-1/sqrt(H), 1/sqrt(H)) init."""
    H = hidden_size
    bound = 1.0 / jnp.sqrt(jnp.float32(H))
    keys = jax.random.split(key, 14)

    def u(k, shape):
        return jax.random.uniform(k, shape, jnp.float32, -bound, bound)

    return {
        # lstm1 forward direction
        "wih_f": u(keys[0], (4 * H, input_size)),
        "whh_f": u(keys[1], (4 * H, H)),
        "b_f":   (u(keys[2], (1, 4 * H)) + u(keys[3], (1, 4 * H))),   # b_ih + b_hh
        # lstm1 backward direction
        "wih_b": u(keys[4], (4 * H, input_size)),
        "whh_b": u(keys[5], (4 * H, H)),
        "b_b":   (u(keys[6], (1, 4 * H)) + u(keys[7], (1, 4 * H))),
        # lstm2 (input 2H)
        "wih_2": u(keys[8], (4 * H, 2 * H)),
        "whh_2": u(keys[9], (4 * H, H)),
        "b_2":   (u(keys[10], (1, 4 * H)) + u(keys[11], (1, 4 * H))),
        # fc: Linear(H, 1)
        "wfc":   u(keys[12], (1, H)),
        "bfc":   u(keys[13], (1, 1)),
    }


def reference_forward(x, params, H):
    """Pure-JAX reference (HIGHEST precision) matching the PyTorch module."""
    dot = functools.partial(jnp.dot, precision=jax.lax.Precision.HIGHEST)
    B, T, _ = x.shape

    def cell(gates, c):
        i = jax.nn.sigmoid(gates[:, 0 * H:1 * H])
        f = jax.nn.sigmoid(gates[:, 1 * H:2 * H])
        g = jnp.tanh(gates[:, 2 * H:3 * H])
        o = jax.nn.sigmoid(gates[:, 3 * H:4 * H])
        c = f * c + i * g
        return o * jnp.tanh(c), c

    def run(seq, wih, whh, b, reverse=False):
        hs = [None] * T
        h = jnp.zeros((B, H), jnp.float32)
        c = jnp.zeros((B, H), jnp.float32)
        order = range(T - 1, -1, -1) if reverse else range(T)
        for t in order:
            gates = dot(seq[t], wih.T) + b + dot(h, whh.T)
            h, c = cell(gates, c)
            hs[t] = h
        return jnp.stack(hs, axis=0), h

    x_tm = jnp.transpose(x, (1, 0, 2))
    out_f, _ = run(x_tm, params["wih_f"], params["whh_f"], params["b_f"])
    out_b, _ = run(x_tm, params["wih_b"], params["whh_b"], params["b_b"], reverse=True)
    out1 = jnp.concatenate([out_f, out_b], axis=-1)                  # [T, B, 2H]
    _, h2 = run(out1, params["wih_2"], params["whh_2"], params["b_2"])
    return dot(h2, params["wfc"].T) + params["bfc"]


if __name__ == "__main__":
    hidden_size = 48
    input_size = 6          # trainDim default
    batch = 2
    seq_len = 8

    key = jax.random.PRNGKey(0)
    k_x, k_p = jax.random.split(key)
    x = jax.random.normal(k_x, (batch, seq_len, input_size), jnp.float32)
    params = init_params(k_p, input_size, hidden_size)

    logits = lstm_classifier_forward(x, params, hidden_size)
    jax.block_until_ready(logits)
    assert logits.shape == (batch, 1)

    # bf16 MXU operands vs a Precision.HIGHEST f32 reference: observed error is
    # a few 1e-3 on logits at these sizes, so check at 1e-2.
    ref = reference_forward(x, params, hidden_size)
    assert jnp.allclose(logits, ref, atol=1e-2, rtol=1e-2), (logits, ref)

    print("KERNEL_OK")
</pallas_src>

<mosaic_0001>
module attributes {stable_mosaic.version = 11 : i64} {
  func.func @_lstm_classifier_kernel(%arg0: memref<64x8xf32, #tpu.memory_space<vmem>>, %arg1: memref<8x1024xbf16, #tpu.memory_space<vmem>>, %arg2: memref<3x128x512xbf16, #tpu.memory_space<vmem>>, %arg3: memref<256x512xbf16, #tpu.memory_space<vmem>>, %arg4: memref<8x1024xf32, #tpu.memory_space<vmem>>, %arg5: memref<8x1xf32, #tpu.memory_space<vmem>>, %arg6: memref<64x1024xf32, #tpu.memory_space<vmem>>, %arg7: memref<64x256xf32, #tpu.memory_space<vmem>>, %arg8: memref<64x512xf32, #tpu.memory_space<vmem>>) attributes {dimension_semantics = [], scalar_prefetch = 0 : i64, scratch_operands = 3 : i64, tpu.core_type = #tpu.core_type<tc>} {
    %c0 = arith.constant 0 : index
    %c0_0 = arith.constant 0 : index
    %0 = vector.load %arg0[%c0, %c0_0] : memref<64x8xf32, #tpu.memory_space<vmem>>, vector<64x8xf32>
    %1 = arith.truncf %0 : vector<64x8xf32> to vector<64x8xbf16>
    %c0_1 = arith.constant 0 : index
    %c0_2 = arith.constant 0 : index
    %2 = vector.load %arg1[%c0_1, %c0_2] : memref<8x1024xbf16, #tpu.memory_space<vmem>>, vector<8x1024xbf16>
    %cst = arith.constant dense<0.000000e+00> : vector<64x1024xf32>
    %3 = tpu.matmul %1, %2, %cst {dimension_numbers = #tpu.dot_dimension_numbers<[1], [0], [0], [1], [0, 0, 1, 1], [], []>} : vector<64x8xbf16>, vector<8x1024xbf16>, vector<64x1024xf32> -> vector<64x1024xf32>
    %c0_3 = arith.constant 0 : index
    %c0_4 = arith.constant 0 : index
    %4 = vector.load %arg4[%c0_3, %c0_4] : memref<8x1024xf32, #tpu.memory_space<vmem>>, vector<1x1024xf32>
    %5 = vector.broadcast %4 : vector<1x1024xf32> to vector<64x1024xf32>
    %6 = arith.addf %3, %5 : vector<64x1024xf32>
    %c0_5 = arith.constant 0 : index
    %c0_6 = arith.constant 0 : index
    %7 = vector.load %arg6[%c0_5, %c0_6] : memref<64x1024xf32, #tpu.memory_space<vmem>>, vector<64x1024xf32>
    tpu.vector_store %arg6[%c0_5, %c0_6], %6 {strides = array<i32>} : memref<64x1024xf32, #tpu.memory_space<vmem>>, vector<64x1024xf32>,
    %cst_7 = arith.constant 0.000000e+00 : f32
    %8 = vector.broadcast %cst_7 : f32 to vector<8x128xf32>
    %c0_8 = arith.constant 0 : index
    %c0_9 = arith.constant 0 : index
    %9 = vector.load %arg6[%c0_8, %c0_9] : memref<64x1024xf32, #tpu.memory_space<vmem>>, vector<8x512xf32>
    %10 = arith.truncf %8 : vector<8x128xf32> to vector<8x128xbf16>
    %c0_10 = arith.constant 0 : index
    %c0_11 = arith.constant 0 : index
    %c0_12 = arith.constant 0 : index
    %11 = vector.load %arg2[%c0_10, %c0_11, %c0_12] : memref<3x128x512xbf16, #tpu.memory_space<vmem>>, vector<1x128x512xbf16>
    %12 = vector.shape_cast %11 : vector<1x128x512xbf16> to vector<128x512xbf16>
    %cst_13 = arith.constant dense<0.000000e+00> : vector<8x512xf32>
    %13 = tpu.matmul %10, %12, %cst_13 {dimension_numbers = #tpu.dot_dimension_numbers<[1], [0], [0], [1], [0, 0, 1, 1], [], []>} : vector<8x128xbf16>, vector<128x512xbf16>, vector<8x512xf32> -> vector<8x512xf32>
    %14 = arith.addf %9, %13 : vector<8x512xf32>
    %c56 = arith.constant 56 : index
    %c512 = arith.constant 512 : index
    %15 = vector.load %arg6[%c56, %c512] : memref<64x1024xf32, #tpu.memory_space<vmem>>, vector<8x512xf32>
    %16 = arith.truncf %8 : vector<8x128xf32> to vector<8x128xbf16>
    %c1 = arith.constant 1 : index
    %c0_14 = arith.constant 0 : index
    %c0_15 = arith.constant 0 : index
    %17 = vector.load %arg2[%c1, %c0_14, %c0_15] : memref<3x128x512xbf16, #tpu.memory_space<vmem>>, vector<1x128x512xbf16>
    %18 = vector.shape_cast %17 : vector<1x128x512xbf16> to vector<128x512xbf16>
    %cst_16 = arith.constant dense<0.000000e+00> : vector<8x512xf32>
    %19 = tpu.matmul %16, %18, %cst_16 {dimension_numbers = #tpu.dot_dimension_numbers<[1], [0], [0], [1], [0, 0, 1, 1], [], []>} : vector<8x128xbf16>, vector<128x512xbf16>, vector<8x512xf32> -> vector<8x512xf32>
    %20 = arith.addf %15, %19 : vector<8x512xf32>
    %21 = vector.extract_strided_slice %14 {offsets = [0, 0], sizes = [8, 128], strides = [1, 1]} : vector<8x512xf32> to vector<8x128xf32>
    %22 = arith.negf %21 : vector<8x128xf32>
    %23 = math.exp %22 : vector<8x128xf32>
    %cst_17 = arith.constant 1.000000e+00 : f32
    %24 = vector.broadcast %cst_17 : f32 to vector<8x128xf32>
    %25 = arith.addf %24, %23 : vector<8x128xf32>
    %26 = arith.divf %24, %25 : vector<8x128xf32>
    %27 = vector.extract_strided_slice %14 {offsets = [0, 128], sizes = [8, 128], strides = [1, 1]} : vector<8x512xf32> to vector<8x128xf32>
    %28 = arith.negf %27 : vector<8x128xf32>
    %29 = math.exp %28 : vector<8x128xf32>
    %cst_18 = arith.constant 1.000000e+00 : f32
    %30 = vector.broadcast %cst_18 : f32 to vector<8x128xf32>
    %31 = arith.addf %30, %29 : vector<8x128xf32>
    %32 = arith.divf %30, %31 : vector<8x128xf32>
    %33 = vector.extract_strided_slice %14 {offsets = [0, 256], sizes = [8, 128], strides = [1, 1]} : vector<8x512xf32> to vector<8x128xf32>
    %34 = math.tanh %33 : vector<8x128xf32>
    %35 = vector.extract_strided_slice %14 {offsets = [0, 384], sizes = [8, 128], strides = [1, 1]} : vector<8x512xf32> to vector<8x128xf32>
    %36 = arith.negf %35 : vector<8x128xf32>
    %37 = math.exp %36 : vector<8x128xf32>
    %cst_19 = arith.constant 1.000000e+00 : f32
    %38 = vector.broadcast %cst_19 : f32 to vector<8x128xf32>
    %39 = arith.addf %38, %37 : vector<8x128xf32>
    %40 = arith.divf %38, %39 : vector<8x128xf32>
    %41 = arith.mulf %32, %8 : vector<8x128xf32>
    %42 = arith.mulf %26, %34 : vector<8x128xf32>
    %43 = arith.addf %41, %42 : vector<8x128xf32>
    %44 = math.tanh %43 : vector<8x128xf32>
    %45 = arith.mulf %40, %44 : vector<8x128xf32>
    %46 = vector.extract_strided_slice %20 {offsets = [0, 0], sizes = [8, 128], strides = [1, 1]} : vector<8x512xf32> to vector<8x128xf32>
    %47 = arith.negf %46 : vector<8x128xf32>
    %48 = math.exp %47 : vector<8x128xf32>
    %cst_20 = arith.constant 1.000000e+00 : f32
    %49 = vector.broadcast %cst_20 : f32 to vector<8x128xf32>
    %50 = arith.addf %49, %48 : vector<8x128xf32>
    %51 = arith.divf %49, %50 : vector<8x128xf32>
    %52 = vector.extract_strided_slice %20 {offsets = [0, 128], sizes = [8, 128], strides = [1, 1]} : vector<8x512xf32> to vector<8x128xf32>
    %53 = arith.negf %52 : vector<8x128xf32>
    %54 = math.exp %53 : vector<8x128xf32>
    %cst_21 = arith.constant 1.000000e+00 : f32
    %55 = vector.broadcast %cst_21 : f32 to vector<8x128xf32>
    %56 = arith.addf %55, %54 : vector<8x128xf32>
    %57 = arith.divf %55, %56 : vector<8x128xf32>
    %58 = vector.extract_strided_slice %20 {offsets = [0, 256], sizes = [8, 128], strides = [1, 1]} : vector<8x512xf32> to vector<8x128xf32>
    %59 = math.tanh %58 : vector<8x128xf32>
    %60 = vector.extract_strided_slice %20 {offsets = [0, 384], sizes = [8, 128], strides = [1, 1]} : vector<8x512xf32> to vector<8x128xf32>
    %61 = arith.negf %60 : vector<8x128xf32>
    %62 = math.exp %61 : vector<8x128xf32>
    %cst_22 = arith.constant 1.000000e+00 : f32
    %63 = vector.broadcast %cst_22 : f32 to vector<8x128xf32>
    %64 = arith.addf %63, %62 : vector<8x128xf32>
    %65 = arith.divf %63, %64 : vector<8x128xf32>
    %66 = arith.mulf %57, %8 : vector<8x128xf32>
    %67 = arith.mulf %51, %59 : vector<8x128xf32>
    %68 = arith.addf %66, %67 : vector<8x128xf32>
    %69 = math.tanh %68 : vector<8x128xf32>
    %70 = arith.mulf %65, %69 : vector<8x128xf32>
    %c0_23 = arith.constant 0 : index
    %c0_24 = arith.constant 0 : index
    %71 = vector.load %arg7[%c0_23, %c0_24] : memref<64x256xf32, #tpu.memory_space<vmem>>, vector<8x128xf32>
    tpu.vector_store %arg7[%c0_23, %c0_24], %45 {strides = array<i32>} : memref<64x256xf32, #tpu.memory_space<vmem>>, vector<8x128xf32>,
    %c56_25 = arith.constant 56 : index
    %c128 = arith.constant 128 : index
    %72 = vector.load %arg7[%c56_25, %c128] : memref<64x256xf32, #tpu.memory_space<vmem>>, vector<8x128xf32>
    tpu.vector_store %arg7[%c56_25, %c128], %70 {strides = array<i32>} : memref<64x256xf32, #tpu.memory_space<vmem>>, vector<8x128xf32>,
    %c8 = arith.constant 8 : index
    %c0_26 = arith.constant 0 : index
    %73 = vector.load %arg6[%c8, %c0_26] : memref<64x1024xf32, #tpu.memory_space<vmem>>, vector<8x512xf32>
    %74 = arith.truncf %45 : vector<8x128xf32> to vector<8x128xbf16>
    %c0_27 = arith.constant 0 : index
    %c0_28 = arith.constant 0 : index
    %c0_29 = arith.constant 0 : index
    %75 = vector.load %arg2[%c0_27, %c0_28, %c0_29] : memref<3x128x512xbf16, #tpu.memory_space<vmem>>, vector<1x128x512xbf16>
    %76 = vector.shape_cast %75 : vector<1x128x512xbf16> to vector<128x512xbf16>
    %cst_30 = arith.constant dense<0.000000e+00> : vector<8x512xf32>
    %77 = tpu.matmul %74, %76, %cst_30 {dimension_numbers = #tpu.dot_dimension_numbers<[1], [0], [0], [1], [0, 0, 1, 1], [], []>} : vector<8x128xbf16>, vector<128x512xbf16>, vector<8x512xf32> -> vector<8x512xf32>
    %78 = arith.addf %73, %77 : vector<8x512xf32>
    %c48 = arith.constant 48 : index
    %c512_31 = arith.constant 512 : index
    %79 = vector.load %arg6[%c48, %c512_31] : memref<64x1024xf32, #tpu.memory_space<vmem>>, vector<8x512xf32>
    %80 = arith.truncf %70 : vector<8x128xf32> to vector<8x128xbf16>
    %c1_32 = arith.constant 1 : index
    %c0_33 = arith.constant 0 : index
    %c0_34 = arith.constant 0 : index
    %81 = vector.load %arg2[%c1_32, %c0_33, %c0_34] : memref<3x128x512xbf16, #tpu.memory_space<vmem>>, vector<1x128x512xbf16>
    %82 = vector.shape_cast %81 : vector<1x128x512xbf16> to vector<128x512xbf16>
    %cst_35 = arith.constant dense<0.000000e+00> : vector<8x512xf32>
    %83 = tpu.matmul %80, %82, %cst_35 {dimension_numbers = #tpu.dot_dimension_numbers<[1], [0], [0], [1], [0, 0, 1, 1], [], []>} : vector<8x128xbf16>, vector<128x512xbf16>, vector<8x512xf32> -> vector<8x512xf32>
    %84 = arith.addf %79, %83 : vector<8x512xf32>
    %85 = vector.extract_strided_slice %78 {offsets = [0, 0], sizes = [8, 128], strides = [1, 1]} : vector<8x512xf32> to vector<8x128xf32>
    %86 = arith.negf %85 : vector<8x128xf32>
    %87 = math.exp %86 : vector<8x128xf32>
    %cst_36 = arith.constant 1.000000e+00 : f32
    %88 = vector.broadcast %cst_36 : f32 to vector<8x128xf32>
    %89 = arith.addf %88, %87 : vector<8x128xf32>
    %90 = arith.divf %88, %89 : vector<8x128xf32>
    %91 = vector.extract_strided_slice %78 {offsets = [0, 128], sizes = [8, 128], strides = [1, 1]} : vector<8x512xf32> to vector<8x128xf32>
    %92 = arith.negf %91 : vector<8x128xf32>
    %93 = math.exp %92 : vector<8x128xf32>
    %cst_37 = arith.constant 1.000000e+00 : f32
    %94 = vector.broadcast %cst_37 : f32 to vector<8x128xf32>
    %95 = arith.addf %94, %93 : vector<8x128xf32>
    %96 = arith.divf %94, %95 : vector<8x128xf32>
    %97 = vector.extract_strided_slice %78 {offsets = [0, 256], sizes = [8, 128], strides = [1, 1]} : vector<8x512xf32> to vector<8x128xf32>
    %98 = math.tanh %97 : vector<8x128xf32>
    %99 = vector.extract_strided_slice %78 {offsets = [0, 384], sizes = [8, 128], strides = [1, 1]} : vector<8x512xf32> to vector<8x128xf32>
    %100 = arith.negf %99 : vector<8x128xf32>
    %101 = math.exp %100 : vector<8x128xf32>
    %cst_38 = arith.constant 1.000000e+00 : f32
    %102 = vector.broadcast %cst_38 : f32 to vector<8x128xf32>
    %103 = arith.addf %102, %101 : vector<8x128xf32>
    %104 = arith.divf %102, %103 : vector<8x128xf32>
    %105 = arith.mulf %96, %43 : vector<8x128xf32>
    %106 = arith.mulf %90, %98 : vector<8x128xf32>
    %107 = arith.addf %105, %106 : vector<8x128xf32>
    %108 = math.tanh %107 : vector<8x128xf32>
    %109 = arith.mulf %104, %108 : vector<8x128xf32>
    %110 = vector.extract_strided_slice %84 {offsets = [0, 0], sizes = [8, 128], strides = [1, 1]} : vector<8x512xf32> to vector<8x128xf32>
    %111 = arith.negf %110 : vector<8x128xf32>
    %112 = math.exp %111 : vector<8x128xf32>
    %cst_39 = arith.constant 1.000000e+00 : f32
    %113 = vector.broadcast %cst_39 : f32 to vector<8x128xf32>
    %114 = arith.addf %113, %112 : vector<8x128xf32>
    %115 = arith.divf %113, %114 : vector<8x128xf32>
    %116 = vector.extract_strided_slice %84 {offsets = [0, 128], sizes = [8, 128], strides = [1, 1]} : vector<8x512xf32> to vector<8x128xf32>
    %117 = arith.negf %116 : vector<8x128xf32>
    %118 = math.exp %117 : vector<8x128xf32>
    %cst_40 = arith.constant 1.000000e+00 : f32
    %119 = vector.broadcast %cst_40 : f32 to vector<8x128xf32>
    %120 = arith.addf %119, %118 : vector<8x128xf32>
    %121 = arith.divf %119, %120 : vector<8x128xf32>
    %122 = vector.extract_strided_slice %84 {offsets = [0, 256], sizes = [8, 128], strides = [1, 1]} : vector<8x512xf32> to vector<8x128xf32>
    %123 = math.tanh %122 : vector<8x128xf32>
    %124 = vector.extract_strided_slice %84 {offsets = [0, 384], sizes = [8, 128], strides = [1, 1]} : vector<8x512xf32> to vector<8x128xf32>
    %125 = arith.negf %124 : vector<8x128xf32>
    %126 = math.exp %125 : vector<8x128xf32>
    %cst_41 = arith.constant 1.000000e+00 : f32
    %127 = vector.broadcast %cst_41 : f32 to vector<8x128xf32>
    %128 = arith.addf %127, %126 : vector<8x128xf32>
    %129 = arith.divf %127, %128 : vector<8x128xf32>
    %130 = arith.mulf %121, %68 : vector<8x128xf32>
    %131 = arith.mulf %115, %123 : vector<8x128xf32>
    %132 = arith.addf %130, %131 : vector<8x128xf32>
    %133 = math.tanh %132 : vector<8x128xf32>
    %134 = arith.mulf %129, %133 : vector<8x128xf32>
    %c8_42 = arith.constant 8 : index
    %c0_43 = arith.constant 0 : index
    %135 = vector.load %arg7[%c8_42, %c0_43] : memref<64x256xf32, #tpu.memory_space<vmem>>, vector<8x128xf32>
    tpu.vector_store %arg7[%c8_42, %c0_43], %109 {strides = array<i32>} : memref<64x256xf32, #tpu.memory_space<vmem>>, vector<8x128xf32>,
    %c48_44 = arith.constant 48 : index
    %c128_45 = arith.constant 128 : index
    %136 = vector.load %arg7[%c48_44, %c128_45] : memref<64x256xf32, #tpu.memory_space<vmem>>, vector<8x128xf32>
    tpu.vector_store %arg7[%c48_44, %c128_45], %134 {strides = array<i32>} : memref<64x256xf32, #tpu.memory_space<vmem>>, vector<8x128xf32>,
    %c16 = arith.constant 16 : index
    %c0_46 = arith.constant 0 : index
    %137 = vector.load %arg6[%c16, %c0_46] : memref<64x1024xf32, #tpu.memory_space<vmem>>, vector<8x512xf32>
    %138 = arith.truncf %109 : vector<8x128xf32> to vector<8x128xbf16>
    %c0_47 = arith.constant 0 : index
    %c0_48 = arith.constant 0 : index
    %c0_49 = arith.constant 0 : index
    %139 = vector.load %arg2[%c0_47, %c0_48, %c0_49] : memref<3x128x512xbf16, #tpu.memory_space<vmem>>, vector<1x128x512xbf16>
    %140 = vector.shape_cast %139 : vector<1x128x512xbf16> to vector<128x512xbf16>
    %cst_50 = arith.constant dense<0.000000e+00> : vector<8x512xf32>
    %141 = tpu.matmul %138, %140, %cst_50 {dimension_numbers = #tpu.dot_dimension_numbers<[1], [0], [0], [1], [0, 0, 1, 1], [], []>} : vector<8x128xbf16>, vector<128x512xbf16>, vector<8x512xf32> -> vector<8x512xf32>
    %142 = arith.addf %137, %141 : vector<8x512xf32>
    %c40 = arith.constant 40 : index
    %c512_51 = arith.constant 512 : index
    %143 = vector.load %arg6[%c40, %c512_51] : memref<64x1024xf32, #tpu.memory_space<vmem>>, vector<8x512xf32>
    %144 = arith.truncf %134 : vector<8x128xf32> to vector<8x128xbf16>
    %c1_52 = arith.constant 1 : index
    %c0_53 = arith.constant 0 : index
    %c0_54 = arith.constant 0 : index
    %145 = vector.load %arg2[%c1_52, %c0_53, %c0_54] : memref<3x128x512xbf16, #tpu.memory_space<vmem>>, vector<1x128x512xbf16>
    %146 = vector.shape_cast %145 : vector<1x128x512xbf16> to vector<128x512xbf16>
    %cst_55 = arith.constant dense<0.000000e+00> : vector<8x512xf32>
    %147 = tpu.matmul %144, %146, %cst_55 {dimension_numbers = #tpu.dot_dimension_numbers<[1], [0], [0], [1], [0, 0, 1, 1], [], []>} : vector<8x128xbf16>, vector<128x512xbf16>, vector<8x512xf32> -> vector<8x512xf32>
    %148 = arith.addf %143, %147 : vector<8x512xf32>
    %149 = vector.extract_strided_slice %142 {offsets = [0, 0], sizes = [8, 128], strides = [1, 1]} : vector<8x512xf32> to vector<8x128xf32>
    %150 = arith.negf %149 : vector<8x128xf32>
    %151 = math.exp %150 : vector<8x128xf32>
    %cst_56 = arith.constant 1.000000e+00 : f32
    %152 = vector.broadcast %cst_56 : f32 to vector<8x128xf32>
    %153 = arith.addf %152, %151 : vector<8x128xf32>
    %154 = arith.divf %152, %153 : vector<8x128xf32>
    %155 = vector.extract_strided_slice %142 {offsets = [0, 128], sizes = [8, 128], strides = [1, 1]} : vector<8x512xf32> to vector<8x128xf32>
    %156 = arith.negf %155 : vector<8x128xf32>
    %157 = math.exp %156 : vector<8x128xf32>
    %cst_57 = arith.constant 1.000000e+00 : f32
    %158 = vector.broadcast %cst_57 : f32 to vector<8x128xf32>
    %159 = arith.addf %158, %157 : vector<8x128xf32>
    %160 = arith.divf %158, %159 : vector<8x128xf32>
    %161 = vector.extract_strided_slice %142 {offsets = [0, 256], sizes = [8, 128], strides = [1, 1]} : vector<8x512xf32> to vector<8x128xf32>
    %162 = math.tanh %161 : vector<8x128xf32>
    %163 = vector.extract_strided_slice %142 {offsets = [0, 384], sizes = [8, 128], strides = [1, 1]} : vector<8x512xf32> to vector<8x128xf32>
    %164 = arith.negf %163 : vector<8x128xf32>
    %165 = math.exp %164 : vector<8x128xf32>
    %cst_58 = arith.constant 1.000000e+00 : f32
    %166 = vector.broadcast %cst_58 : f32 to vector<8x128xf32>
    %167 = arith.addf %166, %165 : vector<8x128xf32>
    %168 = arith.divf %166, %167 : vector<8x128xf32>
    %169 = arith.mulf %160, %107 : vector<8x128xf32>
    %170 = arith.mulf %154, %162 : vector<8x128xf32>
    %171 = arith.addf %169, %170 : vector<8x128xf32>
    %172 = math.tanh %171 : vector<8x128xf32>
    %173 = arith.mulf %168, %172 : vector<8x128xf32>
    %174 = vector.extract_strided_slice %148 {offsets = [0, 0], sizes = [8, 128], strides = [1, 1]} : vector<8x512xf32> to vector<8x128xf32>
    %175 = arith.negf %174 : vector<8x128xf32>
    %176 = math.exp %175 : vector<8x128xf32>
    %cst_59 = arith.constant 1.000000e+00 : f32
    %177 = vector.broadcast %cst_59 : f32 to vector<8x128xf32>
    %178 = arith.addf %177, %176 : vector<8x128xf32>
    %179 = arith.divf %177, %178 : vector<8x128xf32>
    %180 = vector.extract_strided_slice %148 {offsets = [0, 128], sizes = [8, 128], strides = [1, 1]} : vector<8x512xf32> to vector<8x128xf32>
    %181 = arith.negf %180 : vector<8x128xf32>
    %182 = math.exp %181 : vector<8x128xf32>
    %cst_60 = arith.constant 1.000000e+00 : f32
    %183 = vector.broadcast %cst_60 : f32 to vector<8x128xf32>
    %184 = arith.addf %183, %182 : vector<8x128xf32>
    %185 = arith.divf %183, %184 : vector<8x128xf32>
    %186 = vector.extract_strided_slice %148 {offsets = [0, 256], sizes = [8, 128], strides = [1, 1]} : vector<8x512xf32> to vector<8x128xf32>
    %187 = math.tanh %186 : vector<8x128xf32>
    %188 = vector.extract_strided_slice %148 {offsets = [0, 384], sizes = [8, 128], strides = [1, 1]} : vector<8x512xf32> to vector<8x128xf32>
    %189 = arith.negf %188 : vector<8x128xf32>
    %190 = math.exp %189 : vector<8x128xf32>
    %cst_61 = arith.constant 1.000000e+00 : f32
    %191 = vector.broadcast %cst_61 : f32 to vector<8x128xf32>
    %192 = arith.addf %191, %190 : vector<8x128xf32>
    %193 = arith.divf %191, %192 : vector<8x128xf32>
    %194 = arith.mulf %185, %132 : vector<8x128xf32>
    %195 = arith.mulf %179, %187 : vector<8x128xf32>
    %196 = arith.addf %194, %195 : vector<8x128xf32>
    %197 = math.tanh %196 : vector<8x128xf32>
    %198 = arith.mulf %193, %197 : vector<8x128xf32>
    %c16_62 = arith.constant 16 : index
    %c0_63 = arith.constant 0 : index
    %199 = vector.load %arg7[%c16_62, %c0_63] : memref<64x256xf32, #tpu.memory_space<vmem>>, vector<8x128xf32>
    tpu.vector_store %arg7[%c16_62, %c0_63], %173 {strides = array<i32>} : memref<64x256xf32, #tpu.memory_space<vmem>>, vector<8x128xf32>,
    %c40_64 = arith.constant 40 : index
    %c128_65 = arith.constant 128 : index
    %200 = vector.load %arg7[%c40_64, %c128_65] : memref<64x256xf32, #tpu.memory_space<vmem>>, vector<8x128xf32>
    tpu.vector_store %arg7[%c40_64, %c128_65], %198 {strides = array<i32>} : memref<64x256xf32, #tpu.memory_space<vmem>>, vector<8x128xf32>,
    %c24 = arith.constant 24 : index
    %c0_66 = arith.constant 0 : index
    %201 = vector.load %arg6[%c24, %c0_66] : memref<64x1024xf32, #tpu.memory_space<vmem>>, vector<8x512xf32>
    %202 = arith.truncf %173 : vector<8x128xf32> to vector<8x128xbf16>
    %c0_67 = arith.constant 0 : index
    %c0_68 = arith.constant 0 : index
    %c0_69 = arith.constant 0 : index
    %203 = vector.load %arg2[%c0_67, %c0_68, %c0_69] : memref<3x128x512xbf16, #tpu.memory_space<vmem>>, vector<1x128x512xbf16>
    %204 = vector.shape_cast %203 : vector<1x128x512xbf16> to vector<128x512xbf16>
    %cst_70 = arith.constant dense<0.000000e+00> : vector<8x512xf32>
    %205 = tpu.matmul %202, %204, %cst_70 {dimension_numbers = #tpu.dot_dimension_numbers<[1], [0], [0], [1], [0, 0, 1, 1], [], []>} : vector<8x128xbf16>, vector<128x512xbf16>, vector<8x512xf32> -> vector<8x512xf32>
    %206 = arith.addf %201, %205 : vector<8x512xf32>
    %c32 = arith.constant 32 : index
    %c512_71 = arith.constant 512 : index
    %207 = vector.load %arg6[%c32, %c512_71] : memref<64x1024xf32, #tpu.memory_space<vmem>>, vector<8x512xf32>
    %208 = arith.truncf %198 : vector<8x128xf32> to vector<8x128xbf16>
    %c1_72 = arith.constant 1 : index
    %c0_73 = arith.constant 0 : index
    %c0_74 = arith.constant 0 : index
    %209 = vector.load %arg2[%c1_72, %c0_73, %c0_74] : memref<3x128x512xbf16, #tpu.memory_space<vmem>>, vector<1x128x512xbf16>
    %210 = vector.shape_cast %209 : vector<1x128x512xbf16> to vector<128x512xbf16>
    %cst_75 = arith.constant dense<0.000000e+00> : vector<8x512xf32>
    %211 = tpu.matmul %208, %210, %cst_75 {dimension_numbers = #tpu.dot_dimension_numbers<[1], [0], [0], [1], [0, 0, 1, 1], [], []>} : vector<8x128xbf16>, vector<128x512xbf16>, vector<8x512xf32> -> vector<8x512xf32>
    %212 = arith.addf %207, %211 : vector<8x512xf32>
    %213 = vector.extract_strided_slice %206 {offsets = [0, 0], sizes = [8, 128], strides = [1, 1]} : vector<8x512xf32> to vector<8x128xf32>
    %214 = arith.negf %213 : vector<8x128xf32>
    %215 = math.exp %214 : vector<8x128xf32>
    %cst_76 = arith.constant 1.000000e+00 : f32
    %216 = vector.broadcast %cst_76 : f32 to vector<8x128xf32>
    %217 = arith.addf %216, %215 : vector<8x128xf32>
    %218 = arith.divf %216, %217 : vector<8x128xf32>
    %219 = vector.extract_strided_slice %206 {offsets = [0, 128], sizes = [8, 128], strides = [1, 1]} : vector<8x512xf32> to vector<8x128xf32>
    %220 = arith.negf %219 : vector<8x128xf32>
    %221 = math.exp %220 : vector<8x128xf32>
    %cst_77 = arith.constant 1.000000e+00 : f32
    %222 = vector.broadcast %cst_77 : f32 to vector<8x128xf32>
    %223 = arith.addf %222, %221 : vector<8x128xf32>
    %224 = arith.divf %222, %223 : vector<8x128xf32>
    %225 = vector.extract_strided_slice %206 {offsets = [0, 256], sizes = [8, 128], strides = [1, 1]} : vector<8x512xf32> to vector<8x128xf32>
    %226 = math.tanh %225 : vector<8x128xf32>
    %227 = vector.extract_strided_slice %206 {offsets = [0, 384], sizes = [8, 128], strides = [1, 1]} : vector<8x512xf32> to vector<8x128xf32>
    %228 = arith.negf %227 : vector<8x128xf32>
    %229 = math.exp %228 : vector<8x128xf32>
    %cst_78 = arith.constant 1.000000e+00 : f32
    %230 = vector.broadcast %cst_78 : f32 to vector<8x128xf32>
    %231 = arith.addf %230, %229 : vector<8x128xf32>
    %232 = arith.divf %230, %231 : vector<8x128xf32>
    %233 = arith.mulf %224, %171 : vector<8x128xf32>
    %234 = arith.mulf %218, %226 : vector<8x128xf32>
    %235 = arith.addf %233, %234 : vector<8x128xf32>
    %236 = math.tanh %235 : vector<8x128xf32>
    %237 = arith.mulf %232, %236 : vector<8x128xf32>
    %238 = vector.extract_strided_slice %212 {offsets = [0, 0], sizes = [8, 128], strides = [1, 1]} : vector<8x512xf32> to vector<8x128xf32>
    %239 = arith.negf %238 : vector<8x128xf32>
    %240 = math.exp %239 : vector<8x128xf32>
    %cst_79 = arith.constant 1.000000e+00 : f32
    %241 = vector.broadcast %cst_79 : f32 to vector<8x128xf32>
    %242 = arith.addf %241, %240 : vector<8x128xf32>
    %243 = arith.divf %241, %242 : vector<8x128xf32>
    %244 = vector.extract_strided_slice %212 {offsets = [0, 128], sizes = [8, 128], strides = [1, 1]} : vector<8x512xf32> to vector<8x128xf32>
    %245 = arith.negf %244 : vector<8x128xf32>
    %246 = math.exp %245 : vector<8x128xf32>
    %cst_80 = arith.constant 1.000000e+00 : f32
    %247 = vector.broadcast %cst_80 : f32 to vector<8x128xf32>
    %248 = arith.addf %247, %246 : vector<8x128xf32>
    %249 = arith.divf %247, %248 : vector<8x128xf32>
    %250 = vector.extract_strided_slice %212 {offsets = [0, 256], sizes = [8, 128], strides = [1, 1]} : vector<8x512xf32> to vector<8x128xf32>
    %251 = math.tanh %250 : vector<8x128xf32>
    %252 = vector.extract_strided_slice %212 {offsets = [0, 384], sizes = [8, 128], strides = [1, 1]} : vector<8x512xf32> to vector<8x128xf32>
    %253 = arith.negf %252 : vector<8x128xf32>
    %254 = math.exp %253 : vector<8x128xf32>
    %cst_81 = arith.constant 1.000000e+00 : f32
    %255 = vector.broadcast %cst_81 : f32 to vector<8x128xf32>
    %256 = arith.addf %255, %254 : vector<8x128xf32>
    %257 = arith.divf %255, %256 : vector<8x128xf32>
    %258 = arith.mulf %249, %196 : vector<8x128xf32>
    %259 = arith.mulf %243, %251 : vector<8x128xf32>
    %260 = arith.addf %258, %259 : vector<8x128xf32>
    %261 = math.tanh %260 : vector<8x128xf32>
    %262 = arith.mulf %257, %261 : vector<8x128xf32>
    %c24_82 = arith.constant 24 : index
    %c0_83 = arith.constant 0 : index
    %263 = vector.load %arg7[%c24_82, %c0_83] : memref<64x256xf32, #tpu.memory_space<vmem>>, vector<8x128xf32>
    tpu.vector_store %arg7[%c24_82, %c0_83], %237 {strides = array<i32>} : memref<64x256xf32, #tpu.memory_space<vmem>>, vector<8x128xf32>,
    %c32_84 = arith.constant 32 : index
    %c128_85 = arith.constant 128 : index
    %264 = vector.load %arg7[%c32_84, %c128_85] : memref<64x256xf32, #tpu.memory_space<vmem>>, vector<8x128xf32>
    tpu.vector_store %arg7[%c32_84, %c128_85], %262 {strides = array<i32>} : memref<64x256xf32, #tpu.memory_space<vmem>>, vector<8x128xf32>,
    %c32_86 = arith.constant 32 : index
    %c0_87 = arith.constant 0 : index
    %265 = vector.load %arg6[%c32_86, %c0_87] : memref<64x1024xf32, #tpu.memory_space<vmem>>, vector<8x512xf32>
    %266 = arith.truncf %237 : vector<8x128xf32> to vector<8x128xbf16>
    %c0_88 = arith.constant 0 : index
    %c0_89 = arith.constant 0 : index
    %c0_90 = arith.constant 0 : index
    %267 = vector.load %arg2[%c0_88, %c0_89, %c0_90] : memref<3x128x512xbf16, #tpu.memory_space<vmem>>, vector<1x128x512xbf16>
    %268 = vector.shape_cast %267 : vector<1x128x512xbf16> to vector<128x512xbf16>
    %cst_91 = arith.constant dense<0.000000e+00> : vector<8x512xf32>
    %269 = tpu.matmul %266, %268, %cst_91 {dimension_numbers = #tpu.dot_dimension_numbers<[1], [0], [0], [1], [0, 0, 1, 1], [], []>} : vector<8x128xbf16>, vector<128x512xbf16>, vector<8x512xf32> -> vector<8x512xf32>
    %270 = arith.addf %265, %269 : vector<8x512xf32>
    %c24_92 = arith.constant 24 : index
    %c512_93 = arith.constant 512 : index
    %271 = vector.load %arg6[%c24_92, %c512_93] : memref<64x1024xf32, #tpu.memory_space<vmem>>, vector<8x512xf32>
    %272 = arith.truncf %262 : vector<8x128xf32> to vector<8x128xbf16>
    %c1_94 = arith.constant 1 : index
    %c0_95 = arith.constant 0 : index
    %c0_96 = arith.constant 0 : index
    %273 = vector.load %arg2[%c1_94, %c0_95, %c0_96] : memref<3x128x512xbf16, #tpu.memory_space<vmem>>, vector<1x128x512xbf16>
    %274 = vector.shape_cast %273 : vector<1x128x512xbf16> to vector<128x512xbf16>
    %cst_97 = arith.constant dense<0.000000e+00> : vector<8x512xf32>
    %275 = tpu.matmul %272, %274, %cst_97 {dimension_numbers = #tpu.dot_dimension_numbers<[1], [0], [0], [1], [0, 0, 1, 1], [], []>} : vector<8x128xbf16>, vector<128x512xbf16>, vector<8x512xf32> -> vector<8x512xf32>
    %276 = arith.addf %271, %275 : vector<8x512xf32>
    %277 = vector.extract_strided_slice %270 {offsets = [0, 0], sizes = [8, 128], strides = [1, 1]} : vector<8x512xf32> to vector<8x128xf32>
    %278 = arith.negf %277 : vector<8x128xf32>
    %279 = math.exp %278 : vector<8x128xf32>
    %cst_98 = arith.constant 1.000000e+00 : f32
    %280 = vector.broadcast %cst_98 : f32 to vector<8x128xf32>
    %281 = arith.addf %280, %279 : vector<8x128xf32>
    %282 = arith.divf %280, %281 : vector<8x128xf32>
    %283 = vector.extract_strided_slice %270 {offsets = [0, 128], sizes = [8, 128], strides = [1, 1]} : vector<8x512xf32> to vector<8x128xf32>
    %284 = arith.negf %283 : vector<8x128xf32>
    %285 = math.exp %284 : vector<8x128xf32>
    %cst_99 = arith.constant 1.000000e+00 : f32
    %286 = vector.broadcast %cst_99 : f32 to vector<8x128xf32>
    %287 = arith.addf %286, %285 : vector<8x128xf32>
    %288 = arith.divf %286, %287 : vector<8x128xf32>
    %289 = vector.extract_strided_slice %270 {offsets = [0, 256], sizes = [8, 128], strides = [1, 1]} : vector<8x512xf32> to vector<8x128xf32>
    %290 = math.tanh %289 : vector<8x128xf32>
    %291 = vector.extract_strided_slice %270 {offsets = [0, 384], sizes = [8, 128], strides = [1, 1]} : vector<8x512xf32> to vector<8x128xf32>
    %292 = arith.negf %291 : vector<8x128xf32>
    %293 = math.exp %292 : vector<8x128xf32>
    %cst_100 = arith.constant 1.000000e+00 : f32
    %294 = vector.broadcast %cst_100 : f32 to vector<8x128xf32>
    %295 = arith.addf %294, %293 : vector<8x128xf32>
    %296 = arith.divf %294, %295 : vector<8x128xf32>
    %297 = arith.mulf %288, %235 : vector<8x128xf32>
    %298 = arith.mulf %282, %290 : vector<8x128xf32>
    %299 = arith.addf %297, %298 : vector<8x128xf32>
    %300 = math.tanh %299 : vector<8x128xf32>
    %301 = arith.mulf %296, %300 : vector<8x128xf32>
    %302 = vector.extract_strided_slice %276 {offsets = [0, 0], sizes = [8, 128], strides = [1, 1]} : vector<8x512xf32> to vector<8x128xf32>
    %303 = arith.negf %302 : vector<8x128xf32>
    %304 = math.exp %303 : vector<8x128xf32>
    %cst_101 = arith.constant 1.000000e+00 : f32
    %305 = vector.broadcast %cst_101 : f32 to vector<8x128xf32>
    %306 = arith.addf %305, %304 : vector<8x128xf32>
    %307 = arith.divf %305, %306 : vector<8x128xf32>
    %308 = vector.extract_strided_slice %276 {offsets = [0, 128], sizes = [8, 128], strides = [1, 1]} : vector<8x512xf32> to vector<8x128xf32>
    %309 = arith.negf %308 : vector<8x128xf32>
    %310 = math.exp %309 : vector<8x128xf32>
    %cst_102 = arith.constant 1.000000e+00 : f32
    %311 = vector.broadcast %cst_102 : f32 to vector<8x128xf32>
    %312 = arith.addf %311, %310 : vector<8x128xf32>
    %313 = arith.divf %311, %312 : vector<8x128xf32>
    %314 = vector.extract_strided_slice %276 {offsets = [0, 256], sizes = [8, 128], strides = [1, 1]} : vector<8x512xf32> to vector<8x128xf32>
    %315 = math.tanh %314 : vector<8x128xf32>
    %316 = vector.extract_strided_slice %276 {offsets = [0, 384], sizes = [8, 128], strides = [1, 1]} : vector<8x512xf32> to vector<8x128xf32>
    %317 = arith.negf %316 : vector<8x128xf32>
    %318 = math.exp %317 : vector<8x128xf32>
    %cst_103 = arith.constant 1.000000e+00 : f32
    %319 = vector.broadcast %cst_103 : f32 to vector<8x128xf32>
    %320 = arith.addf %319, %318 : vector<8x128xf32>
    %321 = arith.divf %319, %320 : vector<8x128xf32>
    %322 = arith.mulf %313, %260 : vector<8x128xf32>
    %323 = arith.mulf %307, %315 : vector<8x128xf32>
    %324 = arith.addf %322, %323 : vector<8x128xf32>
    %325 = math.tanh %324 : vector<8x128xf32>
    %326 = arith.mulf %321, %325 : vector<8x128xf32>
    %c32_104 = arith.constant 32 : index
    %c0_105 = arith.constant 0 : index
    %327 = vector.load %arg7[%c32_104, %c0_105] : memref<64x256xf32, #tpu.memory_space<vmem>>, vector<8x128xf32>
    tpu.vector_store %arg7[%c32_104, %c0_105], %301 {strides = array<i32>} : memref<64x256xf32, #tpu.memory_space<vmem>>, vector<8x128xf32>,
    %c24_106 = arith.constant 24 : index
    %c128_107 = arith.constant 128 : index
    %328 = vector.load %arg7[%c24_106, %c128_107] : memref<64x256xf32, #tpu.memory_space<vmem>>, vector<8x128xf32>
    tpu.vector_store %arg7[%c24_106, %c128_107], %326 {strides = array<i32>} : memref<64x256xf32, #tpu.memory_space<vmem>>, vector<8x128xf32>,
    %c40_108 = arith.constant 40 : index
    %c0_109 = arith.constant 0 : index
    %329 = vector.load %arg6[%c40_108, %c0_109] : memref<64x1024xf32, #tpu.memory_space<vmem>>, vector<8x512xf32>
    %330 = arith.truncf %301 : vector<8x128xf32> to vector<8x128xbf16>
    %c0_110 = arith.constant 0 : index
    %c0_111 = arith.constant 0 : index
    %c0_112 = arith.constant 0 : index
    %331 = vector.load %arg2[%c0_110, %c0_111, %c0_112] : memref<3x128x512xbf16, #tpu.memory_space<vmem>>, vector<1x128x512xbf16>
    %332 = vector.shape_cast %331 : vector<1x128x512xbf16> to vector<128x512xbf16>
    %cst_113 = arith.constant dense<0.000000e+00> : vector<8x512xf32>
    %333 = tpu.matmul %330, %332, %cst_113 {dimension_numbers = #tpu.dot_dimension_numbers<[1], [0], [0], [1], [0, 0, 1, 1], [], []>} : vector<8x128xbf16>, vector<128x512xbf16>, vector<8x512xf32> -> vector<8x512xf32>
    %334 = arith.addf %329, %333 : vector<8x512xf32>
    %c16_114 = arith.constant 16 : index
    %c512_115 = arith.constant 512 : index
    %335 = vector.load %arg6[%c16_114, %c512_115] : memref<64x1024xf32, #tpu.memory_space<vmem>>, vector<8x512xf32>
    %336 = arith.truncf %326 : vector<8x128xf32> to vector<8x128xbf16>
    %c1_116 = arith.constant 1 : index
    %c0_117 = arith.constant 0 : index
    %c0_118 = arith.constant 0 : index
    %337 = vector.load %arg2[%c1_116, %c0_117, %c0_118] : memref<3x128x512xbf16, #tpu.memory_space<vmem>>, vector<1x128x512xbf16>
    %338 = vector.shape_cast %337 : vector<1x128x512xbf16> to vector<128x512xbf16>
    %cst_119 = arith.constant dense<0.000000e+00> : vector<8x512xf32>
    %339 = tpu.matmul %336, %338, %cst_119 {dimension_numbers = #tpu.dot_dimension_numbers<[1], [0], [0], [1], [0, 0, 1, 1], [], []>} : vector<8x128xbf16>, vector<128x512xbf16>, vector<8x512xf32> -> vector<8x512xf32>
    %340 = arith.addf %335, %339 : vector<8x512xf32>
    %341 = vector.extract_strided_slice %334 {offsets = [0, 0], sizes = [8, 128], strides = [1, 1]} : vector<8x512xf32> to vector<8x128xf32>
    %342 = arith.negf %341 : vector<8x128xf32>
    %343 = math.exp %342 : vector<8x128xf32>
    %cst_120 = arith.constant 1.000000e+00 : f32
    %344 = vector.broadcast %cst_120 : f32 to vector<8x128xf32>
    %345 = arith.addf %344, %343 : vector<8x128xf32>
    %346 = arith.divf %344, %345 : vector<8x128xf32>
    %347 = vector.extract_strided_slice %334 {offsets = [0, 128], sizes = [8, 128], strides = [1, 1]} : vector<8x512xf32> to vector<8x128xf32>
    %348 = arith.negf %347 : vector<8x128xf32>
    %349 = math.exp %348 : vector<8x128xf32>
    %cst_121 = arith.constant 1.000000e+00 : f32
    %350 = vector.broadcast %cst_121 : f32 to vector<8x128xf32>
    %351 = arith.addf %350, %349 : vector<8x128xf32>
    %352 = arith.divf %350, %351 : vector<8x128xf32>
    %353 = vector.extract_strided_slice %334 {offsets = [0, 256], sizes = [8, 128], strides = [1, 1]} : vector<8x512xf32> to vector<8x128xf32>
    %354 = math.tanh %353 : vector<8x128xf32>
    %355 = vector.extract_strided_slice %334 {offsets = [0, 384], sizes = [8, 128], strides = [1, 1]} : vector<8x512xf32> to vector<8x128xf32>
    %356 = arith.negf %355 : vector<8x128xf32>
    %357 = math.exp %356 : vector<8x128xf32>
    %cst_122 = arith.constant 1.000000e+00 : f32
    %358 = vector.broadcast %cst_122 : f32 to vector<8x128xf32>
    %359 = arith.addf %358, %357 : vector<8x128xf32>
    %360 = arith.divf %358, %359 : vector<8x128xf32>
    %361 = arith.mulf %352, %299 : vector<8x128xf32>
    %362 = arith.mulf %346, %354 : vector<8x128xf32>
    %363 = arith.addf %361, %362 : vector<8x128xf32>
    %364 = math.tanh %363 : vector<8x128xf32>
    %365 = arith.mulf %360, %364 : vector<8x128xf32>
    %366 = vector.extract_strided_slice %340 {offsets = [0, 0], sizes = [8, 128], strides = [1, 1]} : vector<8x512xf32> to vector<8x128xf32>
    %367 = arith.negf %366 : vector<8x128xf32>
    %368 = math.exp %367 : vector<8x128xf32>
    %cst_123 = arith.constant 1.000000e+00 : f32
    %369 = vector.broadcast %cst_123 : f32 to vector<8x128xf32>
    %370 = arith.addf %369, %368 : vector<8x128xf32>
    %371 = arith.divf %369, %370 : vector<8x128xf32>
    %372 = vector.extract_strided_slice %340 {offsets = [0, 128], sizes = [8, 128], strides = [1, 1]} : vector<8x512xf32> to vector<8x128xf32>
    %373 = arith.negf %372 : vector<8x128xf32>
    %374 = math.exp %373 : vector<8x128xf32>
    %cst_124 = arith.constant 1.000000e+00 : f32
    %375 = vector.broadcast %cst_124 : f32 to vector<8x128xf32>
    %376 = arith.addf %375, %374 : vector<8x128xf32>
    %377 = arith.divf %375, %376 : vector<8x128xf32>
    %378 = vector.extract_strided_slice %340 {offsets = [0, 256], sizes = [8, 128], strides = [1, 1]} : vector<8x512xf32> to vector<8x128xf32>
    %379 = math.tanh %378 : vector<8x128xf32>
    %380 = vector.extract_strided_slice %340 {offsets = [0, 384], sizes = [8, 128], strides = [1, 1]} : vector<8x512xf32> to vector<8x128xf32>
    %381 = arith.negf %380 : vector<8x128xf32>
    %382 = math.exp %381 : vector<8x128xf32>
    %cst_125 = arith.constant 1.000000e+00 : f32
    %383 = vector.broadcast %cst_125 : f32 to vector<8x128xf32>
    %384 = arith.addf %383, %382 : vector<8x128xf32>
    %385 = arith.divf %383, %384 : vector<8x128xf32>
    %386 = arith.mulf %377, %324 : vector<8x128xf32>
    %387 = arith.mulf %371, %379 : vector<8x128xf32>
    %388 = arith.addf %386, %387 : vector<8x128xf32>
    %389 = math.tanh %388 : vector<8x128xf32>
    %390 = arith.mulf %385, %389 : vector<8x128xf32>
    %c40_126 = arith.constant 40 : index
    %c0_127 = arith.constant 0 : index
    %391 = vector.load %arg7[%c40_126, %c0_127] : memref<64x256xf32, #tpu.memory_space<vmem>>, vector<8x128xf32>
    tpu.vector_store %arg7[%c40_126, %c0_127], %365 {strides = array<i32>} : memref<64x256xf32, #tpu.memory_space<vmem>>, vector<8x128xf32>,
    %c16_128 = arith.constant 16 : index
    %c128_129 = arith.constant 128 : index
    %392 = vector.load %arg7[%c16_128, %c128_129] : memref<64x256xf32, #tpu.memory_space<vmem>>, vector<8x128xf32>
    tpu.vector_store %arg7[%c16_128, %c128_129], %390 {strides = array<i32>} : memref<64x256xf32, #tpu.memory_space<vmem>>, vector<8x128xf32>,
    %c48_130 = arith.constant 48 : index
    %c0_131 = arith.constant 0 : index
    %393 = vector.load %arg6[%c48_130, %c0_131] : memref<64x1024xf32, #tpu.memory_space<vmem>>, vector<8x512xf32>
    %394 = arith.truncf %365 : vector<8x128xf32> to vector<8x128xbf16>
    %c0_132 = arith.constant 0 : index
    %c0_133 = arith.constant 0 : index
    %c0_134 = arith.constant 0 : index
    %395 = vector.load %arg2[%c0_132, %c0_133, %c0_134] : memref<3x128x512xbf16, #tpu.memory_space<vmem>>, vector<1x128x512xbf16>
    %396 = vector.shape_cast %395 : vector<1x128x512xbf16> to vector<128x512xbf16>
    %cst_135 = arith.constant dense<0.000000e+00> : vector<8x512xf32>
    %397 = tpu.matmul %394, %396, %cst_135 {dimension_numbers = #tpu.dot_dimension_numbers<[1], [0], [0], [1], [0, 0, 1, 1], [], []>} : vector<8x128xbf16>, vector<128x512xbf16>, vector<8x512xf32> -> vector<8x512xf32>
    %398 = arith.addf %393, %397 : vector<8x512xf32>
    %c8_136 = arith.constant 8 : index
    %c512_137 = arith.constant 512 : index
    %399 = vector.load %arg6[%c8_136, %c512_137] : memref<64x1024xf32, #tpu.memory_space<vmem>>, vector<8x512xf32>
    %400 = arith.truncf %390 : vector<8x128xf32> to vector<8x128xbf16>
    %c1_138 = arith.constant 1 : index
    %c0_139 = arith.constant 0 : index
    %c0_140 = arith.constant 0 : index
    %401 = vector.load %arg2[%c1_138, %c0_139, %c0_140] : memref<3x128x512xbf16, #tpu.memory_space<vmem>>, vector<1x128x512xbf16>
    %402 = vector.shape_cast %401 : vector<1x128x512xbf16> to vector<128x512xbf16>
    %cst_141 = arith.constant dense<0.000000e+00> : vector<8x512xf32>
    %403 = tpu.matmul %400, %402, %cst_141 {dimension_numbers = #tpu.dot_dimension_numbers<[1], [0], [0], [1], [0, 0, 1, 1], [], []>} : vector<8x128xbf16>, vector<128x512xbf16>, vector<8x512xf32> -> vector<8x512xf32>
    %404 = arith.addf %399, %403 : vector<8x512xf32>
    %405 = vector.extract_strided_slice %398 {offsets = [0, 0], sizes = [8, 128], strides = [1, 1]} : vector<8x512xf32> to vector<8x128xf32>
    %406 = arith.negf %405 : vector<8x128xf32>
    %407 = math.exp %406 : vector<8x128xf32>
    %cst_142 = arith.constant 1.000000e+00 : f32
    %408 = vector.broadcast %cst_142 : f32 to vector<8x128xf32>
    %409 = arith.addf %408, %407 : vector<8x128xf32>
    %410 = arith.divf %408, %409 : vector<8x128xf32>
    %411 = vector.extract_strided_slice %398 {offsets = [0, 128], sizes = [8, 128], strides = [1, 1]} : vector<8x512xf32> to vector<8x128xf32>
    %412 = arith.negf %411 : vector<8x128xf32>
    %413 = math.exp %412 : vector<8x128xf32>
    %cst_143 = arith.constant 1.000000e+00 : f32
    %414 = vector.broadcast %cst_143 : f32 to vector<8x128xf32>
    %415 = arith.addf %414, %413 : vector<8x128xf32>
    %416 = arith.divf %414, %415 : vector<8x128xf32>
    %417 = vector.extract_strided_slice %398 {offsets = [0, 256], sizes = [8, 128], strides = [1, 1]} : vector<8x512xf32> to vector<8x128xf32>
    %418 = math.tanh %417 : vector<8x128xf32>
    %419 = vector.extract_strided_slice %398 {offsets = [0, 384], sizes = [8, 128], strides = [1, 1]} : vector<8x512xf32> to vector<8x128xf32>
    %420 = arith.negf %419 : vector<8x128xf32>
    %421 = math.exp %420 : vector<8x128xf32>
    %cst_144 = arith.constant 1.000000e+00 : f32
    %422 = vector.broadcast %cst_144 : f32 to vector<8x128xf32>
    %423 = arith.addf %422, %421 : vector<8x128xf32>
    %424 = arith.divf %422, %423 : vector<8x128xf32>
    %425 = arith.mulf %416, %363 : vector<8x128xf32>
    %426 = arith.mulf %410, %418 : vector<8x128xf32>
    %427 = arith.addf %425, %426 : vector<8x128xf32>
    %428 = math.tanh %427 : vector<8x128xf32>
    %429 = arith.mulf %424, %428 : vector<8x128xf32>
    %430 = vector.extract_strided_slice %404 {offsets = [0, 0], sizes = [8, 128], strides = [1, 1]} : vector<8x512xf32> to vector<8x128xf32>
    %431 = arith.negf %430 : vector<8x128xf32>
    %432 = math.exp %431 : vector<8x128xf32>
    %cst_145 = arith.constant 1.000000e+00 : f32
    %433 = vector.broadcast %cst_145 : f32 to vector<8x128xf32>
    %434 = arith.addf %433, %432 : vector<8x128xf32>
    %435 = arith.divf %433, %434 : vector<8x128xf32>
    %436 = vector.extract_strided_slice %404 {offsets = [0, 128], sizes = [8, 128], strides = [1, 1]} : vector<8x512xf32> to vector<8x128xf32>
    %437 = arith.negf %436 : vector<8x128xf32>
    %438 = math.exp %437 : vector<8x128xf32>
    %cst_146 = arith.constant 1.000000e+00 : f32
    %439 = vector.broadcast %cst_146 : f32 to vector<8x128xf32>
    %440 = arith.addf %439, %438 : vector<8x128xf32>
    %441 = arith.divf %439, %440 : vector<8x128xf32>
    %442 = vector.extract_strided_slice %404 {offsets = [0, 256], sizes = [8, 128], strides = [1, 1]} : vector<8x512xf32> to vector<8x128xf32>
    %443 = math.tanh %442 : vector<8x128xf32>
    %444 = vector.extract_strided_slice %404 {offsets = [0, 384], sizes = [8, 128], strides = [1, 1]} : vector<8x512xf32> to vector<8x128xf32>
    %445 = arith.negf %444 : vector<8x128xf32>
    %446 = math.exp %445 : vector<8x128xf32>
    %cst_147 = arith.constant 1.000000e+00 : f32
    %447 = vector.broadcast %cst_147 : f32 to vector<8x128xf32>
    %448 = arith.addf %447, %446 : vector<8x128xf32>
    %449 = arith.divf %447, %448 : vector<8x128xf32>
    %450 = arith.mulf %441, %388 : vector<8x128xf32>
    %451 = arith.mulf %435, %443 : vector<8x128xf32>
    %452 = arith.addf %450, %451 : vector<8x128xf32>
    %453 = math.tanh %452 : vector<8x128xf32>
    %454 = arith.mulf %449, %453 : vector<8x128xf32>
    %c48_148 = arith.constant 48 : index
    %c0_149 = arith.constant 0 : index
    %455 = vector.load %arg7[%c48_148, %c0_149] : memref<64x256xf32, #tpu.memory_space<vmem>>, vector<8x128xf32>
    tpu.vector_store %arg7[%c48_148, %c0_149], %429 {strides = array<i32>} : memref<64x256xf32, #tpu.memory_space<vmem>>, vector<8x128xf32>,
    %c8_150 = arith.constant 8 : index
    %c128_151 = arith.constant 128 : index
    %456 = vector.load %arg7[%c8_150, %c128_151] : memref<64x256xf32, #tpu.memory_space<vmem>>, vector<8x128xf32>
    tpu.vector_store %arg7[%c8_150, %c128_151], %454 {strides = array<i32>} : memref<64x256xf32, #tpu.memory_space<vmem>>, vector<8x128xf32>,
    %c56_152 = arith.constant 56 : index
    %c0_153 = arith.constant 0 : index
    %457 = vector.load %arg6[%c56_152, %c0_153] : memref<64x1024xf32, #tpu.memory_space<vmem>>, vector<8x512xf32>
    %458 = arith.truncf %429 : vector<8x128xf32> to vector<8x128xbf16>
    %c0_154 = arith.constant 0 : index
    %c0_155 = arith.constant 0 : index
    %c0_156 = arith.constant 0 : index
    %459 = vector.load %arg2[%c0_154, %c0_155, %c0_156] : memref<3x128x512xbf16, #tpu.memory_space<vmem>>, vector<1x128x512xbf16>
    %460 = vector.shape_cast %459 : vector<1x128x512xbf16> to vector<128x512xbf16>
    %cst_157 = arith.constant dense<0.000000e+00> : vector<8x512xf32>
    %461 = tpu.matmul %458, %460, %cst_157 {dimension_numbers = #tpu.dot_dimension_numbers<[1], [0], [0], [1], [0, 0, 1, 1], [], []>} : vector<8x128xbf16>, vector<128x512xbf16>, vector<8x512xf32> -> vector<8x512xf32>
    %462 = arith.addf %457, %461 : vector<8x512xf32>
    %c0_158 = arith.constant 0 : index
    %c512_159 = arith.constant 512 : index
    %463 = vector.load %arg6[%c0_158, %c512_159] : memref<64x1024xf32, #tpu.memory_space<vmem>>, vector<8x512xf32>
    %464 = arith.truncf %454 : vector<8x128xf32> to vector<8x128xbf16>
    %c1_160 = arith.constant 1 : index
    %c0_161 = arith.constant 0 : index
    %c0_162 = arith.constant 0 : index
    %465 = vector.load %arg2[%c1_160, %c0_161, %c0_162] : memref<3x128x512xbf16, #tpu.memory_space<vmem>>, vector<1x128x512xbf16>
    %466 = vector.shape_cast %465 : vector<1x128x512xbf16> to vector<128x512xbf16>
    %cst_163 = arith.constant dense<0.000000e+00> : vector<8x512xf32>
    %467 = tpu.matmul %464, %466, %cst_163 {dimension_numbers = #tpu.dot_dimension_numbers<[1], [0], [0], [1], [0, 0, 1, 1], [], []>} : vector<8x128xbf16>, vector<128x512xbf16>, vector<8x512xf32> -> vector<8x512xf32>
    %468 = arith.addf %463, %467 : vector<8x512xf32>
    %469 = vector.extract_strided_slice %462 {offsets = [0, 0], sizes = [8, 128], strides = [1, 1]} : vector<8x512xf32> to vector<8x128xf32>
    %470 = arith.negf %469 : vector<8x128xf32>
    %471 = math.exp %470 : vector<8x128xf32>
    %cst_164 = arith.constant 1.000000e+00 : f32
    %472 = vector.broadcast %cst_164 : f32 to vector<8x128xf32>
    %473 = arith.addf %472, %471 : vector<8x128xf32>
    %474 = arith.divf %472, %473 : vector<8x128xf32>
    %475 = vector.extract_strided_slice %462 {offsets = [0, 128], sizes = [8, 128], strides = [1, 1]} : vector<8x512xf32> to vector<8x128xf32>
    %476 = arith.negf %475 : vector<8x128xf32>
    %477 = math.exp %476 : vector<8x128xf32>
    %cst_165 = arith.constant 1.000000e+00 : f32
    %478 = vector.broadcast %cst_165 : f32 to vector<8x128xf32>
    %479 = arith.addf %478, %477 : vector<8x128xf32>
    %480 = arith.divf %478, %479 : vector<8x128xf32>
    %481 = vector.extract_strided_slice %462 {offsets = [0, 256], sizes = [8, 128], strides = [1, 1]} : vector<8x512xf32> to vector<8x128xf32>
    %482 = math.tanh %481 : vector<8x128xf32>
    %483 = vector.extract_strided_slice %462 {offsets = [0, 384], sizes = [8, 128], strides = [1, 1]} : vector<8x512xf32> to vector<8x128xf32>
    %484 = arith.negf %483 : vector<8x128xf32>
    %485 = math.exp %484 : vector<8x128xf32>
    %cst_166 = arith.constant 1.000000e+00 : f32
    %486 = vector.broadcast %cst_166 : f32 to vector<8x128xf32>
    %487 = arith.addf %486, %485 : vector<8x128xf32>
    %488 = arith.divf %486, %487 : vector<8x128xf32>
    %489 = arith.mulf %480, %427 : vector<8x128xf32>
    %490 = arith.mulf %474, %482 : vector<8x128xf32>
    %491 = arith.addf %489, %490 : vector<8x128xf32>
    %492 = math.tanh %491 : vector<8x128xf32>
    %493 = arith.mulf %488, %492 : vector<8x128xf32>
    %494 = vector.extract_strided_slice %468 {offsets = [0, 0], sizes = [8, 128], strides = [1, 1]} : vector<8x512xf32> to vector<8x128xf32>
    %495 = arith.negf %494 : vector<8x128xf32>
    %496 = math.exp %495 : vector<8x128xf32>
    %cst_167 = arith.constant 1.000000e+00 : f32
    %497 = vector.broadcast %cst_167 : f32 to vector<8x128xf32>
    %498 = arith.addf %497, %496 : vector<8x128xf32>
    %499 = arith.divf %497, %498 : vector<8x128xf32>
    %500 = vector.extract_strided_slice %468 {offsets = [0, 128], sizes = [8, 128], strides = [1, 1]} : vector<8x512xf32> to vector<8x128xf32>
    %501 = arith.negf %500 : vector<8x128xf32>
    %502 = math.exp %501 : vector<8x128xf32>
    %cst_168 = arith.constant 1.000000e+00 : f32
    %503 = vector.broadcast %cst_168 : f32 to vector<8x128xf32>
    %504 = arith.addf %503, %502 : vector<8x128xf32>
    %505 = arith.divf %503, %504 : vector<8x128xf32>
    %506 = vector.extract_strided_slice %468 {offsets = [0, 256], sizes = [8, 128], strides = [1, 1]} : vector<8x512xf32> to vector<8x128xf32>
    %507 = math.tanh %506 : vector<8x128xf32>
    %508 = vector.extract_strided_slice %468 {offsets = [0, 384], sizes = [8, 128], strides = [1, 1]} : vector<8x512xf32> to vector<8x128xf32>
    %509 = arith.negf %508 : vector<8x128xf32>
    %510 = math.exp %509 : vector<8x128xf32>
    %cst_169 = arith.constant 1.000000e+00 : f32
    %511 = vector.broadcast %cst_169 : f32 to vector<8x128xf32>
    %512 = arith.addf %511, %510 : vector<8x128xf32>
    %513 = arith.divf %511, %512 : vector<8x128xf32>
    %514 = arith.mulf %505, %452 : vector<8x128xf32>
    %515 = arith.mulf %499, %507 : vector<8x128xf32>
    %516 = arith.addf %514, %515 : vector<8x128xf32>
    %517 = math.tanh %516 : vector<8x128xf32>
    %518 = arith.mulf %513, %517 : vector<8x128xf32>
    %c56_170 = arith.constant 56 : index
    %c0_171 = arith.constant 0 : index
    %519 = vector.load %arg7[%c56_170, %c0_171] : memref<64x256xf32, #tpu.memory_space<vmem>>, vector<8x128xf32>
    tpu.vector_store %arg7[%c56_170, %c0_171], %493 {strides = array<i32>} : memref<64x256xf32, #tpu.memory_space<vmem>>, vector<8x128xf32>,
    %c0_172 = arith.constant 0 : index
    %c128_173 = arith.constant 128 : index
    %520 = vector.load %arg7[%c0_172, %c128_173] : memref<64x256xf32, #tpu.memory_space<vmem>>, vector<8x128xf32>
    tpu.vector_store %arg7[%c0_172, %c128_173], %518 {strides = array<i32>} : memref<64x256xf32, #tpu.memory_space<vmem>>, vector<8x128xf32>,
    %c0_174 = arith.constant 0 : index
    %c0_175 = arith.constant 0 : index
    %521 = vector.load %arg7[%c0_174, %c0_175] : memref<64x256xf32, #tpu.memory_space<vmem>>, vector<64x256xf32>
    %522 = arith.truncf %521 : vector<64x256xf32> to vector<64x256xbf16>
    %c0_176 = arith.constant 0 : index
    %c0_177 = arith.constant 0 : index
    %523 = vector.load %arg3[%c0_176, %c0_177] : memref<256x512xbf16, #tpu.memory_space<vmem>>, vector<256x512xbf16>
    %cst_178 = arith.constant dense<0.000000e+00> : vector<64x512xf32>
    %524 = tpu.matmul %522, %523, %cst_178 {dimension_numbers = #tpu.dot_dimension_numbers<[1], [0], [0], [1], [0, 0, 1, 1], [], []>} : vector<64x256xbf16>, vector<256x512xbf16>, vector<64x512xf32> -> vector<64x512xf32>
    %c1_179 = arith.constant 1 : index
    %c0_180 = arith.constant 0 : index
    %525 = vector.load %arg4[%c1_179, %c0_180] : memref<8x1024xf32, #tpu.memory_space<vmem>>, vector<1x512xf32>
    %526 = vector.broadcast %525 : vector<1x512xf32> to vector<64x512xf32>
    %527 = arith.addf %524, %526 : vector<64x512xf32>
    %c0_181 = arith.constant 0 : index
    %c0_182 = arith.constant 0 : index
    %528 = vector.load %arg8[%c0_181, %c0_182] : memref<64x512xf32, #tpu.memory_space<vmem>>, vector<64x512xf32>
    tpu.vector_store %arg8[%c0_181, %c0_182], %527 {strides = array<i32>} : memref<64x512xf32, #tpu.memory_space<vmem>>, vector<64x512xf32>,
    %c0_183 = arith.constant 0 : index
    %c0_184 = arith.constant 0 : index
    %529 = vector.load %arg8[%c0_183, %c0_184] : memref<64x512xf32, #tpu.memory_space<vmem>>, vector<8x512xf32>
    %530 = arith.truncf %8 : vector<8x128xf32> to vector<8x128xbf16>
    %c2 = arith.constant 2 : index
    %c0_185 = arith.constant 0 : index
    %c0_186 = arith.constant 0 : index
    %531 = vector.load %arg2[%c2, %c0_185, %c0_186] : memref<3x128x512xbf16, #tpu.memory_space<vmem>>, vector<1x128x512xbf16>
    %532 = vector.shape_cast %531 : vector<1x128x512xbf16> to vector<128x512xbf16>
    %cst_187 = arith.constant dense<0.000000e+00> : vector<8x512xf32>
    %533 = tpu.matmul %530, %532, %cst_187 {dimension_numbers = #tpu.dot_dimension_numbers<[1], [0], [0], [1], [0, 0, 1, 1], [], []>} : vector<8x128xbf16>, vector<128x512xbf16>, vector<8x512xf32> -> vector<8x512xf32>
    %534 = arith.addf %529, %533 : vector<8x512xf32>
    %535 = vector.extract_strided_slice %534 {offsets = [0, 0], sizes = [8, 128], strides = [1, 1]} : vector<8x512xf32> to vector<8x128xf32>
    %536 = arith.negf %535 : vector<8x128xf32>
    %537 = math.exp %536 : vector<8x128xf32>
    %cst_188 = arith.constant 1.000000e+00 : f32
    %538 = vector.broadcast %cst_188 : f32 to vector<8x128xf32>
    %539 = arith.addf %538, %537 : vector<8x128xf32>
    %540 = arith.divf %538, %539 : vector<8x128xf32>
    %541 = vector.extract_strided_slice %534 {offsets = [0, 128], sizes = [8, 128], strides = [1, 1]} : vector<8x512xf32> to vector<8x128xf32>
    %542 = arith.negf %541 : vector<8x128xf32>
    %543 = math.exp %542 : vector<8x128xf32>
    %cst_189 = arith.constant 1.000000e+00 : f32
    %544 = vector.broadcast %cst_189 : f32 to vector<8x128xf32>
    %545 = arith.addf %544, %543 : vector<8x128xf32>
    %546 = arith.divf %544, %545 : vector<8x128xf32>
    %547 = vector.extract_strided_slice %534 {offsets = [0, 256], sizes = [8, 128], strides = [1, 1]} : vector<8x512xf32> to vector<8x128xf32>
    %548 = math.tanh %547 : vector<8x128xf32>
    %549 = vector.extract_strided_slice %534 {offsets = [0, 384], sizes = [8, 128], strides = [1, 1]} : vector<8x512xf32> to vector<8x128xf32>
    %550 = arith.negf %549 : vector<8x128xf32>
    %551 = math.exp %550 : vector<8x128xf32>
    %cst_190 = arith.constant 1.000000e+00 : f32
    %552 = vector.broadcast %cst_190 : f32 to vector<8x128xf32>
    %553 = arith.addf %552, %551 : vector<8x128xf32>
    %554 = arith.divf %552, %553 : vector<8x128xf32>
    %555 = arith.mulf %546, %8 : vector<8x128xf32>
    %556 = arith.mulf %540, %548 : vector<8x128xf32>
    %557 = arith.addf %555, %556 : vector<8x128xf32>
    %558 = math.tanh %557 : vector<8x128xf32>
    %559 = arith.mulf %554, %558 : vector<8x128xf32>
    %c8_191 = arith.constant 8 : index
    %c0_192 = arith.constant 0 : index
    %560 = vector.load %arg8[%c8_191, %c0_192] : memref<64x512xf32, #tpu.memory_space<vmem>>, vector<8x512xf32>
    %561 = arith.truncf %559 : vector<8x128xf32> to vector<8x128xbf16>
    %c2_193 = arith.constant 2 : index
    %c0_194 = arith.constant 0 : index
    %c0_195 = arith.constant 0 : index
    %562 = vector.load %arg2[%c2_193, %c0_194, %c0_195] : memref<3x128x512xbf16, #tpu.memory_space<vmem>>, vector<1x128x512xbf16>
    %563 = vector.shape_cast %562 : vector<1x128x512xbf16> to vector<128x512xbf16>
    %cst_196 = arith.constant dense<0.000000e+00> : vector<8x512xf32>
    %564 = tpu.matmul %561, %563, %cst_196 {dimension_numbers = #tpu.dot_dimension_numbers<[1], [0], [0], [1], [0, 0, 1, 1], [], []>} : vector<8x128xbf16>, vector<128x512xbf16>, vector<8x512xf32> -> vector<8x512xf32>
    %565 = arith.addf %560, %564 : vector<8x512xf32>
    %566 = vector.extract_strided_slice %565 {offsets = [0, 0], sizes = [8, 128], strides = [1, 1]} : vector<8x512xf32> to vector<8x128xf32>
    %567 = arith.negf %566 : vector<8x128xf32>
    %568 = math.exp %567 : vector<8x128xf32>
    %cst_197 = arith.constant 1.000000e+00 : f32
    %569 = vector.broadcast %cst_197 : f32 to vector<8x128xf32>
    %570 = arith.addf %569, %568 : vector<8x128xf32>
    %571 = arith.divf %569, %570 : vector<8x128xf32>
    %572 = vector.extract_strided_slice %565 {offsets = [0, 128], sizes = [8, 128], strides = [1, 1]} : vector<8x512xf32> to vector<8x128xf32>
    %573 = arith.negf %572 : vector<8x128xf32>
    %574 = math.exp %573 : vector<8x128xf32>
    %cst_198 = arith.constant 1.000000e+00 : f32
    %575 = vector.broadcast %cst_198 : f32 to vector<8x128xf32>
    %576 = arith.addf %575, %574 : vector<8x128xf32>
    %577 = arith.divf %575, %576 : vector<8x128xf32>
    %578 = vector.extract_strided_slice %565 {offsets = [0, 256], sizes = [8, 128], strides = [1, 1]} : vector<8x512xf32> to vector<8x128xf32>
    %579 = math.tanh %578 : vector<8x128xf32>
    %580 = vector.extract_strided_slice %565 {offsets = [0, 384], sizes = [8, 128], strides = [1, 1]} : vector<8x512xf32> to vector<8x128xf32>
    %581 = arith.negf %580 : vector<8x128xf32>
    %582 = math.exp %581 : vector<8x128xf32>
    %cst_199 = arith.constant 1.000000e+00 : f32
    %583 = vector.broadcast %cst_199 : f32 to vector<8x128xf32>
    %584 = arith.addf %583, %582 : vector<8x128xf32>
    %585 = arith.divf %583, %584 : vector<8x128xf32>
    %586 = arith.mulf %577, %557 : vector<8x128xf32>
    %587 = arith.mulf %571, %579 : vector<8x128xf32>
    %588 = arith.addf %586, %587 : vector<8x128xf32>
    %589 = math.tanh %588 : vector<8x128xf32>
    %590 = arith.mulf %585, %589 : vector<8x128xf32>
    %c16_200 = arith.constant 16 : index
    %c0_201 = arith.constant 0 : index
    %591 = vector.load %arg8[%c16_200, %c0_201] : memref<64x512xf32, #tpu.memory_space<vmem>>, vector<8x512xf32>
    %592 = arith.truncf %590 : vector<8x128xf32> to vector<8x128xbf16>
    %c2_202 = arith.constant 2 : index
    %c0_203 = arith.constant 0 : index
    %c0_204 = arith.constant 0 : index
    %593 = vector.load %arg2[%c2_202, %c0_203, %c0_204] : memref<3x128x512xbf16, #tpu.memory_space<vmem>>, vector<1x128x512xbf16>
    %594 = vector.shape_cast %593 : vector<1x128x512xbf16> to vector<128x512xbf16>
    %cst_205 = arith.constant dense<0.000000e+00> : vector<8x512xf32>
    %595 = tpu.matmul %592, %594, %cst_205 {dimension_numbers = #tpu.dot_dimension_numbers<[1], [0], [0], [1], [0, 0, 1, 1], [], []>} : vector<8x128xbf16>, vector<128x512xbf16>, vector<8x512xf32> -> vector<8x512xf32>
    %596 = arith.addf %591, %595 : vector<8x512xf32>
    %597 = vector.extract_strided_slice %596 {offsets = [0, 0], sizes = [8, 128], strides = [1, 1]} : vector<8x512xf32> to vector<8x128xf32>
    %598 = arith.negf %597 : vector<8x128xf32>
    %599 = math.exp %598 : vector<8x128xf32>
    %cst_206 = arith.constant 1.000000e+00 : f32
    %600 = vector.broadcast %cst_206 : f32 to vector<8x128xf32>
    %601 = arith.addf %600, %599 : vector<8x128xf32>
    %602 = arith.divf %600, %601 : vector<8x128xf32>
    %603 = vector.extract_strided_slice %596 {offsets = [0, 128], sizes = [8, 128], strides = [1, 1]} : vector<8x512xf32> to vector<8x128xf32>
    %604 = arith.negf %603 : vector<8x128xf32>
    %605 = math.exp %604 : vector<8x128xf32>
    %cst_207 = arith.constant 1.000000e+00 : f32
    %606 = vector.broadcast %cst_207 : f32 to vector<8x128xf32>
    %607 = arith.addf %606, %605 : vector<8x128xf32>
    %608 = arith.divf %606, %607 : vector<8x128xf32>
    %609 = vector.extract_strided_slice %596 {offsets = [0, 256], sizes = [8, 128], strides = [1, 1]} : vector<8x512xf32> to vector<8x128xf32>
    %610 = math.tanh %609 : vector<8x128xf32>
    %611 = vector.extract_strided_slice %596 {offsets = [0, 384], sizes = [8, 128], strides = [1, 1]} : vector<8x512xf32> to vector<8x128xf32>
    %612 = arith.negf %611 : vector<8x128xf32>
    %613 = math.exp %612 : vector<8x128xf32>
    %cst_208 = arith.constant 1.000000e+00 : f32
    %614 = vector.broadcast %cst_208 : f32 to vector<8x128xf32>
    %615 = arith.addf %614, %613 : vector<8x128xf32>
    %616 = arith.divf %614, %615 : vector<8x128xf32>
    %617 = arith.mulf %608, %588 : vector<8x128xf32>
    %618 = arith.mulf %602, %610 : vector<8x128xf32>
    %619 = arith.addf %617, %618 : vector<8x128xf32>
    %620 = math.tanh %619 : vector<8x128xf32>
    %621 = arith.mulf %616, %620 : vector<8x128xf32>
    %c24_209 = arith.constant 24 : index
    %c0_210 = arith.constant 0 : index
    %622 = vector.load %arg8[%c24_209, %c0_210] : memref<64x512xf32, #tpu.memory_space<vmem>>, vector<8x512xf32>
    %623 = arith.truncf %621 : vector<8x128xf32> to vector<8x128xbf16>
    %c2_211 = arith.constant 2 : index
    %c0_212 = arith.constant 0 : index
    %c0_213 = arith.constant 0 : index
    %624 = vector.load %arg2[%c2_211, %c0_212, %c0_213] : memref<3x128x512xbf16, #tpu.memory_space<vmem>>, vector<1x128x512xbf16>
    %625 = vector.shape_cast %624 : vector<1x128x512xbf16> to vector<128x512xbf16>
    %cst_214 = arith.constant dense<0.000000e+00> : vector<8x512xf32>
    %626 = tpu.matmul %623, %625, %cst_214 {dimension_numbers = #tpu.dot_dimension_numbers<[1], [0], [0], [1], [0, 0, 1, 1], [], []>} : vector<8x128xbf16>, vector<128x512xbf16>, vector<8x512xf32> -> vector<8x512xf32>
    %627 = arith.addf %622, %626 : vector<8x512xf32>
    %628 = vector.extract_strided_slice %627 {offsets = [0, 0], sizes = [8, 128], strides = [1, 1]} : vector<8x512xf32> to vector<8x128xf32>
    %629 = arith.negf %628 : vector<8x128xf32>
    %630 = math.exp %629 : vector<8x128xf32>
    %cst_215 = arith.constant 1.000000e+00 : f32
    %631 = vector.broadcast %cst_215 : f32 to vector<8x128xf32>
    %632 = arith.addf %631, %630 : vector<8x128xf32>
    %633 = arith.divf %631, %632 : vector<8x128xf32>
    %634 = vector.extract_strided_slice %627 {offsets = [0, 128], sizes = [8, 128], strides = [1, 1]} : vector<8x512xf32> to vector<8x128xf32>
    %635 = arith.negf %634 : vector<8x128xf32>
    %636 = math.exp %635 : vector<8x128xf32>
    %cst_216 = arith.constant 1.000000e+00 : f32
    %637 = vector.broadcast %cst_216 : f32 to vector<8x128xf32>
    %638 = arith.addf %637, %636 : vector<8x128xf32>
    %639 = arith.divf %637, %638 : vector<8x128xf32>
    %640 = vector.extract_strided_slice %627 {offsets = [0, 256], sizes = [8, 128], strides = [1, 1]} : vector<8x512xf32> to vector<8x128xf32>
    %641 = math.tanh %640 : vector<8x128xf32>
    %642 = vector.extract_strided_slice %627 {offsets = [0, 384], sizes = [8, 128], strides = [1, 1]} : vector<8x512xf32> to vector<8x128xf32>
    %643 = arith.negf %642 : vector<8x128xf32>
    %644 = math.exp %643 : vector<8x128xf32>
    %cst_217 = arith.constant 1.000000e+00 : f32
    %645 = vector.broadcast %cst_217 : f32 to vector<8x128xf32>
    %646 = arith.addf %645, %644 : vector<8x128xf32>
    %647 = arith.divf %645, %646 : vector<8x128xf32>
    %648 = arith.mulf %639, %619 : vector<8x128xf32>
    %649 = arith.mulf %633, %641 : vector<8x128xf32>
    %650 = arith.addf %648, %649 : vector<8x128xf32>
    %651 = math.tanh %650 : vector<8x128xf32>
    %652 = arith.mulf %647, %651 : vector<8x128xf32>
    %c32_218 = arith.constant 32 : index
    %c0_219 = arith.constant 0 : index
    %653 = vector.load %arg8[%c32_218, %c0_219] : memref<64x512xf32, #tpu.memory_space<vmem>>, vector<8x512xf32>
    %654 = arith.truncf %652 : vector<8x128xf32> to vector<8x128xbf16>
    %c2_220 = arith.constant 2 : index
    %c0_221 = arith.constant 0 : index
    %c0_222 = arith.constant 0 : index
    %655 = vector.load %arg2[%c2_220, %c0_221, %c0_222] : memref<3x128x512xbf16, #tpu.memory_space<vmem>>, vector<1x128x512xbf16>
    %656 = vector.shape_cast %655 : vector<1x128x512xbf16> to vector<128x512xbf16>
    %cst_223 = arith.constant dense<0.000000e+00> : vector<8x512xf32>
    %657 = tpu.matmul %654, %656, %cst_223 {dimension_numbers = #tpu.dot_dimension_numbers<[1], [0], [0], [1], [0, 0, 1, 1], [], []>} : vector<8x128xbf16>, vector<128x512xbf16>, vector<8x512xf32> -> vector<8x512xf32>
    %658 = arith.addf %653, %657 : vector<8x512xf32>
    %659 = vector.extract_strided_slice %658 {offsets = [0, 0], sizes = [8, 128], strides = [1, 1]} : vector<8x512xf32> to vector<8x128xf32>
    %660 = arith.negf %659 : vector<8x128xf32>
    %661 = math.exp %660 : vector<8x128xf32>
    %cst_224 = arith.constant 1.000000e+00 : f32
    %662 = vector.broadcast %cst_224 : f32 to vector<8x128xf32>
    %663 = arith.addf %662, %661 : vector<8x128xf32>
    %664 = arith.divf %662, %663 : vector<8x128xf32>
    %665 = vector.extract_strided_slice %658 {offsets = [0, 128], sizes = [8, 128], strides = [1, 1]} : vector<8x512xf32> to vector<8x128xf32>
    %666 = arith.negf %665 : vector<8x128xf32>
    %667 = math.exp %666 : vector<8x128xf32>
    %cst_225 = arith.constant 1.000000e+00 : f32
    %668 = vector.broadcast %cst_225 : f32 to vector<8x128xf32>
    %669 = arith.addf %668, %667 : vector<8x128xf32>
    %670 = arith.divf %668, %669 : vector<8x128xf32>
    %671 = vector.extract_strided_slice %658 {offsets = [0, 256], sizes = [8, 128], strides = [1, 1]} : vector<8x512xf32> to vector<8x128xf32>
    %672 = math.tanh %671 : vector<8x128xf32>
    %673 = vector.extract_strided_slice %658 {offsets = [0, 384], sizes = [8, 128], strides = [1, 1]} : vector<8x512xf32> to vector<8x128xf32>
    %674 = arith.negf %673 : vector<8x128xf32>
    %675 = math.exp %674 : vector<8x128xf32>
    %cst_226 = arith.constant 1.000000e+00 : f32
    %676 = vector.broadcast %cst_226 : f32 to vector<8x128xf32>
    %677 = arith.addf %676, %675 : vector<8x128xf32>
    %678 = arith.divf %676, %677 : vector<8x128xf32>
    %679 = arith.mulf %670, %650 : vector<8x128xf32>
    %680 = arith.mulf %664, %672 : vector<8x128xf32>
    %681 = arith.addf %679, %680 : vector<8x128xf32>
    %682 = math.tanh %681 : vector<8x128xf32>
    %683 = arith.mulf %678, %682 : vector<8x128xf32>
    %c40_227 = arith.constant 40 : index
    %c0_228 = arith.constant 0 : index
    %684 = vector.load %arg8[%c40_227, %c0_228] : memref<64x512xf32, #tpu.memory_space<vmem>>, vector<8x512xf32>
    %685 = arith.truncf %683 : vector<8x128xf32> to vector<8x128xbf16>
    %c2_229 = arith.constant 2 : index
    %c0_230 = arith.constant 0 : index
    %c0_231 = arith.constant 0 : index
    %686 = vector.load %arg2[%c2_229, %c0_230, %c0_231] : memref<3x128x512xbf16, #tpu.memory_space<vmem>>, vector<1x128x512xbf16>
    %687 = vector.shape_cast %686 : vector<1x128x512xbf16> to vector<128x512xbf16>
    %cst_232 = arith.constant dense<0.000000e+00> : vector<8x512xf32>
    %688 = tpu.matmul %685, %687, %cst_232 {dimension_numbers = #tpu.dot_dimension_numbers<[1], [0], [0], [1], [0, 0, 1, 1], [], []>} : vector<8x128xbf16>, vector<128x512xbf16>, vector<8x512xf32> -> vector<8x512xf32>
    %689 = arith.addf %684, %688 : vector<8x512xf32>
    %690 = vector.extract_strided_slice %689 {offsets = [0, 0], sizes = [8, 128], strides = [1, 1]} : vector<8x512xf32> to vector<8x128xf32>
    %691 = arith.negf %690 : vector<8x128xf32>
    %692 = math.exp %691 : vector<8x128xf32>
    %cst_233 = arith.constant 1.000000e+00 : f32
    %693 = vector.broadcast %cst_233 : f32 to vector<8x128xf32>
    %694 = arith.addf %693, %692 : vector<8x128xf32>
    %695 = arith.divf %693, %694 : vector<8x128xf32>
    %696 = vector.extract_strided_slice %689 {offsets = [0, 128], sizes = [8, 128], strides = [1, 1]} : vector<8x512xf32> to vector<8x128xf32>
    %697 = arith.negf %696 : vector<8x128xf32>
    %698 = math.exp %697 : vector<8x128xf32>
    %cst_234 = arith.constant 1.000000e+00 : f32
    %699 = vector.broadcast %cst_234 : f32 to vector<8x128xf32>
    %700 = arith.addf %699, %698 : vector<8x128xf32>
    %701 = arith.divf %699, %700 : vector<8x128xf32>
    %702 = vector.extract_strided_slice %689 {offsets = [0, 256], sizes = [8, 128], strides = [1, 1]} : vector<8x512xf32> to vector<8x128xf32>
    %703 = math.tanh %702 : vector<8x128xf32>
    %704 = vector.extract_strided_slice %689 {offsets = [0, 384], sizes = [8, 128], strides = [1, 1]} : vector<8x512xf32> to vector<8x128xf32>
    %705 = arith.negf %704 : vector<8x128xf32>
    %706 = math.exp %705 : vector<8x128xf32>
    %cst_235 = arith.constant 1.000000e+00 : f32
    %707 = vector.broadcast %cst_235 : f32 to vector<8x128xf32>
    %708 = arith.addf %707, %706 : vector<8x128xf32>
    %709 = arith.divf %707, %708 : vector<8x128xf32>
    %710 = arith.mulf %701, %681 : vector<8x128xf32>
    %711 = arith.mulf %695, %703 : vector<8x128xf32>
    %712 = arith.addf %710, %711 : vector<8x128xf32>
    %713 = math.tanh %712 : vector<8x128xf32>
    %714 = arith.mulf %709, %713 : vector<8x128xf32>
    %c48_236 = arith.constant 48 : index
    %c0_237 = arith.constant 0 : index
    %715 = vector.load %arg8[%c48_236, %c0_237] : memref<64x512xf32, #tpu.memory_space<vmem>>, vector<8x512xf32>
    %716 = arith.truncf %714 : vector<8x128xf32> to vector<8x128xbf16>
    %c2_238 = arith.constant 2 : index
    %c0_239 = arith.constant 0 : index
    %c0_240 = arith.constant 0 : index
    %717 = vector.load %arg2[%c2_238, %c0_239, %c0_240] : memref<3x128x512xbf16, #tpu.memory_space<vmem>>, vector<1x128x512xbf16>
    %718 = vector.shape_cast %717 : vector<1x128x512xbf16> to vector<128x512xbf16>
    %cst_241 = arith.constant dense<0.000000e+00> : vector<8x512xf32>
    %719 = tpu.matmul %716, %718, %cst_241 {dimension_numbers = #tpu.dot_dimension_numbers<[1], [0], [0], [1], [0, 0, 1, 1], [], []>} : vector<8x128xbf16>, vector<128x512xbf16>, vector<8x512xf32> -> vector<8x512xf32>
    %720 = arith.addf %715, %719 : vector<8x512xf32>
    %721 = vector.extract_strided_slice %720 {offsets = [0, 0], sizes = [8, 128], strides = [1, 1]} : vector<8x512xf32> to vector<8x128xf32>
    %722 = arith.negf %721 : vector<8x128xf32>
    %723 = math.exp %722 : vector<8x128xf32>
    %cst_242 = arith.constant 1.000000e+00 : f32
    %724 = vector.broadcast %cst_242 : f32 to vector<8x128xf32>
    %725 = arith.addf %724, %723 : vector<8x128xf32>
    %726 = arith.divf %724, %725 : vector<8x128xf32>
    %727 = vector.extract_strided_slice %720 {offsets = [0, 128], sizes = [8, 128], strides = [1, 1]} : vector<8x512xf32> to vector<8x128xf32>
    %728 = arith.negf %727 : vector<8x128xf32>
    %729 = math.exp %728 : vector<8x128xf32>
    %cst_243 = arith.constant 1.000000e+00 : f32
    %730 = vector.broadcast %cst_243 : f32 to vector<8x128xf32>
    %731 = arith.addf %730, %729 : vector<8x128xf32>
    %732 = arith.divf %730, %731 : vector<8x128xf32>
    %733 = vector.extract_strided_slice %720 {offsets = [0, 256], sizes = [8, 128], strides = [1, 1]} : vector<8x512xf32> to vector<8x128xf32>
    %734 = math.tanh %733 : vector<8x128xf32>
    %735 = vector.extract_strided_slice %720 {offsets = [0, 384], sizes = [8, 128], strides = [1, 1]} : vector<8x512xf32> to vector<8x128xf32>
    %736 = arith.negf %735 : vector<8x128xf32>
    %737 = math.exp %736 : vector<8x128xf32>
    %cst_244 = arith.constant 1.000000e+00 : f32
    %738 = vector.broadcast %cst_244 : f32 to vector<8x128xf32>
    %739 = arith.addf %738, %737 : vector<8x128xf32>
    %740 = arith.divf %738, %739 : vector<8x128xf32>
    %741 = arith.mulf %732, %712 : vector<8x128xf32>
    %742 = arith.mulf %726, %734 : vector<8x128xf32>
    %743 = arith.addf %741, %742 : vector<8x128xf32>
    %744 = math.tanh %743 : vector<8x128xf32>
    %745 = arith.mulf %740, %744 : vector<8x128xf32>
    %c56_245 = arith.constant 56 : index
    %c0_246 = arith.constant 0 : index
    %746 = vector.load %arg8[%c56_245, %c0_246] : memref<64x512xf32, #tpu.memory_space<vmem>>, vector<8x512xf32>
    %747 = arith.truncf %745 : vector<8x128xf32> to vector<8x128xbf16>
    %c2_247 = arith.constant 2 : index
    %c0_248 = arith.constant 0 : index
    %c0_249 = arith.constant 0 : index
    %748 = vector.load %arg2[%c2_247, %c0_248, %c0_249] : memref<3x128x512xbf16, #tpu.memory_space<vmem>>, vector<1x128x512xbf16>
    %749 = vector.shape_cast %748 : vector<1x128x512xbf16> to vector<128x512xbf16>
    %cst_250 = arith.constant dense<0.000000e+00> : vector<8x512xf32>
    %750 = tpu.matmul %747, %749, %cst_250 {dimension_numbers = #tpu.dot_dimension_numbers<[1], [0], [0], [1], [0, 0, 1, 1], [], []>} : vector<8x128xbf16>, vector<128x512xbf16>, vector<8x512xf32> -> vector<8x512xf32>
    %751 = arith.addf %746, %750 : vector<8x512xf32>
    %752 = vector.extract_strided_slice %751 {offsets = [0, 0], sizes = [8, 128], strides = [1, 1]} : vector<8x512xf32> to vector<8x128xf32>
    %753 = arith.negf %752 : vector<8x128xf32>
    %754 = math.exp %753 : vector<8x128xf32>
    %cst_251 = arith.constant 1.000000e+00 : f32
    %755 = vector.broadcast %cst_251 : f32 to vector<8x128xf32>
    %756 = arith.addf %755, %754 : vector<8x128xf32>
    %757 = arith.divf %755, %756 : vector<8x128xf32>
    %758 = vector.extract_strided_slice %751 {offsets = [0, 128], sizes = [8, 128], strides = [1, 1]} : vector<8x512xf32> to vector<8x128xf32>
    %759 = arith.negf %758 : vector<8x128xf32>
    %760 = math.exp %759 : vector<8x128xf32>
    %cst_252 = arith.constant 1.000000e+00 : f32
    %761 = vector.broadcast %cst_252 : f32 to vector<8x128xf32>
    %762 = arith.addf %761, %760 : vector<8x128xf32>
    %763 = arith.divf %761, %762 : vector<8x128xf32>
    %764 = vector.extract_strided_slice %751 {offsets = [0, 256], sizes = [8, 128], strides = [1, 1]} : vector<8x512xf32> to vector<8x128xf32>
    %765 = math.tanh %764 : vector<8x128xf32>
    %766 = vector.extract_strided_slice %751 {offsets = [0, 384], sizes = [8, 128], strides = [1, 1]} : vector<8x512xf32> to vector<8x128xf32>
    %767 = arith.negf %766 : vector<8x128xf32>
    %768 = math.exp %767 : vector<8x128xf32>
    %cst_253 = arith.constant 1.000000e+00 : f32
    %769 = vector.broadcast %cst_253 : f32 to vector<8x128xf32>
    %770 = arith.addf %769, %768 : vector<8x128xf32>
    %771 = arith.divf %769, %770 : vector<8x128xf32>
    %772 = arith.mulf %763, %743 : vector<8x128xf32>
    %773 = arith.mulf %757, %765 : vector<8x128xf32>
    %774 = arith.addf %772, %773 : vector<8x128xf32>
    %775 = math.tanh %774 : vector<8x128xf32>
    %776 = arith.mulf %771, %775 : vector<8x128xf32>
    %c2_254 = arith.constant 2 : index
    %c0_255 = arith.constant 0 : index
    %777 = vector.load %arg4[%c2_254, %c0_255] : memref<8x1024xf32, #tpu.memory_space<vmem>>, vector<1x128xf32>
    %c3 = arith.constant 3 : index
    %c0_256 = arith.constant 0 : index
    %778 = vector.load %arg4[%c3, %c0_256] : memref<8x1024xf32, #tpu.memory_space<vmem>>, vector<1x1xf32>
    %779 = vector.broadcast %777 : vector<1x128xf32> to vector<8x128xf32>
    %780 = arith.mulf %776, %779 : vector<8x128xf32>
    %cst_257 = arith.constant dense<0.000000e+00> : vector<8xf32>
    %781 = vector.multi_reduction <add>, %780, %cst_257 [1] : vector<8x128xf32> to vector<8xf32>
    %782 = vector.shape_cast %781 : vector<8xf32> to vector<8x1xf32>
    %783 = vector.broadcast %778 : vector<1x1xf32> to vector<8x1xf32>
    %784 = arith.addf %782, %783 : vector<8x1xf32>
    %c0_258 = arith.constant 0 : index
    %c0_259 = arith.constant 0 : index
    %785 = vector.load %arg5[%c0_258, %c0_259] : memref<8x1xf32, #tpu.memory_space<vmem>>, vector<8x1xf32>
    tpu.vector_store %arg5[%c0_258, %c0_259], %784 {strides = array<i32>} : memref<8x1xf32, #tpu.memory_space<vmem>>, vector<8x1xf32>,
    return
  }
}

</mosaic_0001>

<llo_original>
// kernel: tpu_custom_call.1
$region0: #{tpu_custom_call.1}
  #allocation0 [shape = 'u32[]', space=smem, size = 0x4, offset = 0x4, fixed_abs, tag = 'smem constant byte address 0x4 - core index']
  #allocation1 [shape = 'u32[144,128]{1,0:T(1,128)}', space=vmem, size = 0x12000, scoped, tag = 'internal scratch']
  #allocation2 [shape = 'f32[64,1024]{1,0:T(8,128)}', space=vmem, size = 0x40000, scoped, tag = 'scratch operand']
  #allocation3 [shape = 'f32[64,256]{1,0:T(8,128)}', space=vmem, size = 0x10000, scoped, tag = 'scratch operand']
  #allocation4 [shape = 'f32[64,512]{1,0:T(8,128)}', space=vmem, size = 0x20000, scoped, tag = 'scratch operand']
  %s0 = inlined_call_operand.vmem [shape: f32[64,8], index: 0, kind: input, shape index: {}]
  %s1 = inlined_call_operand.hbm [shape: bf16[8,1024], index: 1, kind: input, shape index: {}]
  %s2 = inlined_call_operand.hbm [shape: bf16[3,128,512], index: 2, kind: input, shape index: {}]
  %s3 = inlined_call_operand.hbm [shape: bf16[256,512], index: 3, kind: input, shape index: {}]
  %s4 = inlined_call_operand.vmem [shape: f32[8,1024], index: 4, kind: input, shape index: {}]
  %s5 = inlined_call_operand.vmem [shape: f32[8,1], index: 5, kind: output, shape index: {}]
  %s6 = sld [smem:[#allocation0]]
  $region42: #{tpu_custom_call.1} parent=0
    _
  %s8 = ssub.s32 1, %s6
  %s9 = scalar_select 0, %s8, %s6
  $region1: #{tpu_custom_call.1} parent=0
    #allocation5 [shape = 'u8[16384]{0}', space=vmem, size = 0x4000, scoped, tag = 'input window, operand 1, single buffered']
    #allocation6 [shape = 's32[1]{0}', space=sflag, size = 0x4, scoped, tag = 'scoped memory for tpu_custom_call.1']
    #allocation7 [shape = 'u8[393216]{0}', space=vmem, size = 0x60000, scoped, tag = 'input window, operand 2, single buffered']
    #allocation8 [shape = 's32[1]{0}', space=sflag, size = 0x4, scoped, tag = 'scoped memory for tpu_custom_call.1']
    #allocation9 [shape = 'u8[262144]{0}', space=vmem, size = 0x40000, scoped, tag = 'input window, operand 3, single buffered']
    %10 = vsyncpa [#allocation6], 0
    %11 = vsyncpa [#allocation8], 0
    // Predicated region
    $region2: #{tpu_custom_call.1} parent=1 // pred_check
      _
    $region3: #{tpu_custom_call.1} parent=1 // pred_check_branch
      %13 = sbr.rel (0) target = $region5
    $region4: #{tpu_custom_call.1} parent=1 // pred_region
      _
    $region5: #{tpu_custom_call.1} parent=1 // pred_fallthru
      _
    // Predicated region
    $region6: #{tpu_custom_call.1} parent=1 // pred_check
      _
    $region7: #{tpu_custom_call.1} parent=1 // pred_check_branch
      %15 = sbr.rel (0) target = $region9
    $region8: #{tpu_custom_call.1} parent=1 // pred_region
      %s17 = ssub.s32 512, 512
      %18 = vsyncadd [#allocation6], %s17
      %s20 = sshll.u32 [#allocation5], 4
      %s21 = int_to_ptr.vmem [resolvable:$true] %s20
      %23 = dma.hbm_to_vmem [thread:$0]  %s1, 512, %s21, [#allocation6]
    $region9: #{tpu_custom_call.1} parent=1 // pred_fallthru
      _
    // Predicated region
    $region10: #{tpu_custom_call.1} parent=1 // pred_check
      _
    $region11: #{tpu_custom_call.1} parent=1 // pred_check_branch
      %25 = sbr.rel (0) target = $region13
    $region12: #{tpu_custom_call.1} parent=1 // pred_region
      %s27 = ssub.s32 12288, 12288
      %28 = vsyncadd [#allocation8], %s27
      %s29 = sshll.u32 [#allocation7], 4
      %s30 = int_to_ptr.vmem [resolvable:$true] %s29
      %35 = dma.hbm_to_vmem [thread:$0]  %s2, 12288, %s30, [#allocation8], 256, 256, 16
    $region13: #{tpu_custom_call.1} parent=1 // pred_fallthru
      _
    // Predicated region
    $region14: #{tpu_custom_call.1} parent=1 // pred_check
      _
    $region15: #{tpu_custom_call.1} parent=1 // pred_check_branch
      %37 = sbr.rel (0) target = $region17
    $region16: #{tpu_custom_call.1} parent=1 // pred_region
      %s39 = ssub.s32 8192, 8192
      %40 = vsyncadd [#allocation8], %s39
      %s41 = sshll.u32 [#allocation9], 4
      %s42 = int_to_ptr.vmem [resolvable:$true] %s41
      %47 = dma.hbm_to_vmem [thread:$0]  %s3, 8192, %s42, [#allocation8], 256, 256, 16
    $region17: #{tpu_custom_call.1} parent=1 // pred_fallthru
      _
    // Predicated region
    $region18: #{tpu_custom_call.1} parent=1 // pred_check
      _
    $region19: #{tpu_custom_call.1} parent=1 // pred_check_branch
      %49 = sbr.rel (0) target = $region21
    $region20: #{tpu_custom_call.1} parent=1 // pred_region
      _
    $region21: #{tpu_custom_call.1} parent=1 // pred_fallthru
      _
    // Predicated region
    $region22: #{tpu_custom_call.1} parent=1 // pred_check
      _
    $region23: #{tpu_custom_call.1} parent=1 // pred_check_branch
      %51 = sbr.rel (0) target = $region25
    $region24: #{tpu_custom_call.1} parent=1 // pred_region
      %52 = dma.done [#allocation6], 512
    $region25: #{tpu_custom_call.1} parent=1 // pred_fallthru
      _
    // Predicated region
    $region26: #{tpu_custom_call.1} parent=1 // pred_check
      _
    $region27: #{tpu_custom_call.1} parent=1 // pred_check_branch
      %54 = sbr.rel (0) target = $region29
    $region28: #{tpu_custom_call.1} parent=1 // pred_region
      %55 = dma.done [#allocation8], 12288
    $region29: #{tpu_custom_call.1} parent=1 // pred_fallthru
      _
    // Predicated region
    $region30: #{tpu_custom_call.1} parent=1 // pred_check
      _
    $region31: #{tpu_custom_call.1} parent=1 // pred_check_branch
      %57 = sbr.rel (0) target = $region33
    $region32: #{tpu_custom_call.1} parent=1 // pred_region
      %58 = dma.done [#allocation8], 8192
    $region33: #{tpu_custom_call.1} parent=1 // pred_fallthru
      _
    %v60 = vld [vmem:[%s0] sm:$0xff]
    %v61 = vld [vmem:[%s0 + $0x8] sm:$0xff]
    %v62 = vld [vmem:[%s0 + $0x10] sm:$0xff]
    %v63 = vld [vmem:[%s0 + $0x18] sm:$0xff]
    %v64 = vld [vmem:[%s0 + $0x20] sm:$0xff]
    %v65 = vld [vmem:[%s0 + $0x28] sm:$0xff]
    %v66 = vld [vmem:[%s0 + $0x30] sm:$0xff]
    %v67 = vld [vmem:[%s0 + $0x38] sm:$0xff]
    %v68 = vpack.c.bf16 %v61, %v60
    %v69 = vpack.c.bf16 %v63, %v62
    %v70 = vpack.c.bf16 %v65, %v64
    %v71 = vpack.c.bf16 %v67, %v66
    %v72 = vld [vmem:[#allocation5] sm:$0xff]
    %v73 = vld [vmem:[#allocation5 + $0x8] sm:$0xff]
    %v74 = vld [vmem:[#allocation5 + $0x10] sm:$0xff]
    %v75 = vld [vmem:[#allocation5 + $0x18] sm:$0xff]
    %v76 = vld [vmem:[%s4] ss:$8 sm:$0xf]
    %v77 = vld [vmem:[%s4] ss:$8 sm:$0xf0]
    %v78 = vor.u32 %v76, %v77
    %v80 = vlaneseq
    %v81 = vshrl.u32 %v80, 7
    %v82 = vsub.s32 0, %v81
    %v83 = vrot.slane %v78, %v82
    %v84 = vlaneseq
    %v85 = vshrl.u32 %v84, 7
    %v86 = vsub.s32 1, %v85
    %v87 = vrot.slane %v78, %v86
    %v88 = vlaneseq
    %v89 = vshrl.u32 %v88, 7
    %v90 = vsub.s32 2, %v89
    %v91 = vrot.slane %v78, %v90
    %v92 = vlaneseq
    %v93 = vshrl.u32 %v92, 7
    %v94 = vsub.s32 3, %v93
    %v95 = vrot.slane %v78, %v94
    %v96 = vlaneseq
    %v97 = vshrl.u32 %v96, 7
    %v98 = vsub.s32 4, %v97
    %v99 = vrot.slane %v78, %v98
    %v100 = vlaneseq
    %v101 = vshrl.u32 %v100, 7
    %v102 = vsub.s32 5, %v101
    %v103 = vrot.slane %v78, %v102
    %v104 = vlaneseq
    %v105 = vshrl.u32 %v104, 7
    %v106 = vsub.s32 6, %v105
    %v107 = vrot.slane %v78, %v106
    %v108 = vlaneseq
    %v109 = vshrl.u32 %v108, 7
    %v110 = vsub.s32 7, %v109
    %v111 = vrot.slane %v78, %v110
    %v124 = vunpack.c.l.b16 %v72
    %v125 = vunpack.c.h.b16 %v72
    %v126 = vunpack.c.l.b16 %v73
    %v127 = vunpack.c.h.b16 %v73
    %v128 = vunpack.c.l.b16 %v74
    %v129 = vunpack.c.h.b16 %v74
    %v130 = vunpack.c.l.b16 %v75
    %v131 = vunpack.c.h.b16 %v75
    %v132 = vpack.c.b16 %v124, %v124
    %v133 = vpack.c.b16 %v125, %v125
    %v134 = vpack.c.b16 %v126, %v126
    %v135 = vpack.c.b16 %v127, %v127
    %v136 = vpack.c.b16 %v128, %v128
    %v137 = vpack.c.b16 %v129, %v129
    %v138 = vpack.c.b16 %v130, %v130
    %v139 = vpack.c.b16 %v131, %v131
    %vm140 = vcmask 64512
    %v142 = vsel %vm140, %v68, 0
    %v145 = vsel %vm140, %v69, 0
    %v148 = vsel %vm140, %v70, 0
    %v151 = vsel %vm140, %v71, 0
    %vm153 = vcmask 1043456
    %v155 = vsel %vm153, %v132, 0
    %v158 = vsel %vm153, %v133, 0
    %v161 = vsel %vm153, %v134, 0
    %v164 = vsel %vm153, %v135, 0
    %v167 = vsel %vm153, %v136, 0
    %v170 = vsel %vm153, %v137, 0
    %v173 = vsel %vm153, %v138, 0
    %v176 = vsel %vm153, %v139, 0
    %178 = vmatprep.subr.bf16.mxu0 %v158
    %179 = vmatpush1.bf16.msra.mxu0 %v155
    %180 = vmatprep.subr.bf16.mxu0 0
    %181 = vmatpush1.bf16.msra.mxu0 0
    %182 = vmatprep.subr.bf16.mxu0 0
    %183 = vmatpush1.bf16.msra.mxu0 0
    %184 = vmatprep.subr.bf16.mxu0 0
    %185 = vmatpush1.bf16.msra.mxu0 0
    %186 = vmatprep.subr.bf16.mxu0 0
    %187 = vmatpush1.bf16.msra.mxu0 0
    %188 = vmatprep.subr.bf16.mxu0 0
    %189 = vmatpush1.bf16.msra.mxu0 0
    %190 = vmatprep.subr.bf16.mxu0 0
    %191 = vmatpush1.bf16.msra.mxu0 0
    %192 = vmatprep.subr.bf16.mxu0 0
    %193 = vmatpush1.bf16.msra.mxu0 0
    %194 = vmatprep.subr.bf16.mxu0 0
    %195 = vmatpush1.bf16.msra.mxu0 0
    %196 = vmatprep.subr.bf16.mxu0 0
    %197 = vmatpush1.bf16.msra.mxu0 0
    %198 = vmatprep.subr.bf16.mxu0 0
    %199 = vmatpush1.bf16.msra.mxu0 0
    %200 = vmatprep.subr.bf16.mxu0 0
    %201 = vmatpush1.bf16.msra.mxu0 0
    %202 = vmatprep.subr.bf16.mxu0 0
    %203 = vmatpush1.bf16.msra.mxu0 0
    %204 = vmatprep.subr.bf16.mxu0 0
    %205 = vmatpush1.bf16.msra.mxu0 0
    %206 = vmatprep.subr.bf16.mxu0 0
    %207 = vmatpush1.bf16.msra.mxu0 0
    %208 = vmatprep.subr.bf16.mxu0 0
    %209 = vmatpush1.bf16.msra.mxu0 0
    %210 = vmatprep.mubr.bf16.mxu0 0
    %211 = vmatmul.mubr.bf16.gmra.mrb[0].mxu0 %v142
    %v212 = vpop.f32.mrb[0].mxu0
    %v213 = vadd.f32 %v83, %v212
    %v214 = vpop.f32.mrb[0].mxu0
    %v215 = vadd.f32 %v87, %v214
    %v216 = vpop.f32.mrb[0].mxu0
    %v217 = vadd.f32 %v83, %v216
    %v218 = vpop.f32.mrb[0].mxu0
    %v219 = vadd.f32 %v87, %v218
    %220 = vmatprep.mubr.bf16.mxu0 0
    %221 = vmatmul.mubr.bf16.gmra.mrb[0].mxu0 %v145
    %v222 = vpop.f32.mrb[0].mxu0
    %v223 = vadd.f32 %v83, %v222
    %v224 = vpop.f32.mrb[0].mxu0
    %v225 = vadd.f32 %v87, %v224
    %v226 = vpop.f32.mrb[0].mxu0
    %v227 = vadd.f32 %v83, %v226
    %v228 = vpop.f32.mrb[0].mxu0
    %v229 = vadd.f32 %v87, %v228
    %230 = vmatprep.mubr.bf16.mxu0 0
    %231 = vmatmul.mubr.bf16.gmra.mrb[0].mxu0 %v148
    %v232 = vpop.f32.mrb[0].mxu0
    %v233 = vadd.f32 %v83, %v232
    %v234 = vpop.f32.mrb[0].mxu0
    %v235 = vadd.f32 %v87, %v234
    %v236 = vpop.f32.mrb[0].mxu0
    %v237 = vadd.f32 %v83, %v236
    %v238 = vpop.f32.mrb[0].mxu0
    %v239 = vadd.f32 %v87, %v238
    %240 = vmatprep.mubr.bf16.mxu0 0
    %241 = vmatmul.mubr.bf16.gmra.mrb[0].mxu0 %v151
    %v242 = vpop.f32.mrb[0].mxu0
    %v243 = vadd.f32 %v83, %v242
    %v244 = vpop.f32.mrb[0].mxu0
    %v245 = vadd.f32 %v87, %v244
    %v246 = vpop.f32.mrb[0].mxu0
    %v247 = vadd.f32 %v83, %v246
    %v248 = vpop.f32.mrb[0].mxu0
    %v249 = vadd.f32 %v87, %v248
    %250 = vdwg.mxu0
    %251 = vmatprep.subr.bf16.mxu0 %v164
    %252 = vmatpush1.bf16.msra.mxu0 %v161
    %253 = vmatprep.subr.bf16.mxu0 0
    %254 = vmatpush1.bf16.msra.mxu0 0
    %255 = vmatprep.subr.bf16.mxu0 0
    %256 = vmatpush1.bf16.msra.mxu0 0
    %257 = vmatprep.subr.bf16.mxu0 0
    %258 = vmatpush1.bf16.msra.mxu0 0
    %259 = vmatprep.subr.bf16.mxu0 0
    %260 = vmatpush1.bf16.msra.mxu0 0
    %261 = vmatprep.subr.bf16.mxu0 0
    %262 = vmatpush1.bf16.msra.mxu0 0
    %263 = vmatprep.subr.bf16.mxu0 0
    %264 = vmatpush1.bf16.msra.mxu0 0
    %265 = vmatprep.subr.bf16.mxu0 0
    %266 = vmatpush1.bf16.msra.mxu0 0
    %267 = vmatprep.subr.bf16.mxu0 0
    %268 = vmatpush1.bf16.msra.mxu0 0
    %269 = vmatprep.subr.bf16.mxu0 0
    %270 = vmatpush1.bf16.msra.mxu0 0
    %271 = vmatprep.subr.bf16.mxu0 0
    %272 = vmatpush1.bf16.msra.mxu0 0
    %273 = vmatprep.subr.bf16.mxu0 0
    %274 = vmatpush1.bf16.msra.mxu0 0
    %275 = vmatprep.subr.bf16.mxu0 0
    %276 = vmatpush1.bf16.msra.mxu0 0
    %277 = vmatprep.subr.bf16.mxu0 0
    %278 = vmatpush1.bf16.msra.mxu0 0
    %279 = vmatprep.subr.bf16.mxu0 0
    %280 = vmatpush1.bf16.msra.mxu0 0
    %281 = vmatprep.subr.bf16.mxu0 0
    %282 = vmatpush1.bf16.msra.mxu0 0
    %283 = vmatprep.mubr.bf16.mxu0 0
    %284 = vmatmul.mubr.bf16.gmra.mrb[0].mxu0 %v142
    %v285 = vpop.f32.mrb[0].mxu0
    %v286 = vadd.f32 %v91, %v285
    %v287 = vpop.f32.mrb[0].mxu0
    %v288 = vadd.f32 %v95, %v287
    %v289 = vpop.f32.mrb[0].mxu0
    %v290 = vadd.f32 %v91, %v289
    %v291 = vpop.f32.mrb[0].mxu0
    %v292 = vadd.f32 %v95, %v291
    %293 = vmatprep.mubr.bf16.mxu0 0
    %294 = vmatmul.mubr.bf16.gmra.mrb[0].mxu0 %v145
    %v295 = vpop.f32.mrb[0].mxu0
    %v296 = vadd.f32 %v91, %v295
    %v297 = vpop.f32.mrb[0].mxu0
    %v298 = vadd.f32 %v95, %v297
    %v299 = vpop.f32.mrb[0].mxu0
    %v300 = vadd.f32 %v91, %v299
    %v301 = vpop.f32.mrb[0].mxu0
    %v302 = vadd.f32 %v95, %v301
    %303 = vmatprep.mubr.bf16.mxu0 0
    %304 = vmatmul.mubr.bf16.gmra.mrb[0].mxu0 %v148
    %v305 = vpop.f32.mrb[0].mxu0
    %v306 = vadd.f32 %v91, %v305
    %v307 = vpop.f32.mrb[0].mxu0
    %v308 = vadd.f32 %v95, %v307
    %v309 = vpop.f32.mrb[0].mxu0
    %v310 = vadd.f32 %v91, %v309
    %v311 = vpop.f32.mrb[0].mxu0
    %v312 = vadd.f32 %v95, %v311
    %313 = vmatprep.mubr.bf16.mxu0 0
    %314 = vmatmul.mubr.bf16.gmra.mrb[0].mxu0 %v151
    %v315 = vpop.f32.mrb[0].mxu0
    %v316 = vadd.f32 %v91, %v315
    %v317 = vpop.f32.mrb[0].mxu0
    %v318 = vadd.f32 %v95, %v317
    %v319 = vpop.f32.mrb[0].mxu0
    %v320 = vadd.f32 %v91, %v319
    %v321 = vpop.f32.mrb[0].mxu0
    %v322 = vadd.f32 %v95, %v321
    %323 = vdwg.mxu0
    %324 = vmatprep.subr.bf16.mxu0 %v170
    %325 = vmatpush1.bf16.msra.mxu0 %v167
    %326 = vmatprep.subr.bf16.mxu0 0
    %327 = vmatpush1.bf16.msra.mxu0 0
    %328 = vmatprep.subr.bf16.mxu0 0
    %329 = vmatpush1.bf16.msra.mxu0 0
    %330 = vmatprep.subr.bf16.mxu0 0
    %331 = vmatpush1.bf16.msra.mxu0 0
    %332 = vmatprep.subr.bf16.mxu0 0
    %333 = vmatpush1.bf16.msra.mxu0 0
    %334 = vmatprep.subr.bf16.mxu0 0
    %335 = vmatpush1.bf16.msra.mxu0 0
    %336 = vmatprep.subr.bf16.mxu0 0
    %337 = vmatpush1.bf16.msra.mxu0 0
    %338 = vmatprep.subr.bf16.mxu0 0
    %339 = vmatpush1.bf16.msra.mxu0 0
    %340 = vmatprep.subr.bf16.mxu0 0
    %341 = vmatpush1.bf16.msra.mxu0 0
    %342 = vmatprep.subr.bf16.mxu0 0
    %343 = vmatpush1.bf16.msra.mxu0 0
    %344 = vmatprep.subr.bf16.mxu0 0
    %345 = vmatpush1.bf16.msra.mxu0 0
    %346 = vmatprep.subr.bf16.mxu0 0
    %347 = vmatpush1.bf16.msra.mxu0 0
    %348 = vmatprep.subr.bf16.mxu0 0
    %349 = vmatpush1.bf16.msra.mxu0 0
    %350 = vmatprep.subr.bf16.mxu0 0
    %351 = vmatpush1.bf16.msra.mxu0 0
    %352 = vmatprep.subr.bf16.mxu0 0
    %353 = vmatpush1.bf16.msra.mxu0 0
    %354 = vmatprep.subr.bf16.mxu0 0
    %355 = vmatpush1.bf16.msra.mxu0 0
    %356 = vmatprep.mubr.bf16.mxu0 0
    %357 = vmatmul.mubr.bf16.gmra.mrb[0].mxu0 %v142
    %v358 = vpop.f32.mrb[0].mxu0
    %v359 = vadd.f32 %v99, %v358
    %v360 = vpop.f32.mrb[0].mxu0
    %v361 = vadd.f32 %v103, %v360
    %v362 = vpop.f32.mrb[0].mxu0
    %v363 = vadd.f32 %v99, %v362
    %v364 = vpop.f32.mrb[0].mxu0
    %v365 = vadd.f32 %v103, %v364
    %366 = vmatprep.mubr.bf16.mxu0 0
    %367 = vmatmul.mubr.bf16.gmra.mrb[0].mxu0 %v145
    %v368 = vpop.f32.mrb[0].mxu0
    %v369 = vadd.f32 %v99, %v368
    %v370 = vpop.f32.mrb[0].mxu0
    %v371 = vadd.f32 %v103, %v370
    %v372 = vpop.f32.mrb[0].mxu0
    %v373 = vadd.f32 %v99, %v372
    %v374 = vpop.f32.mrb[0].mxu0
    %v375 = vadd.f32 %v103, %v374
    %376 = vmatprep.mubr.bf16.mxu0 0
    %377 = vmatmul.mubr.bf16.gmra.mrb[0].mxu0 %v148
    %v378 = vpop.f32.mrb[0].mxu0
    %v379 = vadd.f32 %v99, %v378
    %v380 = vpop.f32.mrb[0].mxu0
    %v381 = vadd.f32 %v103, %v380
    %v382 = vpop.f32.mrb[0].mxu0
    %v383 = vadd.f32 %v99, %v382
    %v384 = vpop.f32.mrb[0].mxu0
    %v385 = vadd.f32 %v103, %v384
    %386 = vmatprep.mubr.bf16.mxu0 0
    %387 = vmatmul.mubr.bf16.gmra.mrb[0].mxu0 %v151
    %v388 = vpop.f32.mrb[0].mxu0
    %v389 = vadd.f32 %v99, %v388
    %v390 = vpop.f32.mrb[0].mxu0
    %v391 = vadd.f32 %v103, %v390
    %v392 = vpop.f32.mrb[0].mxu0
    %v393 = vadd.f32 %v99, %v392
    %v394 = vpop.f32.mrb[0].mxu0
    %v395 = vadd.f32 %v103, %v394
    %396 = vdwg.mxu0
    %397 = vmatprep.subr.bf16.mxu0 %v176
    %398 = vmatpush1.bf16.msra.mxu0 %v173
    %399 = vmatprep.subr.bf16.mxu0 0
    %400 = vmatpush1.bf16.msra.mxu0 0
    %401 = vmatprep.subr.bf16.mxu0 0
    %402 = vmatpush1.bf16.msra.mxu0 0
    %403 = vmatprep.subr.bf16.mxu0 0
    %404 = vmatpush1.bf16.msra.mxu0 0
    %405 = vmatprep.subr.bf16.mxu0 0
    %406 = vmatpush1.bf16.msra.mxu0 0
    %407 = vmatprep.subr.bf16.mxu0 0
    %408 = vmatpush1.bf16.msra.mxu0 0
    %409 = vmatprep.subr.bf16.mxu0 0
    %410 = vmatpush1.bf16.msra.mxu0 0
    %411 = vmatprep.subr.bf16.mxu0 0
    %412 = vmatpush1.bf16.msra.mxu0 0
    %413 = vmatprep.subr.bf16.mxu0 0
    %414 = vmatpush1.bf16.msra.mxu0 0
    %415 = vmatprep.subr.bf16.mxu0 0
    %416 = vmatpush1.bf16.msra.mxu0 0
    %417 = vmatprep.subr.bf16.mxu0 0
    %418 = vmatpush1.bf16.msra.mxu0 0
    %419 = vmatprep.subr.bf16.mxu0 0
    %420 = vmatpush1.bf16.msra.mxu0 0
    %421 = vmatprep.subr.bf16.mxu0 0
    %422 = vmatpush1.bf16.msra.mxu0 0
    %423 = vmatprep.subr.bf16.mxu0 0
    %424 = vmatpush1.bf16.msra.mxu0 0
    %425 = vmatprep.subr.bf16.mxu0 0
    %426 = vmatpush1.bf16.msra.mxu0 0
    %427 = vmatprep.subr.bf16.mxu0 0
    %428 = vmatpush1.bf16.msra.mxu0 0
    %429 = vmatprep.mubr.bf16.mxu0 0
    %430 = vmatmul.mubr.bf16.gmra.mrb[0].mxu0 %v142
    %v431 = vpop.f32.mrb[0].mxu0
    %v432 = vadd.f32 %v107, %v431
    %v433 = vpop.f32.mrb[0].mxu0
    %v434 = vadd.f32 %v111, %v433
    %v435 = vpop.f32.mrb[0].mxu0
    %v436 = vadd.f32 %v107, %v435
    %v437 = vpop.f32.mrb[0].mxu0
    %v438 = vadd.f32 %v111, %v437
    %439 = vmatprep.mubr.bf16.mxu0 0
    %440 = vmatmul.mubr.bf16.gmra.mrb[0].mxu0 %v145
    %v441 = vpop.f32.mrb[0].mxu0
    %v442 = vadd.f32 %v107, %v441
    %v443 = vpop.f32.mrb[0].mxu0
    %v444 = vadd.f32 %v111, %v443
    %v445 = vpop.f32.mrb[0].mxu0
    %v446 = vadd.f32 %v107, %v445
    %v447 = vpop.f32.mrb[0].mxu0
    %v448 = vadd.f32 %v111, %v447
    %449 = vmatprep.mubr.bf16.mxu0 0
    %450 = vmatmul.mubr.bf16.gmra.mrb[0].mxu0 %v148
    %v451 = vpop.f32.mrb[0].mxu0
    %v452 = vadd.f32 %v107, %v451
    %v453 = vpop.f32.mrb[0].mxu0
    %v454 = vadd.f32 %v111, %v453
    %v455 = vpop.f32.mrb[0].mxu0
    %v456 = vadd.f32 %v107, %v455
    %v457 = vpop.f32.mrb[0].mxu0
    %v458 = vadd.f32 %v111, %v457
    %459 = vmatprep.mubr.bf16.mxu0 0
    %460 = vmatmul.mubr.bf16.gmra.mrb[0].mxu0 %v151
    %v461 = vpop.f32.mrb[0].mxu0
    %v462 = vadd.f32 %v107, %v461
    %v463 = vpop.f32.mrb[0].mxu0
    %v464 = vadd.f32 %v111, %v463
    %v465 = vpop.f32.mrb[0].mxu0
    %v466 = vadd.f32 %v107, %v465
    %v467 = vpop.f32.mrb[0].mxu0
    %v468 = vadd.f32 %v111, %v467
    %469 = vdwg.mxu0
    %470 = vst [vmem:[#allocation2] sm:$0xff] %v213
    %471 = vst [vmem:[#allocation2 + $0x8] sm:$0xff] %v215
    %472 = vst [vmem:[#allocation2 + $0x10] sm:$0xff] %v286
    %473 = vst [vmem:[#allocation2 + $0x18] sm:$0xff] %v288
    %474 = vst [vmem:[#allocation2 + $0x20] sm:$0xff] %v359
    %475 = vst [vmem:[#allocation2 + $0x28] sm:$0xff] %v361
    %476 = vst [vmem:[#allocation2 + $0x30] sm:$0xff] %v432
    %477 = vst [vmem:[#allocation2 + $0x38] sm:$0xff] %v434
    %478 = vst [vmem:[#allocation2 + $0x40] sm:$0xff] %v217
    %479 = vst [vmem:[#allocation2 + $0x48] sm:$0xff] %v219
    %480 = vst [vmem:[#allocation2 + $0x50] sm:$0xff] %v290
    %481 = vst [vmem:[#allocation2 + $0x58] sm:$0xff] %v292
    %482 = vst [vmem:[#allocation2 + $0x60] sm:$0xff] %v363
    %483 = vst [vmem:[#allocation2 + $0x68] sm:$0xff] %v365
    %484 = vst [vmem:[#allocation2 + $0x70] sm:$0xff] %v436
    %485 = vst [vmem:[#allocation2 + $0x78] sm:$0xff] %v438
    %486 = vst [vmem:[#allocation2 + $0x80] sm:$0xff] %v223
    %487 = vst [vmem:[#allocation2 + $0x88] sm:$0xff] %v225
    %488 = vst [vmem:[#allocation2 + $0x90] sm:$0xff] %v296
    %489 = vst [vmem:[#allocation2 + $0x98] sm:$0xff] %v298
    %490 = vst [vmem:[#allocation2 + $0xa0] sm:$0xff] %v369
    %491 = vst [vmem:[#allocation2 + $0xa8] sm:$0xff] %v371
    %492 = vst [vmem:[#allocation2 + $0xb0] sm:$0xff] %v442
    %493 = vst [vmem:[#allocation2 + $0xb8] sm:$0xff] %v444
    %494 = vst [vmem:[#allocation2 + $0xc0] sm:$0xff] %v227
    %495 = vst [vmem:[#allocation2 + $0xc8] sm:$0xff] %v229
    %496 = vst [vmem:[#allocation2 + $0xd0] sm:$0xff] %v300
    %497 = vst [vmem:[#allocation2 + $0xd8] sm:$0xff] %v302
    %498 = vst [vmem:[#allocation2 + $0xe0] sm:$0xff] %v373
    %499 = vst [vmem:[#allocation2 + $0xe8] sm:$0xff] %v375
    %500 = vst [vmem:[#allocation2 + $0xf0] sm:$0xff] %v446
    %501 = vst [vmem:[#allocation2 + $0xf8] sm:$0xff] %v448
    %502 = vst [vmem:[#allocation2 + $0x100] sm:$0xff] %v233
    %503 = vst [vmem:[#allocation2 + $0x108] sm:$0xff] %v235
    %504 = vst [vmem:[#allocation2 + $0x110] sm:$0xff] %v306
    %505 = vst [vmem:[#allocation2 + $0x118] sm:$0xff] %v308
    %506 = vst [vmem:[#allocation2 + $0x120] sm:$0xff] %v379
    %507 = vst [vmem:[#allocation2 + $0x128] sm:$0xff] %v381
    %508 = vst [vmem:[#allocation2 + $0x130] sm:$0xff] %v452
    %509 = vst [vmem:[#allocation2 + $0x138] sm:$0xff] %v454
    %510 = vst [vmem:[#allocation2 + $0x140] sm:$0xff] %v237
    %511 = vst [vmem:[#allocation2 + $0x148] sm:$0xff] %v239
    %512 = vst [vmem:[#allocation2 + $0x150] sm:$0xff] %v310
    %513 = vst [vmem:[#allocation2 + $0x158] sm:$0xff] %v312
    %514 = vst [vmem:[#allocation2 + $0x160] sm:$0xff] %v383
    %515 = vst [vmem:[#allocation2 + $0x168] sm:$0xff] %v385
    %516 = vst [vmem:[#allocation2 + $0x170] sm:$0xff] %v456
    %517 = vst [vmem:[#allocation2 + $0x178] sm:$0xff] %v458
    %518 = vst [vmem:[#allocation2 + $0x180] sm:$0xff] %v243
    %519 = vst [vmem:[#allocation2 + $0x188] sm:$0xff] %v245
    %520 = vst [vmem:[#allocation2 + $0x190] sm:$0xff] %v316
    %521 = vst [vmem:[#allocation2 + $0x198] sm:$0xff] %v318
    %522 = vst [vmem:[#allocation2 + $0x1a0] sm:$0xff] %v389
    %523 = vst [vmem:[#allocation2 + $0x1a8] sm:$0xff] %v391
    %524 = vst [vmem:[#allocation2 + $0x1b0] sm:$0xff] %v462
    %525 = vst [vmem:[#allocation2 + $0x1b8] sm:$0xff] %v464
    %526 = vst [vmem:[#allocation2 + $0x1c0] sm:$0xff] %v247
    %527 = vst [vmem:[#allocation2 + $0x1c8] sm:$0xff] %v249
    %528 = vst [vmem:[#allocation2 + $0x1d0] sm:$0xff] %v320
    %529 = vst [vmem:[#allocation2 + $0x1d8] sm:$0xff] %v322
    %530 = vst [vmem:[#allocation2 + $0x1e0] sm:$0xff] %v393
    %531 = vst [vmem:[#allocation2 + $0x1e8] sm:$0xff] %v395
    %532 = vst [vmem:[#allocation2 + $0x1f0] sm:$0xff] %v466
    %533 = vst [vmem:[#allocation2 + $0x1f8] sm:$0xff] %v468
    %v534 = vld [vmem:[#allocation2] sm:$0xff]
    %v535 = vld [vmem:[#allocation2 + $0x8] sm:$0xff]
    %v536 = vld [vmem:[#allocation2 + $0x10] sm:$0xff]
    %v537 = vld [vmem:[#allocation2 + $0x18] sm:$0xff]
    %v538 = vld [vmem:[#allocation7] sm:$0xff]
    %v539 = vld [vmem:[#allocation7 + $0x8] sm:$0xff]
    %v540 = vld [vmem:[#allocation7 + $0x10] sm:$0xff]
    %v541 = vld [vmem:[#allocation7 + $0x18] sm:$0xff]
    %v542 = vld [vmem:[#allocation7 + $0x20] sm:$0xff]
    %v543 = vld [vmem:[#allocation7 + $0x28] sm:$0xff]
    %v544 = vld [vmem:[#allocation7 + $0x30] sm:$0xff]
    %v545 = vld [vmem:[#allocation7 + $0x38] sm:$0xff]
    %v546 = vld [vmem:[#allocation7 + $0x40] sm:$0xff]
    %v547 = vld [vmem:[#allocation7 + $0x48] sm:$0xff]
    %v548 = vld [vmem:[#allocation7 + $0x50] sm:$0xff]
    %v549 = vld [vmem:[#allocation7 + $0x58] sm:$0xff]
    %v550 = vld [vmem:[#allocation7 + $0x60] sm:$0xff]
    %v551 = vld [vmem:[#allocation7 + $0x68] sm:$0xff]
    %v552 = vld [vmem:[#allocation7 + $0x70] sm:$0xff]
    %v553 = vld [vmem:[#allocation7 + $0x78] sm:$0xff]
    %v554 = vld [vmem:[#allocation7 + $0x80] sm:$0xff]
    %v555 = vld [vmem:[#allocation7 + $0x88] sm:$0xff]
    %v556 = vld [vmem:[#allocation7 + $0x90] sm:$0xff]
    %v557 = vld [vmem:[#allocation7 + $0x98] sm:$0xff]
    %v558 = vld [vmem:[#allocation7 + $0xa0] sm:$0xff]
    %v559 = vld [vmem:[#allocation7 + $0xa8] sm:$0xff]
    %v560 = vld [vmem:[#allocation7 + $0xb0] sm:$0xff]
    %v561 = vld [vmem:[#allocation7 + $0xb8] sm:$0xff]
    %v562 = vld [vmem:[#allocation7 + $0xc0] sm:$0xff]
    %v563 = vld [vmem:[#allocation7 + $0xc8] sm:$0xff]
    %v564 = vld [vmem:[#allocation7 + $0xd0] sm:$0xff]
    %v565 = vld [vmem:[#allocation7 + $0xd8] sm:$0xff]
    %v566 = vld [vmem:[#allocation7 + $0xe0] sm:$0xff]
    %v567 = vld [vmem:[#allocation7 + $0xe8] sm:$0xff]
    %v568 = vld [vmem:[#allocation7 + $0xf0] sm:$0xff]
    %v569 = vld [vmem:[#allocation7 + $0xf8] sm:$0xff]
    %v602 = vunpack.c.l.b16 %v538
    %v603 = vunpack.c.h.b16 %v538
    %v604 = vunpack.c.l.b16 %v539
    %v605 = vunpack.c.h.b16 %v539
    %v606 = vunpack.c.l.b16 %v540
    %v607 = vunpack.c.h.b16 %v540
    %v608 = vunpack.c.l.b16 %v541
    %v609 = vunpack.c.h.b16 %v541
    %v610 = vunpack.c.l.b16 %v542
    %v611 = vunpack.c.h.b16 %v542
    %v612 = vunpack.c.l.b16 %v543
    %v613 = vunpack.c.h.b16 %v543
    %v614 = vunpack.c.l.b16 %v544
    %v615 = vunpack.c.h.b16 %v544
    %v616 = vunpack.c.l.b16 %v545
    %v617 = vunpack.c.h.b16 %v545
    %v618 = vunpack.c.l.b16 %v546
    %v619 = vunpack.c.h.b16 %v546
    %v620 = vunpack.c.l.b16 %v547
    %v621 = vunpack.c.h.b16 %v547
    %v622 = vunpack.c.l.b16 %v548
    %v623 = vunpack.c.h.b16 %v548
    %v624 = vunpack.c.l.b16 %v549
    %v625 = vunpack.c.h.b16 %v549
    %v626 = vunpack.c.l.b16 %v550
    %v627 = vunpack.c.h.b16 %v550
    %v628 = vunpack.c.l.b16 %v551
    %v629 = vunpack.c.h.b16 %v551
    %v630 = vunpack.c.l.b16 %v552
    %v631 = vunpack.c.h.b16 %v552
    %v632 = vunpack.c.l.b16 %v553
    %v633 = vunpack.c.h.b16 %v553
    %v634 = vunpack.c.l.b16 %v554
    %v635 = vunpack.c.h.b16 %v554
    %v636 = vunpack.c.l.b16 %v555
    %v637 = vunpack.c.h.b16 %v555
    %v638 = vunpack.c.l.b16 %v556
    %v639 = vunpack.c.h.b16 %v556
    %v640 = vunpack.c.l.b16 %v557
    %v641 = vunpack.c.h.b16 %v557
    %v642 = vunpack.c.l.b16 %v558
    %v643 = vunpack.c.h.b16 %v558
    %v644 = vunpack.c.l.b16 %v559
    %v645 = vunpack.c.h.b16 %v559
    %v646 = vunpack.c.l.b16 %v560
    %v647 = vunpack.c.h.b16 %v560
    %v648 = vunpack.c.l.b16 %v561
    %v649 = vunpack.c.h.b16 %v561
    %v650 = vunpack.c.l.b16 %v562
    %v651 = vunpack.c.h.b16 %v562
    %v652 = vunpack.c.l.b16 %v563
    %v653 = vunpack.c.h.b16 %v563
    %v654 = vunpack.c.l.b16 %v564
    %v655 = vunpack.c.h.b16 %v564
    %v656 = vunpack.c.l.b16 %v565
    %v657 = vunpack.c.h.b16 %v565
    %v658 = vunpack.c.l.b16 %v566
    %v659 = vunpack.c.h.b16 %v566
    %v660 = vunpack.c.l.b16 %v567
    %v661 = vunpack.c.h.b16 %v567
    %v662 = vunpack.c.l.b16 %v568
    %v663 = vunpack.c.h.b16 %v568
    %v664 = vunpack.c.l.b16 %v569
    %v665 = vunpack.c.h.b16 %v569
    %v666 = vpack.c.b16 %v606, %v602
    %v667 = vpack.c.b16 %v607, %v603
    %v668 = vpack.c.b16 %v608, %v604
    %v669 = vpack.c.b16 %v609, %v605
    %v670 = vpack.c.b16 %v614, %v610
    %v671 = vpack.c.b16 %v615, %v611
    %v672 = vpack.c.b16 %v616, %v612
    %v673 = vpack.c.b16 %v617, %v613
    %v674 = vpack.c.b16 %v622, %v618
    %v675 = vpack.c.b16 %v623, %v619
    %v676 = vpack.c.b16 %v624, %v620
    %v677 = vpack.c.b16 %v625, %v621
    %v678 = vpack.c.b16 %v630, %v626
    %v679 = vpack.c.b16 %v631, %v627
    %v680 = vpack.c.b16 %v632, %v628
    %v681 = vpack.c.b16 %v633, %v629
    %v682 = vpack.c.b16 %v638, %v634
    %v683 = vpack.c.b16 %v639, %v635
    %v684 = vpack.c.b16 %v640, %v636
    %v685 = vpack.c.b16 %v641, %v637
    %v686 = vpack.c.b16 %v646, %v642
    %v687 = vpack.c.b16 %v647, %v643
    %v688 = vpack.c.b16 %v648, %v644
    %v689 = vpack.c.b16 %v649, %v645
    %v690 = vpack.c.b16 %v654, %v650
    %v691 = vpack.c.b16 %v655, %v651
    %v692 = vpack.c.b16 %v656, %v652
    %v693 = vpack.c.b16 %v657, %v653
    %v694 = vpack.c.b16 %v662, %v658
    %v695 = vpack.c.b16 %v663, %v659
    %v696 = vpack.c.b16 %v664, %v660
    %v697 = vpack.c.b16 %v665, %v661
    %730 = vmatprep.subr.bf16.mxu0 %v667
    %731 = vmatpush1.bf16.msra.mxu0 %v666
    %732 = vmatprep.subr.bf16.mxu0 %v671
    %733 = vmatpush1.bf16.msra.mxu0 %v670
    %734 = vmatprep.subr.bf16.mxu0 %v675
    %735 = vmatpush1.bf16.msra.mxu0 %v674
    %736 = vmatprep.subr.bf16.mxu0 %v679
    %737 = vmatpush1.bf16.msra.mxu0 %v678
    %738 = vmatprep.subr.bf16.mxu0 %v683
    %739 = vmatpush1.bf16.msra.mxu0 %v682
    %740 = vmatprep.subr.bf16.mxu0 %v687
    %741 = vmatpush1.bf16.msra.mxu0 %v686
    %742 = vmatprep.subr.bf16.mxu0 %v691
    %743 = vmatpush1.bf16.msra.mxu0 %v690
    %744 = vmatprep.subr.bf16.mxu0 %v695
    %745 = vmatpush1.bf16.msra.mxu0 %v694
    %746 = vmatprep.subr.bf16.mxu0 0
    %747 = vmatpush1.bf16.msra.mxu0 0
    %748 = vmatprep.subr.bf16.mxu0 0
    %749 = vmatpush1.bf16.msra.mxu0 0
    %750 = vmatprep.subr.bf16.mxu0 0
    %751 = vmatpush1.bf16.msra.mxu0 0
    %752 = vmatprep.subr.bf16.mxu0 0
    %753 = vmatpush1.bf16.msra.mxu0 0
    %754 = vmatprep.subr.bf16.mxu0 0
    %755 = vmatpush1.bf16.msra.mxu0 0
    %756 = vmatprep.subr.bf16.mxu0 0
    %757 = vmatpush1.bf16.msra.mxu0 0
    %758 = vmatprep.subr.bf16.mxu0 0
    %759 = vmatpush1.bf16.msra.mxu0 0
    %760 = vmatprep.subr.bf16.mxu0 0
    %761 = vmatpush1.bf16.msra.mxu0 0
    %762 = vmatprep.mubr.bf16.mxu0 0
    %763 = vmatmul.mubr.bf16.gmra.mrb[0].mxu0 0
    %v764 = vpop.f32.mrb[0].mxu0
    %v765 = vadd.f32 0.0, %v764
    %v766 = vpop.f32.mrb[0].mxu0
    %v767 = vadd.f32 0.0, %v766
    %v768 = vpop.f32.mrb[0].mxu0
    %v769 = vpop.f32.mrb[0].mxu0
    %770 = vdwg.mxu0
    %771 = vmatprep.subr.bf16.mxu0 %v669
    %772 = vmatpush1.bf16.msra.mxu0 %v668
    %773 = vmatprep.subr.bf16.mxu0 %v673
    %774 = vmatpush1.bf16.msra.mxu0 %v672
    %775 = vmatprep.subr.bf16.mxu0 %v677
    %776 = vmatpush1.bf16.msra.mxu0 %v676
    %777 = vmatprep.subr.bf16.mxu0 %v681
    %778 = vmatpush1.bf16.msra.mxu0 %v680
    %779 = vmatprep.subr.bf16.mxu0 %v685
    %780 = vmatpush1.bf16.msra.mxu0 %v684
    %781 = vmatprep.subr.bf16.mxu0 %v689
    %782 = vmatpush1.bf16.msra.mxu0 %v688
    %783 = vmatprep.subr.bf16.mxu0 %v693
    %784 = vmatpush1.bf16.msra.mxu0 %v692
    %785 = vmatprep.subr.bf16.mxu0 %v697
    %786 = vmatpush1.bf16.msra.mxu0 %v696
    %787 = vmatprep.subr.bf16.mxu0 0
    %788 = vmatpush1.bf16.msra.mxu0 0
    %789 = vmatprep.subr.bf16.mxu0 0
    %790 = vmatpush1.bf16.msra.mxu0 0
    %791 = vmatprep.subr.bf16.mxu0 0
    %792 = vmatpush1.bf16.msra.mxu0 0
    %793 = vmatprep.subr.bf16.mxu0 0
    %794 = vmatpush1.bf16.msra.mxu0 0
    %795 = vmatprep.subr.bf16.mxu0 0
    %796 = vmatpush1.bf16.msra.mxu0 0
    %797 = vmatprep.subr.bf16.mxu0 0
    %798 = vmatpush1.bf16.msra.mxu0 0
    %799 = vmatprep.subr.bf16.mxu0 0
    %800 = vmatpush1.bf16.msra.mxu0 0
    %801 = vmatprep.subr.bf16.mxu0 0
    %802 = vmatpush1.bf16.msra.mxu0 0
    %803 = vmatprep.mubr.bf16.mxu0 0
    %804 = vmatmul.mubr.bf16.gmra.mrb[0].mxu0 0
    %v805 = vpop.f32.mrb[0].mxu0
    %v806 = vadd.f32 0.0, %v805
    %v807 = vpop.f32.mrb[0].mxu0
    %v808 = vadd.f32 0.0, %v807
    %v809 = vpop.f32.mrb[0].mxu0
    %v810 = vpop.f32.mrb[0].mxu0
    %811 = vdwg.mxu0
    %v812 = vadd.f32 %v534, %v765
    %v813 = vadd.f32 %v535, %v767
    %v814 = vadd.f32 %v536, %v806
    %v815 = vadd.f32 %v537, %v808
    %v816 = vld [vmem:[#allocation2 + $0x1e0] sm:$0xff]
    %v817 = vld [vmem:[#allocation2 + $0x1e8] sm:$0xff]
    %v818 = vld [vmem:[#allocation2 + $0x1f0] sm:$0xff]
    %v819 = vld [vmem:[#allocation2 + $0x1f8] sm:$0xff]
    %s820 = scalar_lea.vmem [#allocation7], 256
    %v821 = vld [vmem:[%s820] sm:$0xff]
    %v822 = vld [vmem:[%s820 + $0x8] sm:$0xff]
    %v823 = vld [vmem:[%s820 + $0x10] sm:$0xff]
    %v824 = vld [vmem:[%s820 + $0x18] sm:$0xff]
    %v825 = vld [vmem:[%s820 + $0x20] sm:$0xff]
    %v826 = vld [vmem:[%s820 + $0x28] sm:$0xff]
    %v827 = vld [vmem:[%s820 + $0x30] sm:$0xff]
    %v828 = vld [vmem:[%s820 + $0x38] sm:$0xff]
    %v829 = vld [vmem:[%s820 + $0x40] sm:$0xff]
    %v830 = vld [vmem:[%s820 + $0x48] sm:$0xff]
    %v831 = vld [vmem:[%s820 + $0x50] sm:$0xff]
    %v832 = vld [vmem:[%s820 + $0x58] sm:$0xff]
    %v833 = vld [vmem:[%s820 + $0x60] sm:$0xff]
    %v834 = vld [vmem:[%s820 + $0x68] sm:$0xff]
    %v835 = vld [vmem:[%s820 + $0x70] sm:$0xff]
    %v836 = vld [vmem:[%s820 + $0x78] sm:$0xff]
    %v837 = vld [vmem:[%s820 + $0x80] sm:$0xff]
    %v838 = vld [vmem:[%s820 + $0x88] sm:$0xff]
    %v839 = vld [vmem:[%s820 + $0x90] sm:$0xff]
    %v840 = vld [vmem:[%s820 + $0x98] sm:$0xff]
    %v841 = vld [vmem:[%s820 + $0xa0] sm:$0xff]
    %v842 = vld [vmem:[%s820 + $0xa8] sm:$0xff]
    %v843 = vld [vmem:[%s820 + $0xb0] sm:$0xff]
    %v844 = vld [vmem:[%s820 + $0xb8] sm:$0xff]
    %v845 = vld [vmem:[%s820 + $0xc0] sm:$0xff]
    %v846 = vld [vmem:[%s820 + $0xc8] sm:$0xff]
    %v847 = vld [vmem:[%s820 + $0xd0] sm:$0xff]
    %v848 = vld [vmem:[%s820 + $0xd8] sm:$0xff]
    %v849 = vld [vmem:[%s820 + $0xe0] sm:$0xff]
    %v850 = vld [vmem:[%s820 + $0xe8] sm:$0xff]
    %v851 = vld [vmem:[%s820 + $0xf0] sm:$0xff]
    %v852 = vld [vmem:[%s820 + $0xf8] sm:$0xff]
    %v885 = vunpack.c.l.b16 %v821
    %v886 = vunpack.c.h.b16 %v821
    %v887 = vunpack.c.l.b16 %v822
    %v888 = vunpack.c.h.b16 %v822
    %v889 = vunpack.c.l.b16 %v823
    %v890 = vunpack.c.h.b16 %v823
    %v891 = vunpack.c.l.b16 %v824
    %v892 = vunpack.c.h.b16 %v824
    %v893 = vunpack.c.l.b16 %v825
    %v894 = vunpack.c.h.b16 %v825
    %v895 = vunpack.c.l.b16 %v826
    %v896 = vunpack.c.h.b16 %v826
    %v897 = vunpack.c.l.b16 %v827
    %v898 = vunpack.c.h.b16 %v827
    %v899 = vunpack.c.l.b16 %v828
    %v900 = vunpack.c.h.b16 %v828
    %v901 = vunpack.c.l.b16 %v829
    %v902 = vunpack.c.h.b16 %v829
    %v903 = vunpack.c.l.b16 %v830
    %v904 = vunpack.c.h.b16 %v830
    %v905 = vunpack.c.l.b16 %v831
    %v906 = vunpack.c.h.b16 %v831
    %v907 = vunpack.c.l.b16 %v832
    %v908 = vunpack.c.h.b16 %v832
    %v909 = vunpack.c.l.b16 %v833
    %v910 = vunpack.c.h.b16 %v833
    %v911 = vunpack.c.l.b16 %v834
    %v912 = vunpack.c.h.b16 %v834
    %v913 = vunpack.c.l.b16 %v835
    %v914 = vunpack.c.h.b16 %v835
    %v915 = vunpack.c.l.b16 %v836
    %v916 = vunpack.c.h.b16 %v836
    %v917 = vunpack.c.l.b16 %v837
    %v918 = vunpack.c.h.b16 %v837
    %v919 = vunpack.c.l.b16 %v838
    %v920 = vunpack.c.h.b16 %v838
    %v921 = vunpack.c.l.b16 %v839
    %v922 = vunpack.c.h.b16 %v839
    %v923 = vunpack.c.l.b16 %v840
    %v924 = vunpack.c.h.b16 %v840
    %v925 = vunpack.c.l.b16 %v841
    %v926 = vunpack.c.h.b16 %v841
    %v927 = vunpack.c.l.b16 %v842
    %v928 = vunpack.c.h.b16 %v842
    %v929 = vunpack.c.l.b16 %v843
    %v930 = vunpack.c.h.b16 %v843
    %v931 = vunpack.c.l.b16 %v844
    %v932 = vunpack.c.h.b16 %v844
    %v933 = vunpack.c.l.b16 %v845
    %v934 = vunpack.c.h.b16 %v845
    %v935 = vunpack.c.l.b16 %v846
    %v936 = vunpack.c.h.b16 %v846
    %v937 = vunpack.c.l.b16 %v847
    %v938 = vunpack.c.h.b16 %v847
    %v939 = vunpack.c.l.b16 %v848
    %v940 = vunpack.c.h.b16 %v848
    %v941 = vunpack.c.l.b16 %v849
    %v942 = vunpack.c.h.b16 %v849
    %v943 = vunpack.c.l.b16 %v850
    %v944 = vunpack.c.h.b16 %v850
    %v945 = vunpack.c.l.b16 %v851
    %v946 = vunpack.c.h.b16 %v851
    %v947 = vunpack.c.l.b16 %v852
    %v948 = vunpack.c.h.b16 %v852
    %v949 = vpack.c.b16 %v889, %v885
    %v950 = vpack.c.b16 %v890, %v886
    %v951 = vpack.c.b16 %v891, %v887
    %v952 = vpack.c.b16 %v892, %v888
    %v953 = vpack.c.b16 %v897, %v893
    %v954 = vpack.c.b16 %v898, %v894
    %v955 = vpack.c.b16 %v899, %v895
    %v956 = vpack.c.b16 %v900, %v896
    %v957 = vpack.c.b16 %v905, %v901
    %v958 = vpack.c.b16 %v906, %v902
    %v959 = vpack.c.b16 %v907, %v903
    %v960 = vpack.c.b16 %v908, %v904
    %v961 = vpack.c.b16 %v913, %v909
    %v962 = vpack.c.b16 %v914, %v910
    %v963 = vpack.c.b16 %v915, %v911
    %v964 = vpack.c.b16 %v916, %v912
    %v965 = vpack.c.b16 %v921, %v917
    %v966 = vpack.c.b16 %v922, %v918
    %v967 = vpack.c.b16 %v923, %v919
    %v968 = vpack.c.b16 %v924, %v920
    %v969 = vpack.c.b16 %v929, %v925
    %v970 = vpack.c.b16 %v930, %v926
    %v971 = vpack.c.b16 %v931, %v927
    %v972 = vpack.c.b16 %v932, %v928
    %v973 = vpack.c.b16 %v937, %v933
    %v974 = vpack.c.b16 %v938, %v934
    %v975 = vpack.c.b16 %v939, %v935
    %v976 = vpack.c.b16 %v940, %v936
    %v977 = vpack.c.b16 %v945, %v941
    %v978 = vpack.c.b16 %v946, %v942
    %v979 = vpack.c.b16 %v947, %v943
    %v980 = vpack.c.b16 %v948, %v944
    %1013 = vmatprep.subr.bf16.mxu0 %v950
    %1014 = vmatpush1.bf16.msra.mxu0 %v949
    %1015 = vmatprep.subr.bf16.mxu0 %v954
    %1016 = vmatpush1.bf16.msra.mxu0 %v953
    %1017 = vmatprep.subr.bf16.mxu0 %v958
    %1018 = vmatpush1.bf16.msra.mxu0 %v957
    %1019 = vmatprep.subr.bf16.mxu0 %v962
    %1020 = vmatpush1.bf16.msra.mxu0 %v961
    %1021 = vmatprep.subr.bf16.mxu0 %v966
    %1022 = vmatpush1.bf16.msra.mxu0 %v965
    %1023 = vmatprep.subr.bf16.mxu0 %v970
    %1024 = vmatpush1.bf16.msra.mxu0 %v969
    %1025 = vmatprep.subr.bf16.mxu0 %v974
    %1026 = vmatpush1.bf16.msra.mxu0 %v973
    %1027 = vmatprep.subr.bf16.mxu0 %v978
    %1028 = vmatpush1.bf16.msra.mxu0 %v977
    %1029 = vmatprep.subr.bf16.mxu0 0
    %1030 = vmatpush1.bf16.msra.mxu0 0
    %1031 = vmatprep.subr.bf16.mxu0 0
    %1032 = vmatpush1.bf16.msra.mxu0 0
    %1033 = vmatprep.subr.bf16.mxu0 0
    %1034 = vmatpush1.bf16.msra.mxu0 0
    %1035 = vmatprep.subr.bf16.mxu0 0
    %1036 = vmatpush1.bf16.msra.mxu0 0
    %1037 = vmatprep.subr.bf16.mxu0 0
    %1038 = vmatpush1.bf16.msra.mxu0 0
    %1039 = vmatprep.subr.bf16.mxu0 0
    %1040 = vmatpush1.bf16.msra.mxu0 0
    %1041 = vmatprep.subr.bf16.mxu0 0
    %1042 = vmatpush1.bf16.msra.mxu0 0
    %1043 = vmatprep.subr.bf16.mxu0 0
    %1044 = vmatpush1.bf16.msra.mxu0 0
    %1045 = vmatprep.mubr.bf16.mxu0 0
    %1046 = vmatmul.mubr.bf16.gmra.mrb[0].mxu0 0
    %v1047 = vpop.f32.mrb[0].mxu0
    %v1048 = vadd.f32 0.0, %v1047
    %v1049 = vpop.f32.mrb[0].mxu0
    %v1050 = vadd.f32 0.0, %v1049
    %v1051 = vpop.f32.mrb[0].mxu0
    %v1052 = vpop.f32.mrb[0].mxu0
    %1053 = vdwg.mxu0
    %1054 = vmatprep.subr.bf16.mxu0 %v952
    %1055 = vmatpush1.bf16.msra.mxu0 %v951
    %1056 = vmatprep.subr.bf16.mxu0 %v956
    %1057 = vmatpush1.bf16.msra.mxu0 %v955
    %1058 = vmatprep.subr.bf16.mxu0 %v960
    %1059 = vmatpush1.bf16.msra.mxu0 %v959
    %1060 = vmatprep.subr.bf16.mxu0 %v964
    %1061 = vmatpush1.bf16.msra.mxu0 %v963
    %1062 = vmatprep.subr.bf16.mxu0 %v968
    %1063 = vmatpush1.bf16.msra.mxu0 %v967
    %1064 = vmatprep.subr.bf16.mxu0 %v972
    %1065 = vmatpush1.bf16.msra.mxu0 %v971
    %1066 = vmatprep.subr.bf16.mxu0 %v976
    %1067 = vmatpush1.bf16.msra.mxu0 %v975
    %1068 = vmatprep.subr.bf16.mxu0 %v980
    %1069 = vmatpush1.bf16.msra.mxu0 %v979
    %1070 = vmatprep.subr.bf16.mxu0 0
    %1071 = vmatpush1.bf16.msra.mxu0 0
    %1072 = vmatprep.subr.bf16.mxu0 0
    %1073 = vmatpush1.bf16.msra.mxu0 0
    %1074 = vmatprep.subr.bf16.mxu0 0
    %1075 = vmatpush1.bf16.msra.mxu0 0
    %1076 = vmatprep.subr.bf16.mxu0 0
    %1077 = vmatpush1.bf16.msra.mxu0 0
    %1078 = vmatprep.subr.bf16.mxu0 0
    %1079 = vmatpush1.bf16.msra.mxu0 0
    %1080 = vmatprep.subr.bf16.mxu0 0
    %1081 = vmatpush1.bf16.msra.mxu0 0
    %1082 = vmatprep.subr.bf16.mxu0 0
    %1083 = vmatpush1.bf16.msra.mxu0 0
    %1084 = vmatprep.subr.bf16.mxu0 0
    %1085 = vmatpush1.bf16.msra.mxu0 0
    %1086 = vmatprep.mubr.bf16.mxu0 0
    %1087 = vmatmul.mubr.bf16.gmra.mrb[0].mxu0 0
    %v1088 = vpop.f32.mrb[0].mxu0
    %v1089 = vadd.f32 0.0, %v1088
    %v1090 = vpop.f32.mrb[0].mxu0
    %v1091 = vadd.f32 0.0, %v1090
    %v1092 = vpop.f32.mrb[0].mxu0
    %v1093 = vpop.f32.mrb[0].mxu0
    %1094 = vdwg.mxu0
    %v1095 = vadd.f32 %v816, %v1048
    %v1096 = vadd.f32 %v817, %v1050
    %v1097 = vadd.f32 %v818, %v1089
    %v1098 = vadd.f32 %v819, %v1091
    %v1099 = vxor.u32 %v812, 2147483648
    %v1100 = vmul.f32 %v1099, 1.442695
    %v1101 = vpow.pop %v1100
    %v1102 = vadd.f32 %v1101, 1.0
    %v1103 = vrcp.pop %v1102
    %v1104 = vmul.f32 1.0, %v1103
    %v1105 = vxor.u32 %v813, 2147483648
    %v1106 = vmul.f32 %v1105, 1.442695
    %v1107 = vpow.pop %v1106
    %v1108 = vadd.f32 %v1107, 1.0
    %v1109 = vrcp.pop %v1108
    %v1110 = vmul.f32 1.0, %v1109
    %v1111 = vtanh.pop %v814
    %v1112 = vxor.u32 %v815, 2147483648
    %v1113 = vmul.f32 %v1112, 1.442695
    %v1114 = vpow.pop %v1113
    %v1115 = vadd.f32 %v1114, 1.0
    %v1116 = vrcp.pop %v1115
    %v1117 = vmul.f32 1.0, %v1116
    %v1118 = vmul.f32 %v1110, 0.0
    %v1119 = vmul.f32 %v1104, %v1111
    %v1120 = vadd.f32 %v1118, %v1119
    %v1121 = vtanh.pop %v1120
    %v1122 = vmul.f32 %v1117, %v1121
    %v1123 = vxor.u32 %v1095, 2147483648
    %v1124 = vmul.f32 %v1123, 1.442695
    %v1125 = vpow.pop %v1124
    %v1126 = vadd.f32 %v1125, 1.0
    %v1127 = vrcp.pop %v1126
    %v1128 = vmul.f32 1.0, %v1127
    %v1129 = vxor.u32 %v1096, 2147483648
    %v1130 = vmul.f32 %v1129, 1.442695
    %v1131 = vpow.pop %v1130
    %v1132 = vadd.f32 %v1131, 1.0
    %v1133 = vrcp.pop %v1132
    %v1134 = vmul.f32 1.0, %v1133
    %v1135 = vtanh.pop %v1097
    %v1136 = vxor.u32 %v1098, 2147483648
    %v1137 = vmul.f32 %v1136, 1.442695
    %v1138 = vpow.pop %v1137
    %v1139 = vadd.f32 %v1138, 1.0
    %v1140 = vrcp.pop %v1139
    %v1141 = vmul.f32 1.0, %v1140
    %v1142 = vmul.f32 %v1134, 0.0
    %v1143 = vmul.f32 %v1128, %v1135
    %v1144 = vadd.f32 %v1142, %v1143
    %v1145 = vtanh.pop %v1144
    %v1146 = vmul.f32 %v1141, %v1145
    %1147 = vst [vmem:[#allocation3] sm:$0xff] %v1122
    %1148 = vst [vmem:[#allocation3 + $0x78] sm:$0xff] %v1146
    %v1149 = vld [vmem:[#allocation2 + $0x40] sm:$0xff]
    %v1150 = vld [vmem:[#allocation2 + $0x48] sm:$0xff]
    %v1151 = vld [vmem:[#allocation2 + $0x50] sm:$0xff]
    %v1152 = vld [vmem:[#allocation2 + $0x58] sm:$0xff]
    %v1153 = vpack.c.bf16 %v1122, %v1122
    %v1154 = vld [vmem:[#allocation7] sm:$0xff]
    %v1155 = vld [vmem:[#allocation7 + $0x8] sm:$0xff]
    %v1156 = vld [vmem:[#allocation7 + $0x10] sm:$0xff]
    %v1157 = vld [vmem:[#allocation7 + $0x18] sm:$0xff]
    %v1158 = vld [vmem:[#allocation7 + $0x20] sm:$0xff]
    %v1159 = vld [vmem:[#allocation7 + $0x28] sm:$0xff]
    %v1160 = vld [vmem:[#allocation7 + $0x30] sm:$0xff]
    %v1161 = vld [vmem:[#allocation7 + $0x38] sm:$0xff]
    %v1162 = vld [vmem:[#allocation7 + $0x40] sm:$0xff]
    %v1163 = vld [vmem:[#allocation7 + $0x48] sm:$0xff]
    %v1164 = vld [vmem:[#allocation7 + $0x50] sm:$0xff]
    %v1165 = vld [vmem:[#allocation7 + $0x58] sm:$0xff]
    %v1166 = vld [vmem:[#allocation7 + $0x60] sm:$0xff]
    %v1167 = vld [vmem:[#allocation7 + $0x68] sm:$0xff]
    %v1168 = vld [vmem:[#allocation7 + $0x70] sm:$0xff]
    %v1169 = vld [vmem:[#allocation7 + $0x78] sm:$0xff]
    %v1170 = vld [vmem:[#allocation7 + $0x80] sm:$0xff]
    %v1171 = vld [vmem:[#allocation7 + $0x88] sm:$0xff]
    %v1172 = vld [vmem:[#allocation7 + $0x90] sm:$0xff]
    %v1173 = vld [vmem:[#allocation7 + $0x98] sm:$0xff]
    %v1174 = vld [vmem:[#allocation7 + $0xa0] sm:$0xff]
    %v1175 = vld [vmem:[#allocation7 + $0xa8] sm:$0xff]
    %v1176 = vld [vmem:[#allocation7 + $0xb0] sm:$0xff]
    %v1177 = vld [vmem:[#allocation7 + $0xb8] sm:$0xff]
    %v1178 = vld [vmem:[#allocation7 + $0xc0] sm:$0xff]
    %v1179 = vld [vmem:[#allocation7 + $0xc8] sm:$0xff]
    %v1180 = vld [vmem:[#allocation7 + $0xd0] sm:$0xff]
    %v1181 = vld [vmem:[#allocation7 + $0xd8] sm:$0xff]
    %v1182 = vld [vmem:[#allocation7 + $0xe0] sm:$0xff]
    %v1183 = vld [vmem:[#allocation7 + $0xe8] sm:$0xff]
    %v1184 = vld [vmem:[#allocation7 + $0xf0] sm:$0xff]
    %v1185 = vld [vmem:[#allocation7 + $0xf8] sm:$0xff]
    %v1218 = vunpack.c.l.b16 %v1154
    %v1219 = vunpack.c.h.b16 %v1154
    %v1220 = vunpack.c.l.b16 %v1155
    %v1221 = vunpack.c.h.b16 %v1155
    %v1222 = vunpack.c.l.b16 %v1156
    %v1223 = vunpack.c.h.b16 %v1156
    %v1224 = vunpack.c.l.b16 %v1157
    %v1225 = vunpack.c.h.b16 %v1157
    %v1226 = vunpack.c.l.b16 %v1158
    %v1227 = vunpack.c.h.b16 %v1158
    %v1228 = vunpack.c.l.b16 %v1159
    %v1229 = vunpack.c.h.b16 %v1159
    %v1230 = vunpack.c.l.b16 %v1160
    %v1231 = vunpack.c.h.b16 %v1160
    %v1232 = vunpack.c.l.b16 %v1161
    %v1233 = vunpack.c.h.b16 %v1161
    %v1234 = vunpack.c.l.b16 %v1162
    %v1235 = vunpack.c.h.b16 %v1162
    %v1236 = vunpack.c.l.b16 %v1163
    %v1237 = vunpack.c.h.b16 %v1163
    %v1238 = vunpack.c.l.b16 %v1164
    %v1239 = vunpack.c.h.b16 %v1164
    %v1240 = vunpack.c.l.b16 %v1165
    %v1241 = vunpack.c.h.b16 %v1165
    %v1242 = vunpack.c.l.b16 %v1166
    %v1243 = vunpack.c.h.b16 %v1166
    %v1244 = vunpack.c.l.b16 %v1167
    %v1245 = vunpack.c.h.b16 %v1167
    %v1246 = vunpack.c.l.b16 %v1168
    %v1247 = vunpack.c.h.b16 %v1168
    %v1248 = vunpack.c.l.b16 %v1169
    %v1249 = vunpack.c.h.b16 %v1169
    %v1250 = vunpack.c.l.b16 %v1170
    %v1251 = vunpack.c.h.b16 %v1170
    %v1252 = vunpack.c.l.b16 %v1171
    %v1253 = vunpack.c.h.b16 %v1171
    %v1254 = vunpack.c.l.b16 %v1172
    %v1255 = vunpack.c.h.b16 %v1172
    %v1256 = vunpack.c.l.b16 %v1173
    %v1257 = vunpack.c.h.b16 %v1173
    %v1258 = vunpack.c.l.b16 %v1174
    %v1259 = vunpack.c.h.b16 %v1174
    %v1260 = vunpack.c.l.b16 %v1175
    %v1261 = vunpack.c.h.b16 %v1175
    %v1262 = vunpack.c.l.b16 %v1176
    %v1263 = vunpack.c.h.b16 %v1176
    %v1264 = vunpack.c.l.b16 %v1177
    %v1265 = vunpack.c.h.b16 %v1177
    %v1266 = vunpack.c.l.b16 %v1178
    %v1267 = vunpack.c.h.b16 %v1178
    %v1268 = vunpack.c.l.b16 %v1179
    %v1269 = vunpack.c.h.b16 %v1179
    %v1270 = vunpack.c.l.b16 %v1180
    %v1271 = vunpack.c.h.b16 %v1180
    %v1272 = vunpack.c.l.b16 %v1181
    %v1273 = vunpack.c.h.b16 %v1181
    %v1274 = vunpack.c.l.b16 %v1182
    %v1275 = vunpack.c.h.b16 %v1182
    %v1276 = vunpack.c.l.b16 %v1183
    %v1277 = vunpack.c.h.b16 %v1183
    %v1278 = vunpack.c.l.b16 %v1184
    %v1279 = vunpack.c.h.b16 %v1184
    %v1280 = vunpack.c.l.b16 %v1185
    %v1281 = vunpack.c.h.b16 %v1185
    %v1282 = vpack.c.b16 %v1222, %v1218
    %v1283 = vpack.c.b16 %v1223, %v1219
    %v1284 = vpack.c.b16 %v1224, %v1220
    %v1285 = vpack.c.b16 %v1225, %v1221
    %v1286 = vpack.c.b16 %v1230, %v1226
    %v1287 = vpack.c.b16 %v1231, %v1227
    %v1288 = vpack.c.b16 %v1232, %v1228
    %v1289 = vpack.c.b16 %v1233, %v1229
    %v1290 = vpack.c.b16 %v1238, %v1234
    %v1291 = vpack.c.b16 %v1239, %v1235
    %v1292 = vpack.c.b16 %v1240, %v1236
    %v1293 = vpack.c.b16 %v1241, %v1237
    %v1294 = vpack.c.b16 %v1246, %v1242
    %v1295 = vpack.c.b16 %v1247, %v1243
    %v1296 = vpack.c.b16 %v1248, %v1244
    %v1297 = vpack.c.b16 %v1249, %v1245
    %v1298 = vpack.c.b16 %v1254, %v1250
    %v1299 = vpack.c.b16 %v1255, %v1251
    %v1300 = vpack.c.b16 %v1256, %v1252
    %v1301 = vpack.c.b16 %v1257, %v1253
    %v1302 = vpack.c.b16 %v1262, %v1258
    %v1303 = vpack.c.b16 %v1263, %v1259
    %v1304 = vpack.c.b16 %v1264, %v1260
    %v1305 = vpack.c.b16 %v1265, %v1261
    %v1306 = vpack.c.b16 %v1270, %v1266
    %v1307 = vpack.c.b16 %v1271, %v1267
    %v1308 = vpack.c.b16 %v1272, %v1268
    %v1309 = vpack.c.b16 %v1273, %v1269
    %v1310 = vpack.c.b16 %v1278, %v1274
    %v1311 = vpack.c.b16 %v1279, %v1275
    %v1312 = vpack.c.b16 %v1280, %v1276
    %v1313 = vpack.c.b16 %v1281, %v1277
    %1346 = vmatprep.subr.bf16.mxu0 %v1283
    %1347 = vmatpush1.bf16.msra.mxu0 %v1282
    %1348 = vmatprep.subr.bf16.mxu0 %v1287
    %1349 = vmatpush1.bf16.msra.mxu0 %v1286
    %1350 = vmatprep.subr.bf16.mxu0 %v1291
    %1351 = vmatpush1.bf16.msra.mxu0 %v1290
    %1352 = vmatprep.subr.bf16.mxu0 %v1295
    %1353 = vmatpush1.bf16.msra.mxu0 %v1294
    %1354 = vmatprep.subr.bf16.mxu0 %v1299
    %1355 = vmatpush1.bf16.msra.mxu0 %v1298
    %1356 = vmatprep.subr.bf16.mxu0 %v1303
    %1357 = vmatpush1.bf16.msra.mxu0 %v1302
    %1358 = vmatprep.subr.bf16.mxu0 %v1307
    %1359 = vmatpush1.bf16.msra.mxu0 %v1306
    %1360 = vmatprep.subr.bf16.mxu0 %v1311
    %1361 = vmatpush1.bf16.msra.mxu0 %v1310
    %1362 = vmatprep.subr.bf16.mxu0 0
    %1363 = vmatpush1.bf16.msra.mxu0 0
    %1364 = vmatprep.subr.bf16.mxu0 0
    %1365 = vmatpush1.bf16.msra.mxu0 0
    %1366 = vmatprep.subr.bf16.mxu0 0
    %1367 = vmatpush1.bf16.msra.mxu0 0
    %1368 = vmatprep.subr.bf16.mxu0 0
    %1369 = vmatpush1.bf16.msra.mxu0 0
    %1370 = vmatprep.subr.bf16.mxu0 0
    %1371 = vmatpush1.bf16.msra.mxu0 0
    %1372 = vmatprep.subr.bf16.mxu0 0
    %1373 = vmatpush1.bf16.msra.mxu0 0
    %1374 = vmatprep.subr.bf16.mxu0 0
    %1375 = vmatpush1.bf16.msra.mxu0 0
    %1376 = vmatprep.subr.bf16.mxu0 0
    %1377 = vmatpush1.bf16.msra.mxu0 0
    %1378 = vmatprep.mubr.bf16.mxu0 0
    %1379 = vmatmul.mubr.bf16.gmra.mrb[0].mxu0 %v1153
    %v1380 = vpop.f32.mrb[0].mxu0
    %v1381 = vadd.f32 0.0, %v1380
    %v1382 = vpop.f32.mrb[0].mxu0
    %v1383 = vadd.f32 0.0, %v1382
    %v1384 = vpop.f32.mrb[0].mxu0
    %v1385 = vpop.f32.mrb[0].mxu0
    %1386 = vdwg.mxu0
    %1387 = vmatprep.subr.bf16.mxu0 %v1285
    %1388 = vmatpush1.bf16.msra.mxu0 %v1284
    %1389 = vmatprep.subr.bf16.mxu0 %v1289
    %1390 = vmatpush1.bf16.msra.mxu0 %v1288
    %1391 = vmatprep.subr.bf16.mxu0 %v1293
    %1392 = vmatpush1.bf16.msra.mxu0 %v1292
    %1393 = vmatprep.subr.bf16.mxu0 %v1297
    %1394 = vmatpush1.bf16.msra.mxu0 %v1296
    %1395 = vmatprep.subr.bf16.mxu0 %v1301
    %1396 = vmatpush1.bf16.msra.mxu0 %v1300
    %1397 = vmatprep.subr.bf16.mxu0 %v1305
    %1398 = vmatpush1.bf16.msra.mxu0 %v1304
    %1399 = vmatprep.subr.bf16.mxu0 %v1309
    %1400 = vmatpush1.bf16.msra.mxu0 %v1308
    %1401 = vmatprep.subr.bf16.mxu0 %v1313
    %1402 = vmatpush1.bf16.msra.mxu0 %v1312
    %1403 = vmatprep.subr.bf16.mxu0 0
    %1404 = vmatpush1.bf16.msra.mxu0 0
    %1405 = vmatprep.subr.bf16.mxu0 0
    %1406 = vmatpush1.bf16.msra.mxu0 0
    %1407 = vmatprep.subr.bf16.mxu0 0
    %1408 = vmatpush1.bf16.msra.mxu0 0
    %1409 = vmatprep.subr.bf16.mxu0 0
    %1410 = vmatpush1.bf16.msra.mxu0 0
    %1411 = vmatprep.subr.bf16.mxu0 0
    %1412 = vmatpush1.bf16.msra.mxu0 0
    %1413 = vmatprep.subr.bf16.mxu0 0
    %1414 = vmatpush1.bf16.msra.mxu0 0
    %1415 = vmatprep.subr.bf16.mxu0 0
    %1416 = vmatpush1.bf16.msra.mxu0 0
    %1417 = vmatprep.subr.bf16.mxu0 0
    %1418 = vmatpush1.bf16.msra.mxu0 0
    %1419 = vmatprep.mubr.bf16.mxu0 0
    %1420 = vmatmul.mubr.bf16.gmra.mrb[0].mxu0 %v1153
    %v1421 = vpop.f32.mrb[0].mxu0
    %v1422 = vadd.f32 0.0, %v1421
    %v1423 = vpop.f32.mrb[0].mxu0
    %v1424 = vadd.f32 0.0, %v1423
    %v1425 = vpop.f32.mrb[0].mxu0
    %v1426 = vpop.f32.mrb[0].mxu0
    %1427 = vdwg.mxu0
    %v1428 = vadd.f32 %v1149, %v1381
    %v1429 = vadd.f32 %v1150, %v1383
    %v1430 = vadd.f32 %v1151, %v1422
    %v1431 = vadd.f32 %v1152, %v1424
    %v1432 = vld [vmem:[#allocation2 + $0x1a0] sm:$0xff]
    %v1433 = vld [vmem:[#allocation2 + $0x1a8] sm:$0xff]
    %v1434 = vld [vmem:[#allocation2 + $0x1b0] sm:$0xff]
    %v1435 = vld [vmem:[#allocation2 + $0x1b8] sm:$0xff]
    %v1436 = vpack.c.bf16 %v1146, %v1146
    %v1437 = vld [vmem:[%s820] sm:$0xff]
    %v1438 = vld [vmem:[%s820 + $0x8] sm:$0xff]
    %v1439 = vld [vmem:[%s820 + $0x10] sm:$0xff]
    %v1440 = vld [vmem:[%s820 + $0x18] sm:$0xff]
    %v1441 = vld [vmem:[%s820 + $0x20] sm:$0xff]
    %v1442 = vld [vmem:[%s820 + $0x28] sm:$0xff]
    %v1443 = vld [vmem:[%s820 + $0x30] sm:$0xff]
    %v1444 = vld [vmem:[%s820 + $0x38] sm:$0xff]
    %v1445 = vld [vmem:[%s820 + $0x40] sm:$0xff]
    %v1446 = vld [vmem:[%s820 + $0x48] sm:$0xff]
    %v1447 = vld [vmem:[%s820 + $0x50] sm:$0xff]
    %v1448 = vld [vmem:[%s820 + $0x58] sm:$0xff]
    %v1449 = vld [vmem:[%s820 + $0x60] sm:$0xff]
    %v1450 = vld [vmem:[%s820 + $0x68] sm:$0xff]
    %v1451 = vld [vmem:[%s820 + $0x70] sm:$0xff]
    %v1452 = vld [vmem:[%s820 + $0x78] sm:$0xff]
    %v1453 = vld [vmem:[%s820 + $0x80] sm:$0xff]
    %v1454 = vld [vmem:[%s820 + $0x88] sm:$0xff]
    %v1455 = vld [vmem:[%s820 + $0x90] sm:$0xff]
    %v1456 = vld [vmem:[%s820 + $0x98] sm:$0xff]
    %v1457 = vld [vmem:[%s820 + $0xa0] sm:$0xff]
    %v1458 = vld [vmem:[%s820 + $0xa8] sm:$0xff]
    %v1459 = vld [vmem:[%s820 + $0xb0] sm:$0xff]
    %v1460 = vld [vmem:[%s820 + $0xb8] sm:$0xff]
    %v1461 = vld [vmem:[%s820 + $0xc0] sm:$0xff]
    %v1462 = vld [vmem:[%s820 + $0xc8] sm:$0xff]
    %v1463 = vld [vmem:[%s820 + $0xd0] sm:$0xff]
    %v1464 = vld [vmem:[%s820 + $0xd8] sm:$0xff]
    %v1465 = vld [vmem:[%s820 + $0xe0] sm:$0xff]
    %v1466 = vld [vmem:[%s820 + $0xe8] sm:$0xff]
    %v1467 = vld [vmem:[%s820 + $0xf0] sm:$0xff]
    %v1468 = vld [vmem:[%s820 + $0xf8] sm:$0xff]
    %v1501 = vunpack.c.l.b16 %v1437
    %v1502 = vunpack.c.h.b16 %v1437
    %v1503 = vunpack.c.l.b16 %v1438
    %v1504 = vunpack.c.h.b16 %v1438
    %v1505 = vunpack.c.l.b16 %v1439
    %v1506 = vunpack.c.h.b16 %v1439
    %v1507 = vunpack.c.l.b16 %v1440
    %v1508 = vunpack.c.h.b16 %v1440
    %v1509 = vunpack.c.l.b16 %v1441
    %v1510 = vunpack.c.h.b16 %v1441
    %v1511 = vunpack.c.l.b16 %v1442
    %v1512 = vunpack.c.h.b16 %v1442
    %v1513 = vunpack.c.l.b16 %v1443
    %v1514 = vunpack.c.h.b16 %v1443
    %v1515 = vunpack.c.l.b16 %v1444
    %v1516 = vunpack.c.h.b16 %v1444
    %v1517 = vunpack.c.l.b16 %v1445
    %v1518 = vunpack.c.h.b16 %v1445
    %v1519 = vunpack.c.l.b16 %v1446
    %v1520 = vunpack.c.h.b16 %v1446
    %v1521 = vunpack.c.l.b16 %v1447
    %v1522 = vunpack.c.h.b16 %v1447
    %v1523 = vunpack.c.l.b16 %v1448
    %v1524 = vunpack.c.h.b16 %v1448
    %v1525 = vunpack.c.l.b16 %v1449
    %v1526 = vunpack.c.h.b16 %v1449
    %v1527 = vunpack.c.l.b16 %v1450
    %v1528 = vunpack.c.h.b16 %v1450
    %v1529 = vunpack.c.l.b16 %v1451
    %v1530 = vunpack.c.h.b16 %v1451
    %v1531 = vunpack.c.l.b16 %v1452
    %v1532 = vunpack.c.h.b16 %v1452
    %v1533 = vunpack.c.l.b16 %v1453
    %v1534 = vunpack.c.h.b16 %v1453
    %v1535 = vunpack.c.l.b16 %v1454
    %v1536 = vunpack.c.h.b16 %v1454
    %v1537 = vunpack.c.l.b16 %v1455
    %v1538 = vunpack.c.h.b16 %v1455
    %v1539 = vunpack.c.l.b16 %v1456
    %v1540 = vunpack.c.h.b16 %v1456
    %v1541 = vunpack.c.l.b16 %v1457
    %v1542 = vunpack.c.h.b16 %v1457
    %v1543 = vunpack.c.l.b16 %v1458
    %v1544 = vunpack.c.h.b16 %v1458
    %v1545 = vunpack.c.l.b16 %v1459
    %v1546 = vunpack.c.h.b16 %v1459
    %v1547 = vunpack.c.l.b16 %v1460
    %v1548 = vunpack.c.h.b16 %v1460
    %v1549 = vunpack.c.l.b16 %v1461
    %v1550 = vunpack.c.h.b16 %v1461
    %v1551 = vunpack.c.l.b16 %v1462
    %v1552 = vunpack.c.h.b16 %v1462
    %v1553 = vunpack.c.l.b16 %v1463
    %v1554 = vunpack.c.h.b16 %v1463
    %v1555 = vunpack.c.l.b16 %v1464
    %v1556 = vunpack.c.h.b16 %v1464
    %v1557 = vunpack.c.l.b16 %v1465
    %v1558 = vunpack.c.h.b16 %v1465
    %v1559 = vunpack.c.l.b16 %v1466
    %v1560 = vunpack.c.h.b16 %v1466
    %v1561 = vunpack.c.l.b16 %v1467
    %v1562 = vunpack.c.h.b16 %v1467
    %v1563 = vunpack.c.l.b16 %v1468
    %v1564 = vunpack.c.h.b16 %v1468
    %v1565 = vpack.c.b16 %v1505, %v1501
    %v1566 = vpack.c.b16 %v1506, %v1502
    %v1567 = vpack.c.b16 %v1507, %v1503
    %v1568 = vpack.c.b16 %v1508, %v1504
    %v1569 = vpack.c.b16 %v1513, %v1509
    %v1570 = vpack.c.b16 %v1514, %v1510
    %v1571 = vpack.c.b16 %v1515, %v1511
    %v1572 = vpack.c.b16 %v1516, %v1512
    %v1573 = vpack.c.b16 %v1521, %v1517
    %v1574 = vpack.c.b16 %v1522, %v1518
    %v1575 = vpack.c.b16 %v1523, %v1519
    %v1576 = vpack.c.b16 %v1524, %v1520
    %v1577 = vpack.c.b16 %v1529, %v1525
    %v1578 = vpack.c.b16 %v1530, %v1526
    %v1579 = vpack.c.b16 %v1531, %v1527
    %v1580 = vpack.c.b16 %v1532, %v1528
    %v1581 = vpack.c.b16 %v1537, %v1533
    %v1582 = vpack.c.b16 %v1538, %v1534
    %v1583 = vpack.c.b16 %v1539, %v1535
    %v1584 = vpack.c.b16 %v1540, %v1536
    %v1585 = vpack.c.b16 %v1545, %v1541
    %v1586 = vpack.c.b16 %v1546, %v1542
    %v1587 = vpack.c.b16 %v1547, %v1543
    %v1588 = vpack.c.b16 %v1548, %v1544
    %v1589 = vpack.c.b16 %v1553, %v1549
    %v1590 = vpack.c.b16 %v1554, %v1550
    %v1591 = vpack.c.b16 %v1555, %v1551
    %v1592 = vpack.c.b16 %v1556, %v1552
    %v1593 = vpack.c.b16 %v1561, %v1557
    %v1594 = vpack.c.b16 %v1562, %v1558
    %v1595 = vpack.c.b16 %v1563, %v1559
    %v1596 = vpack.c.b16 %v1564, %v1560
    %1629 = vmatprep.subr.bf16.mxu0 %v1566
    %1630 = vmatpush1.bf16.msra.mxu0 %v1565
    %1631 = vmatprep.subr.bf16.mxu0 %v1570
    %1632 = vmatpush1.bf16.msra.mxu0 %v1569
    %1633 = vmatprep.subr.bf16.mxu0 %v1574
    %1634 = vmatpush1.bf16.msra.mxu0 %v1573
    %1635 = vmatprep.subr.bf16.mxu0 %v1578
    %1636 = vmatpush1.bf16.msra.mxu0 %v1577
    %1637 = vmatprep.subr.bf16.mxu0 %v1582
    %1638 = vmatpush1.bf16.msra.mxu0 %v1581
    %1639 = vmatprep.subr.bf16.mxu0 %v1586
    %1640 = vmatpush1.bf16.msra.mxu0 %v1585
    %1641 = vmatprep.subr.bf16.mxu0 %v1590
    %1642 = vmatpush1.bf16.msra.mxu0 %v1589
    %1643 = vmatprep.subr.bf16.mxu0 %v1594
    %1644 = vmatpush1.bf16.msra.mxu0 %v1593
    %1645 = vmatprep.subr.bf16.mxu0 0
    %1646 = vmatpush1.bf16.msra.mxu0 0
    %1647 = vmatprep.subr.bf16.mxu0 0
    %1648 = vmatpush1.bf16.msra.mxu0 0
    %1649 = vmatprep.subr.bf16.mxu0 0
    %1650 = vmatpush1.bf16.msra.mxu0 0
    %1651 = vmatprep.subr.bf16.mxu0 0
    %1652 = vmatpush1.bf16.msra.mxu0 0
    %1653 = vmatprep.subr.bf16.mxu0 0
    %1654 = vmatpush1.bf16.msra.mxu0 0
    %1655 = vmatprep.subr.bf16.mxu0 0
    %1656 = vmatpush1.bf16.msra.mxu0 0
    %1657 = vmatprep.subr.bf16.mxu0 0
    %1658 = vmatpush1.bf16.msra.mxu0 0
    %1659 = vmatprep.subr.bf16.mxu0 0
    %1660 = vmatpush1.bf16.msra.mxu0 0
    %1661 = vmatprep.mubr.bf16.mxu0 0
    %1662 = vmatmul.mubr.bf16.gmra.mrb[0].mxu0 %v1436
    %v1663 = vpop.f32.mrb[0].mxu0
    %v1664 = vadd.f32 0.0, %v1663
    %v1665 = vpop.f32.mrb[0].mxu0
    %v1666 = vadd.f32 0.0, %v1665
    %v1667 = vpop.f32.mrb[0].mxu0
    %v1668 = vpop.f32.mrb[0].mxu0
    %1669 = vdwg.mxu0
    %1670 = vmatprep.subr.bf16.mxu0 %v1568
    %1671 = vmatpush1.bf16.msra.mxu0 %v1567
    %1672 = vmatprep.subr.bf16.mxu0 %v1572
    %1673 = vmatpush1.bf16.msra.mxu0 %v1571
    %1674 = vmatprep.subr.bf16.mxu0 %v1576
    %1675 = vmatpush1.bf16.msra.mxu0 %v1575
    %1676 = vmatprep.subr.bf16.mxu0 %v1580
    %1677 = vmatpush1.bf16.msra.mxu0 %v1579
    %1678 = vmatprep.subr.bf16.mxu0 %v1584
    %1679 = vmatpush1.bf16.msra.mxu0 %v1583
    %1680 = vmatprep.subr.bf16.mxu0 %v1588
    %1681 = vmatpush1.bf16.msra.mxu0 %v1587
    %1682 = vmatprep.subr.bf16.mxu0 %v1592
    %1683 = vmatpush1.bf16.msra.mxu0 %v1591
    %1684 = vmatprep.subr.bf16.mxu0 %v1596
    %1685 = vmatpush1.bf16.msra.mxu0 %v1595
    %1686 = vmatprep.subr.bf16.mxu0 0
    %1687 = vmatpush1.bf16.msra.mxu0 0
    %1688 = vmatprep.subr.bf16.mxu0 0
    %1689 = vmatpush1.bf16.msra.mxu0 0
    %1690 = vmatprep.subr.bf16.mxu0 0
    %1691 = vmatpush1.bf16.msra.mxu0 0
    %1692 = vmatprep.subr.bf16.mxu0 0
    %1693 = vmatpush1.bf16.msra.mxu0 0
    %1694 = vmatprep.subr.bf16.mxu0 0
    %1695 = vmatpush1.bf16.msra.mxu0 0
    %1696 = vmatprep.subr.bf16.mxu0 0
    %1697 = vmatpush1.bf16.msra.mxu0 0
    %1698 = vmatprep.subr.bf16.mxu0 0
    %1699 = vmatpush1.bf16.msra.mxu0 0
    %1700 = vmatprep.subr.bf16.mxu0 0
    %1701 = vmatpush1.bf16.msra.mxu0 0
    %1702 = vmatprep.mubr.bf16.mxu0 0
    %1703 = vmatmul.mubr.bf16.gmra.mrb[0].mxu0 %v1436
    %v1704 = vpop.f32.mrb[0].mxu0
    %v1705 = vadd.f32 0.0, %v1704
    %v1706 = vpop.f32.mrb[0].mxu0
    %v1707 = vadd.f32 0.0, %v1706
    %v1708 = vpop.f32.mrb[0].mxu0
    %v1709 = vpop.f32.mrb[0].mxu0
    %1710 = vdwg.mxu0
    %v1711 = vadd.f32 %v1432, %v1664
    %v1712 = vadd.f32 %v1433, %v1666
    %v1713 = vadd.f32 %v1434, %v1705
    %v1714 = vadd.f32 %v1435, %v1707
    %v1715 = vxor.u32 %v1428, 2147483648
    %v1716 = vmul.f32 %v1715, 1.442695
    %v1717 = vpow.pop %v1716
    %v1718 = vadd.f32 %v1717, 1.0
    %v1719 = vrcp.pop %v1718
    %v1720 = vmul.f32 1.0, %v1719
    %v1721 = vxor.u32 %v1429, 2147483648
    %v1722 = vmul.f32 %v1721, 1.442695
    %v1723 = vpow.pop %v1722
    %v1724 = vadd.f32 %v1723, 1.0
    %v1725 = vrcp.pop %v1724
    %v1726 = vmul.f32 1.0, %v1725
    %v1727 = vtanh.pop %v1430
    %v1728 = vxor.u32 %v1431, 2147483648
    %v1729 = vmul.f32 %v1728, 1.442695
    %v1730 = vpow.pop %v1729
    %v1731 = vadd.f32 %v1730, 1.0
    %v1732 = vrcp.pop %v1731
    %v1733 = vmul.f32 1.0, %v1732
    %v1734 = vmul.f32 %v1726, %v1120
    %v1735 = vmul.f32 %v1720, %v1727
    %v1736 = vadd.f32 %v1734, %v1735
    %v1737 = vtanh.pop %v1736
    %v1738 = vmul.f32 %v1733, %v1737
    %v1739 = vxor.u32 %v1711, 2147483648
    %v1740 = vmul.f32 %v1739, 1.442695
    %v1741 = vpow.pop %v1740
    %v1742 = vadd.f32 %v1741, 1.0
    %v1743 = vrcp.pop %v1742
    %v1744 = vmul.f32 1.0, %v1743
    %v1745 = vxor.u32 %v1712, 2147483648
    %v1746 = vmul.f32 %v1745, 1.442695
    %v1747 = vpow.pop %v1746
    %v1748 = vadd.f32 %v1747, 1.0
    %v1749 = vrcp.pop %v1748
    %v1750 = vmul.f32 1.0, %v1749
    %v1751 = vtanh.pop %v1713
    %v1752 = vxor.u32 %v1714, 2147483648
    %v1753 = vmul.f32 %v1752, 1.442695
    %v1754 = vpow.pop %v1753
    %v1755 = vadd.f32 %v1754, 1.0
    %v1756 = vrcp.pop %v1755
    %v1757 = vmul.f32 1.0, %v1756
    %v1758 = vmul.f32 %v1750, %v1144
    %v1759 = vmul.f32 %v1744, %v1751
    %v1760 = vadd.f32 %v1758, %v1759
    %v1761 = vtanh.pop %v1760
    %v1762 = vmul.f32 %v1757, %v1761
    %1763 = vst [vmem:[#allocation3 + $0x10] sm:$0xff] %v1738
    %1764 = vst [vmem:[#allocation3 + $0x68] sm:$0xff] %v1762
    %v1765 = vld [vmem:[#allocation2 + $0x80] sm:$0xff]
    %v1766 = vld [vmem:[#allocation2 + $0x88] sm:$0xff]
    %v1767 = vld [vmem:[#allocation2 + $0x90] sm:$0xff]
    %v1768 = vld [vmem:[#allocation2 + $0x98] sm:$0xff]
    %v1769 = vpack.c.bf16 %v1738, %v1738
    %v1770 = vld [vmem:[#allocation7] sm:$0xff]
    %v1771 = vld [vmem:[#allocation7 + $0x8] sm:$0xff]
    %v1772 = vld [vmem:[#allocation7 + $0x10] sm:$0xff]
    %v1773 = vld [vmem:[#allocation7 + $0x18] sm:$0xff]
    %v1774 = vld [vmem:[#allocation7 + $0x20] sm:$0xff]
    %v1775 = vld [vmem:[#allocation7 + $0x28] sm:$0xff]
    %v1776 = vld [vmem:[#allocation7 + $0x30] sm:$0xff]
    %v1777 = vld [vmem:[#allocation7 + $0x38] sm:$0xff]
    %v1778 = vld [vmem:[#allocation7 + $0x40] sm:$0xff]
    %v1779 = vld [vmem:[#allocation7 + $0x48] sm:$0xff]
    %v1780 = vld [vmem:[#allocation7 + $0x50] sm:$0xff]
    %v1781 = vld [vmem:[#allocation7 + $0x58] sm:$0xff]
    %v1782 = vld [vmem:[#allocation7 + $0x60] sm:$0xff]
    %v1783 = vld [vmem:[#allocation7 + $0x68] sm:$0xff]
    %v1784 = vld [vmem:[#allocation7 + $0x70] sm:$0xff]
    %v1785 = vld [vmem:[#allocation7 + $0x78] sm:$0xff]
    %v1786 = vld [vmem:[#allocation7 + $0x80] sm:$0xff]
    %v1787 = vld [vmem:[#allocation7 + $0x88] sm:$0xff]
    %v1788 = vld [vmem:[#allocation7 + $0x90] sm:$0xff]
    %v1789 = vld [vmem:[#allocation7 + $0x98] sm:$0xff]
    %v1790 = vld [vmem:[#allocation7 + $0xa0] sm:$0xff]
    %v1791 = vld [vmem:[#allocation7 + $0xa8] sm:$0xff]
    %v1792 = vld [vmem:[#allocation7 + $0xb0] sm:$0xff]
    %v1793 = vld [vmem:[#allocation7 + $0xb8] sm:$0xff]
    %v1794 = vld [vmem:[#allocation7 + $0xc0] sm:$0xff]
    %v1795 = vld [vmem:[#allocation7 + $0xc8] sm:$0xff]
    %v1796 = vld [vmem:[#allocation7 + $0xd0] sm:$0xff]
    %v1797 = vld [vmem:[#allocation7 + $0xd8] sm:$0xff]
    %v1798 = vld [vmem:[#allocation7 + $0xe0] sm:$0xff]
    %v1799 = vld [vmem:[#allocation7 + $0xe8] sm:$0xff]
    %v1800 = vld [vmem:[#allocation7 + $0xf0] sm:$0xff]
    %v1801 = vld [vmem:[#allocation7 + $0xf8] sm:$0xff]
    %v1834 = vunpack.c.l.b16 %v1770
    %v1835 = vunpack.c.h.b16 %v1770
    %v1836 = vunpack.c.l.b16 %v1771
    %v1837 = vunpack.c.h.b16 %v1771
    %v1838 = vunpack.c.l.b16 %v1772
    %v1839 = vunpack.c.h.b16 %v1772
    %v1840 = vunpack.c.l.b16 %v1773
    %v1841 = vunpack.c.h.b16 %v1773
    %v1842 = vunpack.c.l.b16 %v1774
    %v1843 = vunpack.c.h.b16 %v1774
    %v1844 = vunpack.c.l.b16 %v1775
    %v1845 = vunpack.c.h.b16 %v1775
    %v1846 = vunpack.c.l.b16 %v1776
    %v1847 = vunpack.c.h.b16 %v1776
    %v1848 = vunpack.c.l.b16 %v1777
    %v1849 = vunpack.c.h.b16 %v1777
    %v1850 = vunpack.c.l.b16 %v1778
    %v1851 = vunpack.c.h.b16 %v1778
    %v1852 = vunpack.c.l.b16 %v1779
    %v1853 = vunpack.c.h.b16 %v1779
    %v1854 = vunpack.c.l.b16 %v1780
    %v1855 = vunpack.c.h.b16 %v1780
    %v1856 = vunpack.c.l.b16 %v1781
    %v1857 = vunpack.c.h.b16 %v1781
    %v1858 = vunpack.c.l.b16 %v1782
    %v1859 = vunpack.c.h.b16 %v1782
    %v1860 = vunpack.c.l.b16 %v1783
    %v1861 = vunpack.c.h.b16 %v1783
    %v1862 = vunpack.c.l.b16 %v1784
    %v1863 = vunpack.c.h.b16 %v1784
    %v1864 = vunpack.c.l.b16 %v1785
    %v1865 = vunpack.c.h.b16 %v1785
    %v1866 = vunpack.c.l.b16 %v1786
    %v1867 = vunpack.c.h.b16 %v1786
    %v1868 = vunpack.c.l.b16 %v1787
    %v1869 = vunpack.c.h.b16 %v1787
    %v1870 = vunpack.c.l.b16 %v1788
    %v1871 = vunpack.c.h.b16 %v1788
    %v1872 = vunpack.c.l.b16 %v1789
    %v1873 = vunpack.c.h.b16 %v1789
    %v1874 = vunpack.c.l.b16 %v1790
    %v1875 = vunpack.c.h.b16 %v1790
    %v1876 = vunpack.c.l.b16 %v1791
    %v1877 = vunpack.c.h.b16 %v1791
    %v1878 = vunpack.c.l.b16 %v1792
    %v1879 = vunpack.c.h.b16 %v1792
    %v1880 = vunpack.c.l.b16 %v1793
    %v1881 = vunpack.c.h.b16 %v1793
    %v1882 = vunpack.c.l.b16 %v1794
    %v1883 = vunpack.c.h.b16 %v1794
    %v1884 = vunpack.c.l.b16 %v1795
    %v1885 = vunpack.c.h.b16 %v1795
    %v1886 = vunpack.c.l.b16 %v1796
    %v1887 = vunpack.c.h.b16 %v1796
    %v1888 = vunpack.c.l.b16 %v1797
    %v1889 = vunpack.c.h.b16 %v1797
    %v1890 = vunpack.c.l.b16 %v1798
    %v1891 = vunpack.c.h.b16 %v1798
    %v1892 = vunpack.c.l.b16 %v1799
    %v1893 = vunpack.c.h.b16 %v1799
    %v1894 = vunpack.c.l.b16 %v1800
    %v1895 = vunpack.c.h.b16 %v1800
    %v1896 = vunpack.c.l.b16 %v1801
    %v1897 = vunpack.c.h.b16 %v1801
    %v1898 = vpack.c.b16 %v1838, %v1834
    %v1899 = vpack.c.b16 %v1839, %v1835
    %v1900 = vpack.c.b16 %v1840, %v1836
    %v1901 = vpack.c.b16 %v1841, %v1837
    %v1902 = vpack.c.b16 %v1846, %v1842
    %v1903 = vpack.c.b16 %v1847, %v1843
    %v1904 = vpack.c.b16 %v1848, %v1844
    %v1905 = vpack.c.b16 %v1849, %v1845
    %v1906 = vpack.c.b16 %v1854, %v1850
    %v1907 = vpack.c.b16 %v1855, %v1851
    %v1908 = vpack.c.b16 %v1856, %v1852
    %v1909 = vpack.c.b16 %v1857, %v1853
    %v1910 = vpack.c.b16 %v1862, %v1858
    %v1911 = vpack.c.b16 %v1863, %v1859
    %v1912 = vpack.c.b16 %v1864, %v1860
    %v1913 = vpack.c.b16 %v1865, %v1861
    %v1914 = vpack.c.b16 %v1870, %v1866
    %v1915 = vpack.c.b16 %v1871, %v1867
    %v1916 = vpack.c.b16 %v1872, %v1868
    %v1917 = vpack.c.b16 %v1873, %v1869
    %v1918 = vpack.c.b16 %v1878, %v1874
    %v1919 = vpack.c.b16 %v1879, %v1875
    %v1920 = vpack.c.b16 %v1880, %v1876
    %v1921 = vpack.c.b16 %v1881, %v1877
    %v1922 = vpack.c.b16 %v1886, %v1882
    %v1923 = vpack.c.b16 %v1887, %v1883
    %v1924 = vpack.c.b16 %v1888, %v1884
    %v1925 = vpack.c.b16 %v1889, %v1885
    %v1926 = vpack.c.b16 %v1894, %v1890
    %v1927 = vpack.c.b16 %v1895, %v1891
    %v1928 = vpack.c.b16 %v1896, %v1892
    %v1929 = vpack.c.b16 %v1897, %v1893
    %1962 = vmatprep.subr.bf16.mxu0 %v1899
    %1963 = vmatpush1.bf16.msra.mxu0 %v1898
    %1964 = vmatprep.subr.bf16.mxu0 %v1903
    %1965 = vmatpush1.bf16.msra.mxu0 %v1902
    %1966 = vmatprep.subr.bf16.mxu0 %v1907
    %1967 = vmatpush1.bf16.msra.mxu0 %v1906
    %1968 = vmatprep.subr.bf16.mxu0 %v1911
    %1969 = vmatpush1.bf16.msra.mxu0 %v1910
    %1970 = vmatprep.subr.bf16.mxu0 %v1915
    %1971 = vmatpush1.bf16.msra.mxu0 %v1914
    %1972 = vmatprep.subr.bf16.mxu0 %v1919
    %1973 = vmatpush1.bf16.msra.mxu0 %v1918
    %1974 = vmatprep.subr.bf16.mxu0 %v1923
    %1975 = vmatpush1.bf16.msra.mxu0 %v1922
    %1976 = vmatprep.subr.bf16.mxu0 %v1927
    %1977 = vmatpush1.bf16.msra.mxu0 %v1926
    %1978 = vmatprep.subr.bf16.mxu0 0
    %1979 = vmatpush1.bf16.msra.mxu0 0
    %1980 = vmatprep.subr.bf16.mxu0 0
    %1981 = vmatpush1.bf16.msra.mxu0 0
    %1982 = vmatprep.subr.bf16.mxu0 0
    %1983 = vmatpush1.bf16.msra.mxu0 0
    %1984 = vmatprep.subr.bf16.mxu0 0
    %1985 = vmatpush1.bf16.msra.mxu0 0
    %1986 = vmatprep.subr.bf16.mxu0 0
    %1987 = vmatpush1.bf16.msra.mxu0 0
    %1988 = vmatprep.subr.bf16.mxu0 0
    %1989 = vmatpush1.bf16.msra.mxu0 0
    %1990 = vmatprep.subr.bf16.mxu0 0
    %1991 = vmatpush1.bf16.msra.mxu0 0
    %1992 = vmatprep.subr.bf16.mxu0 0
    %1993 = vmatpush1.bf16.msra.mxu0 0
    %1994 = vmatprep.mubr.bf16.mxu0 0
    %1995 = vmatmul.mubr.bf16.gmra.mrb[0].mxu0 %v1769
    %v1996 = vpop.f32.mrb[0].mxu0
    %v1997 = vadd.f32 0.0, %v1996
    %v1998 = vpop.f32.mrb[0].mxu0
    %v1999 = vadd.f32 0.0, %v1998
    %v2000 = vpop.f32.mrb[0].mxu0
    %v2001 = vpop.f32.mrb[0].mxu0
    %2002 = vdwg.mxu0
    %2003 = vmatprep.subr.bf16.mxu0 %v1901
    %2004 = vmatpush1.bf16.msra.mxu0 %v1900
    %2005 = vmatprep.subr.bf16.mxu0 %v1905
    %2006 = vmatpush1.bf16.msra.mxu0 %v1904
    %2007 = vmatprep.subr.bf16.mxu0 %v1909
    %2008 = vmatpush1.bf16.msra.mxu0 %v1908
    %2009 = vmatprep.subr.bf16.mxu0 %v1913
    %2010 = vmatpush1.bf16.msra.mxu0 %v1912
    %2011 = vmatprep.subr.bf16.mxu0 %v1917
    %2012 = vmatpush1.bf16.msra.mxu0 %v1916
    %2013 = vmatprep.subr.bf16.mxu0 %v1921
    %2014 = vmatpush1.bf16.msra.mxu0 %v1920
    %2015 = vmatprep.subr.bf16.mxu0 %v1925
    %2016 = vmatpush1.bf16.msra.mxu0 %v1924
    %2017 = vmatprep.subr.bf16.mxu0 %v1929
    %2018 = vmatpush1.bf16.msra.mxu0 %v1928
    %2019 = vmatprep.subr.bf16.mxu0 0
    %2020 = vmatpush1.bf16.msra.mxu0 0
    %2021 = vmatprep.subr.bf16.mxu0 0
    %2022 = vmatpush1.bf16.msra.mxu0 0
    %2023 = vmatprep.subr.bf16.mxu0 0
    %2024 = vmatpush1.bf16.msra.mxu0 0
    %2025 = vmatprep.subr.bf16.mxu0 0
    %2026 = vmatpush1.bf16.msra.mxu0 0
    %2027 = vmatprep.subr.bf16.mxu0 0
    %2028 = vmatpush1.bf16.msra.mxu0 0
    %2029 = vmatprep.subr.bf16.mxu0 0
    %2030 = vmatpush1.bf16.msra.mxu0 0
    %2031 = vmatprep.subr.bf16.mxu0 0
    %2032 = vmatpush1.bf16.msra.mxu0 0
    %2033 = vmatprep.subr.bf16.mxu0 0
    %2034 = vmatpush1.bf16.msra.mxu0 0
    %2035 = vmatprep.mubr.bf16.mxu0 0
    %2036 = vmatmul.mubr.bf16.gmra.mrb[0].mxu0 %v1769
    %v2037 = vpop.f32.mrb[0].mxu0
    %v2038 = vadd.f32 0.0, %v2037
    %v2039 = vpop.f32.mrb[0].mxu0
    %v2040 = vadd.f32 0.0, %v2039
    %v2041 = vpop.f32.mrb[0].mxu0
    %v2042 = vpop.f32.mrb[0].mxu0
    %2043 = vdwg.mxu0
    %v2044 = vadd.f32 %v1765, %v1997
    %v2045 = vadd.f32 %v1766, %v1999
    %v2046 = vadd.f32 %v1767, %v2038
    %v2047 = vadd.f32 %v1768, %v2040
    %v2048 = vld [vmem:[#allocation2 + $0x160] sm:$0xff]
    %v2049 = vld [vmem:[#allocation2 + $0x168] sm:$0xff]
    %v2050 = vld [vmem:[#allocation2 + $0x170] sm:$0xff]
    %v2051 = vld [vmem:[#allocation2 + $0x178] sm:$0xff]
    %v2052 = vpack.c.bf16 %v1762, %v1762
    %v2053 = vld [vmem:[%s820] sm:$0xff]
    %v2054 = vld [vmem:[%s820 + $0x8] sm:$0xff]
    %v2055 = vld [vmem:[%s820 + $0x10] sm:$0xff]
    %v2056 = vld [vmem:[%s820 + $0x18] sm:$0xff]
    %v2057 = vld [vmem:[%s820 + $0x20] sm:$0xff]
    %v2058 = vld [vmem:[%s820 + $0x28] sm:$0xff]
    %v2059 = vld [vmem:[%s820 + $0x30] sm:$0xff]
    %v2060 = vld [vmem:[%s820 + $0x38] sm:$0xff]
    %v2061 = vld [vmem:[%s820 + $0x40] sm:$0xff]
    %v2062 = vld [vmem:[%s820 + $0x48] sm:$0xff]
    %v2063 = vld [vmem:[%s820 + $0x50] sm:$0xff]
    %v2064 = vld [vmem:[%s820 + $0x58] sm:$0xff]
    %v2065 = vld [vmem:[%s820 + $0x60] sm:$0xff]
    %v2066 = vld [vmem:[%s820 + $0x68] sm:$0xff]
    %v2067 = vld [vmem:[%s820 + $0x70] sm:$0xff]
    %v2068 = vld [vmem:[%s820 + $0x78] sm:$0xff]
    %v2069 = vld [vmem:[%s820 + $0x80] sm:$0xff]
    %v2070 = vld [vmem:[%s820 + $0x88] sm:$0xff]
    %v2071 = vld [vmem:[%s820 + $0x90] sm:$0xff]
    %v2072 = vld [vmem:[%s820 + $0x98] sm:$0xff]
    %v2073 = vld [vmem:[%s820 + $0xa0] sm:$0xff]
    %v2074 = vld [vmem:[%s820 + $0xa8] sm:$0xff]
    %v2075 = vld [vmem:[%s820 + $0xb0] sm:$0xff]
    %v2076 = vld [vmem:[%s820 + $0xb8] sm:$0xff]
    %v2077 = vld [vmem:[%s820 + $0xc0] sm:$0xff]
    %v2078 = vld [vmem:[%s820 + $0xc8] sm:$0xff]
    %v2079 = vld [vmem:[%s820 + $0xd0] sm:$0xff]
    %v2080 = vld [vmem:[%s820 + $0xd8] sm:$0xff]
    %v2081 = vld [vmem:[%s820 + $0xe0] sm:$0xff]
    %v2082 = vld [vmem:[%s820 + $0xe8] sm:$0xff]
    %v2083 = vld [vmem:[%s820 + $0xf0] sm:$0xff]
    %v2084 = vld [vmem:[%s820 + $0xf8] sm:$0xff]
    %v2117 = vunpack.c.l.b16 %v2053
    %v2118 = vunpack.c.h.b16 %v2053
    %v2119 = vunpack.c.l.b16 %v2054
    %v2120 = vunpack.c.h.b16 %v2054
    %v2121 = vunpack.c.l.b16 %v2055
    %v2122 = vunpack.c.h.b16 %v2055
    %v2123 = vunpack.c.l.b16 %v2056
    %v2124 = vunpack.c.h.b16 %v2056
    %v2125 = vunpack.c.l.b16 %v2057
    %v2126 = vunpack.c.h.b16 %v2057
    %v2127 = vunpack.c.l.b16 %v2058
    %v2128 = vunpack.c.h.b16 %v2058
    %v2129 = vunpack.c.l.b16 %v2059
    %v2130 = vunpack.c.h.b16 %v2059
    %v2131 = vunpack.c.l.b16 %v2060
    %v2132 = vunpack.c.h.b16 %v2060
    %v2133 = vunpack.c.l.b16 %v2061
    %v2134 = vunpack.c.h.b16 %v2061
    %v2135 = vunpack.c.l.b16 %v2062
    %v2136 = vunpack.c.h.b16 %v2062
    %v2137 = vunpack.c.l.b16 %v2063
    %v2138 = vunpack.c.h.b16 %v2063
    %v2139 = vunpack.c.l.b16 %v2064
    %v2140 = vunpack.c.h.b16 %v2064
    %v2141 = vunpack.c.l.b16 %v2065
    %v2142 = vunpack.c.h.b16 %v2065
    %v2143 = vunpack.c.l.b16 %v2066
    %v2144 = vunpack.c.h.b16 %v2066
    %v2145 = vunpack.c.l.b16 %v2067
    %v2146 = vunpack.c.h.b16 %v2067
    %v2147 = vunpack.c.l.b16 %v2068
    %v2148 = vunpack.c.h.b16 %v2068
    %v2149 = vunpack.c.l.b16 %v2069
    %v2150 = vunpack.c.h.b16 %v2069
    %v2151 = vunpack.c.l.b16 %v2070
    %v2152 = vunpack.c.h.b16 %v2070
    %v2153 = vunpack.c.l.b16 %v2071
    %v2154 = vunpack.c.h.b16 %v2071
    %v2155 = vunpack.c.l.b16 %v2072
    %v2156 = vunpack.c.h.b16 %v2072
    %v2157 = vunpack.c.l.b16 %v2073
    %v2158 = vunpack.c.h.b16 %v2073
    %v2159 = vunpack.c.l.b16 %v2074
    %v2160 = vunpack.c.h.b16 %v2074
    %v2161 = vunpack.c.l.b16 %v2075
    %v2162 = vunpack.c.h.b16 %v2075
    %v2163 = vunpack.c.l.b16 %v2076
    %v2164 = vunpack.c.h.b16 %v2076
    %v2165 = vunpack.c.l.b16 %v2077
    %v2166 = vunpack.c.h.b16 %v2077
    %v2167 = vunpack.c.l.b16 %v2078
    %v2168 = vunpack.c.h.b16 %v2078
    %v2169 = vunpack.c.l.b16 %v2079
    %v2170 = vunpack.c.h.b16 %v2079
    %v2171 = vunpack.c.l.b16 %v2080
    %v2172 = vunpack.c.h.b16 %v2080
    %v2173 = vunpack.c.l.b16 %v2081
    %v2174 = vunpack.c.h.b16 %v2081
    %v2175 = vunpack.c.l.b16 %v2082
    %v2176 = vunpack.c.h.b16 %v2082
    %v2177 = vunpack.c.l.b16 %v2083
    %v2178 = vunpack.c.h.b16 %v2083
    %v2179 = vunpack.c.l.b16 %v2084
    %v2180 = vunpack.c.h.b16 %v2084
    %v2181 = vpack.c.b16 %v2121, %v2117
    %v2182 = vpack.c.b16 %v2122, %v2118
    %v2183 = vpack.c.b16 %v2123, %v2119
    %v2184 = vpack.c.b16 %v2124, %v2120
    %v2185 = vpack.c.b16 %v2129, %v2125
    %v2186 = vpack.c.b16 %v2130, %v2126
    %v2187 = vpack.c.b16 %v2131, %v2127
    %v2188 = vpack.c.b16 %v2132, %v2128
    %v2189 = vpack.c.b16 %v2137, %v2133
    %v2190 = vpack.c.b16 %v2138, %v2134
    %v2191 = vpack.c.b16 %v2139, %v2135
    %v2192 = vpack.c.b16 %v2140, %v2136
    %v2193 = vpack.c.b16 %v2145, %v2141
    %v2194 = vpack.c.b16 %v2146, %v2142
    %v2195 = vpack.c.b16 %v2147, %v2143
    %v2196 = vpack.c.b16 %v2148, %v2144
    %v2197 = vpack.c.b16 %v2153, %v2149
    %v2198 = vpack.c.b16 %v2154, %v2150
    %v2199 = vpack.c.b16 %v2155, %v2151
    %v2200 = vpack.c.b16 %v2156, %v2152
    %v2201 = vpack.c.b16 %v2161, %v2157
    %v2202 = vpack.c.b16 %v2162, %v2158
    %v2203 = vpack.c.b16 %v2163, %v2159
    %v2204 = vpack.c.b16 %v2164, %v2160
    %v2205 = vpack.c.b16 %v2169, %v2165
    %v2206 = vpack.c.b16 %v2170, %v2166
    %v2207 = vpack.c.b16 %v2171, %v2167
    %v2208 = vpack.c.b16 %v2172, %v2168
    %v2209 = vpack.c.b16 %v2177, %v2173
    %v2210 = vpack.c.b16 %v2178, %v2174
    %v2211 = vpack.c.b16 %v2179, %v2175
    %v2212 = vpack.c.b16 %v2180, %v2176
    %2245 = vmatprep.subr.bf16.mxu0 %v2182
    %2246 = vmatpush1.bf16.msra.mxu0 %v2181
    %2247 = vmatprep.subr.bf16.mxu0 %v2186
    %2248 = vmatpush1.bf16.msra.mxu0 %v2185
    %2249 = vmatprep.subr.bf16.mxu0 %v2190
    %2250 = vmatpush1.bf16.msra.mxu0 %v2189
    %2251 = vmatprep.subr.bf16.mxu0 %v2194
    %2252 = vmatpush1.bf16.msra.mxu0 %v2193
    %2253 = vmatprep.subr.bf16.mxu0 %v2198
    %2254 = vmatpush1.bf16.msra.mxu0 %v2197
    %2255 = vmatprep.subr.bf16.mxu0 %v2202
    %2256 = vmatpush1.bf16.msra.mxu0 %v2201
    %2257 = vmatprep.subr.bf16.mxu0 %v2206
    %2258 = vmatpush1.bf16.msra.mxu0 %v2205
    %2259 = vmatprep.subr.bf16.mxu0 %v2210
    %2260 = vmatpush1.bf16.msra.mxu0 %v2209
    %2261 = vmatprep.subr.bf16.mxu0 0
    %2262 = vmatpush1.bf16.msra.mxu0 0
    %2263 = vmatprep.subr.bf16.mxu0 0
    %2264 = vmatpush1.bf16.msra.mxu0 0
    %2265 = vmatprep.subr.bf16.mxu0 0
    %2266 = vmatpush1.bf16.msra.mxu0 0
    %2267 = vmatprep.subr.bf16.mxu0 0
    %2268 = vmatpush1.bf16.msra.mxu0 0
    %2269 = vmatprep.subr.bf16.mxu0 0
    %2270 = vmatpush1.bf16.msra.mxu0 0
    %2271 = vmatprep.subr.bf16.mxu0 0
    %2272 = vmatpush1.bf16.msra.mxu0 0
    %2273 = vmatprep.subr.bf16.mxu0 0
    %2274 = vmatpush1.bf16.msra.mxu0 0
    %2275 = vmatprep.subr.bf16.mxu0 0
    %2276 = vmatpush1.bf16.msra.mxu0 0
    %2277 = vmatprep.mubr.bf16.mxu0 0
    %2278 = vmatmul.mubr.bf16.gmra.mrb[0].mxu0 %v2052
    %v2279 = vpop.f32.mrb[0].mxu0
    %v2280 = vadd.f32 0.0, %v2279
    %v2281 = vpop.f32.mrb[0].mxu0
    %v2282 = vadd.f32 0.0, %v2281
    %v2283 = vpop.f32.mrb[0].mxu0
    %v2284 = vpop.f32.mrb[0].mxu0
    %2285 = vdwg.mxu0
    %2286 = vmatprep.subr.bf16.mxu0 %v2184
    %2287 = vmatpush1.bf16.msra.mxu0 %v2183
    %2288 = vmatprep.subr.bf16.mxu0 %v2188
    %2289 = vmatpush1.bf16.msra.mxu0 %v2187
    %2290 = vmatprep.subr.bf16.mxu0 %v2192
    %2291 = vmatpush1.bf16.msra.mxu0 %v2191
    %2292 = vmatprep.subr.bf16.mxu0 %v2196
    %2293 = vmatpush1.bf16.msra.mxu0 %v2195
    %2294 = vmatprep.subr.bf16.mxu0 %v2200
    %2295 = vmatpush1.bf16.msra.mxu0 %v2199
    %2296 = vmatprep.subr.bf16.mxu0 %v2204
    %2297 = vmatpush1.bf16.msra.mxu0 %v2203
    %2298 = vmatprep.subr.bf16.mxu0 %v2208
    %2299 = vmatpush1.bf16.msra.mxu0 %v2207
    %2300 = vmatprep.subr.bf16.mxu0 %v2212
    %2301 = vmatpush1.bf16.msra.mxu0 %v2211
    %2302 = vmatprep.subr.bf16.mxu0 0
    %2303 = vmatpush1.bf16.msra.mxu0 0
    %2304 = vmatprep.subr.bf16.mxu0 0
    %2305 = vmatpush1.bf16.msra.mxu0 0
    %2306 = vmatprep.subr.bf16.mxu0 0
    %2307 = vmatpush1.bf16.msra.mxu0 0
    %2308 = vmatprep.subr.bf16.mxu0 0
    %2309 = vmatpush1.bf16.msra.mxu0 0
    %2310 = vmatprep.subr.bf16.mxu0 0
    %2311 = vmatpush1.bf16.msra.mxu0 0
    %2312 = vmatprep.subr.bf16.mxu0 0
    %2313 = vmatpush1.bf16.msra.mxu0 0
    %2314 = vmatprep.subr.bf16.mxu0 0
    %2315 = vmatpush1.bf16.msra.mxu0 0
    %2316 = vmatprep.subr.bf16.mxu0 0
    %2317 = vmatpush1.bf16.msra.mxu0 0
    %2318 = vmatprep.mubr.bf16.mxu0 0
    %2319 = vmatmul.mubr.bf16.gmra.mrb[0].mxu0 %v2052
    %v2320 = vpop.f32.mrb[0].mxu0
    %v2321 = vadd.f32 0.0, %v2320
    %v2322 = vpop.f32.mrb[0].mxu0
    %v2323 = vadd.f32 0.0, %v2322
    %v2324 = vpop.f32.mrb[0].mxu0
    %v2325 = vpop.f32.mrb[0].mxu0
    %2326 = vdwg.mxu0
    %v2327 = vadd.f32 %v2048, %v2280
    %v2328 = vadd.f32 %v2049, %v2282
    %v2329 = vadd.f32 %v2050, %v2321
    %v2330 = vadd.f32 %v2051, %v2323
    %v2331 = vxor.u32 %v2044, 2147483648
    %v2332 = vmul.f32 %v2331, 1.442695
    %v2333 = vpow.pop %v2332
    %v2334 = vadd.f32 %v2333, 1.0
    %v2335 = vrcp.pop %v2334
    %v2336 = vmul.f32 1.0, %v2335
    %v2337 = vxor.u32 %v2045, 2147483648
    %v2338 = vmul.f32 %v2337, 1.442695
    %v2339 = vpow.pop %v2338
    %v2340 = vadd.f32 %v2339, 1.0
    %v2341 = vrcp.pop %v2340
    %v2342 = vmul.f32 1.0, %v2341
    %v2343 = vtanh.pop %v2046
    %v2344 = vxor.u32 %v2047, 2147483648
    %v2345 = vmul.f32 %v2344, 1.442695
    %v2346 = vpow.pop %v2345
    %v2347 = vadd.f32 %v2346, 1.0
    %v2348 = vrcp.pop %v2347
    %v2349 = vmul.f32 1.0, %v2348
    %v2350 = vmul.f32 %v2342, %v1736
    %v2351 = vmul.f32 %v2336, %v2343
    %v2352 = vadd.f32 %v2350, %v2351
    %v2353 = vtanh.pop %v2352
    %v2354 = vmul.f32 %v2349, %v2353
    %v2355 = vxor.u32 %v2327, 2147483648
    %v2356 = vmul.f32 %v2355, 1.442695
    %v2357 = vpow.pop %v2356
    %v2358 = vadd.f32 %v2357, 1.0
    %v2359 = vrcp.pop %v2358
    %v2360 = vmul.f32 1.0, %v2359
    %v2361 = vxor.u32 %v2328, 2147483648
    %v2362 = vmul.f32 %v2361, 1.442695
    %v2363 = vpow.pop %v2362
    %v2364 = vadd.f32 %v2363, 1.0
    %v2365 = vrcp.pop %v2364
    %v2366 = vmul.f32 1.0, %v2365
    %v2367 = vtanh.pop %v2329
    %v2368 = vxor.u32 %v2330, 2147483648
    %v2369 = vmul.f32 %v2368, 1.442695
    %v2370 = vpow.pop %v2369
    %v2371 = vadd.f32 %v2370, 1.0
    %v2372 = vrcp.pop %v2371
    %v2373 = vmul.f32 1.0, %v2372
    %v2374 = vmul.f32 %v2366, %v1760
    %v2375 = vmul.f32 %v2360, %v2367
    %v2376 = vadd.f32 %v2374, %v2375
    %v2377 = vtanh.pop %v2376
    %v2378 = vmul.f32 %v2373, %v2377
    %2379 = vst [vmem:[#allocation3 + $0x20] sm:$0xff] %v2354
    %2380 = vst [vmem:[#allocation3 + $0x58] sm:$0xff] %v2378
    %v2381 = vld [vmem:[#allocation2 + $0xc0] sm:$0xff]
    %v2382 = vld [vmem:[#allocation2 + $0xc8] sm:$0xff]
    %v2383 = vld [vmem:[#allocation2 + $0xd0] sm:$0xff]
    %v2384 = vld [vmem:[#allocation2 + $0xd8] sm:$0xff]
    %v2385 = vpack.c.bf16 %v2354, %v2354
    %v2386 = vld [vmem:[#allocation7] sm:$0xff]
    %v2387 = vld [vmem:[#allocation7 + $0x8] sm:$0xff]
    %v2388 = vld [vmem:[#allocation7 + $0x10] sm:$0xff]
    %v2389 = vld [vmem:[#allocation7 + $0x18] sm:$0xff]
    %v2390 = vld [vmem:[#allocation7 + $0x20] sm:$0xff]
    %v2391 = vld [vmem:[#allocation7 + $0x28] sm:$0xff]
    %v2392 = vld [vmem:[#allocation7 + $0x30] sm:$0xff]
    %v2393 = vld [vmem:[#allocation7 + $0x38] sm:$0xff]
    %v2394 = vld [vmem:[#allocation7 + $0x40] sm:$0xff]
    %v2395 = vld [vmem:[#allocation7 + $0x48] sm:$0xff]
    %v2396 = vld [vmem:[#allocation7 + $0x50] sm:$0xff]
    %v2397 = vld [vmem:[#allocation7 + $0x58] sm:$0xff]
    %v2398 = vld [vmem:[#allocation7 + $0x60] sm:$0xff]
    %v2399 = vld [vmem:[#allocation7 + $0x68] sm:$0xff]
    %v2400 = vld [vmem:[#allocation7 + $0x70] sm:$0xff]
    %v2401 = vld [vmem:[#allocation7 + $0x78] sm:$0xff]
    %v2402 = vld [vmem:[#allocation7 + $0x80] sm:$0xff]
    %v2403 = vld [vmem:[#allocation7 + $0x88] sm:$0xff]
    %v2404 = vld [vmem:[#allocation7 + $0x90] sm:$0xff]
    %v2405 = vld [vmem:[#allocation7 + $0x98] sm:$0xff]
    %v2406 = vld [vmem:[#allocation7 + $0xa0] sm:$0xff]
    %v2407 = vld [vmem:[#allocation7 + $0xa8] sm:$0xff]
    %v2408 = vld [vmem:[#allocation7 + $0xb0] sm:$0xff]
    %v2409 = vld [vmem:[#allocation7 + $0xb8] sm:$0xff]
    %v2410 = vld [vmem:[#allocation7 + $0xc0] sm:$0xff]
    %v2411 = vld [vmem:[#allocation7 + $0xc8] sm:$0xff]
    %v2412 = vld [vmem:[#allocation7 + $0xd0] sm:$0xff]
    %v2413 = vld [vmem:[#allocation7 + $0xd8] sm:$0xff]
    %v2414 = vld [vmem:[#allocation7 + $0xe0] sm:$0xff]
    %v2415 = vld [vmem:[#allocation7 + $0xe8] sm:$0xff]
    %v2416 = vld [vmem:[#allocation7 + $0xf0] sm:$0xff]
    %v2417 = vld [vmem:[#allocation7 + $0xf8] sm:$0xff]
    %v2450 = vunpack.c.l.b16 %v2386
    %v2451 = vunpack.c.h.b16 %v2386
    %v2452 = vunpack.c.l.b16 %v2387
    %v2453 = vunpack.c.h.b16 %v2387
    %v2454 = vunpack.c.l.b16 %v2388
    %v2455 = vunpack.c.h.b16 %v2388
    %v2456 = vunpack.c.l.b16 %v2389
    %v2457 = vunpack.c.h.b16 %v2389
    %v2458 = vunpack.c.l.b16 %v2390
    %v2459 = vunpack.c.h.b16 %v2390
    %v2460 = vunpack.c.l.b16 %v2391
    %v2461 = vunpack.c.h.b16 %v2391
    %v2462 = vunpack.c.l.b16 %v2392
    %v2463 = vunpack.c.h.b16 %v2392
    %v2464 = vunpack.c.l.b16 %v2393
    %v2465 = vunpack.c.h.b16 %v2393
    %v2466 = vunpack.c.l.b16 %v2394
    %v2467 = vunpack.c.h.b16 %v2394
    %v2468 = vunpack.c.l.b16 %v2395
    %v2469 = vunpack.c.h.b16 %v2395
    %v2470 = vunpack.c.l.b16 %v2396
    %v2471 = vunpack.c.h.b16 %v2396
    %v2472 = vunpack.c.l.b16 %v2397
    %v2473 = vunpack.c.h.b16 %v2397
    %v2474 = vunpack.c.l.b16 %v2398
    %v2475 = vunpack.c.h.b16 %v2398
    %v2476 = vunpack.c.l.b16 %v2399
    %v2477 = vunpack.c.h.b16 %v2399
    %v2478 = vunpack.c.l.b16 %v2400
    %v2479 = vunpack.c.h.b16 %v2400
    %v2480 = vunpack.c.l.b16 %v2401
    %v2481 = vunpack.c.h.b16 %v2401
    %v2482 = vunpack.c.l.b16 %v2402
    %v2483 = vunpack.c.h.b16 %v2402
    %v2484 = vunpack.c.l.b16 %v2403
    %v2485 = vunpack.c.h.b16 %v2403
    %v2486 = vunpack.c.l.b16 %v2404
    %v2487 = vunpack.c.h.b16 %v2404
    %v2488 = vunpack.c.l.b16 %v2405
    %v2489 = vunpack.c.h.b16 %v2405
    %v2490 = vunpack.c.l.b16 %v2406
    %v2491 = vunpack.c.h.b16 %v2406
    %v2492 = vunpack.c.l.b16 %v2407
    %v2493 = vunpack.c.h.b16 %v2407
    %v2494 = vunpack.c.l.b16 %v2408
    %v2495 = vunpack.c.h.b16 %v2408
    %v2496 = vunpack.c.l.b16 %v2409
    %v2497 = vunpack.c.h.b16 %v2409
    %v2498 = vunpack.c.l.b16 %v2410
    %v2499 = vunpack.c.h.b16 %v2410
    %v2500 = vunpack.c.l.b16 %v2411
    %v2501 = vunpack.c.h.b16 %v2411
    %v2502 = vunpack.c.l.b16 %v2412
    %v2503 = vunpack.c.h.b16 %v2412
    %v2504 = vunpack.c.l.b16 %v2413
    %v2505 = vunpack.c.h.b16 %v2413
    %v2506 = vunpack.c.l.b16 %v2414
    %v2507 = vunpack.c.h.b16 %v2414
    %v2508 = vunpack.c.l.b16 %v2415
    %v2509 = vunpack.c.h.b16 %v2415
    %v2510 = vunpack.c.l.b16 %v2416
    %v2511 = vunpack.c.h.b16 %v2416
    %v2512 = vunpack.c.l.b16 %v2417
    %v2513 = vunpack.c.h.b16 %v2417
    %v2514 = vpack.c.b16 %v2454, %v2450
    %v2515 = vpack.c.b16 %v2455, %v2451
    %v2516 = vpack.c.b16 %v2456, %v2452
    %v2517 = vpack.c.b16 %v2457, %v2453
    %v2518 = vpack.c.b16 %v2462, %v2458
    %v2519 = vpack.c.b16 %v2463, %v2459
    %v2520 = vpack.c.b16 %v2464, %v2460
    %v2521 = vpack.c.b16 %v2465, %v2461
    %v2522 = vpack.c.b16 %v2470, %v2466
    %v2523 = vpack.c.b16 %v2471, %v2467
    %v2524 = vpack.c.b16 %v2472, %v2468
    %v2525 = vpack.c.b16 %v2473, %v2469
    %v2526 = vpack.c.b16 %v2478, %v2474
    %v2527 = vpack.c.b16 %v2479, %v2475
    %v2528 = vpack.c.b16 %v2480, %v2476
    %v2529 = vpack.c.b16 %v2481, %v2477
    %v2530 = vpack.c.b16 %v2486, %v2482
    %v2531 = vpack.c.b16 %v2487, %v2483
    %v2532 = vpack.c.b16 %v2488, %v2484
    %v2533 = vpack.c.b16 %v2489, %v2485
    %v2534 = vpack.c.b16 %v2494, %v2490
    %v2535 = vpack.c.b16 %v2495, %v2491
    %v2536 = vpack.c.b16 %v2496, %v2492
    %v2537 = vpack.c.b16 %v2497, %v2493
    %v2538 = vpack.c.b16 %v2502, %v2498
    %v2539 = vpack.c.b16 %v2503, %v2499
    %v2540 = vpack.c.b16 %v2504, %v2500
    %v2541 = vpack.c.b16 %v2505, %v2501
    %v2542 = vpack.c.b16 %v2510, %v2506
    %v2543 = vpack.c.b16 %v2511, %v2507
    %v2544 = vpack.c.b16 %v2512, %v2508
    %v2545 = vpack.c.b16 %v2513, %v2509
    %2578 = vmatprep.subr.bf16.mxu0 %v2515
    %2579 = vmatpush1.bf16.msra.mxu0 %v2514
    %2580 = vmatprep.subr.bf16.mxu0 %v2519
    %2581 = vmatpush1.bf16.msra.mxu0 %v2518
    %2582 = vmatprep.subr.bf16.mxu0 %v2523
    %2583 = vmatpush1.bf16.msra.mxu0 %v2522
    %2584 = vmatprep.subr.bf16.mxu0 %v2527
    %2585 = vmatpush1.bf16.msra.mxu0 %v2526
    %2586 = vmatprep.subr.bf16.mxu0 %v2531
    %2587 = vmatpush1.bf16.msra.mxu0 %v2530
    %2588 = vmatprep.subr.bf16.mxu0 %v2535
    %2589 = vmatpush1.bf16.msra.mxu0 %v2534
    %2590 = vmatprep.subr.bf16.mxu0 %v2539
    %2591 = vmatpush1.bf16.msra.mxu0 %v2538
    %2592 = vmatprep.subr.bf16.mxu0 %v2543
    %2593 = vmatpush1.bf16.msra.mxu0 %v2542
    %2594 = vmatprep.subr.bf16.mxu0 0
    %2595 = vmatpush1.bf16.msra.mxu0 0
    %2596 = vmatprep.subr.bf16.mxu0 0
    %2597 = vmatpush1.bf16.msra.mxu0 0
    %2598 = vmatprep.subr.bf16.mxu0 0
    %2599 = vmatpush1.bf16.msra.mxu0 0
    %2600 = vmatprep.subr.bf16.mxu0 0
    %2601 = vmatpush1.bf16.msra.mxu0 0
    %2602 = vmatprep.subr.bf16.mxu0 0
    %2603 = vmatpush1.bf16.msra.mxu0 0
    %2604 = vmatprep.subr.bf16.mxu0 0
    %2605 = vmatpush1.bf16.msra.mxu0 0
    %2606 = vmatprep.subr.bf16.mxu0 0
    %2607 = vmatpush1.bf16.msra.mxu0 0
    %2608 = vmatprep.subr.bf16.mxu0 0
    %2609 = vmatpush1.bf16.msra.mxu0 0
    %2610 = vmatprep.mubr.bf16.mxu0 0
    %2611 = vmatmul.mubr.bf16.gmra.mrb[0].mxu0 %v2385
    %v2612 = vpop.f32.mrb[0].mxu0
    %v2613 = vadd.f32 0.0, %v2612
    %v2614 = vpop.f32.mrb[0].mxu0
    %v2615 = vadd.f32 0.0, %v2614
    %v2616 = vpop.f32.mrb[0].mxu0
    %v2617 = vpop.f32.mrb[0].mxu0
    %2618 = vdwg.mxu0
    %2619 = vmatprep.subr.bf16.mxu0 %v2517
    %2620 = vmatpush1.bf16.msra.mxu0 %v2516
    %2621 = vmatprep.subr.bf16.mxu0 %v2521
    %2622 = vmatpush1.bf16.msra.mxu0 %v2520
    %2623 = vmatprep.subr.bf16.mxu0 %v2525
    %2624 = vmatpush1.bf16.msra.mxu0 %v2524
    %2625 = vmatprep.subr.bf16.mxu0 %v2529
    %2626 = vmatpush1.bf16.msra.mxu0 %v2528
    %2627 = vmatprep.subr.bf16.mxu0 %v2533
    %2628 = vmatpush1.bf16.msra.mxu0 %v2532
    %2629 = vmatprep.subr.bf16.mxu0 %v2537
    %2630 = vmatpush1.bf16.msra.mxu0 %v2536
    %2631 = vmatprep.subr.bf16.mxu0 %v2541
    %2632 = vmatpush1.bf16.msra.mxu0 %v2540
    %2633 = vmatprep.subr.bf16.mxu0 %v2545
    %2634 = vmatpush1.bf16.msra.mxu0 %v2544
    %2635 = vmatprep.subr.bf16.mxu0 0
    %2636 = vmatpush1.bf16.msra.mxu0 0
    %2637 = vmatprep.subr.bf16.mxu0 0
    %2638 = vmatpush1.bf16.msra.mxu0 0
    %2639 = vmatprep.subr.bf16.mxu0 0
    %2640 = vmatpush1.bf16.msra.mxu0 0
    %2641 = vmatprep.subr.bf16.mxu0 0
    %2642 = vmatpush1.bf16.msra.mxu0 0
    %2643 = vmatprep.subr.bf16.mxu0 0
    %2644 = vmatpush1.bf16.msra.mxu0 0
    %2645 = vmatprep.subr.bf16.mxu0 0
    %2646 = vmatpush1.bf16.msra.mxu0 0
    %2647 = vmatprep.subr.bf16.mxu0 0
    %2648 = vmatpush1.bf16.msra.mxu0 0
    %2649 = vmatprep.subr.bf16.mxu0 0
    %2650 = vmatpush1.bf16.msra.mxu0 0
    %2651 = vmatprep.mubr.bf16.mxu0 0
    %2652 = vmatmul.mubr.bf16.gmra.mrb[0].mxu0 %v2385
    %v2653 = vpop.f32.mrb[0].mxu0
    %v2654 = vadd.f32 0.0, %v2653
    %v2655 = vpop.f32.mrb[0].mxu0
    %v2656 = vadd.f32 0.0, %v2655
    %v2657 = vpop.f32.mrb[0].mxu0
    %v2658 = vpop.f32.mrb[0].mxu0
    %2659 = vdwg.mxu0
    %v2660 = vadd.f32 %v2381, %v2613
    %v2661 = vadd.f32 %v2382, %v2615
    %v2662 = vadd.f32 %v2383, %v2654
    %v2663 = vadd.f32 %v2384, %v2656
    %v2664 = vld [vmem:[#allocation2 + $0x120] sm:$0xff]
    %v2665 = vld [vmem:[#allocation2 + $0x128] sm:$0xff]
    %v2666 = vld [vmem:[#allocation2 + $0x130] sm:$0xff]
    %v2667 = vld [vmem:[#allocation2 + $0x138] sm:$0xff]
    %v2668 = vpack.c.bf16 %v2378, %v2378
    %v2669 = vld [vmem:[%s820] sm:$0xff]
    %v2670 = vld [vmem:[%s820 + $0x8] sm:$0xff]
    %v2671 = vld [vmem:[%s820 + $0x10] sm:$0xff]
    %v2672 = vld [vmem:[%s820 + $0x18] sm:$0xff]
    %v2673 = vld [vmem:[%s820 + $0x20] sm:$0xff]
    %v2674 = vld [vmem:[%s820 + $0x28] sm:$0xff]
    %v2675 = vld [vmem:[%s820 + $0x30] sm:$0xff]
    %v2676 = vld [vmem:[%s820 + $0x38] sm:$0xff]
    %v2677 = vld [vmem:[%s820 + $0x40] sm:$0xff]
    %v2678 = vld [vmem:[%s820 + $0x48] sm:$0xff]
    %v2679 = vld [vmem:[%s820 + $0x50] sm:$0xff]
    %v2680 = vld [vmem:[%s820 + $0x58] sm:$0xff]
    %v2681 = vld [vmem:[%s820 + $0x60] sm:$0xff]
    %v2682 = vld [vmem:[%s820 + $0x68] sm:$0xff]
    %v2683 = vld [vmem:[%s820 + $0x70] sm:$0xff]
    %v2684 = vld [vmem:[%s820 + $0x78] sm:$0xff]
    %v2685 = vld [vmem:[%s820 + $0x80] sm:$0xff]
    %v2686 = vld [vmem:[%s820 + $0x88] sm:$0xff]
    %v2687 = vld [vmem:[%s820 + $0x90] sm:$0xff]
    %v2688 = vld [vmem:[%s820 + $0x98] sm:$0xff]
    %v2689 = vld [vmem:[%s820 + $0xa0] sm:$0xff]
    %v2690 = vld [vmem:[%s820 + $0xa8] sm:$0xff]
    %v2691 = vld [vmem:[%s820 + $0xb0] sm:$0xff]
    %v2692 = vld [vmem:[%s820 + $0xb8] sm:$0xff]
    %v2693 = vld [vmem:[%s820 + $0xc0] sm:$0xff]
    %v2694 = vld [vmem:[%s820 + $0xc8] sm:$0xff]
    %v2695 = vld [vmem:[%s820 + $0xd0] sm:$0xff]
    %v2696 = vld [vmem:[%s820 + $0xd8] sm:$0xff]
    %v2697 = vld [vmem:[%s820 + $0xe0] sm:$0xff]
    %v2698 = vld [vmem:[%s820 + $0xe8] sm:$0xff]
    %v2699 = vld [vmem:[%s820 + $0xf0] sm:$0xff]
    %v2700 = vld [vmem:[%s820 + $0xf8] sm:$0xff]
    %v2733 = vunpack.c.l.b16 %v2669
    %v2734 = vunpack.c.h.b16 %v2669
    %v2735 = vunpack.c.l.b16 %v2670
    %v2736 = vunpack.c.h.b16 %v2670
    %v2737 = vunpack.c.l.b16 %v2671
    %v2738 = vunpack.c.h.b16 %v2671
    %v2739 = vunpack.c.l.b16 %v2672
    %v2740 = vunpack.c.h.b16 %v2672
    %v2741 = vunpack.c.l.b16 %v2673
    %v2742 = vunpack.c.h.b16 %v2673
    %v2743 = vunpack.c.l.b16 %v2674
    %v2744 = vunpack.c.h.b16 %v2674
    %v2745 = vunpack.c.l.b16 %v2675
    %v2746 = vunpack.c.h.b16 %v2675
    %v2747 = vunpack.c.l.b16 %v2676
    %v2748 = vunpack.c.h.b16 %v2676
    %v2749 = vunpack.c.l.b16 %v2677
    %v2750 = vunpack.c.h.b16 %v2677
    %v2751 = vunpack.c.l.b16 %v2678
    %v2752 = vunpack.c.h.b16 %v2678
    %v2753 = vunpack.c.l.b16 %v2679
    %v2754 = vunpack.c.h.b16 %v2679
    %v2755 = vunpack.c.l.b16 %v2680
    %v2756 = vunpack.c.h.b16 %v2680
    %v2757 = vunpack.c.l.b16 %v2681
    %v2758 = vunpack.c.h.b16 %v2681
    %v2759 = vunpack.c.l.b16 %v2682
    %v2760 = vunpack.c.h.b16 %v2682
    %v2761 = vunpack.c.l.b16 %v2683
    %v2762 = vunpack.c.h.b16 %v2683
    %v2763 = vunpack.c.l.b16 %v2684
    %v2764 = vunpack.c.h.b16 %v2684
    %v2765 = vunpack.c.l.b16 %v2685
    %v2766 = vunpack.c.h.b16 %v2685
    %v2767 = vunpack.c.l.b16 %v2686
    %v2768 = vunpack.c.h.b16 %v2686
    %v2769 = vunpack.c.l.b16 %v2687
    %v2770 = vunpack.c.h.b16 %v2687
    %v2771 = vunpack.c.l.b16 %v2688
    %v2772 = vunpack.c.h.b16 %v2688
    %v2773 = vunpack.c.l.b16 %v2689
    %v2774 = vunpack.c.h.b16 %v2689
    %v2775 = vunpack.c.l.b16 %v2690
    %v2776 = vunpack.c.h.b16 %v2690
    %v2777 = vunpack.c.l.b16 %v2691
    %v2778 = vunpack.c.h.b16 %v2691
    %v2779 = vunpack.c.l.b16 %v2692
    %v2780 = vunpack.c.h.b16 %v2692
    %v2781 = vunpack.c.l.b16 %v2693
    %v2782 = vunpack.c.h.b16 %v2693
    %v2783 = vunpack.c.l.b16 %v2694
    %v2784 = vunpack.c.h.b16 %v2694
    %v2785 = vunpack.c.l.b16 %v2695
    %v2786 = vunpack.c.h.b16 %v2695
    %v2787 = vunpack.c.l.b16 %v2696
    %v2788 = vunpack.c.h.b16 %v2696
    %v2789 = vunpack.c.l.b16 %v2697
    %v2790 = vunpack.c.h.b16 %v2697
    %v2791 = vunpack.c.l.b16 %v2698
    %v2792 = vunpack.c.h.b16 %v2698
    %v2793 = vunpack.c.l.b16 %v2699
    %v2794 = vunpack.c.h.b16 %v2699
    %v2795 = vunpack.c.l.b16 %v2700
    %v2796 = vunpack.c.h.b16 %v2700
    %v2797 = vpack.c.b16 %v2737, %v2733
    %v2798 = vpack.c.b16 %v2738, %v2734
    %v2799 = vpack.c.b16 %v2739, %v2735
    %v2800 = vpack.c.b16 %v2740, %v2736
    %v2801 = vpack.c.b16 %v2745, %v2741
    %v2802 = vpack.c.b16 %v2746, %v2742
    %v2803 = vpack.c.b16 %v2747, %v2743
    %v2804 = vpack.c.b16 %v2748, %v2744
    %v2805 = vpack.c.b16 %v2753, %v2749
    %v2806 = vpack.c.b16 %v2754, %v2750
    %v2807 = vpack.c.b16 %v2755, %v2751
    %v2808 = vpack.c.b16 %v2756, %v2752
    %v2809 = vpack.c.b16 %v2761, %v2757
    %v2810 = vpack.c.b16 %v2762, %v2758
    %v2811 = vpack.c.b16 %v2763, %v2759
    %v2812 = vpack.c.b16 %v2764, %v2760
    %v2813 = vpack.c.b16 %v2769, %v2765
    %v2814 = vpack.c.b16 %v2770, %v2766
    %v2815 = vpack.c.b16 %v2771, %v2767
    %v2816 = vpack.c.b16 %v2772, %v2768
    %v2817 = vpack.c.b16 %v2777, %v2773
    %v2818 = vpack.c.b16 %v2778, %v2774
    %v2819 = vpack.c.b16 %v2779, %v2775
    %v2820 = vpack.c.b16 %v2780, %v2776
    %v2821 = vpack.c.b16 %v2785, %v2781
    %v2822 = vpack.c.b16 %v2786, %v2782
    %v2823 = vpack.c.b16 %v2787, %v2783
    %v2824 = vpack.c.b16 %v2788, %v2784
    %v2825 = vpack.c.b16 %v2793, %v2789
    %v2826 = vpack.c.b16 %v2794, %v2790
    %v2827 = vpack.c.b16 %v2795, %v2791
    %v2828 = vpack.c.b16 %v2796, %v2792
    %2861 = vmatprep.subr.bf16.mxu0 %v2798
    %2862 = vmatpush1.bf16.msra.mxu0 %v2797
    %2863 = vmatprep.subr.bf16.mxu0 %v2802
    %2864 = vmatpush1.bf16.msra.mxu0 %v2801
    %2865 = vmatprep.subr.bf16.mxu0 %v2806
    %2866 = vmatpush1.bf16.msra.mxu0 %v2805
    %2867 = vmatprep.subr.bf16.mxu0 %v2810
    %2868 = vmatpush1.bf16.msra.mxu0 %v2809
    %2869 = vmatprep.subr.bf16.mxu0 %v2814
    %2870 = vmatpush1.bf16.msra.mxu0 %v2813
    %2871 = vmatprep.subr.bf16.mxu0 %v2818
    %2872 = vmatpush1.bf16.msra.mxu0 %v2817
    %2873 = vmatprep.subr.bf16.mxu0 %v2822
    %2874 = vmatpush1.bf16.msra.mxu0 %v2821
    %2875 = vmatprep.subr.bf16.mxu0 %v2826
    %2876 = vmatpush1.bf16.msra.mxu0 %v2825
    %2877 = vmatprep.subr.bf16.mxu0 0
    %2878 = vmatpush1.bf16.msra.mxu0 0
    %2879 = vmatprep.subr.bf16.mxu0 0
    %2880 = vmatpush1.bf16.msra.mxu0 0
    %2881 = vmatprep.subr.bf16.mxu0 0
    %2882 = vmatpush1.bf16.msra.mxu0 0
    %2883 = vmatprep.subr.bf16.mxu0 0
    %2884 = vmatpush1.bf16.msra.mxu0 0
    %2885 = vmatprep.subr.bf16.mxu0 0
    %2886 = vmatpush1.bf16.msra.mxu0 0
    %2887 = vmatprep.subr.bf16.mxu0 0
    %2888 = vmatpush1.bf16.msra.mxu0 0
    %2889 = vmatprep.subr.bf16.mxu0 0
    %2890 = vmatpush1.bf16.msra.mxu0 0
    %2891 = vmatprep.subr.bf16.mxu0 0
    %2892 = vmatpush1.bf16.msra.mxu0 0
    %2893 = vmatprep.mubr.bf16.mxu0 0
    %2894 = vmatmul.mubr.bf16.gmra.mrb[0].mxu0 %v2668
    %v2895 = vpop.f32.mrb[0].mxu0
    %v2896 = vadd.f32 0.0, %v2895
    %v2897 = vpop.f32.mrb[0].mxu0
    %v2898 = vadd.f32 0.0, %v2897
    %v2899 = vpop.f32.mrb[0].mxu0
    %v2900 = vpop.f32.mrb[0].mxu0
    %2901 = vdwg.mxu0
    %2902 = vmatprep.subr.bf16.mxu0 %v2800
    %2903 = vmatpush1.bf16.msra.mxu0 %v2799
    %2904 = vmatprep.subr.bf16.mxu0 %v2804
    %2905 = vmatpush1.bf16.msra.mxu0 %v2803
    %2906 = vmatprep.subr.bf16.mxu0 %v2808
    %2907 = vmatpush1.bf16.msra.mxu0 %v2807
    %2908 = vmatprep.subr.bf16.mxu0 %v2812
    %2909 = vmatpush1.bf16.msra.mxu0 %v2811
    %2910 = vmatprep.subr.bf16.mxu0 %v2816
    %2911 = vmatpush1.bf16.msra.mxu0 %v2815
    %2912 = vmatprep.subr.bf16.mxu0 %v2820
    %2913 = vmatpush1.bf16.msra.mxu0 %v2819
    %2914 = vmatprep.subr.bf16.mxu0 %v2824
    %2915 = vmatpush1.bf16.msra.mxu0 %v2823
    %2916 = vmatprep.subr.bf16.mxu0 %v2828
    %2917 = vmatpush1.bf16.msra.mxu0 %v2827
    %2918 = vmatprep.subr.bf16.mxu0 0
    %2919 = vmatpush1.bf16.msra.mxu0 0
    %2920 = vmatprep.subr.bf16.mxu0 0
    %2921 = vmatpush1.bf16.msra.mxu0 0
    %2922 = vmatprep.subr.bf16.mxu0 0
    %2923 = vmatpush1.bf16.msra.mxu0 0
    %2924 = vmatprep.subr.bf16.mxu0 0
    %2925 = vmatpush1.bf16.msra.mxu0 0
    %2926 = vmatprep.subr.bf16.mxu0 0
    %2927 = vmatpush1.bf16.msra.mxu0 0
    %2928 = vmatprep.subr.bf16.mxu0 0
    %2929 = vmatpush1.bf16.msra.mxu0 0
    %2930 = vmatprep.subr.bf16.mxu0 0
    %2931 = vmatpush1.bf16.msra.mxu0 0
    %2932 = vmatprep.subr.bf16.mxu0 0
    %2933 = vmatpush1.bf16.msra.mxu0 0
    %2934 = vmatprep.mubr.bf16.mxu0 0
    %2935 = vmatmul.mubr.bf16.gmra.mrb[0].mxu0 %v2668
    %v2936 = vpop.f32.mrb[0].mxu0
    %v2937 = vadd.f32 0.0, %v2936
    %v2938 = vpop.f32.mrb[0].mxu0
    %v2939 = vadd.f32 0.0, %v2938
    %v2940 = vpop.f32.mrb[0].mxu0
    %v2941 = vpop.f32.mrb[0].mxu0
    %2942 = vdwg.mxu0
    %v2943 = vadd.f32 %v2664, %v2896
    %v2944 = vadd.f32 %v2665, %v2898
    %v2945 = vadd.f32 %v2666, %v2937
    %v2946 = vadd.f32 %v2667, %v2939
    %v2947 = vxor.u32 %v2660, 2147483648
    %v2948 = vmul.f32 %v2947, 1.442695
    %v2949 = vpow.pop %v2948
    %v2950 = vadd.f32 %v2949, 1.0
    %v2951 = vrcp.pop %v2950
    %v2952 = vmul.f32 1.0, %v2951
    %v2953 = vxor.u32 %v2661, 2147483648
    %v2954 = vmul.f32 %v2953, 1.442695
    %v2955 = vpow.pop %v2954
    %v2956 = vadd.f32 %v2955, 1.0
    %v2957 = vrcp.pop %v2956
    %v2958 = vmul.f32 1.0, %v2957
    %v2959 = vtanh.pop %v2662
    %v2960 = vxor.u32 %v2663, 2147483648
    %v2961 = vmul.f32 %v2960, 1.442695
    %v2962 = vpow.pop %v2961
    %v2963 = vadd.f32 %v2962, 1.0
    %v2964 = vrcp.pop %v2963
    %v2965 = vmul.f32 1.0, %v2964
    %v2966 = vmul.f32 %v2958, %v2352
    %v2967 = vmul.f32 %v2952, %v2959
    %v2968 = vadd.f32 %v2966, %v2967
    %v2969 = vtanh.pop %v2968
    %v2970 = vmul.f32 %v2965, %v2969
    %v2971 = vxor.u32 %v2943, 2147483648
    %v2972 = vmul.f32 %v2971, 1.442695
    %v2973 = vpow.pop %v2972
    %v2974 = vadd.f32 %v2973, 1.0
    %v2975 = vrcp.pop %v2974
    %v2976 = vmul.f32 1.0, %v2975
    %v2977 = vxor.u32 %v2944, 2147483648
    %v2978 = vmul.f32 %v2977, 1.442695
    %v2979 = vpow.pop %v2978
    %v2980 = vadd.f32 %v2979, 1.0
    %v2981 = vrcp.pop %v2980
    %v2982 = vmul.f32 1.0, %v2981
    %v2983 = vtanh.pop %v2945
    %v2984 = vxor.u32 %v2946, 2147483648
    %v2985 = vmul.f32 %v2984, 1.442695
    %v2986 = vpow.pop %v2985
    %v2987 = vadd.f32 %v2986, 1.0
    %v2988 = vrcp.pop %v2987
    %v2989 = vmul.f32 1.0, %v2988
    %v2990 = vmul.f32 %v2982, %v2376
    %v2991 = vmul.f32 %v2976, %v2983
    %v2992 = vadd.f32 %v2990, %v2991
    %v2993 = vtanh.pop %v2992
    %v2994 = vmul.f32 %v2989, %v2993
    %2995 = vst [vmem:[#allocation3 + $0x30] sm:$0xff] %v2970
    %2996 = vst [vmem:[#allocation3 + $0x48] sm:$0xff] %v2994
    %v2997 = vld [vmem:[#allocation2 + $0x100] sm:$0xff]
    %v2998 = vld [vmem:[#allocation2 + $0x108] sm:$0xff]
    %v2999 = vld [vmem:[#allocation2 + $0x110] sm:$0xff]
    %v3000 = vld [vmem:[#allocation2 + $0x118] sm:$0xff]
    %v3001 = vpack.c.bf16 %v2970, %v2970
    %v3002 = vld [vmem:[#allocation7] sm:$0xff]
    %v3003 = vld [vmem:[#allocation7 + $0x8] sm:$0xff]
    %v3004 = vld [vmem:[#allocation7 + $0x10] sm:$0xff]
    %v3005 = vld [vmem:[#allocation7 + $0x18] sm:$0xff]
    %v3006 = vld [vmem:[#allocation7 + $0x20] sm:$0xff]
    %v3007 = vld [vmem:[#allocation7 + $0x28] sm:$0xff]
    %v3008 = vld [vmem:[#allocation7 + $0x30] sm:$0xff]
    %v3009 = vld [vmem:[#allocation7 + $0x38] sm:$0xff]
    %v3010 = vld [vmem:[#allocation7 + $0x40] sm:$0xff]
    %v3011 = vld [vmem:[#allocation7 + $0x48] sm:$0xff]
    %v3012 = vld [vmem:[#allocation7 + $0x50] sm:$0xff]
    %v3013 = vld [vmem:[#allocation7 + $0x58] sm:$0xff]
    %v3014 = vld [vmem:[#allocation7 + $0x60] sm:$0xff]
    %v3015 = vld [vmem:[#allocation7 + $0x68] sm:$0xff]
    %v3016 = vld [vmem:[#allocation7 + $0x70] sm:$0xff]
    %v3017 = vld [vmem:[#allocation7 + $0x78] sm:$0xff]
    %v3018 = vld [vmem:[#allocation7 + $0x80] sm:$0xff]
    %v3019 = vld [vmem:[#allocation7 + $0x88] sm:$0xff]
    %v3020 = vld [vmem:[#allocation7 + $0x90] sm:$0xff]
    %v3021 = vld [vmem:[#allocation7 + $0x98] sm:$0xff]
    %v3022 = vld [vmem:[#allocation7 + $0xa0] sm:$0xff]
    %v3023 = vld [vmem:[#allocation7 + $0xa8] sm:$0xff]
    %v3024 = vld [vmem:[#allocation7 + $0xb0] sm:$0xff]
    %v3025 = vld [vmem:[#allocation7 + $0xb8] sm:$0xff]
    %v3026 = vld [vmem:[#allocation7 + $0xc0] sm:$0xff]
    %v3027 = vld [vmem:[#allocation7 + $0xc8] sm:$0xff]
    %v3028 = vld [vmem:[#allocation7 + $0xd0] sm:$0xff]
    %v3029 = vld [vmem:[#allocation7 + $0xd8] sm:$0xff]
    %v3030 = vld [vmem:[#allocation7 + $0xe0] sm:$0xff]
    %v3031 = vld [vmem:[#allocation7 + $0xe8] sm:$0xff]
    %v3032 = vld [vmem:[#allocation7 + $0xf0] sm:$0xff]
    %v3033 = vld [vmem:[#allocation7 + $0xf8] sm:$0xff]
    %v3066 = vunpack.c.l.b16 %v3002
    %v3067 = vunpack.c.h.b16 %v3002
    %v3068 = vunpack.c.l.b16 %v3003
    %v3069 = vunpack.c.h.b16 %v3003
    %v3070 = vunpack.c.l.b16 %v3004
    %v3071 = vunpack.c.h.b16 %v3004
    %v3072 = vunpack.c.l.b16 %v3005
    %v3073 = vunpack.c.h.b16 %v3005
    %v3074 = vunpack.c.l.b16 %v3006
    %v3075 = vunpack.c.h.b16 %v3006
    %v3076 = vunpack.c.l.b16 %v3007
    %v3077 = vunpack.c.h.b16 %v3007
    %v3078 = vunpack.c.l.b16 %v3008
    %v3079 = vunpack.c.h.b16 %v3008
    %v3080 = vunpack.c.l.b16 %v3009
    %v3081 = vunpack.c.h.b16 %v3009
    %v3082 = vunpack.c.l.b16 %v3010
    %v3083 = vunpack.c.h.b16 %v3010
    %v3084 = vunpack.c.l.b16 %v3011
    %v3085 = vunpack.c.h.b16 %v3011
    %v3086 = vunpack.c.l.b16 %v3012
    %v3087 = vunpack.c.h.b16 %v3012
    %v3088 = vunpack.c.l.b16 %v3013
    %v3089 = vunpack.c.h.b16 %v3013
    %v3090 = vunpack.c.l.b16 %v3014
    %v3091 = vunpack.c.h.b16 %v3014
    %v3092 = vunpack.c.l.b16 %v3015
    %v3093 = vunpack.c.h.b16 %v3015
    %v3094 = vunpack.c.l.b16 %v3016
    %v3095 = vunpack.c.h.b16 %v3016
    %v3096 = vunpack.c.l.b16 %v3017
    %v3097 = vunpack.c.h.b16 %v3017
    %v3098 = vunpack.c.l.b16 %v3018
    %v3099 = vunpack.c.h.b16 %v3018
    %v3100 = vunpack.c.l.b16 %v3019
    %v3101 = vunpack.c.h.b16 %v3019
    %v3102 = vunpack.c.l.b16 %v3020
    %v3103 = vunpack.c.h.b16 %v3020
    %v3104 = vunpack.c.l.b16 %v3021
    %v3105 = vunpack.c.h.b16 %v3021
    %v3106 = vunpack.c.l.b16 %v3022
    %v3107 = vunpack.c.h.b16 %v3022
    %v3108 = vunpack.c.l.b16 %v3023
    %v3109 = vunpack.c.h.b16 %v3023
    %v3110 = vunpack.c.l.b16 %v3024
    %v3111 = vunpack.c.h.b16 %v3024
    %v3112 = vunpack.c.l.b16 %v3025
    %v3113 = vunpack.c.h.b16 %v3025
    %v3114 = vunpack.c.l.b16 %v3026
    %v3115 = vunpack.c.h.b16 %v3026
    %v3116 = vunpack.c.l.b16 %v3027
    %v3117 = vunpack.c.h.b16 %v3027
    %v3118 = vunpack.c.l.b16 %v3028
    %v3119 = vunpack.c.h.b16 %v3028
    %v3120 = vunpack.c.l.b16 %v3029
    %v3121 = vunpack.c.h.b16 %v3029
    %v3122 = vunpack.c.l.b16 %v3030
    %v3123 = vunpack.c.h.b16 %v3030
    %v3124 = vunpack.c.l.b16 %v3031
    %v3125 = vunpack.c.h.b16 %v3031
    %v3126 = vunpack.c.l.b16 %v3032
    %v3127 = vunpack.c.h.b16 %v3032
    %v3128 = vunpack.c.l.b16 %v3033
    %v3129 = vunpack.c.h.b16 %v3033
    %v3130 = vpack.c.b16 %v3070, %v3066
    %v3131 = vpack.c.b16 %v3071, %v3067
    %v3132 = vpack.c.b16 %v3072, %v3068
    %v3133 = vpack.c.b16 %v3073, %v3069
    %v3134 = vpack.c.b16 %v3078, %v3074
    %v3135 = vpack.c.b16 %v3079, %v3075
    %v3136 = vpack.c.b16 %v3080, %v3076
    %v3137 = vpack.c.b16 %v3081, %v3077
    %v3138 = vpack.c.b16 %v3086, %v3082
    %v3139 = vpack.c.b16 %v3087, %v3083
    %v3140 = vpack.c.b16 %v3088, %v3084
    %v3141 = vpack.c.b16 %v3089, %v3085
    %v3142 = vpack.c.b16 %v3094, %v3090
    %v3143 = vpack.c.b16 %v3095, %v3091
    %v3144 = vpack.c.b16 %v3096, %v3092
    %v3145 = vpack.c.b16 %v3097, %v3093
    %v3146 = vpack.c.b16 %v3102, %v3098
    %v3147 = vpack.c.b16 %v3103, %v3099
    %v3148 = vpack.c.b16 %v3104, %v3100
    %v3149 = vpack.c.b16 %v3105, %v3101
    %v3150 = vpack.c.b16 %v3110, %v3106
    %v3151 = vpack.c.b16 %v3111, %v3107
    %v3152 = vpack.c.b16 %v3112, %v3108
    %v3153 = vpack.c.b16 %v3113, %v3109
    %v3154 = vpack.c.b16 %v3118, %v3114
    %v3155 = vpack.c.b16 %v3119, %v3115
    %v3156 = vpack.c.b16 %v3120, %v3116
    %v3157 = vpack.c.b16 %v3121, %v3117
    %v3158 = vpack.c.b16 %v3126, %v3122
    %v3159 = vpack.c.b16 %v3127, %v3123
    %v3160 = vpack.c.b16 %v3128, %v3124
    %v3161 = vpack.c.b16 %v3129, %v3125
    %3194 = vmatprep.subr.bf16.mxu0 %v3131
    %3195 = vmatpush1.bf16.msra.mxu0 %v3130
    %3196 = vmatprep.subr.bf16.mxu0 %v3135
    %3197 = vmatpush1.bf16.msra.mxu0 %v3134
    %3198 = vmatprep.subr.bf16.mxu0 %v3139
    %3199 = vmatpush1.bf16.msra.mxu0 %v3138
    %3200 = vmatprep.subr.bf16.mxu0 %v3143
    %3201 = vmatpush1.bf16.msra.mxu0 %v3142
    %3202 = vmatprep.subr.bf16.mxu0 %v3147
    %3203 = vmatpush1.bf16.msra.mxu0 %v3146
    %3204 = vmatprep.subr.bf16.mxu0 %v3151
    %3205 = vmatpush1.bf16.msra.mxu0 %v3150
    %3206 = vmatprep.subr.bf16.mxu0 %v3155
    %3207 = vmatpush1.bf16.msra.mxu0 %v3154
    %3208 = vmatprep.subr.bf16.mxu0 %v3159
    %3209 = vmatpush1.bf16.msra.mxu0 %v3158
    %3210 = vmatprep.subr.bf16.mxu0 0
    %3211 = vmatpush1.bf16.msra.mxu0 0
    %3212 = vmatprep.subr.bf16.mxu0 0
    %3213 = vmatpush1.bf16.msra.mxu0 0
    %3214 = vmatprep.subr.bf16.mxu0 0
    %3215 = vmatpush1.bf16.msra.mxu0 0
    %3216 = vmatprep.subr.bf16.mxu0 0
    %3217 = vmatpush1.bf16.msra.mxu0 0
    %3218 = vmatprep.subr.bf16.mxu0 0
    %3219 = vmatpush1.bf16.msra.mxu0 0
    %3220 = vmatprep.subr.bf16.mxu0 0
    %3221 = vmatpush1.bf16.msra.mxu0 0
    %3222 = vmatprep.subr.bf16.mxu0 0
    %3223 = vmatpush1.bf16.msra.mxu0 0
    %3224 = vmatprep.subr.bf16.mxu0 0
    %3225 = vmatpush1.bf16.msra.mxu0 0
    %3226 = vmatprep.mubr.bf16.mxu0 0
    %3227 = vmatmul.mubr.bf16.gmra.mrb[0].mxu0 %v3001
    %v3228 = vpop.f32.mrb[0].mxu0
    %v3229 = vadd.f32 0.0, %v3228
    %v3230 = vpop.f32.mrb[0].mxu0
    %v3231 = vadd.f32 0.0, %v3230
    %v3232 = vpop.f32.mrb[0].mxu0
    %v3233 = vpop.f32.mrb[0].mxu0
    %3234 = vdwg.mxu0
    %3235 = vmatprep.subr.bf16.mxu0 %v3133
    %3236 = vmatpush1.bf16.msra.mxu0 %v3132
    %3237 = vmatprep.subr.bf16.mxu0 %v3137
    %3238 = vmatpush1.bf16.msra.mxu0 %v3136
    %3239 = vmatprep.subr.bf16.mxu0 %v3141
    %3240 = vmatpush1.bf16.msra.mxu0 %v3140
    %3241 = vmatprep.subr.bf16.mxu0 %v3145
    %3242 = vmatpush1.bf16.msra.mxu0 %v3144
    %3243 = vmatprep.subr.bf16.mxu0 %v3149
    %3244 = vmatpush1.bf16.msra.mxu0 %v3148
    %3245 = vmatprep.subr.bf16.mxu0 %v3153
    %3246 = vmatpush1.bf16.msra.mxu0 %v3152
    %3247 = vmatprep.subr.bf16.mxu0 %v3157
    %3248 = vmatpush1.bf16.msra.mxu0 %v3156
    %3249 = vmatprep.subr.bf16.mxu0 %v3161
    %3250 = vmatpush1.bf16.msra.mxu0 %v3160
    %3251 = vmatprep.subr.bf16.mxu0 0
    %3252 = vmatpush1.bf16.msra.mxu0 0
    %3253 = vmatprep.subr.bf16.mxu0 0
    %3254 = vmatpush1.bf16.msra.mxu0 0
    %3255 = vmatprep.subr.bf16.mxu0 0
    %3256 = vmatpush1.bf16.msra.mxu0 0
    %3257 = vmatprep.subr.bf16.mxu0 0
    %3258 = vmatpush1.bf16.msra.mxu0 0
    %3259 = vmatprep.subr.bf16.mxu0 0
    %3260 = vmatpush1.bf16.msra.mxu0 0
    %3261 = vmatprep.subr.bf16.mxu0 0
    %3262 = vmatpush1.bf16.msra.mxu0 0
    %3263 = vmatprep.subr.bf16.mxu0 0
    %3264 = vmatpush1.bf16.msra.mxu0 0
    %3265 = vmatprep.subr.bf16.mxu0 0
    %3266 = vmatpush1.bf16.msra.mxu0 0
    %3267 = vmatprep.mubr.bf16.mxu0 0
    %3268 = vmatmul.mubr.bf16.gmra.mrb[0].mxu0 %v3001
    %v3269 = vpop.f32.mrb[0].mxu0
    %v3270 = vadd.f32 0.0, %v3269
    %v3271 = vpop.f32.mrb[0].mxu0
    %v3272 = vadd.f32 0.0, %v3271
    %v3273 = vpop.f32.mrb[0].mxu0
    %v3274 = vpop.f32.mrb[0].mxu0
    %3275 = vdwg.mxu0
    %v3276 = vadd.f32 %v2997, %v3229
    %v3277 = vadd.f32 %v2998, %v3231
    %v3278 = vadd.f32 %v2999, %v3270
    %v3279 = vadd.f32 %v3000, %v3272
    %v3280 = vld [vmem:[#allocation2 + $0xe0] sm:$0xff]
    %v3281 = vld [vmem:[#allocation2 + $0xe8] sm:$0xff]
    %v3282 = vld [vmem:[#allocation2 + $0xf0] sm:$0xff]
    %v3283 = vld [vmem:[#allocation2 + $0xf8] sm:$0xff]
    %v3284 = vpack.c.bf16 %v2994, %v2994
    %v3285 = vld [vmem:[%s820] sm:$0xff]
    %v3286 = vld [vmem:[%s820 + $0x8] sm:$0xff]
    %v3287 = vld [vmem:[%s820 + $0x10] sm:$0xff]
    %v3288 = vld [vmem:[%s820 + $0x18] sm:$0xff]
    %v3289 = vld [vmem:[%s820 + $0x20] sm:$0xff]
    %v3290 = vld [vmem:[%s820 + $0x28] sm:$0xff]
    %v3291 = vld [vmem:[%s820 + $0x30] sm:$0xff]
    %v3292 = vld [vmem:[%s820 + $0x38] sm:$0xff]
    %v3293 = vld [vmem:[%s820 + $0x40] sm:$0xff]
    %v3294 = vld [vmem:[%s820 + $0x48] sm:$0xff]
    %v3295 = vld [vmem:[%s820 + $0x50] sm:$0xff]
    %v3296 = vld [vmem:[%s820 + $0x58] sm:$0xff]
    %v3297 = vld [vmem:[%s820 + $0x60] sm:$0xff]
    %v3298 = vld [vmem:[%s820 + $0x68] sm:$0xff]
    %v3299 = vld [vmem:[%s820 + $0x70] sm:$0xff]
    %v3300 = vld [vmem:[%s820 + $0x78] sm:$0xff]
    %v3301 = vld [vmem:[%s820 + $0x80] sm:$0xff]
    %v3302 = vld [vmem:[%s820 + $0x88] sm:$0xff]
    %v3303 = vld [vmem:[%s820 + $0x90] sm:$0xff]
    %v3304 = vld [vmem:[%s820 + $0x98] sm:$0xff]
    %v3305 = vld [vmem:[%s820 + $0xa0] sm:$0xff]
    %v3306 = vld [vmem:[%s820 + $0xa8] sm:$0xff]
    %v3307 = vld [vmem:[%s820 + $0xb0] sm:$0xff]
    %v3308 = vld [vmem:[%s820 + $0xb8] sm:$0xff]
    %v3309 = vld [vmem:[%s820 + $0xc0] sm:$0xff]
    %v3310 = vld [vmem:[%s820 + $0xc8] sm:$0xff]
    %v3311 = vld [vmem:[%s820 + $0xd0] sm:$0xff]
    %v3312 = vld [vmem:[%s820 + $0xd8] sm:$0xff]
    %v3313 = vld [vmem:[%s820 + $0xe0] sm:$0xff]
    %v3314 = vld [vmem:[%s820 + $0xe8] sm:$0xff]
    %v3315 = vld [vmem:[%s820 + $0xf0] sm:$0xff]
    %v3316 = vld [vmem:[%s820 + $0xf8] sm:$0xff]
    %v3349 = vunpack.c.l.b16 %v3285
    %v3350 = vunpack.c.h.b16 %v3285
    %v3351 = vunpack.c.l.b16 %v3286
    %v3352 = vunpack.c.h.b16 %v3286
    %v3353 = vunpack.c.l.b16 %v3287
    %v3354 = vunpack.c.h.b16 %v3287
    %v3355 = vunpack.c.l.b16 %v3288
    %v3356 = vunpack.c.h.b16 %v3288
    %v3357 = vunpack.c.l.b16 %v3289
    %v3358 = vunpack.c.h.b16 %v3289
    %v3359 = vunpack.c.l.b16 %v3290
    %v3360 = vunpack.c.h.b16 %v3290
    %v3361 = vunpack.c.l.b16 %v3291
    %v3362 = vunpack.c.h.b16 %v3291
    %v3363 = vunpack.c.l.b16 %v3292
    %v3364 = vunpack.c.h.b16 %v3292
    %v3365 = vunpack.c.l.b16 %v3293
    %v3366 = vunpack.c.h.b16 %v3293
    %v3367 = vunpack.c.l.b16 %v3294
    %v3368 = vunpack.c.h.b16 %v3294
    %v3369 = vunpack.c.l.b16 %v3295
    %v3370 = vunpack.c.h.b16 %v3295
    %v3371 = vunpack.c.l.b16 %v3296
    %v3372 = vunpack.c.h.b16 %v3296
    %v3373 = vunpack.c.l.b16 %v3297
    %v3374 = vunpack.c.h.b16 %v3297
    %v3375 = vunpack.c.l.b16 %v3298
    %v3376 = vunpack.c.h.b16 %v3298
    %v3377 = vunpack.c.l.b16 %v3299
    %v3378 = vunpack.c.h.b16 %v3299
    %v3379 = vunpack.c.l.b16 %v3300
    %v3380 = vunpack.c.h.b16 %v3300
    %v3381 = vunpack.c.l.b16 %v3301
    %v3382 = vunpack.c.h.b16 %v3301
    %v3383 = vunpack.c.l.b16 %v3302
    %v3384 = vunpack.c.h.b16 %v3302
    %v3385 = vunpack.c.l.b16 %v3303
    %v3386 = vunpack.c.h.b16 %v3303
    %v3387 = vunpack.c.l.b16 %v3304
    %v3388 = vunpack.c.h.b16 %v3304
    %v3389 = vunpack.c.l.b16 %v3305
    %v3390 = vunpack.c.h.b16 %v3305
    %v3391 = vunpack.c.l.b16 %v3306
    %v3392 = vunpack.c.h.b16 %v3306
    %v3393 = vunpack.c.l.b16 %v3307
    %v3394 = vunpack.c.h.b16 %v3307
    %v3395 = vunpack.c.l.b16 %v3308
    %v3396 = vunpack.c.h.b16 %v3308
    %v3397 = vunpack.c.l.b16 %v3309
    %v3398 = vunpack.c.h.b16 %v3309
    %v3399 = vunpack.c.l.b16 %v3310
    %v3400 = vunpack.c.h.b16 %v3310
    %v3401 = vunpack.c.l.b16 %v3311
    %v3402 = vunpack.c.h.b16 %v3311
    %v3403 = vunpack.c.l.b16 %v3312
    %v3404 = vunpack.c.h.b16 %v3312
    %v3405 = vunpack.c.l.b16 %v3313
    %v3406 = vunpack.c.h.b16 %v3313
    %v3407 = vunpack.c.l.b16 %v3314
    %v3408 = vunpack.c.h.b16 %v3314
    %v3409 = vunpack.c.l.b16 %v3315
    %v3410 = vunpack.c.h.b16 %v3315
    %v3411 = vunpack.c.l.b16 %v3316
    %v3412 = vunpack.c.h.b16 %v3316
    %v3413 = vpack.c.b16 %v3353, %v3349
    %v3414 = vpack.c.b16 %v3354, %v3350
    %v3415 = vpack.c.b16 %v3355, %v3351
    %v3416 = vpack.c.b16 %v3356, %v3352
    %v3417 = vpack.c.b16 %v3361, %v3357
    %v3418 = vpack.c.b16 %v3362, %v3358
    %v3419 = vpack.c.b16 %v3363, %v3359
    %v3420 = vpack.c.b16 %v3364, %v3360
    %v3421 = vpack.c.b16 %v3369, %v3365
    %v3422 = vpack.c.b16 %v3370, %v3366
    %v3423 = vpack.c.b16 %v3371, %v3367
    %v3424 = vpack.c.b16 %v3372, %v3368
    %v3425 = vpack.c.b16 %v3377, %v3373
    %v3426 = vpack.c.b16 %v3378, %v3374
    %v3427 = vpack.c.b16 %v3379, %v3375
    %v3428 = vpack.c.b16 %v3380, %v3376
    %v3429 = vpack.c.b16 %v3385, %v3381
    %v3430 = vpack.c.b16 %v3386, %v3382
    %v3431 = vpack.c.b16 %v3387, %v3383
    %v3432 = vpack.c.b16 %v3388, %v3384
    %v3433 = vpack.c.b16 %v3393, %v3389
    %v3434 = vpack.c.b16 %v3394, %v3390
    %v3435 = vpack.c.b16 %v3395, %v3391
    %v3436 = vpack.c.b16 %v3396, %v3392
    %v3437 = vpack.c.b16 %v3401, %v3397
    %v3438 = vpack.c.b16 %v3402, %v3398
    %v3439 = vpack.c.b16 %v3403, %v3399
    %v3440 = vpack.c.b16 %v3404, %v3400
    %v3441 = vpack.c.b16 %v3409, %v3405
    %v3442 = vpack.c.b16 %v3410, %v3406
    %v3443 = vpack.c.b16 %v3411, %v3407
    %v3444 = vpack.c.b16 %v3412, %v3408
    %3477 = vmatprep.subr.bf16.mxu0 %v3414
    %3478 = vmatpush1.bf16.msra.mxu0 %v3413
    %3479 = vmatprep.subr.bf16.mxu0 %v3418
    %3480 = vmatpush1.bf16.msra.mxu0 %v3417
    %3481 = vmatprep.subr.bf16.mxu0 %v3422
    %3482 = vmatpush1.bf16.msra.mxu0 %v3421
    %3483 = vmatprep.subr.bf16.mxu0 %v3426
    %3484 = vmatpush1.bf16.msra.mxu0 %v3425
    %3485 = vmatprep.subr.bf16.mxu0 %v3430
    %3486 = vmatpush1.bf16.msra.mxu0 %v3429
    %3487 = vmatprep.subr.bf16.mxu0 %v3434
    %3488 = vmatpush1.bf16.msra.mxu0 %v3433
    %3489 = vmatprep.subr.bf16.mxu0 %v3438
    %3490 = vmatpush1.bf16.msra.mxu0 %v3437
    %3491 = vmatprep.subr.bf16.mxu0 %v3442
    %3492 = vmatpush1.bf16.msra.mxu0 %v3441
    %3493 = vmatprep.subr.bf16.mxu0 0
    %3494 = vmatpush1.bf16.msra.mxu0 0
    %3495 = vmatprep.subr.bf16.mxu0 0
    %3496 = vmatpush1.bf16.msra.mxu0 0
    %3497 = vmatprep.subr.bf16.mxu0 0
    %3498 = vmatpush1.bf16.msra.mxu0 0
    %3499 = vmatprep.subr.bf16.mxu0 0
    %3500 = vmatpush1.bf16.msra.mxu0 0
    %3501 = vmatprep.subr.bf16.mxu0 0
    %3502 = vmatpush1.bf16.msra.mxu0 0
    %3503 = vmatprep.subr.bf16.mxu0 0
    %3504 = vmatpush1.bf16.msra.mxu0 0
    %3505 = vmatprep.subr.bf16.mxu0 0
    %3506 = vmatpush1.bf16.msra.mxu0 0
    %3507 = vmatprep.subr.bf16.mxu0 0
    %3508 = vmatpush1.bf16.msra.mxu0 0
    %3509 = vmatprep.mubr.bf16.mxu0 0
    %3510 = vmatmul.mubr.bf16.gmra.mrb[0].mxu0 %v3284
    %v3511 = vpop.f32.mrb[0].mxu0
    %v3512 = vadd.f32 0.0, %v3511
    %v3513 = vpop.f32.mrb[0].mxu0
    %v3514 = vadd.f32 0.0, %v3513
    %v3515 = vpop.f32.mrb[0].mxu0
    %v3516 = vpop.f32.mrb[0].mxu0
    %3517 = vdwg.mxu0
    %3518 = vmatprep.subr.bf16.mxu0 %v3416
    %3519 = vmatpush1.bf16.msra.mxu0 %v3415
    %3520 = vmatprep.subr.bf16.mxu0 %v3420
    %3521 = vmatpush1.bf16.msra.mxu0 %v3419
    %3522 = vmatprep.subr.bf16.mxu0 %v3424
    %3523 = vmatpush1.bf16.msra.mxu0 %v3423
    %3524 = vmatprep.subr.bf16.mxu0 %v3428
    %3525 = vmatpush1.bf16.msra.mxu0 %v3427
    %3526 = vmatprep.subr.bf16.mxu0 %v3432
    %3527 = vmatpush1.bf16.msra.mxu0 %v3431
    %3528 = vmatprep.subr.bf16.mxu0 %v3436
    %3529 = vmatpush1.bf16.msra.mxu0 %v3435
    %3530 = vmatprep.subr.bf16.mxu0 %v3440
    %3531 = vmatpush1.bf16.msra.mxu0 %v3439
    %3532 = vmatprep.subr.bf16.mxu0 %v3444
    %3533 = vmatpush1.bf16.msra.mxu0 %v3443
    %3534 = vmatprep.subr.bf16.mxu0 0
    %3535 = vmatpush1.bf16.msra.mxu0 0
    %3536 = vmatprep.subr.bf16.mxu0 0
    %3537 = vmatpush1.bf16.msra.mxu0 0
    %3538 = vmatprep.subr.bf16.mxu0 0
    %3539 = vmatpush1.bf16.msra.mxu0 0
    %3540 = vmatprep.subr.bf16.mxu0 0
    %3541 = vmatpush1.bf16.msra.mxu0 0
    %3542 = vmatprep.subr.bf16.mxu0 0
    %3543 = vmatpush1.bf16.msra.mxu0 0
    %3544 = vmatprep.subr.bf16.mxu0 0
    %3545 = vmatpush1.bf16.msra.mxu0 0
    %3546 = vmatprep.subr.bf16.mxu0 0
    %3547 = vmatpush1.bf16.msra.mxu0 0
    %3548 = vmatprep.subr.bf16.mxu0 0
    %3549 = vmatpush1.bf16.msra.mxu0 0
    %3550 = vmatprep.mubr.bf16.mxu0 0
    %3551 = vmatmul.mubr.bf16.gmra.mrb[0].mxu0 %v3284
    %v3552 = vpop.f32.mrb[0].mxu0
    %v3553 = vadd.f32 0.0, %v3552
    %v3554 = vpop.f32.mrb[0].mxu0
    %v3555 = vadd.f32 0.0, %v3554
    %v3556 = vpop.f32.mrb[0].mxu0
    %v3557 = vpop.f32.mrb[0].mxu0
    %3558 = vdwg.mxu0
    %v3559 = vadd.f32 %v3280, %v3512
    %v3560 = vadd.f32 %v3281, %v3514
    %v3561 = vadd.f32 %v3282, %v3553
    %v3562 = vadd.f32 %v3283, %v3555
    %v3563 = vxor.u32 %v3276, 2147483648
    %v3564 = vmul.f32 %v3563, 1.442695
    %v3565 = vpow.pop %v3564
    %v3566 = vadd.f32 %v3565, 1.0
    %v3567 = vrcp.pop %v3566
    %v3568 = vmul.f32 1.0, %v3567
    %v3569 = vxor.u32 %v3277, 2147483648
    %v3570 = vmul.f32 %v3569, 1.442695
    %v3571 = vpow.pop %v3570
    %v3572 = vadd.f32 %v3571, 1.0
    %v3573 = vrcp.pop %v3572
    %v3574 = vmul.f32 1.0, %v3573
    %v3575 = vtanh.pop %v3278
    %v3576 = vxor.u32 %v3279, 2147483648
    %v3577 = vmul.f32 %v3576, 1.442695
    %v3578 = vpow.pop %v3577
    %v3579 = vadd.f32 %v3578, 1.0
    %v3580 = vrcp.pop %v3579
    %v3581 = vmul.f32 1.0, %v3580
    %v3582 = vmul.f32 %v3574, %v2968
    %v3583 = vmul.f32 %v3568, %v3575
    %v3584 = vadd.f32 %v3582, %v3583
    %v3585 = vtanh.pop %v3584
    %v3586 = vmul.f32 %v3581, %v3585
    %v3587 = vxor.u32 %v3559, 2147483648
    %v3588 = vmul.f32 %v3587, 1.442695
    %v3589 = vpow.pop %v3588
    %v3590 = vadd.f32 %v3589, 1.0
    %v3591 = vrcp.pop %v3590
    %v3592 = vmul.f32 1.0, %v3591
    %v3593 = vxor.u32 %v3560, 2147483648
    %v3594 = vmul.f32 %v3593, 1.442695
    %v3595 = vpow.pop %v3594
    %v3596 = vadd.f32 %v3595, 1.0
    %v3597 = vrcp.pop %v3596
    %v3598 = vmul.f32 1.0, %v3597
    %v3599 = vtanh.pop %v3561
    %v3600 = vxor.u32 %v3562, 2147483648
    %v3601 = vmul.f32 %v3600, 1.442695
    %v3602 = vpow.pop %v3601
    %v3603 = vadd.f32 %v3602, 1.0
    %v3604 = vrcp.pop %v3603
    %v3605 = vmul.f32 1.0, %v3604
    %v3606 = vmul.f32 %v3598, %v2992
    %v3607 = vmul.f32 %v3592, %v3599
    %v3608 = vadd.f32 %v3606, %v3607
    %v3609 = vtanh.pop %v3608
    %v3610 = vmul.f32 %v3605, %v3609
    %3611 = vst [vmem:[#allocation3 + $0x40] sm:$0xff] %v3586
    %3612 = vst [vmem:[#allocation3 + $0x38] sm:$0xff] %v3610
    %v3613 = vld [vmem:[#allocation2 + $0x140] sm:$0xff]
    %v3614 = vld [vmem:[#allocation2 + $0x148] sm:$0xff]
    %v3615 = vld [vmem:[#allocation2 + $0x150] sm:$0xff]
    %v3616 = vld [vmem:[#allocation2 + $0x158] sm:$0xff]
    %v3617 = vpack.c.bf16 %v3586, %v3586
    %v3618 = vld [vmem:[#allocation7] sm:$0xff]
    %v3619 = vld [vmem:[#allocation7 + $0x8] sm:$0xff]
    %v3620 = vld [vmem:[#allocation7 + $0x10] sm:$0xff]
    %v3621 = vld [vmem:[#allocation7 + $0x18] sm:$0xff]
    %v3622 = vld [vmem:[#allocation7 + $0x20] sm:$0xff]
    %v3623 = vld [vmem:[#allocation7 + $0x28] sm:$0xff]
    %v3624 = vld [vmem:[#allocation7 + $0x30] sm:$0xff]
    %v3625 = vld [vmem:[#allocation7 + $0x38] sm:$0xff]
    %v3626 = vld [vmem:[#allocation7 + $0x40] sm:$0xff]
    %v3627 = vld [vmem:[#allocation7 + $0x48] sm:$0xff]
    %v3628 = vld [vmem:[#allocation7 + $0x50] sm:$0xff]
    %v3629 = vld [vmem:[#allocation7 + $0x58] sm:$0xff]
    %v3630 = vld [vmem:[#allocation7 + $0x60] sm:$0xff]
    %v3631 = vld [vmem:[#allocation7 + $0x68] sm:$0xff]
    %v3632 = vld [vmem:[#allocation7 + $0x70] sm:$0xff]
    %v3633 = vld [vmem:[#allocation7 + $0x78] sm:$0xff]
    %v3634 = vld [vmem:[#allocation7 + $0x80] sm:$0xff]
    %v3635 = vld [vmem:[#allocation7 + $0x88] sm:$0xff]
    %v3636 = vld [vmem:[#allocation7 + $0x90] sm:$0xff]
    %v3637 = vld [vmem:[#allocation7 + $0x98] sm:$0xff]
    %v3638 = vld [vmem:[#allocation7 + $0xa0] sm:$0xff]
    %v3639 = vld [vmem:[#allocation7 + $0xa8] sm:$0xff]
    %v3640 = vld [vmem:[#allocation7 + $0xb0] sm:$0xff]
    %v3641 = vld [vmem:[#allocation7 + $0xb8] sm:$0xff]
    %v3642 = vld [vmem:[#allocation7 + $0xc0] sm:$0xff]
    %v3643 = vld [vmem:[#allocation7 + $0xc8] sm:$0xff]
    %v3644 = vld [vmem:[#allocation7 + $0xd0] sm:$0xff]
    %v3645 = vld [vmem:[#allocation7 + $0xd8] sm:$0xff]
    %v3646 = vld [vmem:[#allocation7 + $0xe0] sm:$0xff]
    %v3647 = vld [vmem:[#allocation7 + $0xe8] sm:$0xff]
    %v3648 = vld [vmem:[#allocation7 + $0xf0] sm:$0xff]
    %v3649 = vld [vmem:[#allocation7 + $0xf8] sm:$0xff]
    %v3682 = vunpack.c.l.b16 %v3618
    %v3683 = vunpack.c.h.b16 %v3618
    %v3684 = vunpack.c.l.b16 %v3619
    %v3685 = vunpack.c.h.b16 %v3619
    %v3686 = vunpack.c.l.b16 %v3620
    %v3687 = vunpack.c.h.b16 %v3620
    %v3688 = vunpack.c.l.b16 %v3621
    %v3689 = vunpack.c.h.b16 %v3621
    %v3690 = vunpack.c.l.b16 %v3622
    %v3691 = vunpack.c.h.b16 %v3622
    %v3692 = vunpack.c.l.b16 %v3623
    %v3693 = vunpack.c.h.b16 %v3623
    %v3694 = vunpack.c.l.b16 %v3624
    %v3695 = vunpack.c.h.b16 %v3624
    %v3696 = vunpack.c.l.b16 %v3625
    %v3697 = vunpack.c.h.b16 %v3625
    %v3698 = vunpack.c.l.b16 %v3626
    %v3699 = vunpack.c.h.b16 %v3626
    %v3700 = vunpack.c.l.b16 %v3627
    %v3701 = vunpack.c.h.b16 %v3627
    %v3702 = vunpack.c.l.b16 %v3628
    %v3703 = vunpack.c.h.b16 %v3628
    %v3704 = vunpack.c.l.b16 %v3629
    %v3705 = vunpack.c.h.b16 %v3629
    %v3706 = vunpack.c.l.b16 %v3630
    %v3707 = vunpack.c.h.b16 %v3630
    %v3708 = vunpack.c.l.b16 %v3631
    %v3709 = vunpack.c.h.b16 %v3631
    %v3710 = vunpack.c.l.b16 %v3632
    %v3711 = vunpack.c.h.b16 %v3632
    %v3712 = vunpack.c.l.b16 %v3633
    %v3713 = vunpack.c.h.b16 %v3633
    %v3714 = vunpack.c.l.b16 %v3634
    %v3715 = vunpack.c.h.b16 %v3634
    %v3716 = vunpack.c.l.b16 %v3635
    %v3717 = vunpack.c.h.b16 %v3635
    %v3718 = vunpack.c.l.b16 %v3636
    %v3719 = vunpack.c.h.b16 %v3636
    %v3720 = vunpack.c.l.b16 %v3637
    %v3721 = vunpack.c.h.b16 %v3637
    %v3722 = vunpack.c.l.b16 %v3638
    %v3723 = vunpack.c.h.b16 %v3638
    %v3724 = vunpack.c.l.b16 %v3639
    %v3725 = vunpack.c.h.b16 %v3639
    %v3726 = vunpack.c.l.b16 %v3640
    %v3727 = vunpack.c.h.b16 %v3640
    %v3728 = vunpack.c.l.b16 %v3641
    %v3729 = vunpack.c.h.b16 %v3641
    %v3730 = vunpack.c.l.b16 %v3642
    %v3731 = vunpack.c.h.b16 %v3642
    %v3732 = vunpack.c.l.b16 %v3643
    %v3733 = vunpack.c.h.b16 %v3643
    %v3734 = vunpack.c.l.b16 %v3644
    %v3735 = vunpack.c.h.b16 %v3644
    %v3736 = vunpack.c.l.b16 %v3645
    %v3737 = vunpack.c.h.b16 %v3645
    %v3738 = vunpack.c.l.b16 %v3646
    %v3739 = vunpack.c.h.b16 %v3646
    %v3740 = vunpack.c.l.b16 %v3647
    %v3741 = vunpack.c.h.b16 %v3647
    %v3742 = vunpack.c.l.b16 %v3648
    %v3743 = vunpack.c.h.b16 %v3648
    %v3744 = vunpack.c.l.b16 %v3649
    %v3745 = vunpack.c.h.b16 %v3649
    %v3746 = vpack.c.b16 %v3686, %v3682
    %v3747 = vpack.c.b16 %v3687, %v3683
    %v3748 = vpack.c.b16 %v3688, %v3684
    %v3749 = vpack.c.b16 %v3689, %v3685
    %v3750 = vpack.c.b16 %v3694, %v3690
    %v3751 = vpack.c.b16 %v3695, %v3691
    %v3752 = vpack.c.b16 %v3696, %v3692
    %v3753 = vpack.c.b16 %v3697, %v3693
    %v3754 = vpack.c.b16 %v3702, %v3698
    %v3755 = vpack.c.b16 %v3703, %v3699
    %v3756 = vpack.c.b16 %v3704, %v3700
    %v3757 = vpack.c.b16 %v3705, %v3701
    %v3758 = vpack.c.b16 %v3710, %v3706
    %v3759 = vpack.c.b16 %v3711, %v3707
    %v3760 = vpack.c.b16 %v3712, %v3708
    %v3761 = vpack.c.b16 %v3713, %v3709
    %v3762 = vpack.c.b16 %v3718, %v3714
    %v3763 = vpack.c.b16 %v3719, %v3715
    %v3764 = vpack.c.b16 %v3720, %v3716
    %v3765 = vpack.c.b16 %v3721, %v3717
    %v3766 = vpack.c.b16 %v3726, %v3722
    %v3767 = vpack.c.b16 %v3727, %v3723
    %v3768 = vpack.c.b16 %v3728, %v3724
    %v3769 = vpack.c.b16 %v3729, %v3725
    %v3770 = vpack.c.b16 %v3734, %v3730
    %v3771 = vpack.c.b16 %v3735, %v3731
    %v3772 = vpack.c.b16 %v3736, %v3732
    %v3773 = vpack.c.b16 %v3737, %v3733
    %v3774 = vpack.c.b16 %v3742, %v3738
    %v3775 = vpack.c.b16 %v3743, %v3739
    %v3776 = vpack.c.b16 %v3744, %v3740
    %v3777 = vpack.c.b16 %v3745, %v3741
    %3810 = vmatprep.subr.bf16.mxu0 %v3747
    %3811 = vmatpush1.bf16.msra.mxu0 %v3746
    %3812 = vmatprep.subr.bf16.mxu0 %v3751
    %3813 = vmatpush1.bf16.msra.mxu0 %v3750
    %3814 = vmatprep.subr.bf16.mxu0 %v3755
    %3815 = vmatpush1.bf16.msra.mxu0 %v3754
    %3816 = vmatprep.subr.bf16.mxu0 %v3759
    %3817 = vmatpush1.bf16.msra.mxu0 %v3758
    %3818 = vmatprep.subr.bf16.mxu0 %v3763
    %3819 = vmatpush1.bf16.msra.mxu0 %v3762
    %3820 = vmatprep.subr.bf16.mxu0 %v3767
    %3821 = vmatpush1.bf16.msra.mxu0 %v3766
    %3822 = vmatprep.subr.bf16.mxu0 %v3771
    %3823 = vmatpush1.bf16.msra.mxu0 %v3770
    %3824 = vmatprep.subr.bf16.mxu0 %v3775
    %3825 = vmatpush1.bf16.msra.mxu0 %v3774
    %3826 = vmatprep.subr.bf16.mxu0 0
    %3827 = vmatpush1.bf16.msra.mxu0 0
    %3828 = vmatprep.subr.bf16.mxu0 0
    %3829 = vmatpush1.bf16.msra.mxu0 0
    %3830 = vmatprep.subr.bf16.mxu0 0
    %3831 = vmatpush1.bf16.msra.mxu0 0
    %3832 = vmatprep.subr.bf16.mxu0 0
    %3833 = vmatpush1.bf16.msra.mxu0 0
    %3834 = vmatprep.subr.bf16.mxu0 0
    %3835 = vmatpush1.bf16.msra.mxu0 0
    %3836 = vmatprep.subr.bf16.mxu0 0
    %3837 = vmatpush1.bf16.msra.mxu0 0
    %3838 = vmatprep.subr.bf16.mxu0 0
    %3839 = vmatpush1.bf16.msra.mxu0 0
    %3840 = vmatprep.subr.bf16.mxu0 0
    %3841 = vmatpush1.bf16.msra.mxu0 0
    %3842 = vmatprep.mubr.bf16.mxu0 0
    %3843 = vmatmul.mubr.bf16.gmra.mrb[0].mxu0 %v3617
    %v3844 = vpop.f32.mrb[0].mxu0
    %v3845 = vadd.f32 0.0, %v3844
    %v3846 = vpop.f32.mrb[0].mxu0
    %v3847 = vadd.f32 0.0, %v3846
    %v3848 = vpop.f32.mrb[0].mxu0
    %v3849 = vpop.f32.mrb[0].mxu0
    %3850 = vdwg.mxu0
    %3851 = vmatprep.subr.bf16.mxu0 %v3749
    %3852 = vmatpush1.bf16.msra.mxu0 %v3748
    %3853 = vmatprep.subr.bf16.mxu0 %v3753
    %3854 = vmatpush1.bf16.msra.mxu0 %v3752
    %3855 = vmatprep.subr.bf16.mxu0 %v3757
    %3856 = vmatpush1.bf16.msra.mxu0 %v3756
    %3857 = vmatprep.subr.bf16.mxu0 %v3761
    %3858 = vmatpush1.bf16.msra.mxu0 %v3760
    %3859 = vmatprep.subr.bf16.mxu0 %v3765
    %3860 = vmatpush1.bf16.msra.mxu0 %v3764
    %3861 = vmatprep.subr.bf16.mxu0 %v3769
    %3862 = vmatpush1.bf16.msra.mxu0 %v3768
    %3863 = vmatprep.subr.bf16.mxu0 %v3773
    %3864 = vmatpush1.bf16.msra.mxu0 %v3772
    %3865 = vmatprep.subr.bf16.mxu0 %v3777
    %3866 = vmatpush1.bf16.msra.mxu0 %v3776
    %3867 = vmatprep.subr.bf16.mxu0 0
    %3868 = vmatpush1.bf16.msra.mxu0 0
    %3869 = vmatprep.subr.bf16.mxu0 0
    %3870 = vmatpush1.bf16.msra.mxu0 0
    %3871 = vmatprep.subr.bf16.mxu0 0
    %3872 = vmatpush1.bf16.msra.mxu0 0
    %3873 = vmatprep.subr.bf16.mxu0 0
    %3874 = vmatpush1.bf16.msra.mxu0 0
    %3875 = vmatprep.subr.bf16.mxu0 0
    %3876 = vmatpush1.bf16.msra.mxu0 0
    %3877 = vmatprep.subr.bf16.mxu0 0
    %3878 = vmatpush1.bf16.msra.mxu0 0
    %3879 = vmatprep.subr.bf16.mxu0 0
    %3880 = vmatpush1.bf16.msra.mxu0 0
    %3881 = vmatprep.subr.bf16.mxu0 0
    %3882 = vmatpush1.bf16.msra.mxu0 0
    %3883 = vmatprep.mubr.bf16.mxu0 0
    %3884 = vmatmul.mubr.bf16.gmra.mrb[0].mxu0 %v3617
    %v3885 = vpop.f32.mrb[0].mxu0
    %v3886 = vadd.f32 0.0, %v3885
    %v3887 = vpop.f32.mrb[0].mxu0
    %v3888 = vadd.f32 0.0, %v3887
    %v3889 = vpop.f32.mrb[0].mxu0
    %v3890 = vpop.f32.mrb[0].mxu0
    %3891 = vdwg.mxu0
    %v3892 = vadd.f32 %v3613, %v3845
    %v3893 = vadd.f32 %v3614, %v3847
    %v3894 = vadd.f32 %v3615, %v3886
    %v3895 = vadd.f32 %v3616, %v3888
    %v3896 = vld [vmem:[#allocation2 + $0xa0] sm:$0xff]
    %v3897 = vld [vmem:[#allocation2 + $0xa8] sm:$0xff]
    %v3898 = vld [vmem:[#allocation2 + $0xb0] sm:$0xff]
    %v3899 = vld [vmem:[#allocation2 + $0xb8] sm:$0xff]
    %v3900 = vpack.c.bf16 %v3610, %v3610
    %v3901 = vld [vmem:[%s820] sm:$0xff]
    %v3902 = vld [vmem:[%s820 + $0x8] sm:$0xff]
    %v3903 = vld [vmem:[%s820 + $0x10] sm:$0xff]
    %v3904 = vld [vmem:[%s820 + $0x18] sm:$0xff]
    %v3905 = vld [vmem:[%s820 + $0x20] sm:$0xff]
    %v3906 = vld [vmem:[%s820 + $0x28] sm:$0xff]
    %v3907 = vld [vmem:[%s820 + $0x30] sm:$0xff]
    %v3908 = vld [vmem:[%s820 + $0x38] sm:$0xff]
    %v3909 = vld [vmem:[%s820 + $0x40] sm:$0xff]
    %v3910 = vld [vmem:[%s820 + $0x48] sm:$0xff]
    %v3911 = vld [vmem:[%s820 + $0x50] sm:$0xff]
    %v3912 = vld [vmem:[%s820 + $0x58] sm:$0xff]
    %v3913 = vld [vmem:[%s820 + $0x60] sm:$0xff]
    %v3914 = vld [vmem:[%s820 + $0x68] sm:$0xff]
    %v3915 = vld [vmem:[%s820 + $0x70] sm:$0xff]
    %v3916 = vld [vmem:[%s820 + $0x78] sm:$0xff]
    %v3917 = vld [vmem:[%s820 + $0x80] sm:$0xff]
    %v3918 = vld [vmem:[%s820 + $0x88] sm:$0xff]
    %v3919 = vld [vmem:[%s820 + $0x90] sm:$0xff]
    %v3920 = vld [vmem:[%s820 + $0x98] sm:$0xff]
    %v3921 = vld [vmem:[%s820 + $0xa0] sm:$0xff]
    %v3922 = vld [vmem:[%s820 + $0xa8] sm:$0xff]
    %v3923 = vld [vmem:[%s820 + $0xb0] sm:$0xff]
    %v3924 = vld [vmem:[%s820 + $0xb8] sm:$0xff]
    %v3925 = vld [vmem:[%s820 + $0xc0] sm:$0xff]
    %v3926 = vld [vmem:[%s820 + $0xc8] sm:$0xff]
    %v3927 = vld [vmem:[%s820 + $0xd0] sm:$0xff]
    %v3928 = vld [vmem:[%s820 + $0xd8] sm:$0xff]
    %v3929 = vld [vmem:[%s820 + $0xe0] sm:$0xff]
    %v3930 = vld [vmem:[%s820 + $0xe8] sm:$0xff]
    %v3931 = vld [vmem:[%s820 + $0xf0] sm:$0xff]
    %v3932 = vld [vmem:[%s820 + $0xf8] sm:$0xff]
    %v3965 = vunpack.c.l.b16 %v3901
    %v3966 = vunpack.c.h.b16 %v3901
    %v3967 = vunpack.c.l.b16 %v3902
    %v3968 = vunpack.c.h.b16 %v3902
    %v3969 = vunpack.c.l.b16 %v3903
    %v3970 = vunpack.c.h.b16 %v3903
    %v3971 = vunpack.c.l.b16 %v3904
    %v3972 = vunpack.c.h.b16 %v3904
    %v3973 = vunpack.c.l.b16 %v3905
    %v3974 = vunpack.c.h.b16 %v3905
    %v3975 = vunpack.c.l.b16 %v3906
    %v3976 = vunpack.c.h.b16 %v3906
    %v3977 = vunpack.c.l.b16 %v3907
    %v3978 = vunpack.c.h.b16 %v3907
    %v3979 = vunpack.c.l.b16 %v3908
    %v3980 = vunpack.c.h.b16 %v3908
    %v3981 = vunpack.c.l.b16 %v3909
    %v3982 = vunpack.c.h.b16 %v3909
    %v3983 = vunpack.c.l.b16 %v3910
    %v3984 = vunpack.c.h.b16 %v3910
    %v3985 = vunpack.c.l.b16 %v3911
    %v3986 = vunpack.c.h.b16 %v3911
    %v3987 = vunpack.c.l.b16 %v3912
    %v3988 = vunpack.c.h.b16 %v3912
    %v3989 = vunpack.c.l.b16 %v3913
    %v3990 = vunpack.c.h.b16 %v3913
    %v3991 = vunpack.c.l.b16 %v3914
    %v3992 = vunpack.c.h.b16 %v3914
    %v3993 = vunpack.c.l.b16 %v3915
    %v3994 = vunpack.c.h.b16 %v3915
    %v3995 = vunpack.c.l.b16 %v3916
    %v3996 = vunpack.c.h.b16 %v3916
    %v3997 = vunpack.c.l.b16 %v3917
    %v3998 = vunpack.c.h.b16 %v3917
    %v3999 = vunpack.c.l.b16 %v3918
    %v4000 = vunpack.c.h.b16 %v3918
    %v4001 = vunpack.c.l.b16 %v3919
    %v4002 = vunpack.c.h.b16 %v3919
    %v4003 = vunpack.c.l.b16 %v3920
    %v4004 = vunpack.c.h.b16 %v3920
    %v4005 = vunpack.c.l.b16 %v3921
    %v4006 = vunpack.c.h.b16 %v3921
    %v4007 = vunpack.c.l.b16 %v3922
    %v4008 = vunpack.c.h.b16 %v3922
    %v4009 = vunpack.c.l.b16 %v3923
    %v4010 = vunpack.c.h.b16 %v3923
    %v4011 = vunpack.c.l.b16 %v3924
    %v4012 = vunpack.c.h.b16 %v3924
    %v4013 = vunpack.c.l.b16 %v3925
    %v4014 = vunpack.c.h.b16 %v3925
    %v4015 = vunpack.c.l.b16 %v3926
    %v4016 = vunpack.c.h.b16 %v3926
    %v4017 = vunpack.c.l.b16 %v3927
    %v4018 = vunpack.c.h.b16 %v3927
    %v4019 = vunpack.c.l.b16 %v3928
    %v4020 = vunpack.c.h.b16 %v3928
    %v4021 = vunpack.c.l.b16 %v3929
    %v4022 = vunpack.c.h.b16 %v3929
    %v4023 = vunpack.c.l.b16 %v3930
    %v4024 = vunpack.c.h.b16 %v3930
    %v4025 = vunpack.c.l.b16 %v3931
    %v4026 = vunpack.c.h.b16 %v3931
    %v4027 = vunpack.c.l.b16 %v3932
    %v4028 = vunpack.c.h.b16 %v3932
    %v4029 = vpack.c.b16 %v3969, %v3965
    %v4030 = vpack.c.b16 %v3970, %v3966
    %v4031 = vpack.c.b16 %v3971, %v3967
    %v4032 = vpack.c.b16 %v3972, %v3968
    %v4033 = vpack.c.b16 %v3977, %v3973
    %v4034 = vpack.c.b16 %v3978, %v3974
    %v4035 = vpack.c.b16 %v3979, %v3975
    %v4036 = vpack.c.b16 %v3980, %v3976
    %v4037 = vpack.c.b16 %v3985, %v3981
    %v4038 = vpack.c.b16 %v3986, %v3982
    %v4039 = vpack.c.b16 %v3987, %v3983
    %v4040 = vpack.c.b16 %v3988, %v3984
    %v4041 = vpack.c.b16 %v3993, %v3989
    %v4042 = vpack.c.b16 %v3994, %v3990
    %v4043 = vpack.c.b16 %v3995, %v3991
    %v4044 = vpack.c.b16 %v3996, %v3992
    %v4045 = vpack.c.b16 %v4001, %v3997
    %v4046 = vpack.c.b16 %v4002, %v3998
    %v4047 = vpack.c.b16 %v4003, %v3999
    %v4048 = vpack.c.b16 %v4004, %v4000
    %v4049 = vpack.c.b16 %v4009, %v4005
    %v4050 = vpack.c.b16 %v4010, %v4006
    %v4051 = vpack.c.b16 %v4011, %v4007
    %v4052 = vpack.c.b16 %v4012, %v4008
    %v4053 = vpack.c.b16 %v4017, %v4013
    %v4054 = vpack.c.b16 %v4018, %v4014
    %v4055 = vpack.c.b16 %v4019, %v4015
    %v4056 = vpack.c.b16 %v4020, %v4016
    %v4057 = vpack.c.b16 %v4025, %v4021
    %v4058 = vpack.c.b16 %v4026, %v4022
    %v4059 = vpack.c.b16 %v4027, %v4023
    %v4060 = vpack.c.b16 %v4028, %v4024
    %4093 = vmatprep.subr.bf16.mxu0 %v4030
    %4094 = vmatpush1.bf16.msra.mxu0 %v4029
    %4095 = vmatprep.subr.bf16.mxu0 %v4034
    %4096 = vmatpush1.bf16.msra.mxu0 %v4033
    %4097 = vmatprep.subr.bf16.mxu0 %v4038
    %4098 = vmatpush1.bf16.msra.mxu0 %v4037
    %4099 = vmatprep.subr.bf16.mxu0 %v4042
    %4100 = vmatpush1.bf16.msra.mxu0 %v4041
    %4101 = vmatprep.subr.bf16.mxu0 %v4046
    %4102 = vmatpush1.bf16.msra.mxu0 %v4045
    %4103 = vmatprep.subr.bf16.mxu0 %v4050
    %4104 = vmatpush1.bf16.msra.mxu0 %v4049
    %4105 = vmatprep.subr.bf16.mxu0 %v4054
    %4106 = vmatpush1.bf16.msra.mxu0 %v4053
    %4107 = vmatprep.subr.bf16.mxu0 %v4058
    %4108 = vmatpush1.bf16.msra.mxu0 %v4057
    %4109 = vmatprep.subr.bf16.mxu0 0
    %4110 = vmatpush1.bf16.msra.mxu0 0
    %4111 = vmatprep.subr.bf16.mxu0 0
    %4112 = vmatpush1.bf16.msra.mxu0 0
    %4113 = vmatprep.subr.bf16.mxu0 0
    %4114 = vmatpush1.bf16.msra.mxu0 0
    %4115 = vmatprep.subr.bf16.mxu0 0
    %4116 = vmatpush1.bf16.msra.mxu0 0
    %4117 = vmatprep.subr.bf16.mxu0 0
    %4118 = vmatpush1.bf16.msra.mxu0 0
    %4119 = vmatprep.subr.bf16.mxu0 0
    %4120 = vmatpush1.bf16.msra.mxu0 0
    %4121 = vmatprep.subr.bf16.mxu0 0
    %4122 = vmatpush1.bf16.msra.mxu0 0
    %4123 = vmatprep.subr.bf16.mxu0 0
    %4124 = vmatpush1.bf16.msra.mxu0 0
    %4125 = vmatprep.mubr.bf16.mxu0 0
    %4126 = vmatmul.mubr.bf16.gmra.mrb[0].mxu0 %v3900
    %v4127 = vpop.f32.mrb[0].mxu0
    %v4128 = vadd.f32 0.0, %v4127
    %v4129 = vpop.f32.mrb[0].mxu0
    %v4130 = vadd.f32 0.0, %v4129
    %v4131 = vpop.f32.mrb[0].mxu0
    %v4132 = vpop.f32.mrb[0].mxu0
    %4133 = vdwg.mxu0
    %4134 = vmatprep.subr.bf16.mxu0 %v4032
    %4135 = vmatpush1.bf16.msra.mxu0 %v4031
    %4136 = vmatprep.subr.bf16.mxu0 %v4036
    %4137 = vmatpush1.bf16.msra.mxu0 %v4035
    %4138 = vmatprep.subr.bf16.mxu0 %v4040
    %4139 = vmatpush1.bf16.msra.mxu0 %v4039
    %4140 = vmatprep.subr.bf16.mxu0 %v4044
    %4141 = vmatpush1.bf16.msra.mxu0 %v4043
    %4142 = vmatprep.subr.bf16.mxu0 %v4048
    %4143 = vmatpush1.bf16.msra.mxu0 %v4047
    %4144 = vmatprep.subr.bf16.mxu0 %v4052
    %4145 = vmatpush1.bf16.msra.mxu0 %v4051
    %4146 = vmatprep.subr.bf16.mxu0 %v4056
    %4147 = vmatpush1.bf16.msra.mxu0 %v4055
    %4148 = vmatprep.subr.bf16.mxu0 %v4060
    %4149 = vmatpush1.bf16.msra.mxu0 %v4059
    %4150 = vmatprep.subr.bf16.mxu0 0
    %4151 = vmatpush1.bf16.msra.mxu0 0
    %4152 = vmatprep.subr.bf16.mxu0 0
    %4153 = vmatpush1.bf16.msra.mxu0 0
    %4154 = vmatprep.subr.bf16.mxu0 0
    %4155 = vmatpush1.bf16.msra.mxu0 0
    %4156 = vmatprep.subr.bf16.mxu0 0
    %4157 = vmatpush1.bf16.msra.mxu0 0
    %4158 = vmatprep.subr.bf16.mxu0 0
    %4159 = vmatpush1.bf16.msra.mxu0 0
    %4160 = vmatprep.subr.bf16.mxu0 0
    %4161 = vmatpush1.bf16.msra.mxu0 0
    %4162 = vmatprep.subr.bf16.mxu0 0
    %4163 = vmatpush1.bf16.msra.mxu0 0
    %4164 = vmatprep.subr.bf16.mxu0 0
    %4165 = vmatpush1.bf16.msra.mxu0 0
    %4166 = vmatprep.mubr.bf16.mxu0 0
    %4167 = vmatmul.mubr.bf16.gmra.mrb[0].mxu0 %v3900
    %v4168 = vpop.f32.mrb[0].mxu0
    %v4169 = vadd.f32 0.0, %v4168
    %v4170 = vpop.f32.mrb[0].mxu0
    %v4171 = vadd.f32 0.0, %v4170
    %v4172 = vpop.f32.mrb[0].mxu0
    %v4173 = vpop.f32.mrb[0].mxu0
    %4174 = vdwg.mxu0
    %v4175 = vadd.f32 %v3896, %v4128
    %v4176 = vadd.f32 %v3897, %v4130
    %v4177 = vadd.f32 %v3898, %v4169
    %v4178 = vadd.f32 %v3899, %v4171
    %v4179 = vxor.u32 %v3892, 2147483648
    %v4180 = vmul.f32 %v4179, 1.442695
    %v4181 = vpow.pop %v4180
    %v4182 = vadd.f32 %v4181, 1.0
    %v4183 = vrcp.pop %v4182
    %v4184 = vmul.f32 1.0, %v4183
    %v4185 = vxor.u32 %v3893, 2147483648
    %v4186 = vmul.f32 %v4185, 1.442695
    %v4187 = vpow.pop %v4186
    %v4188 = vadd.f32 %v4187, 1.0
    %v4189 = vrcp.pop %v4188
    %v4190 = vmul.f32 1.0, %v4189
    %v4191 = vtanh.pop %v3894
    %v4192 = vxor.u32 %v3895, 2147483648
    %v4193 = vmul.f32 %v4192, 1.442695
    %v4194 = vpow.pop %v4193
    %v4195 = vadd.f32 %v4194, 1.0
    %v4196 = vrcp.pop %v4195
    %v4197 = vmul.f32 1.0, %v4196
    %v4198 = vmul.f32 %v4190, %v3584
    %v4199 = vmul.f32 %v4184, %v4191
    %v4200 = vadd.f32 %v4198, %v4199
    %v4201 = vtanh.pop %v4200
    %v4202 = vmul.f32 %v4197, %v4201
    %v4203 = vxor.u32 %v4175, 2147483648
    %v4204 = vmul.f32 %v4203, 1.442695
    %v4205 = vpow.pop %v4204
    %v4206 = vadd.f32 %v4205, 1.0
    %v4207 = vrcp.pop %v4206
    %v4208 = vmul.f32 1.0, %v4207
    %v4209 = vxor.u32 %v4176, 2147483648
    %v4210 = vmul.f32 %v4209, 1.442695
    %v4211 = vpow.pop %v4210
    %v4212 = vadd.f32 %v4211, 1.0
    %v4213 = vrcp.pop %v4212
    %v4214 = vmul.f32 1.0, %v4213
    %v4215 = vtanh.pop %v4177
    %v4216 = vxor.u32 %v4178, 2147483648
    %v4217 = vmul.f32 %v4216, 1.442695
    %v4218 = vpow.pop %v4217
    %v4219 = vadd.f32 %v4218, 1.0
    %v4220 = vrcp.pop %v4219
    %v4221 = vmul.f32 1.0, %v4220
    %v4222 = vmul.f32 %v4214, %v3608
    %v4223 = vmul.f32 %v4208, %v4215
    %v4224 = vadd.f32 %v4222, %v4223
    %v4225 = vtanh.pop %v4224
    %v4226 = vmul.f32 %v4221, %v4225
    %4227 = vst [vmem:[#allocation3 + $0x50] sm:$0xff] %v4202
    %4228 = vst [vmem:[#allocation3 + $0x28] sm:$0xff] %v4226
    %v4229 = vld [vmem:[#allocation2 + $0x180] sm:$0xff]
    %v4230 = vld [vmem:[#allocation2 + $0x188] sm:$0xff]
    %v4231 = vld [vmem:[#allocation2 + $0x190] sm:$0xff]
    %v4232 = vld [vmem:[#allocation2 + $0x198] sm:$0xff]
    %v4233 = vpack.c.bf16 %v4202, %v4202
    %v4234 = vld [vmem:[#allocation7] sm:$0xff]
    %v4235 = vld [vmem:[#allocation7 + $0x8] sm:$0xff]
    %v4236 = vld [vmem:[#allocation7 + $0x10] sm:$0xff]
    %v4237 = vld [vmem:[#allocation7 + $0x18] sm:$0xff]
    %v4238 = vld [vmem:[#allocation7 + $0x20] sm:$0xff]
    %v4239 = vld [vmem:[#allocation7 + $0x28] sm:$0xff]
    %v4240 = vld [vmem:[#allocation7 + $0x30] sm:$0xff]
    %v4241 = vld [vmem:[#allocation7 + $0x38] sm:$0xff]
    %v4242 = vld [vmem:[#allocation7 + $0x40] sm:$0xff]
    %v4243 = vld [vmem:[#allocation7 + $0x48] sm:$0xff]
    %v4244 = vld [vmem:[#allocation7 + $0x50] sm:$0xff]
    %v4245 = vld [vmem:[#allocation7 + $0x58] sm:$0xff]
    %v4246 = vld [vmem:[#allocation7 + $0x60] sm:$0xff]
    %v4247 = vld [vmem:[#allocation7 + $0x68] sm:$0xff]
    %v4248 = vld [vmem:[#allocation7 + $0x70] sm:$0xff]
    %v4249 = vld [vmem:[#allocation7 + $0x78] sm:$0xff]
    %v4250 = vld [vmem:[#allocation7 + $0x80] sm:$0xff]
    %v4251 = vld [vmem:[#allocation7 + $0x88] sm:$0xff]
    %v4252 = vld [vmem:[#allocation7 + $0x90] sm:$0xff]
    %v4253 = vld [vmem:[#allocation7 + $0x98] sm:$0xff]
    %v4254 = vld [vmem:[#allocation7 + $0xa0] sm:$0xff]
    %v4255 = vld [vmem:[#allocation7 + $0xa8] sm:$0xff]
    %v4256 = vld [vmem:[#allocation7 + $0xb0] sm:$0xff]
    %v4257 = vld [vmem:[#allocation7 + $0xb8] sm:$0xff]
    %v4258 = vld [vmem:[#allocation7 + $0xc0] sm:$0xff]
    %v4259 = vld [vmem:[#allocation7 + $0xc8] sm:$0xff]
    %v4260 = vld [vmem:[#allocation7 + $0xd0] sm:$0xff]
    %v4261 = vld [vmem:[#allocation7 + $0xd8] sm:$0xff]
    %v4262 = vld [vmem:[#allocation7 + $0xe0] sm:$0xff]
    %v4263 = vld [vmem:[#allocation7 + $0xe8] sm:$0xff]
    %v4264 = vld [vmem:[#allocation7 + $0xf0] sm:$0xff]
    %v4265 = vld [vmem:[#allocation7 + $0xf8] sm:$0xff]
    %v4298 = vunpack.c.l.b16 %v4234
    %v4299 = vunpack.c.h.b16 %v4234
    %v4300 = vunpack.c.l.b16 %v4235
    %v4301 = vunpack.c.h.b16 %v4235
    %v4302 = vunpack.c.l.b16 %v4236
    %v4303 = vunpack.c.h.b16 %v4236
    %v4304 = vunpack.c.l.b16 %v4237
    %v4305 = vunpack.c.h.b16 %v4237
    %v4306 = vunpack.c.l.b16 %v4238
    %v4307 = vunpack.c.h.b16 %v4238
    %v4308 = vunpack.c.l.b16 %v4239
    %v4309 = vunpack.c.h.b16 %v4239
    %v4310 = vunpack.c.l.b16 %v4240
    %v4311 = vunpack.c.h.b16 %v4240
    %v4312 = vunpack.c.l.b16 %v4241
    %v4313 = vunpack.c.h.b16 %v4241
    %v4314 = vunpack.c.l.b16 %v4242
    %v4315 = vunpack.c.h.b16 %v4242
    %v4316 = vunpack.c.l.b16 %v4243
    %v4317 = vunpack.c.h.b16 %v4243
    %v4318 = vunpack.c.l.b16 %v4244
    %v4319 = vunpack.c.h.b16 %v4244
    %v4320 = vunpack.c.l.b16 %v4245
    %v4321 = vunpack.c.h.b16 %v4245
    %v4322 = vunpack.c.l.b16 %v4246
    %v4323 = vunpack.c.h.b16 %v4246
    %v4324 = vunpack.c.l.b16 %v4247
    %v4325 = vunpack.c.h.b16 %v4247
    %v4326 = vunpack.c.l.b16 %v4248
    %v4327 = vunpack.c.h.b16 %v4248
    %v4328 = vunpack.c.l.b16 %v4249
    %v4329 = vunpack.c.h.b16 %v4249
    %v4330 = vunpack.c.l.b16 %v4250
    %v4331 = vunpack.c.h.b16 %v4250
    %v4332 = vunpack.c.l.b16 %v4251
    %v4333 = vunpack.c.h.b16 %v4251
    %v4334 = vunpack.c.l.b16 %v4252
    %v4335 = vunpack.c.h.b16 %v4252
    %v4336 = vunpack.c.l.b16 %v4253
    %v4337 = vunpack.c.h.b16 %v4253
    %v4338 = vunpack.c.l.b16 %v4254
    %v4339 = vunpack.c.h.b16 %v4254
    %v4340 = vunpack.c.l.b16 %v4255
    %v4341 = vunpack.c.h.b16 %v4255
    %v4342 = vunpack.c.l.b16 %v4256
    %v4343 = vunpack.c.h.b16 %v4256
    %v4344 = vunpack.c.l.b16 %v4257
    %v4345 = vunpack.c.h.b16 %v4257
    %v4346 = vunpack.c.l.b16 %v4258
    %v4347 = vunpack.c.h.b16 %v4258
    %v4348 = vunpack.c.l.b16 %v4259
    %v4349 = vunpack.c.h.b16 %v4259
    %v4350 = vunpack.c.l.b16 %v4260
    %v4351 = vunpack.c.h.b16 %v4260
    %v4352 = vunpack.c.l.b16 %v4261
    %v4353 = vunpack.c.h.b16 %v4261
    %v4354 = vunpack.c.l.b16 %v4262
    %v4355 = vunpack.c.h.b16 %v4262
    %v4356 = vunpack.c.l.b16 %v4263
    %v4357 = vunpack.c.h.b16 %v4263
    %v4358 = vunpack.c.l.b16 %v4264
    %v4359 = vunpack.c.h.b16 %v4264
    %v4360 = vunpack.c.l.b16 %v4265
    %v4361 = vunpack.c.h.b16 %v4265
    %v4362 = vpack.c.b16 %v4302, %v4298
    %v4363 = vpack.c.b16 %v4303, %v4299
    %v4364 = vpack.c.b16 %v4304, %v4300
    %v4365 = vpack.c.b16 %v4305, %v4301
    %v4366 = vpack.c.b16 %v4310, %v4306
    %v4367 = vpack.c.b16 %v4311, %v4307
    %v4368 = vpack.c.b16 %v4312, %v4308
    %v4369 = vpack.c.b16 %v4313, %v4309
    %v4370 = vpack.c.b16 %v4318, %v4314
    %v4371 = vpack.c.b16 %v4319, %v4315
    %v4372 = vpack.c.b16 %v4320, %v4316
    %v4373 = vpack.c.b16 %v4321, %v4317
    %v4374 = vpack.c.b16 %v4326, %v4322
    %v4375 = vpack.c.b16 %v4327, %v4323
    %v4376 = vpack.c.b16 %v4328, %v4324
    %v4377 = vpack.c.b16 %v4329, %v4325
    %v4378 = vpack.c.b16 %v4334, %v4330
    %v4379 = vpack.c.b16 %v4335, %v4331
    %v4380 = vpack.c.b16 %v4336, %v4332
    %v4381 = vpack.c.b16 %v4337, %v4333
    %v4382 = vpack.c.b16 %v4342, %v4338
    %v4383 = vpack.c.b16 %v4343, %v4339
    %v4384 = vpack.c.b16 %v4344, %v4340
    %v4385 = vpack.c.b16 %v4345, %v4341
    %v4386 = vpack.c.b16 %v4350, %v4346
    %v4387 = vpack.c.b16 %v4351, %v4347
    %v4388 = vpack.c.b16 %v4352, %v4348
    %v4389 = vpack.c.b16 %v4353, %v4349
    %v4390 = vpack.c.b16 %v4358, %v4354
    %v4391 = vpack.c.b16 %v4359, %v4355
    %v4392 = vpack.c.b16 %v4360, %v4356
    %v4393 = vpack.c.b16 %v4361, %v4357
    %4426 = vmatprep.subr.bf16.mxu0 %v4363
    %4427 = vmatpush1.bf16.msra.mxu0 %v4362
    %4428 = vmatprep.subr.bf16.mxu0 %v4367
    %4429 = vmatpush1.bf16.msra.mxu0 %v4366
    %4430 = vmatprep.subr.bf16.mxu0 %v4371
    %4431 = vmatpush1.bf16.msra.mxu0 %v4370
    %4432 = vmatprep.subr.bf16.mxu0 %v4375
    %4433 = vmatpush1.bf16.msra.mxu0 %v4374
    %4434 = vmatprep.subr.bf16.mxu0 %v4379
    %4435 = vmatpush1.bf16.msra.mxu0 %v4378
    %4436 = vmatprep.subr.bf16.mxu0 %v4383
    %4437 = vmatpush1.bf16.msra.mxu0 %v4382
    %4438 = vmatprep.subr.bf16.mxu0 %v4387
    %4439 = vmatpush1.bf16.msra.mxu0 %v4386
    %4440 = vmatprep.subr.bf16.mxu0 %v4391
    %4441 = vmatpush1.bf16.msra.mxu0 %v4390
    %4442 = vmatprep.subr.bf16.mxu0 0
    %4443 = vmatpush1.bf16.msra.mxu0 0
    %4444 = vmatprep.subr.bf16.mxu0 0
    %4445 = vmatpush1.bf16.msra.mxu0 0
    %4446 = vmatprep.subr.bf16.mxu0 0
    %4447 = vmatpush1.bf16.msra.mxu0 0
    %4448 = vmatprep.subr.bf16.mxu0 0
    %4449 = vmatpush1.bf16.msra.mxu0 0
    %4450 = vmatprep.subr.bf16.mxu0 0
    %4451 = vmatpush1.bf16.msra.mxu0 0
    %4452 = vmatprep.subr.bf16.mxu0 0
    %4453 = vmatpush1.bf16.msra.mxu0 0
    %4454 = vmatprep.subr.bf16.mxu0 0
    %4455 = vmatpush1.bf16.msra.mxu0 0
    %4456 = vmatprep.subr.bf16.mxu0 0
    %4457 = vmatpush1.bf16.msra.mxu0 0
    %4458 = vmatprep.mubr.bf16.mxu0 0
    %4459 = vmatmul.mubr.bf16.gmra.mrb[0].mxu0 %v4233
    %v4460 = vpop.f32.mrb[0].mxu0
    %v4461 = vadd.f32 0.0, %v4460
    %v4462 = vpop.f32.mrb[0].mxu0
    %v4463 = vadd.f32 0.0, %v4462
    %v4464 = vpop.f32.mrb[0].mxu0
    %v4465 = vpop.f32.mrb[0].mxu0
    %4466 = vdwg.mxu0
    %4467 = vmatprep.subr.bf16.mxu0 %v4365
    %4468 = vmatpush1.bf16.msra.mxu0 %v4364
    %4469 = vmatprep.subr.bf16.mxu0 %v4369
    %4470 = vmatpush1.bf16.msra.mxu0 %v4368
    %4471 = vmatprep.subr.bf16.mxu0 %v4373
    %4472 = vmatpush1.bf16.msra.mxu0 %v4372
    %4473 = vmatprep.subr.bf16.mxu0 %v4377
    %4474 = vmatpush1.bf16.msra.mxu0 %v4376
    %4475 = vmatprep.subr.bf16.mxu0 %v4381
    %4476 = vmatpush1.bf16.msra.mxu0 %v4380
    %4477 = vmatprep.subr.bf16.mxu0 %v4385
    %4478 = vmatpush1.bf16.msra.mxu0 %v4384
    %4479 = vmatprep.subr.bf16.mxu0 %v4389
    %4480 = vmatpush1.bf16.msra.mxu0 %v4388
    %4481 = vmatprep.subr.bf16.mxu0 %v4393
    %4482 = vmatpush1.bf16.msra.mxu0 %v4392
    %4483 = vmatprep.subr.bf16.mxu0 0
    %4484 = vmatpush1.bf16.msra.mxu0 0
    %4485 = vmatprep.subr.bf16.mxu0 0
    %4486 = vmatpush1.bf16.msra.mxu0 0
    %4487 = vmatprep.subr.bf16.mxu0 0
    %4488 = vmatpush1.bf16.msra.mxu0 0
    %4489 = vmatprep.subr.bf16.mxu0 0
    %4490 = vmatpush1.bf16.msra.mxu0 0
    %4491 = vmatprep.subr.bf16.mxu0 0
    %4492 = vmatpush1.bf16.msra.mxu0 0
    %4493 = vmatprep.subr.bf16.mxu0 0
    %4494 = vmatpush1.bf16.msra.mxu0 0
    %4495 = vmatprep.subr.bf16.mxu0 0
    %4496 = vmatpush1.bf16.msra.mxu0 0
    %4497 = vmatprep.subr.bf16.mxu0 0
    %4498 = vmatpush1.bf16.msra.mxu0 0
    %4499 = vmatprep.mubr.bf16.mxu0 0
    %4500 = vmatmul.mubr.bf16.gmra.mrb[0].mxu0 %v4233
    %v4501 = vpop.f32.mrb[0].mxu0
    %v4502 = vadd.f32 0.0, %v4501
    %v4503 = vpop.f32.mrb[0].mxu0
    %v4504 = vadd.f32 0.0, %v4503
    %v4505 = vpop.f32.mrb[0].mxu0
    %v4506 = vpop.f32.mrb[0].mxu0
    %4507 = vdwg.mxu0
    %v4508 = vadd.f32 %v4229, %v4461
    %v4509 = vadd.f32 %v4230, %v4463
    %v4510 = vadd.f32 %v4231, %v4502
    %v4511 = vadd.f32 %v4232, %v4504
    %v4512 = vld [vmem:[#allocation2 + $0x60] sm:$0xff]
    %v4513 = vld [vmem:[#allocation2 + $0x68] sm:$0xff]
    %v4514 = vld [vmem:[#allocation2 + $0x70] sm:$0xff]
    %v4515 = vld [vmem:[#allocation2 + $0x78] sm:$0xff]
    %v4516 = vpack.c.bf16 %v4226, %v4226
    %v4517 = vld [vmem:[%s820] sm:$0xff]
    %v4518 = vld [vmem:[%s820 + $0x8] sm:$0xff]
    %v4519 = vld [vmem:[%s820 + $0x10] sm:$0xff]
    %v4520 = vld [vmem:[%s820 + $0x18] sm:$0xff]
    %v4521 = vld [vmem:[%s820 + $0x20] sm:$0xff]
    %v4522 = vld [vmem:[%s820 + $0x28] sm:$0xff]
    %v4523 = vld [vmem:[%s820 + $0x30] sm:$0xff]
    %v4524 = vld [vmem:[%s820 + $0x38] sm:$0xff]
    %v4525 = vld [vmem:[%s820 + $0x40] sm:$0xff]
    %v4526 = vld [vmem:[%s820 + $0x48] sm:$0xff]
    %v4527 = vld [vmem:[%s820 + $0x50] sm:$0xff]
    %v4528 = vld [vmem:[%s820 + $0x58] sm:$0xff]
    %v4529 = vld [vmem:[%s820 + $0x60] sm:$0xff]
    %v4530 = vld [vmem:[%s820 + $0x68] sm:$0xff]
    %v4531 = vld [vmem:[%s820 + $0x70] sm:$0xff]
    %v4532 = vld [vmem:[%s820 + $0x78] sm:$0xff]
    %v4533 = vld [vmem:[%s820 + $0x80] sm:$0xff]
    %v4534 = vld [vmem:[%s820 + $0x88] sm:$0xff]
    %v4535 = vld [vmem:[%s820 + $0x90] sm:$0xff]
    %v4536 = vld [vmem:[%s820 + $0x98] sm:$0xff]
    %v4537 = vld [vmem:[%s820 + $0xa0] sm:$0xff]
    %v4538 = vld [vmem:[%s820 + $0xa8] sm:$0xff]
    %v4539 = vld [vmem:[%s820 + $0xb0] sm:$0xff]
    %v4540 = vld [vmem:[%s820 + $0xb8] sm:$0xff]
    %v4541 = vld [vmem:[%s820 + $0xc0] sm:$0xff]
    %v4542 = vld [vmem:[%s820 + $0xc8] sm:$0xff]
    %v4543 = vld [vmem:[%s820 + $0xd0] sm:$0xff]
    %v4544 = vld [vmem:[%s820 + $0xd8] sm:$0xff]
    %v4545 = vld [vmem:[%s820 + $0xe0] sm:$0xff]
    %v4546 = vld [vmem:[%s820 + $0xe8] sm:$0xff]
    %v4547 = vld [vmem:[%s820 + $0xf0] sm:$0xff]
    %v4548 = vld [vmem:[%s820 + $0xf8] sm:$0xff]
    %v4581 = vunpack.c.l.b16 %v4517
    %v4582 = vunpack.c.h.b16 %v4517
    %v4583 = vunpack.c.l.b16 %v4518
    %v4584 = vunpack.c.h.b16 %v4518
    %v4585 = vunpack.c.l.b16 %v4519
    %v4586 = vunpack.c.h.b16 %v4519
    %v4587 = vunpack.c.l.b16 %v4520
    %v4588 = vunpack.c.h.b16 %v4520
    %v4589 = vunpack.c.l.b16 %v4521
    %v4590 = vunpack.c.h.b16 %v4521
    %v4591 = vunpack.c.l.b16 %v4522
    %v4592 = vunpack.c.h.b16 %v4522
    %v4593 = vunpack.c.l.b16 %v4523
    %v4594 = vunpack.c.h.b16 %v4523
    %v4595 = vunpack.c.l.b16 %v4524
    %v4596 = vunpack.c.h.b16 %v4524
    %v4597 = vunpack.c.l.b16 %v4525
    %v4598 = vunpack.c.h.b16 %v4525
    %v4599 = vunpack.c.l.b16 %v4526
    %v4600 = vunpack.c.h.b16 %v4526
    %v4601 = vunpack.c.l.b16 %v4527
    %v4602 = vunpack.c.h.b16 %v4527
    %v4603 = vunpack.c.l.b16 %v4528
    %v4604 = vunpack.c.h.b16 %v4528
    %v4605 = vunpack.c.l.b16 %v4529
    %v4606 = vunpack.c.h.b16 %v4529
    %v4607 = vunpack.c.l.b16 %v4530
    %v4608 = vunpack.c.h.b16 %v4530
    %v4609 = vunpack.c.l.b16 %v4531
    %v4610 = vunpack.c.h.b16 %v4531
    %v4611 = vunpack.c.l.b16 %v4532
    %v4612 = vunpack.c.h.b16 %v4532
    %v4613 = vunpack.c.l.b16 %v4533
    %v4614 = vunpack.c.h.b16 %v4533
    %v4615 = vunpack.c.l.b16 %v4534
    %v4616 = vunpack.c.h.b16 %v4534
    %v4617 = vunpack.c.l.b16 %v4535
    %v4618 = vunpack.c.h.b16 %v4535
    %v4619 = vunpack.c.l.b16 %v4536
    %v4620 = vunpack.c.h.b16 %v4536
    %v4621 = vunpack.c.l.b16 %v4537
    %v4622 = vunpack.c.h.b16 %v4537
    %v4623 = vunpack.c.l.b16 %v4538
    %v4624 = vunpack.c.h.b16 %v4538
    %v4625 = vunpack.c.l.b16 %v4539
    %v4626 = vunpack.c.h.b16 %v4539
    %v4627 = vunpack.c.l.b16 %v4540
    %v4628 = vunpack.c.h.b16 %v4540
    %v4629 = vunpack.c.l.b16 %v4541
    %v4630 = vunpack.c.h.b16 %v4541
    %v4631 = vunpack.c.l.b16 %v4542
    %v4632 = vunpack.c.h.b16 %v4542
    %v4633 = vunpack.c.l.b16 %v4543
    %v4634 = vunpack.c.h.b16 %v4543
    %v4635 = vunpack.c.l.b16 %v4544
    %v4636 = vunpack.c.h.b16 %v4544
    %v4637 = vunpack.c.l.b16 %v4545
    %v4638 = vunpack.c.h.b16 %v4545
    %v4639 = vunpack.c.l.b16 %v4546
    %v4640 = vunpack.c.h.b16 %v4546
    %v4641 = vunpack.c.l.b16 %v4547
    %v4642 = vunpack.c.h.b16 %v4547
    %v4643 = vunpack.c.l.b16 %v4548
    %v4644 = vunpack.c.h.b16 %v4548
    %v4645 = vpack.c.b16 %v4585, %v4581
    %v4646 = vpack.c.b16 %v4586, %v4582
    %v4647 = vpack.c.b16 %v4587, %v4583
    %v4648 = vpack.c.b16 %v4588, %v4584
    %v4649 = vpack.c.b16 %v4593, %v4589
    %v4650 = vpack.c.b16 %v4594, %v4590
    %v4651 = vpack.c.b16 %v4595, %v4591
    %v4652 = vpack.c.b16 %v4596, %v4592
    %v4653 = vpack.c.b16 %v4601, %v4597
    %v4654 = vpack.c.b16 %v4602, %v4598
    %v4655 = vpack.c.b16 %v4603, %v4599
    %v4656 = vpack.c.b16 %v4604, %v4600
    %v4657 = vpack.c.b16 %v4609, %v4605
    %v4658 = vpack.c.b16 %v4610, %v4606
    %v4659 = vpack.c.b16 %v4611, %v4607
    %v4660 = vpack.c.b16 %v4612, %v4608
    %v4661 = vpack.c.b16 %v4617, %v4613
    %v4662 = vpack.c.b16 %v4618, %v4614
    %v4663 = vpack.c.b16 %v4619, %v4615
    %v4664 = vpack.c.b16 %v4620, %v4616
    %v4665 = vpack.c.b16 %v4625, %v4621
    %v4666 = vpack.c.b16 %v4626, %v4622
    %v4667 = vpack.c.b16 %v4627, %v4623
    %v4668 = vpack.c.b16 %v4628, %v4624
    %v4669 = vpack.c.b16 %v4633, %v4629
    %v4670 = vpack.c.b16 %v4634, %v4630
    %v4671 = vpack.c.b16 %v4635, %v4631
    %v4672 = vpack.c.b16 %v4636, %v4632
    %v4673 = vpack.c.b16 %v4641, %v4637
    %v4674 = vpack.c.b16 %v4642, %v4638
    %v4675 = vpack.c.b16 %v4643, %v4639
    %v4676 = vpack.c.b16 %v4644, %v4640
    %4709 = vmatprep.subr.bf16.mxu0 %v4646
    %4710 = vmatpush1.bf16.msra.mxu0 %v4645
    %4711 = vmatprep.subr.bf16.mxu0 %v4650
    %4712 = vmatpush1.bf16.msra.mxu0 %v4649
    %4713 = vmatprep.subr.bf16.mxu0 %v4654
    %4714 = vmatpush1.bf16.msra.mxu0 %v4653
    %4715 = vmatprep.subr.bf16.mxu0 %v4658
    %4716 = vmatpush1.bf16.msra.mxu0 %v4657
    %4717 = vmatprep.subr.bf16.mxu0 %v4662
    %4718 = vmatpush1.bf16.msra.mxu0 %v4661
    %4719 = vmatprep.subr.bf16.mxu0 %v4666
    %4720 = vmatpush1.bf16.msra.mxu0 %v4665
    %4721 = vmatprep.subr.bf16.mxu0 %v4670
    %4722 = vmatpush1.bf16.msra.mxu0 %v4669
    %4723 = vmatprep.subr.bf16.mxu0 %v4674
    %4724 = vmatpush1.bf16.msra.mxu0 %v4673
    %4725 = vmatprep.subr.bf16.mxu0 0
    %4726 = vmatpush1.bf16.msra.mxu0 0
    %4727 = vmatprep.subr.bf16.mxu0 0
    %4728 = vmatpush1.bf16.msra.mxu0 0
    %4729 = vmatprep.subr.bf16.mxu0 0
    %4730 = vmatpush1.bf16.msra.mxu0 0
    %4731 = vmatprep.subr.bf16.mxu0 0
    %4732 = vmatpush1.bf16.msra.mxu0 0
    %4733 = vmatprep.subr.bf16.mxu0 0
    %4734 = vmatpush1.bf16.msra.mxu0 0
    %4735 = vmatprep.subr.bf16.mxu0 0
    %4736 = vmatpush1.bf16.msra.mxu0 0
    %4737 = vmatprep.subr.bf16.mxu0 0
    %4738 = vmatpush1.bf16.msra.mxu0 0
    %4739 = vmatprep.subr.bf16.mxu0 0
    %4740 = vmatpush1.bf16.msra.mxu0 0
    %4741 = vmatprep.mubr.bf16.mxu0 0
    %4742 = vmatmul.mubr.bf16.gmra.mrb[0].mxu0 %v4516
    %v4743 = vpop.f32.mrb[0].mxu0
    %v4744 = vadd.f32 0.0, %v4743
    %v4745 = vpop.f32.mrb[0].mxu0
    %v4746 = vadd.f32 0.0, %v4745
    %v4747 = vpop.f32.mrb[0].mxu0
    %v4748 = vpop.f32.mrb[0].mxu0
    %4749 = vdwg.mxu0
    %4750 = vmatprep.subr.bf16.mxu0 %v4648
    %4751 = vmatpush1.bf16.msra.mxu0 %v4647
    %4752 = vmatprep.subr.bf16.mxu0 %v4652
    %4753 = vmatpush1.bf16.msra.mxu0 %v4651
    %4754 = vmatprep.subr.bf16.mxu0 %v4656
    %4755 = vmatpush1.bf16.msra.mxu0 %v4655
    %4756 = vmatprep.subr.bf16.mxu0 %v4660
    %4757 = vmatpush1.bf16.msra.mxu0 %v4659
    %4758 = vmatprep.subr.bf16.mxu0 %v4664
    %4759 = vmatpush1.bf16.msra.mxu0 %v4663
    %4760 = vmatprep.subr.bf16.mxu0 %v4668
    %4761 = vmatpush1.bf16.msra.mxu0 %v4667
    %4762 = vmatprep.subr.bf16.mxu0 %v4672
    %4763 = vmatpush1.bf16.msra.mxu0 %v4671
    %4764 = vmatprep.subr.bf16.mxu0 %v4676
    %4765 = vmatpush1.bf16.msra.mxu0 %v4675
    %4766 = vmatprep.subr.bf16.mxu0 0
    %4767 = vmatpush1.bf16.msra.mxu0 0
    %4768 = vmatprep.subr.bf16.mxu0 0
    %4769 = vmatpush1.bf16.msra.mxu0 0
    %4770 = vmatprep.subr.bf16.mxu0 0
    %4771 = vmatpush1.bf16.msra.mxu0 0
    %4772 = vmatprep.subr.bf16.mxu0 0
    %4773 = vmatpush1.bf16.msra.mxu0 0
    %4774 = vmatprep.subr.bf16.mxu0 0
    %4775 = vmatpush1.bf16.msra.mxu0 0
    %4776 = vmatprep.subr.bf16.mxu0 0
    %4777 = vmatpush1.bf16.msra.mxu0 0
    %4778 = vmatprep.subr.bf16.mxu0 0
    %4779 = vmatpush1.bf16.msra.mxu0 0
    %4780 = vmatprep.subr.bf16.mxu0 0
    %4781 = vmatpush1.bf16.msra.mxu0 0
    %4782 = vmatprep.mubr.bf16.mxu0 0
    %4783 = vmatmul.mubr.bf16.gmra.mrb[0].mxu0 %v4516
    %v4784 = vpop.f32.mrb[0].mxu0
    %v4785 = vadd.f32 0.0, %v4784
    %v4786 = vpop.f32.mrb[0].mxu0
    %v4787 = vadd.f32 0.0, %v4786
    %v4788 = vpop.f32.mrb[0].mxu0
    %v4789 = vpop.f32.mrb[0].mxu0
    %4790 = vdwg.mxu0
    %v4791 = vadd.f32 %v4512, %v4744
    %v4792 = vadd.f32 %v4513, %v4746
    %v4793 = vadd.f32 %v4514, %v4785
    %v4794 = vadd.f32 %v4515, %v4787
    %v4795 = vxor.u32 %v4508, 2147483648
    %v4796 = vmul.f32 %v4795, 1.442695
    %v4797 = vpow.pop %v4796
    %v4798 = vadd.f32 %v4797, 1.0
    %v4799 = vrcp.pop %v4798
    %v4800 = vmul.f32 1.0, %v4799
    %v4801 = vxor.u32 %v4509, 2147483648
    %v4802 = vmul.f32 %v4801, 1.442695
    %v4803 = vpow.pop %v4802
    %v4804 = vadd.f32 %v4803, 1.0
    %v4805 = vrcp.pop %v4804
    %v4806 = vmul.f32 1.0, %v4805
    %v4807 = vtanh.pop %v4510
    %v4808 = vxor.u32 %v4511, 2147483648
    %v4809 = vmul.f32 %v4808, 1.442695
    %v4810 = vpow.pop %v4809
    %v4811 = vadd.f32 %v4810, 1.0
    %v4812 = vrcp.pop %v4811
    %v4813 = vmul.f32 1.0, %v4812
    %v4814 = vmul.f32 %v4806, %v4200
    %v4815 = vmul.f32 %v4800, %v4807
    %v4816 = vadd.f32 %v4814, %v4815
    %v4817 = vtanh.pop %v4816
    %v4818 = vmul.f32 %v4813, %v4817
    %v4819 = vxor.u32 %v4791, 2147483648
    %v4820 = vmul.f32 %v4819, 1.442695
    %v4821 = vpow.pop %v4820
    %v4822 = vadd.f32 %v4821, 1.0
    %v4823 = vrcp.pop %v4822
    %v4824 = vmul.f32 1.0, %v4823
    %v4825 = vxor.u32 %v4792, 2147483648
    %v4826 = vmul.f32 %v4825, 1.442695
    %v4827 = vpow.pop %v4826
    %v4828 = vadd.f32 %v4827, 1.0
    %v4829 = vrcp.pop %v4828
    %v4830 = vmul.f32 1.0, %v4829
    %v4831 = vtanh.pop %v4793
    %v4832 = vxor.u32 %v4794, 2147483648
    %v4833 = vmul.f32 %v4832, 1.442695
    %v4834 = vpow.pop %v4833
    %v4835 = vadd.f32 %v4834, 1.0
    %v4836 = vrcp.pop %v4835
    %v4837 = vmul.f32 1.0, %v4836
    %v4838 = vmul.f32 %v4830, %v4224
    %v4839 = vmul.f32 %v4824, %v4831
    %v4840 = vadd.f32 %v4838, %v4839
    %v4841 = vtanh.pop %v4840
    %v4842 = vmul.f32 %v4837, %v4841
    %4843 = vst [vmem:[#allocation3 + $0x60] sm:$0xff] %v4818
    %4844 = vst [vmem:[#allocation3 + $0x18] sm:$0xff] %v4842
    %v4845 = vld [vmem:[#allocation2 + $0x1c0] sm:$0xff]
    %v4846 = vld [vmem:[#allocation2 + $0x1c8] sm:$0xff]
    %v4847 = vld [vmem:[#allocation2 + $0x1d0] sm:$0xff]
    %v4848 = vld [vmem:[#allocation2 + $0x1d8] sm:$0xff]
    %v4849 = vpack.c.bf16 %v4818, %v4818
    %v4850 = vld [vmem:[#allocation7] sm:$0xff]
    %v4851 = vld [vmem:[#allocation7 + $0x8] sm:$0xff]
    %v4852 = vld [vmem:[#allocation7 + $0x10] sm:$0xff]
    %v4853 = vld [vmem:[#allocation7 + $0x18] sm:$0xff]
    %v4854 = vld [vmem:[#allocation7 + $0x20] sm:$0xff]
    %v4855 = vld [vmem:[#allocation7 + $0x28] sm:$0xff]
    %v4856 = vld [vmem:[#allocation7 + $0x30] sm:$0xff]
    %v4857 = vld [vmem:[#allocation7 + $0x38] sm:$0xff]
    %v4858 = vld [vmem:[#allocation7 + $0x40] sm:$0xff]
    %v4859 = vld [vmem:[#allocation7 + $0x48] sm:$0xff]
    %v4860 = vld [vmem:[#allocation7 + $0x50] sm:$0xff]
    %v4861 = vld [vmem:[#allocation7 + $0x58] sm:$0xff]
    %v4862 = vld [vmem:[#allocation7 + $0x60] sm:$0xff]
    %v4863 = vld [vmem:[#allocation7 + $0x68] sm:$0xff]
    %v4864 = vld [vmem:[#allocation7 + $0x70] sm:$0xff]
    %v4865 = vld [vmem:[#allocation7 + $0x78] sm:$0xff]
    %v4866 = vld [vmem:[#allocation7 + $0x80] sm:$0xff]
    %v4867 = vld [vmem:[#allocation7 + $0x88] sm:$0xff]
    %v4868 = vld [vmem:[#allocation7 + $0x90] sm:$0xff]
    %v4869 = vld [vmem:[#allocation7 + $0x98] sm:$0xff]
    %v4870 = vld [vmem:[#allocation7 + $0xa0] sm:$0xff]
    %v4871 = vld [vmem:[#allocation7 + $0xa8] sm:$0xff]
    %v4872 = vld [vmem:[#allocation7 + $0xb0] sm:$0xff]
    %v4873 = vld [vmem:[#allocation7 + $0xb8] sm:$0xff]
    %v4874 = vld [vmem:[#allocation7 + $0xc0] sm:$0xff]
    %v4875 = vld [vmem:[#allocation7 + $0xc8] sm:$0xff]
    %v4876 = vld [vmem:[#allocation7 + $0xd0] sm:$0xff]
    %v4877 = vld [vmem:[#allocation7 + $0xd8] sm:$0xff]
    %v4878 = vld [vmem:[#allocation7 + $0xe0] sm:$0xff]
    %v4879 = vld [vmem:[#allocation7 + $0xe8] sm:$0xff]
    %v4880 = vld [vmem:[#allocation7 + $0xf0] sm:$0xff]
    %v4881 = vld [vmem:[#allocation7 + $0xf8] sm:$0xff]
    %v4914 = vunpack.c.l.b16 %v4850
    %v4915 = vunpack.c.h.b16 %v4850
    %v4916 = vunpack.c.l.b16 %v4851
    %v4917 = vunpack.c.h.b16 %v4851
    %v4918 = vunpack.c.l.b16 %v4852
    %v4919 = vunpack.c.h.b16 %v4852
    %v4920 = vunpack.c.l.b16 %v4853
    %v4921 = vunpack.c.h.b16 %v4853
    %v4922 = vunpack.c.l.b16 %v4854
    %v4923 = vunpack.c.h.b16 %v4854
    %v4924 = vunpack.c.l.b16 %v4855
    %v4925 = vunpack.c.h.b16 %v4855
    %v4926 = vunpack.c.l.b16 %v4856
    %v4927 = vunpack.c.h.b16 %v4856
    %v4928 = vunpack.c.l.b16 %v4857
    %v4929 = vunpack.c.h.b16 %v4857
    %v4930 = vunpack.c.l.b16 %v4858
    %v4931 = vunpack.c.h.b16 %v4858
    %v4932 = vunpack.c.l.b16 %v4859
    %v4933 = vunpack.c.h.b16 %v4859
    %v4934 = vunpack.c.l.b16 %v4860
    %v4935 = vunpack.c.h.b16 %v4860
    %v4936 = vunpack.c.l.b16 %v4861
    %v4937 = vunpack.c.h.b16 %v4861
    %v4938 = vunpack.c.l.b16 %v4862
    %v4939 = vunpack.c.h.b16 %v4862
    %v4940 = vunpack.c.l.b16 %v4863
    %v4941 = vunpack.c.h.b16 %v4863
    %v4942 = vunpack.c.l.b16 %v4864
    %v4943 = vunpack.c.h.b16 %v4864
    %v4944 = vunpack.c.l.b16 %v4865
    %v4945 = vunpack.c.h.b16 %v4865
    %v4946 = vunpack.c.l.b16 %v4866
    %v4947 = vunpack.c.h.b16 %v4866
    %v4948 = vunpack.c.l.b16 %v4867
    %v4949 = vunpack.c.h.b16 %v4867
    %v4950 = vunpack.c.l.b16 %v4868
    %v4951 = vunpack.c.h.b16 %v4868
    %v4952 = vunpack.c.l.b16 %v4869
    %v4953 = vunpack.c.h.b16 %v4869
    %v4954 = vunpack.c.l.b16 %v4870
    %v4955 = vunpack.c.h.b16 %v4870
    %v4956 = vunpack.c.l.b16 %v4871
    %v4957 = vunpack.c.h.b16 %v4871
    %v4958 = vunpack.c.l.b16 %v4872
    %v4959 = vunpack.c.h.b16 %v4872
    %v4960 = vunpack.c.l.b16 %v4873
    %v4961 = vunpack.c.h.b16 %v4873
    %v4962 = vunpack.c.l.b16 %v4874
    %v4963 = vunpack.c.h.b16 %v4874
    %v4964 = vunpack.c.l.b16 %v4875
    %v4965 = vunpack.c.h.b16 %v4875
    %v4966 = vunpack.c.l.b16 %v4876
    %v4967 = vunpack.c.h.b16 %v4876
    %v4968 = vunpack.c.l.b16 %v4877
    %v4969 = vunpack.c.h.b16 %v4877
    %v4970 = vunpack.c.l.b16 %v4878
    %v4971 = vunpack.c.h.b16 %v4878
    %v4972 = vunpack.c.l.b16 %v4879
    %v4973 = vunpack.c.h.b16 %v4879
    %v4974 = vunpack.c.l.b16 %v4880
    %v4975 = vunpack.c.h.b16 %v4880
    %v4976 = vunpack.c.l.b16 %v4881
    %v4977 = vunpack.c.h.b16 %v4881
    %v4978 = vpack.c.b16 %v4918, %v4914
    %v4979 = vpack.c.b16 %v4919, %v4915
    %v4980 = vpack.c.b16 %v4920, %v4916
    %v4981 = vpack.c.b16 %v4921, %v4917
    %v4982 = vpack.c.b16 %v4926, %v4922
    %v4983 = vpack.c.b16 %v4927, %v4923
    %v4984 = vpack.c.b16 %v4928, %v4924
    %v4985 = vpack.c.b16 %v4929, %v4925
    %v4986 = vpack.c.b16 %v4934, %v4930
    %v4987 = vpack.c.b16 %v4935, %v4931
    %v4988 = vpack.c.b16 %v4936, %v4932
    %v4989 = vpack.c.b16 %v4937, %v4933
    %v4990 = vpack.c.b16 %v4942, %v4938
    %v4991 = vpack.c.b16 %v4943, %v4939
    %v4992 = vpack.c.b16 %v4944, %v4940
    %v4993 = vpack.c.b16 %v4945, %v4941
    %v4994 = vpack.c.b16 %v4950, %v4946
    %v4995 = vpack.c.b16 %v4951, %v4947
    %v4996 = vpack.c.b16 %v4952, %v4948
    %v4997 = vpack.c.b16 %v4953, %v4949
    %v4998 = vpack.c.b16 %v4958, %v4954
    %v4999 = vpack.c.b16 %v4959, %v4955
    %v5000 = vpack.c.b16 %v4960, %v4956
    %v5001 = vpack.c.b16 %v4961, %v4957
    %v5002 = vpack.c.b16 %v4966, %v4962
    %v5003 = vpack.c.b16 %v4967, %v4963
    %v5004 = vpack.c.b16 %v4968, %v4964
    %v5005 = vpack.c.b16 %v4969, %v4965
    %v5006 = vpack.c.b16 %v4974, %v4970
    %v5007 = vpack.c.b16 %v4975, %v4971
    %v5008 = vpack.c.b16 %v4976, %v4972
    %v5009 = vpack.c.b16 %v4977, %v4973
    %5042 = vmatprep.subr.bf16.mxu0 %v4979
    %5043 = vmatpush1.bf16.msra.mxu0 %v4978
    %5044 = vmatprep.subr.bf16.mxu0 %v4983
    %5045 = vmatpush1.bf16.msra.mxu0 %v4982
    %5046 = vmatprep.subr.bf16.mxu0 %v4987
    %5047 = vmatpush1.bf16.msra.mxu0 %v4986
    %5048 = vmatprep.subr.bf16.mxu0 %v4991
    %5049 = vmatpush1.bf16.msra.mxu0 %v4990
    %5050 = vmatprep.subr.bf16.mxu0 %v4995
    %5051 = vmatpush1.bf16.msra.mxu0 %v4994
    %5052 = vmatprep.subr.bf16.mxu0 %v4999
    %5053 = vmatpush1.bf16.msra.mxu0 %v4998
    %5054 = vmatprep.subr.bf16.mxu0 %v5003
    %5055 = vmatpush1.bf16.msra.mxu0 %v5002
    %5056 = vmatprep.subr.bf16.mxu0 %v5007
    %5057 = vmatpush1.bf16.msra.mxu0 %v5006
    %5058 = vmatprep.subr.bf16.mxu0 0
    %5059 = vmatpush1.bf16.msra.mxu0 0
    %5060 = vmatprep.subr.bf16.mxu0 0
    %5061 = vmatpush1.bf16.msra.mxu0 0
    %5062 = vmatprep.subr.bf16.mxu0 0
    %5063 = vmatpush1.bf16.msra.mxu0 0
    %5064 = vmatprep.subr.bf16.mxu0 0
    %5065 = vmatpush1.bf16.msra.mxu0 0
    %5066 = vmatprep.subr.bf16.mxu0 0
    %5067 = vmatpush1.bf16.msra.mxu0 0
    %5068 = vmatprep.subr.bf16.mxu0 0
    %5069 = vmatpush1.bf16.msra.mxu0 0
    %5070 = vmatprep.subr.bf16.mxu0 0
    %5071 = vmatpush1.bf16.msra.mxu0 0
    %5072 = vmatprep.subr.bf16.mxu0 0
    %5073 = vmatpush1.bf16.msra.mxu0 0
    %5074 = vmatprep.mubr.bf16.mxu0 0
    %5075 = vmatmul.mubr.bf16.gmra.mrb[0].mxu0 %v4849
    %v5076 = vpop.f32.mrb[0].mxu0
    %v5077 = vadd.f32 0.0, %v5076
    %v5078 = vpop.f32.mrb[0].mxu0
    %v5079 = vadd.f32 0.0, %v5078
    %v5080 = vpop.f32.mrb[0].mxu0
    %v5081 = vpop.f32.mrb[0].mxu0
    %5082 = vdwg.mxu0
    %5083 = vmatprep.subr.bf16.mxu0 %v4981
    %5084 = vmatpush1.bf16.msra.mxu0 %v4980
    %5085 = vmatprep.subr.bf16.mxu0 %v4985
    %5086 = vmatpush1.bf16.msra.mxu0 %v4984
    %5087 = vmatprep.subr.bf16.mxu0 %v4989
    %5088 = vmatpush1.bf16.msra.mxu0 %v4988
    %5089 = vmatprep.subr.bf16.mxu0 %v4993
    %5090 = vmatpush1.bf16.msra.mxu0 %v4992
    %5091 = vmatprep.subr.bf16.mxu0 %v4997
    %5092 = vmatpush1.bf16.msra.mxu0 %v4996
    %5093 = vmatprep.subr.bf16.mxu0 %v5001
    %5094 = vmatpush1.bf16.msra.mxu0 %v5000
    %5095 = vmatprep.subr.bf16.mxu0 %v5005
    %5096 = vmatpush1.bf16.msra.mxu0 %v5004
    %5097 = vmatprep.subr.bf16.mxu0 %v5009
    %5098 = vmatpush1.bf16.msra.mxu0 %v5008
    %5099 = vmatprep.subr.bf16.mxu0 0
    %5100 = vmatpush1.bf16.msra.mxu0 0
    %5101 = vmatprep.subr.bf16.mxu0 0
    %5102 = vmatpush1.bf16.msra.mxu0 0
    %5103 = vmatprep.subr.bf16.mxu0 0
    %5104 = vmatpush1.bf16.msra.mxu0 0
    %5105 = vmatprep.subr.bf16.mxu0 0
    %5106 = vmatpush1.bf16.msra.mxu0 0
    %5107 = vmatprep.subr.bf16.mxu0 0
    %5108 = vmatpush1.bf16.msra.mxu0 0
    %5109 = vmatprep.subr.bf16.mxu0 0
    %5110 = vmatpush1.bf16.msra.mxu0 0
    %5111 = vmatprep.subr.bf16.mxu0 0
    %5112 = vmatpush1.bf16.msra.mxu0 0
    %5113 = vmatprep.subr.bf16.mxu0 0
    %5114 = vmatpush1.bf16.msra.mxu0 0
    %5115 = vmatprep.mubr.bf16.mxu0 0
    %5116 = vmatmul.mubr.bf16.gmra.mrb[0].mxu0 %v4849
    %v5117 = vpop.f32.mrb[0].mxu0
    %v5118 = vadd.f32 0.0, %v5117
    %v5119 = vpop.f32.mrb[0].mxu0
    %v5120 = vadd.f32 0.0, %v5119
    %v5121 = vpop.f32.mrb[0].mxu0
    %v5122 = vpop.f32.mrb[0].mxu0
    %5123 = vdwg.mxu0
    %v5124 = vadd.f32 %v4845, %v5077
    %v5125 = vadd.f32 %v4846, %v5079
    %v5126 = vadd.f32 %v4847, %v5118
    %v5127 = vadd.f32 %v4848, %v5120
    %v5128 = vld [vmem:[#allocation2 + $0x20] sm:$0xff]
    %v5129 = vld [vmem:[#allocation2 + $0x28] sm:$0xff]
    %v5130 = vld [vmem:[#allocation2 + $0x30] sm:$0xff]
    %v5131 = vld [vmem:[#allocation2 + $0x38] sm:$0xff]
    %v5132 = vpack.c.bf16 %v4842, %v4842
    %v5133 = vld [vmem:[%s820] sm:$0xff]
    %v5134 = vld [vmem:[%s820 + $0x8] sm:$0xff]
    %v5135 = vld [vmem:[%s820 + $0x10] sm:$0xff]
    %v5136 = vld [vmem:[%s820 + $0x18] sm:$0xff]
    %v5137 = vld [vmem:[%s820 + $0x20] sm:$0xff]
    %v5138 = vld [vmem:[%s820 + $0x28] sm:$0xff]
    %v5139 = vld [vmem:[%s820 + $0x30] sm:$0xff]
    %v5140 = vld [vmem:[%s820 + $0x38] sm:$0xff]
    %v5141 = vld [vmem:[%s820 + $0x40] sm:$0xff]
    %v5142 = vld [vmem:[%s820 + $0x48] sm:$0xff]
    %v5143 = vld [vmem:[%s820 + $0x50] sm:$0xff]
    %v5144 = vld [vmem:[%s820 + $0x58] sm:$0xff]
    %v5145 = vld [vmem:[%s820 + $0x60] sm:$0xff]
    %v5146 = vld [vmem:[%s820 + $0x68] sm:$0xff]
    %v5147 = vld [vmem:[%s820 + $0x70] sm:$0xff]
    %v5148 = vld [vmem:[%s820 + $0x78] sm:$0xff]
    %v5149 = vld [vmem:[%s820 + $0x80] sm:$0xff]
    %v5150 = vld [vmem:[%s820 + $0x88] sm:$0xff]
    %v5151 = vld [vmem:[%s820 + $0x90] sm:$0xff]
    %v5152 = vld [vmem:[%s820 + $0x98] sm:$0xff]
    %v5153 = vld [vmem:[%s820 + $0xa0] sm:$0xff]
    %v5154 = vld [vmem:[%s820 + $0xa8] sm:$0xff]
    %v5155 = vld [vmem:[%s820 + $0xb0] sm:$0xff]
    %v5156 = vld [vmem:[%s820 + $0xb8] sm:$0xff]
    %v5157 = vld [vmem:[%s820 + $0xc0] sm:$0xff]
    %v5158 = vld [vmem:[%s820 + $0xc8] sm:$0xff]
    %v5159 = vld [vmem:[%s820 + $0xd0] sm:$0xff]
    %v5160 = vld [vmem:[%s820 + $0xd8] sm:$0xff]
    %v5161 = vld [vmem:[%s820 + $0xe0] sm:$0xff]
    %v5162 = vld [vmem:[%s820 + $0xe8] sm:$0xff]
    %v5163 = vld [vmem:[%s820 + $0xf0] sm:$0xff]
    %v5164 = vld [vmem:[%s820 + $0xf8] sm:$0xff]
    %v5197 = vunpack.c.l.b16 %v5133
    %v5198 = vunpack.c.h.b16 %v5133
    %v5199 = vunpack.c.l.b16 %v5134
    %v5200 = vunpack.c.h.b16 %v5134
    %v5201 = vunpack.c.l.b16 %v5135
    %v5202 = vunpack.c.h.b16 %v5135
    %v5203 = vunpack.c.l.b16 %v5136
    %v5204 = vunpack.c.h.b16 %v5136
    %v5205 = vunpack.c.l.b16 %v5137
    %v5206 = vunpack.c.h.b16 %v5137
    %v5207 = vunpack.c.l.b16 %v5138
    %v5208 = vunpack.c.h.b16 %v5138
    %v5209 = vunpack.c.l.b16 %v5139
    %v5210 = vunpack.c.h.b16 %v5139
    %v5211 = vunpack.c.l.b16 %v5140
    %v5212 = vunpack.c.h.b16 %v5140
    %v5213 = vunpack.c.l.b16 %v5141
    %v5214 = vunpack.c.h.b16 %v5141
    %v5215 = vunpack.c.l.b16 %v5142
    %v5216 = vunpack.c.h.b16 %v5142
    %v5217 = vunpack.c.l.b16 %v5143
    %v5218 = vunpack.c.h.b16 %v5143
    %v5219 = vunpack.c.l.b16 %v5144
    %v5220 = vunpack.c.h.b16 %v5144
    %v5221 = vunpack.c.l.b16 %v5145
    %v5222 = vunpack.c.h.b16 %v5145
    %v5223 = vunpack.c.l.b16 %v5146
    %v5224 = vunpack.c.h.b16 %v5146
    %v5225 = vunpack.c.l.b16 %v5147
    %v5226 = vunpack.c.h.b16 %v5147
    %v5227 = vunpack.c.l.b16 %v5148
    %v5228 = vunpack.c.h.b16 %v5148
    %v5229 = vunpack.c.l.b16 %v5149
    %v5230 = vunpack.c.h.b16 %v5149
    %v5231 = vunpack.c.l.b16 %v5150
    %v5232 = vunpack.c.h.b16 %v5150
    %v5233 = vunpack.c.l.b16 %v5151
    %v5234 = vunpack.c.h.b16 %v5151
    %v5235 = vunpack.c.l.b16 %v5152
    %v5236 = vunpack.c.h.b16 %v5152
    %v5237 = vunpack.c.l.b16 %v5153
    %v5238 = vunpack.c.h.b16 %v5153
    %v5239 = vunpack.c.l.b16 %v5154
    %v5240 = vunpack.c.h.b16 %v5154
    %v5241 = vunpack.c.l.b16 %v5155
    %v5242 = vunpack.c.h.b16 %v5155
    %v5243 = vunpack.c.l.b16 %v5156
    %v5244 = vunpack.c.h.b16 %v5156
    %v5245 = vunpack.c.l.b16 %v5157
    %v5246 = vunpack.c.h.b16 %v5157
    %v5247 = vunpack.c.l.b16 %v5158
    %v5248 = vunpack.c.h.b16 %v5158
    %v5249 = vunpack.c.l.b16 %v5159
    %v5250 = vunpack.c.h.b16 %v5159
    %v5251 = vunpack.c.l.b16 %v5160
    %v5252 = vunpack.c.h.b16 %v5160
    %v5253 = vunpack.c.l.b16 %v5161
    %v5254 = vunpack.c.h.b16 %v5161
    %v5255 = vunpack.c.l.b16 %v5162
    %v5256 = vunpack.c.h.b16 %v5162
    %v5257 = vunpack.c.l.b16 %v5163
    %v5258 = vunpack.c.h.b16 %v5163
    %v5259 = vunpack.c.l.b16 %v5164
    %v5260 = vunpack.c.h.b16 %v5164
    %v5261 = vpack.c.b16 %v5201, %v5197
    %v5262 = vpack.c.b16 %v5202, %v5198
    %v5263 = vpack.c.b16 %v5203, %v5199
    %v5264 = vpack.c.b16 %v5204, %v5200
    %v5265 = vpack.c.b16 %v5209, %v5205
    %v5266 = vpack.c.b16 %v5210, %v5206
    %v5267 = vpack.c.b16 %v5211, %v5207
    %v5268 = vpack.c.b16 %v5212, %v5208
    %v5269 = vpack.c.b16 %v5217, %v5213
    %v5270 = vpack.c.b16 %v5218, %v5214
    %v5271 = vpack.c.b16 %v5219, %v5215
    %v5272 = vpack.c.b16 %v5220, %v5216
    %v5273 = vpack.c.b16 %v5225, %v5221
    %v5274 = vpack.c.b16 %v5226, %v5222
    %v5275 = vpack.c.b16 %v5227, %v5223
    %v5276 = vpack.c.b16 %v5228, %v5224
    %v5277 = vpack.c.b16 %v5233, %v5229
    %v5278 = vpack.c.b16 %v5234, %v5230
    %v5279 = vpack.c.b16 %v5235, %v5231
    %v5280 = vpack.c.b16 %v5236, %v5232
    %v5281 = vpack.c.b16 %v5241, %v5237
    %v5282 = vpack.c.b16 %v5242, %v5238
    %v5283 = vpack.c.b16 %v5243, %v5239
    %v5284 = vpack.c.b16 %v5244, %v5240
    %v5285 = vpack.c.b16 %v5249, %v5245
    %v5286 = vpack.c.b16 %v5250, %v5246
    %v5287 = vpack.c.b16 %v5251, %v5247
    %v5288 = vpack.c.b16 %v5252, %v5248
    %v5289 = vpack.c.b16 %v5257, %v5253
    %v5290 = vpack.c.b16 %v5258, %v5254
    %v5291 = vpack.c.b16 %v5259, %v5255
    %v5292 = vpack.c.b16 %v5260, %v5256
    %5325 = vmatprep.subr.bf16.mxu0 %v5262
    %5326 = vmatpush1.bf16.msra.mxu0 %v5261
    %5327 = vmatprep.subr.bf16.mxu0 %v5266
    %5328 = vmatpush1.bf16.msra.mxu0 %v5265
    %5329 = vmatprep.subr.bf16.mxu0 %v5270
    %5330 = vmatpush1.bf16.msra.mxu0 %v5269
    %5331 = vmatprep.subr.bf16.mxu0 %v5274
    %5332 = vmatpush1.bf16.msra.mxu0 %v5273
    %5333 = vmatprep.subr.bf16.mxu0 %v5278
    %5334 = vmatpush1.bf16.msra.mxu0 %v5277
    %5335 = vmatprep.subr.bf16.mxu0 %v5282
    %5336 = vmatpush1.bf16.msra.mxu0 %v5281
    %5337 = vmatprep.subr.bf16.mxu0 %v5286
    %5338 = vmatpush1.bf16.msra.mxu0 %v5285
    %5339 = vmatprep.subr.bf16.mxu0 %v5290
    %5340 = vmatpush1.bf16.msra.mxu0 %v5289
    %5341 = vmatprep.subr.bf16.mxu0 0
    %5342 = vmatpush1.bf16.msra.mxu0 0
    %5343 = vmatprep.subr.bf16.mxu0 0
    %5344 = vmatpush1.bf16.msra.mxu0 0
    %5345 = vmatprep.subr.bf16.mxu0 0
    %5346 = vmatpush1.bf16.msra.mxu0 0
    %5347 = vmatprep.subr.bf16.mxu0 0
    %5348 = vmatpush1.bf16.msra.mxu0 0
    %5349 = vmatprep.subr.bf16.mxu0 0
    %5350 = vmatpush1.bf16.msra.mxu0 0
    %5351 = vmatprep.subr.bf16.mxu0 0
    %5352 = vmatpush1.bf16.msra.mxu0 0
    %5353 = vmatprep.subr.bf16.mxu0 0
    %5354 = vmatpush1.bf16.msra.mxu0 0
    %5355 = vmatprep.subr.bf16.mxu0 0
    %5356 = vmatpush1.bf16.msra.mxu0 0
    %5357 = vmatprep.mubr.bf16.mxu0 0
    %5358 = vmatmul.mubr.bf16.gmra.mrb[0].mxu0 %v5132
    %v5359 = vpop.f32.mrb[0].mxu0
    %v5360 = vadd.f32 0.0, %v5359
    %v5361 = vpop.f32.mrb[0].mxu0
    %v5362 = vadd.f32 0.0, %v5361
    %v5363 = vpop.f32.mrb[0].mxu0
    %v5364 = vpop.f32.mrb[0].mxu0
    %5365 = vdwg.mxu0
    %5366 = vmatprep.subr.bf16.mxu0 %v5264
    %5367 = vmatpush1.bf16.msra.mxu0 %v5263
    %5368 = vmatprep.subr.bf16.mxu0 %v5268
    %5369 = vmatpush1.bf16.msra.mxu0 %v5267
    %5370 = vmatprep.subr.bf16.mxu0 %v5272
    %5371 = vmatpush1.bf16.msra.mxu0 %v5271
    %5372 = vmatprep.subr.bf16.mxu0 %v5276
    %5373 = vmatpush1.bf16.msra.mxu0 %v5275
    %5374 = vmatprep.subr.bf16.mxu0 %v5280
    %5375 = vmatpush1.bf16.msra.mxu0 %v5279
    %5376 = vmatprep.subr.bf16.mxu0 %v5284
    %5377 = vmatpush1.bf16.msra.mxu0 %v5283
    %5378 = vmatprep.subr.bf16.mxu0 %v5288
    %5379 = vmatpush1.bf16.msra.mxu0 %v5287
    %5380 = vmatprep.subr.bf16.mxu0 %v5292
    %5381 = vmatpush1.bf16.msra.mxu0 %v5291
    %5382 = vmatprep.subr.bf16.mxu0 0
    %5383 = vmatpush1.bf16.msra.mxu0 0
    %5384 = vmatprep.subr.bf16.mxu0 0
    %5385 = vmatpush1.bf16.msra.mxu0 0
    %5386 = vmatprep.subr.bf16.mxu0 0
    %5387 = vmatpush1.bf16.msra.mxu0 0
    %5388 = vmatprep.subr.bf16.mxu0 0
    %5389 = vmatpush1.bf16.msra.mxu0 0
    %5390 = vmatprep.subr.bf16.mxu0 0
    %5391 = vmatpush1.bf16.msra.mxu0 0
    %5392 = vmatprep.subr.bf16.mxu0 0
    %5393 = vmatpush1.bf16.msra.mxu0 0
    %5394 = vmatprep.subr.bf16.mxu0 0
    %5395 = vmatpush1.bf16.msra.mxu0 0
    %5396 = vmatprep.subr.bf16.mxu0 0
    %5397 = vmatpush1.bf16.msra.mxu0 0
    %5398 = vmatprep.mubr.bf16.mxu0 0
    %5399 = vmatmul.mubr.bf16.gmra.mrb[0].mxu0 %v5132
    %v5400 = vpop.f32.mrb[0].mxu0
    %v5401 = vadd.f32 0.0, %v5400
    %v5402 = vpop.f32.mrb[0].mxu0
    %v5403 = vadd.f32 0.0, %v5402
    %v5404 = vpop.f32.mrb[0].mxu0
    %v5405 = vpop.f32.mrb[0].mxu0
    %5406 = vdwg.mxu0
    %v5407 = vadd.f32 %v5128, %v5360
    %v5408 = vadd.f32 %v5129, %v5362
    %v5409 = vadd.f32 %v5130, %v5401
    %v5410 = vadd.f32 %v5131, %v5403
    %v5411 = vxor.u32 %v5124, 2147483648
    %v5412 = vmul.f32 %v5411, 1.442695
    %v5413 = vpow.pop %v5412
    %v5414 = vadd.f32 %v5413, 1.0
    %v5415 = vrcp.pop %v5414
    %v5416 = vmul.f32 1.0, %v5415
    %v5417 = vxor.u32 %v5125, 2147483648
    %v5418 = vmul.f32 %v5417, 1.442695
    %v5419 = vpow.pop %v5418
    %v5420 = vadd.f32 %v5419, 1.0
    %v5421 = vrcp.pop %v5420
    %v5422 = vmul.f32 1.0, %v5421
    %v5423 = vtanh.pop %v5126
    %v5424 = vxor.u32 %v5127, 2147483648
    %v5425 = vmul.f32 %v5424, 1.442695
    %v5426 = vpow.pop %v5425
    %v5427 = vadd.f32 %v5426, 1.0
    %v5428 = vrcp.pop %v5427
    %v5429 = vmul.f32 1.0, %v5428
    %v5430 = vmul.f32 %v5422, %v4816
    %v5431 = vmul.f32 %v5416, %v5423
    %v5432 = vadd.f32 %v5430, %v5431
    %v5433 = vtanh.pop %v5432
    %v5434 = vmul.f32 %v5429, %v5433
    %v5435 = vxor.u32 %v5407, 2147483648
    %v5436 = vmul.f32 %v5435, 1.442695
    %v5437 = vpow.pop %v5436
    %v5438 = vadd.f32 %v5437, 1.0
    %v5439 = vrcp.pop %v5438
    %v5440 = vmul.f32 1.0, %v5439
    %v5441 = vxor.u32 %v5408, 2147483648
    %v5442 = vmul.f32 %v5441, 1.442695
    %v5443 = vpow.pop %v5442
    %v5444 = vadd.f32 %v5443, 1.0
    %v5445 = vrcp.pop %v5444
    %v5446 = vmul.f32 1.0, %v5445
    %v5447 = vtanh.pop %v5409
    %v5448 = vxor.u32 %v5410, 2147483648
    %v5449 = vmul.f32 %v5448, 1.442695
    %v5450 = vpow.pop %v5449
    %v5451 = vadd.f32 %v5450, 1.0
    %v5452 = vrcp.pop %v5451
    %v5453 = vmul.f32 1.0, %v5452
    %v5454 = vmul.f32 %v5446, %v4840
    %v5455 = vmul.f32 %v5440, %v5447
    %v5456 = vadd.f32 %v5454, %v5455
    %v5457 = vtanh.pop %v5456
    %v5458 = vmul.f32 %v5453, %v5457
    %5459 = vst [vmem:[#allocation3 + $0x70] sm:$0xff] %v5434
    %5460 = vst [vmem:[#allocation3 + $0x8] sm:$0xff] %v5458
    %v5461 = vld [vmem:[#allocation3] sm:$0xff]
    %v5462 = vld [vmem:[#allocation3 + $0x8] sm:$0xff]
    %v5463 = vld [vmem:[#allocation3 + $0x10] sm:$0xff]
    %v5464 = vld [vmem:[#allocation3 + $0x18] sm:$0xff]
    %v5465 = vld [vmem:[#allocation3 + $0x20] sm:$0xff]
    %v5466 = vld [vmem:[#allocation3 + $0x28] sm:$0xff]
    %v5467 = vld [vmem:[#allocation3 + $0x30] sm:$0xff]
    %v5468 = vld [vmem:[#allocation3 + $0x38] sm:$0xff]
    %v5469 = vld [vmem:[#allocation3 + $0x40] sm:$0xff]
    %v5470 = vld [vmem:[#allocation3 + $0x48] sm:$0xff]
    %v5471 = vld [vmem:[#allocation3 + $0x50] sm:$0xff]
    %v5472 = vld [vmem:[#allocation3 + $0x58] sm:$0xff]
    %v5473 = vld [vmem:[#allocation3 + $0x60] sm:$0xff]
    %v5474 = vld [vmem:[#allocation3 + $0x68] sm:$0xff]
    %v5475 = vld [vmem:[#allocation3 + $0x70] sm:$0xff]
    %v5476 = vld [vmem:[#allocation3 + $0x78] sm:$0xff]
    %v5477 = vpack.c.bf16 %v5463, %v5461
    %v5478 = vpack.c.bf16 %v5464, %v5462
    %v5479 = vpack.c.bf16 %v5467, %v5465
    %v5480 = vpack.c.bf16 %v5468, %v5466
    %v5481 = vpack.c.bf16 %v5471, %v5469
    %v5482 = vpack.c.bf16 %v5472, %v5470
    %v5483 = vpack.c.bf16 %v5475, %v5473
    %v5484 = vpack.c.bf16 %v5476, %v5474
    %v5485 = vld [vmem:[#allocation9] sm:$0xff]
    %v5486 = vld [vmem:[#allocation9 + $0x8] sm:$0xff]
    %v5487 = vld [vmem:[#allocation9 + $0x10] sm:$0xff]
    %v5488 = vld [vmem:[#allocation9 + $0x18] sm:$0xff]
    %v5489 = vld [vmem:[#allocation9 + $0x20] sm:$0xff]
    %v5490 = vld [vmem:[#allocation9 + $0x28] sm:$0xff]
    %v5491 = vld [vmem:[#allocation9 + $0x30] sm:$0xff]
    %v5492 = vld [vmem:[#allocation9 + $0x38] sm:$0xff]
    %v5493 = vld [vmem:[#allocation9 + $0x40] sm:$0xff]
    %v5494 = vld [vmem:[#allocation9 + $0x48] sm:$0xff]
    %v5495 = vld [vmem:[#allocation9 + $0x50] sm:$0xff]
    %v5496 = vld [vmem:[#allocation9 + $0x58] sm:$0xff]
    %v5497 = vld [vmem:[#allocation9 + $0x60] sm:$0xff]
    %v5498 = vld [vmem:[#allocation9 + $0x68] sm:$0xff]
    %v5499 = vld [vmem:[#allocation9 + $0x70] sm:$0xff]
    %v5500 = vld [vmem:[#allocation9 + $0x78] sm:$0xff]
    %v5501 = vld [vmem:[#allocation9 + $0x80] sm:$0xff]
    %v5502 = vld [vmem:[#allocation9 + $0x88] sm:$0xff]
    %v5503 = vld [vmem:[#allocation9 + $0x90] sm:$0xff]
    %v5504 = vld [vmem:[#allocation9 + $0x98] sm:$0xff]
    %v5505 = vld [vmem:[#allocation9 + $0xa0] sm:$0xff]
    %v5506 = vld [vmem:[#allocation9 + $0xa8] sm:$0xff]
    %v5507 = vld [vmem:[#allocation9 + $0xb0] sm:$0xff]
    %v5508 = vld [vmem:[#allocation9 + $0xb8] sm:$0xff]
    %v5509 = vld [vmem:[#allocation9 + $0xc0] sm:$0xff]
    %v5510 = vld [vmem:[#allocation9 + $0xc8] sm:$0xff]
    %v5511 = vld [vmem:[#allocation9 + $0xd0] sm:$0xff]
    %v5512 = vld [vmem:[#allocation9 + $0xd8] sm:$0xff]
    %v5513 = vld [vmem:[#allocation9 + $0xe0] sm:$0xff]
    %v5514 = vld [vmem:[#allocation9 + $0xe8] sm:$0xff]
    %v5515 = vld [vmem:[#allocation9 + $0xf0] sm:$0xff]
    %v5516 = vld [vmem:[#allocation9 + $0xf8] sm:$0xff]
    %v5517 = vld [vmem:[#allocation9 + $0x100] sm:$0xff]
    %v5518 = vld [vmem:[#allocation9 + $0x108] sm:$0xff]
    %v5519 = vld [vmem:[#allocation9 + $0x110] sm:$0xff]
    %v5520 = vld [vmem:[#allocation9 + $0x118] sm:$0xff]
    %v5521 = vld [vmem:[#allocation9 + $0x120] sm:$0xff]
    %v5522 = vld [vmem:[#allocation9 + $0x128] sm:$0xff]
    %v5523 = vld [vmem:[#allocation9 + $0x130] sm:$0xff]
    %v5524 = vld [vmem:[#allocation9 + $0x138] sm:$0xff]
    %v5525 = vld [vmem:[#allocation9 + $0x140] sm:$0xff]
    %v5526 = vld [vmem:[#allocation9 + $0x148] sm:$0xff]
    %v5527 = vld [vmem:[#allocation9 + $0x150] sm:$0xff]
    %v5528 = vld [vmem:[#allocation9 + $0x158] sm:$0xff]
    %v5529 = vld [vmem:[#allocation9 + $0x160] sm:$0xff]
    %v5530 = vld [vmem:[#allocation9 + $0x168] sm:$0xff]
    %v5531 = vld [vmem:[#allocation9 + $0x170] sm:$0xff]
    %v5532 = vld [vmem:[#allocation9 + $0x178] sm:$0xff]
    %v5533 = vld [vmem:[#allocation9 + $0x180] sm:$0xff]
    %v5534 = vld [vmem:[#allocation9 + $0x188] sm:$0xff]
    %v5535 = vld [vmem:[#allocation9 + $0x190] sm:$0xff]
    %v5536 = vld [vmem:[#allocation9 + $0x198] sm:$0xff]
    %v5537 = vld [vmem:[#allocation9 + $0x1a0] sm:$0xff]
    %v5538 = vld [vmem:[#allocation9 + $0x1a8] sm:$0xff]
    %v5539 = vld [vmem:[#allocation9 + $0x1b0] sm:$0xff]
    %v5540 = vld [vmem:[#allocation9 + $0x1b8] sm:$0xff]
    %v5541 = vld [vmem:[#allocation9 + $0x1c0] sm:$0xff]
    %v5542 = vld [vmem:[#allocation9 + $0x1c8] sm:$0xff]
    %v5543 = vld [vmem:[#allocation9 + $0x1d0] sm:$0xff]
    %v5544 = vld [vmem:[#allocation9 + $0x1d8] sm:$0xff]
    %v5545 = vld [vmem:[#allocation9 + $0x1e0] sm:$0xff]
    %v5546 = vld [vmem:[#allocation9 + $0x1e8] sm:$0xff]
    %v5547 = vld [vmem:[#allocation9 + $0x1f0] sm:$0xff]
    %v5548 = vld [vmem:[#allocation9 + $0x1f8] sm:$0xff]
    %s5549 = scalar_lea.vmem %s4, 1
    %v5550 = vld [vmem:[%s5549] ss:$8 sm:$0xf]
    %v5552 = vlaneseq
    %v5553 = vshrl.u32 %v5552, 7
    %v5554 = vsub.s32 0, %v5553
    %v5555 = vrot.slane %v5550, %v5554
    %v5556 = vlaneseq
    %v5557 = vshrl.u32 %v5556, 7
    %v5558 = vsub.s32 1, %v5557
    %v5559 = vrot.slane %v5550, %v5558
    %v5560 = vlaneseq
    %v5561 = vshrl.u32 %v5560, 7
    %v5562 = vsub.s32 2, %v5561
    %v5563 = vrot.slane %v5550, %v5562
    %v5564 = vlaneseq
    %v5565 = vshrl.u32 %v5564, 7
    %v5566 = vsub.s32 3, %v5565
    %v5567 = vrot.slane %v5550, %v5566
    %v5636 = vunpack.c.l.b16 %v5485
    %v5637 = vunpack.c.h.b16 %v5485
    %v5638 = vunpack.c.l.b16 %v5486
    %v5639 = vunpack.c.h.b16 %v5486
    %v5640 = vunpack.c.l.b16 %v5487
    %v5641 = vunpack.c.h.b16 %v5487
    %v5642 = vunpack.c.l.b16 %v5488
    %v5643 = vunpack.c.h.b16 %v5488
    %v5644 = vunpack.c.l.b16 %v5489
    %v5645 = vunpack.c.h.b16 %v5489
    %v5646 = vunpack.c.l.b16 %v5490
    %v5647 = vunpack.c.h.b16 %v5490
    %v5648 = vunpack.c.l.b16 %v5491
    %v5649 = vunpack.c.h.b16 %v5491
    %v5650 = vunpack.c.l.b16 %v5492
    %v5651 = vunpack.c.h.b16 %v5492
    %v5652 = vunpack.c.l.b16 %v5493
    %v5653 = vunpack.c.h.b16 %v5493
    %v5654 = vunpack.c.l.b16 %v5494
    %v5655 = vunpack.c.h.b16 %v5494
    %v5656 = vunpack.c.l.b16 %v5495
    %v5657 = vunpack.c.h.b16 %v5495
    %v5658 = vunpack.c.l.b16 %v5496
    %v5659 = vunpack.c.h.b16 %v5496
    %v5660 = vunpack.c.l.b16 %v5497
    %v5661 = vunpack.c.h.b16 %v5497
    %v5662 = vunpack.c.l.b16 %v5498
    %v5663 = vunpack.c.h.b16 %v5498
    %v5664 = vunpack.c.l.b16 %v5499
    %v5665 = vunpack.c.h.b16 %v5499
    %v5666 = vunpack.c.l.b16 %v5500
    %v5667 = vunpack.c.h.b16 %v5500
    %v5668 = vunpack.c.l.b16 %v5501
    %v5669 = vunpack.c.h.b16 %v5501
    %v5670 = vunpack.c.l.b16 %v5502
    %v5671 = vunpack.c.h.b16 %v5502
    %v5672 = vunpack.c.l.b16 %v5503
    %v5673 = vunpack.c.h.b16 %v5503
    %v5674 = vunpack.c.l.b16 %v5504
    %v5675 = vunpack.c.h.b16 %v5504
    %v5676 = vunpack.c.l.b16 %v5505
    %v5677 = vunpack.c.h.b16 %v5505
    %v5678 = vunpack.c.l.b16 %v5506
    %v5679 = vunpack.c.h.b16 %v5506
    %v5680 = vunpack.c.l.b16 %v5507
    %v5681 = vunpack.c.h.b16 %v5507
    %v5682 = vunpack.c.l.b16 %v5508
    %v5683 = vunpack.c.h.b16 %v5508
    %v5684 = vunpack.c.l.b16 %v5509
    %v5685 = vunpack.c.h.b16 %v5509
    %v5686 = vunpack.c.l.b16 %v5510
    %v5687 = vunpack.c.h.b16 %v5510
    %v5688 = vunpack.c.l.b16 %v5511
    %v5689 = vunpack.c.h.b16 %v5511
    %v5690 = vunpack.c.l.b16 %v5512
    %v5691 = vunpack.c.h.b16 %v5512
    %v5692 = vunpack.c.l.b16 %v5513
    %v5693 = vunpack.c.h.b16 %v5513
    %v5694 = vunpack.c.l.b16 %v5514
    %v5695 = vunpack.c.h.b16 %v5514
    %v5696 = vunpack.c.l.b16 %v5515
    %v5697 = vunpack.c.h.b16 %v5515
    %v5698 = vunpack.c.l.b16 %v5516
    %v5699 = vunpack.c.h.b16 %v5516
    %v5700 = vunpack.c.l.b16 %v5517
    %v5701 = vunpack.c.h.b16 %v5517
    %v5702 = vunpack.c.l.b16 %v5518
    %v5703 = vunpack.c.h.b16 %v5518
    %v5704 = vunpack.c.l.b16 %v5519
    %v5705 = vunpack.c.h.b16 %v5519
    %v5706 = vunpack.c.l.b16 %v5520
    %v5707 = vunpack.c.h.b16 %v5520
    %v5708 = vunpack.c.l.b16 %v5521
    %v5709 = vunpack.c.h.b16 %v5521
    %v5710 = vunpack.c.l.b16 %v5522
    %v5711 = vunpack.c.h.b16 %v5522
    %v5712 = vunpack.c.l.b16 %v5523
    %v5713 = vunpack.c.h.b16 %v5523
    %v5714 = vunpack.c.l.b16 %v5524
    %v5715 = vunpack.c.h.b16 %v5524
    %v5716 = vunpack.c.l.b16 %v5525
    %v5717 = vunpack.c.h.b16 %v5525
    %v5718 = vunpack.c.l.b16 %v5526
    %v5719 = vunpack.c.h.b16 %v5526
    %v5720 = vunpack.c.l.b16 %v5527
    %v5721 = vunpack.c.h.b16 %v5527
    %v5722 = vunpack.c.l.b16 %v5528
    %v5723 = vunpack.c.h.b16 %v5528
    %v5724 = vunpack.c.l.b16 %v5529
    %v5725 = vunpack.c.h.b16 %v5529
    %v5726 = vunpack.c.l.b16 %v5530
    %v5727 = vunpack.c.h.b16 %v5530
    %v5728 = vunpack.c.l.b16 %v5531
    %v5729 = vunpack.c.h.b16 %v5531
    %v5730 = vunpack.c.l.b16 %v5532
    %v5731 = vunpack.c.h.b16 %v5532
    %v5732 = vunpack.c.l.b16 %v5533
    %v5733 = vunpack.c.h.b16 %v5533
    %v5734 = vunpack.c.l.b16 %v5534
    %v5735 = vunpack.c.h.b16 %v5534
    %v5736 = vunpack.c.l.b16 %v5535
    %v5737 = vunpack.c.h.b16 %v5535
    %v5738 = vunpack.c.l.b16 %v5536
    %v5739 = vunpack.c.h.b16 %v5536
    %v5740 = vunpack.c.l.b16 %v5537
    %v5741 = vunpack.c.h.b16 %v5537
    %v5742 = vunpack.c.l.b16 %v5538
    %v5743 = vunpack.c.h.b16 %v5538
    %v5744 = vunpack.c.l.b16 %v5539
    %v5745 = vunpack.c.h.b16 %v5539
    %v5746 = vunpack.c.l.b16 %v5540
    %v5747 = vunpack.c.h.b16 %v5540
    %v5748 = vunpack.c.l.b16 %v5541
    %v5749 = vunpack.c.h.b16 %v5541
    %v5750 = vunpack.c.l.b16 %v5542
    %v5751 = vunpack.c.h.b16 %v5542
    %v5752 = vunpack.c.l.b16 %v5543
    %v5753 = vunpack.c.h.b16 %v5543
    %v5754 = vunpack.c.l.b16 %v5544
    %v5755 = vunpack.c.h.b16 %v5544
    %v5756 = vunpack.c.l.b16 %v5545
    %v5757 = vunpack.c.h.b16 %v5545
    %v5758 = vunpack.c.l.b16 %v5546
    %v5759 = vunpack.c.h.b16 %v5546
    %v5760 = vunpack.c.l.b16 %v5547
    %v5761 = vunpack.c.h.b16 %v5547
    %v5762 = vunpack.c.l.b16 %v5548
    %v5763 = vunpack.c.h.b16 %v5548
    %v5764 = vpack.c.b16 %v5640, %v5636
    %v5765 = vpack.c.b16 %v5641, %v5637
    %v5766 = vpack.c.b16 %v5642, %v5638
    %v5767 = vpack.c.b16 %v5643, %v5639
    %v5768 = vpack.c.b16 %v5648, %v5644
    %v5769 = vpack.c.b16 %v5649, %v5645
    %v5770 = vpack.c.b16 %v5650, %v5646
    %v5771 = vpack.c.b16 %v5651, %v5647
    %v5772 = vpack.c.b16 %v5656, %v5652
    %v5773 = vpack.c.b16 %v5657, %v5653
    %v5774 = vpack.c.b16 %v5658, %v5654
    %v5775 = vpack.c.b16 %v5659, %v5655
    %v5776 = vpack.c.b16 %v5664, %v5660
    %v5777 = vpack.c.b16 %v5665, %v5661
    %v5778 = vpack.c.b16 %v5666, %v5662
    %v5779 = vpack.c.b16 %v5667, %v5663
    %v5780 = vpack.c.b16 %v5672, %v5668
    %v5781 = vpack.c.b16 %v5673, %v5669
    %v5782 = vpack.c.b16 %v5674, %v5670
    %v5783 = vpack.c.b16 %v5675, %v5671
    %v5784 = vpack.c.b16 %v5680, %v5676
    %v5785 = vpack.c.b16 %v5681, %v5677
    %v5786 = vpack.c.b16 %v5682, %v5678
    %v5787 = vpack.c.b16 %v5683, %v5679
    %v5788 = vpack.c.b16 %v5688, %v5684
    %v5789 = vpack.c.b16 %v5689, %v5685
    %v5790 = vpack.c.b16 %v5690, %v5686
    %v5791 = vpack.c.b16 %v5691, %v5687
    %v5792 = vpack.c.b16 %v5696, %v5692
    %v5793 = vpack.c.b16 %v5697, %v5693
    %v5794 = vpack.c.b16 %v5698, %v5694
    %v5795 = vpack.c.b16 %v5699, %v5695
    %v5796 = vpack.c.b16 %v5704, %v5700
    %v5797 = vpack.c.b16 %v5705, %v5701
    %v5798 = vpack.c.b16 %v5706, %v5702
    %v5799 = vpack.c.b16 %v5707, %v5703
    %v5800 = vpack.c.b16 %v5712, %v5708
    %v5801 = vpack.c.b16 %v5713, %v5709
    %v5802 = vpack.c.b16 %v5714, %v5710
    %v5803 = vpack.c.b16 %v5715, %v5711
    %v5804 = vpack.c.b16 %v5720, %v5716
    %v5805 = vpack.c.b16 %v5721, %v5717
    %v5806 = vpack.c.b16 %v5722, %v5718
    %v5807 = vpack.c.b16 %v5723, %v5719
    %v5808 = vpack.c.b16 %v5728, %v5724
    %v5809 = vpack.c.b16 %v5729, %v5725
    %v5810 = vpack.c.b16 %v5730, %v5726
    %v5811 = vpack.c.b16 %v5731, %v5727
    %v5812 = vpack.c.b16 %v5736, %v5732
    %v5813 = vpack.c.b16 %v5737, %v5733
    %v5814 = vpack.c.b16 %v5738, %v5734
    %v5815 = vpack.c.b16 %v5739, %v5735
    %v5816 = vpack.c.b16 %v5744, %v5740
    %v5817 = vpack.c.b16 %v5745, %v5741
    %v5818 = vpack.c.b16 %v5746, %v5742
    %v5819 = vpack.c.b16 %v5747, %v5743
    %v5820 = vpack.c.b16 %v5752, %v5748
    %v5821 = vpack.c.b16 %v5753, %v5749
    %v5822 = vpack.c.b16 %v5754, %v5750
    %v5823 = vpack.c.b16 %v5755, %v5751
    %v5824 = vpack.c.b16 %v5760, %v5756
    %v5825 = vpack.c.b16 %v5761, %v5757
    %v5826 = vpack.c.b16 %v5762, %v5758
    %v5827 = vpack.c.b16 %v5763, %v5759
    %5892 = vmatprep.subr.bf16.mxu0 %v5765
    %5893 = vmatpush1.bf16.msra.mxu0 %v5764
    %5894 = vmatprep.subr.bf16.mxu0 %v5769
    %5895 = vmatpush1.bf16.msra.mxu0 %v5768
    %5896 = vmatprep.subr.bf16.mxu0 %v5773
    %5897 = vmatpush1.bf16.msra.mxu0 %v5772
    %5898 = vmatprep.subr.bf16.mxu0 %v5777
    %5899 = vmatpush1.bf16.msra.mxu0 %v5776
    %5900 = vmatprep.subr.bf16.mxu0 %v5781
    %5901 = vmatpush1.bf16.msra.mxu0 %v5780
    %5902 = vmatprep.subr.bf16.mxu0 %v5785
    %5903 = vmatpush1.bf16.msra.mxu0 %v5784
    %5904 = vmatprep.subr.bf16.mxu0 %v5789
    %5905 = vmatpush1.bf16.msra.mxu0 %v5788
    %5906 = vmatprep.subr.bf16.mxu0 %v5793
    %5907 = vmatpush1.bf16.msra.mxu0 %v5792
    %5908 = vmatprep.subr.bf16.mxu0 %v5797
    %5909 = vmatpush1.bf16.msra.mxu0 %v5796
    %5910 = vmatprep.subr.bf16.mxu0 %v5801
    %5911 = vmatpush1.bf16.msra.mxu0 %v5800
    %5912 = vmatprep.subr.bf16.mxu0 %v5805
    %5913 = vmatpush1.bf16.msra.mxu0 %v5804
    %5914 = vmatprep.subr.bf16.mxu0 %v5809
    %5915 = vmatpush1.bf16.msra.mxu0 %v5808
    %5916 = vmatprep.subr.bf16.mxu0 %v5813
    %5917 = vmatpush1.bf16.msra.mxu0 %v5812
    %5918 = vmatprep.subr.bf16.mxu0 %v5817
    %5919 = vmatpush1.bf16.msra.mxu0 %v5816
    %5920 = vmatprep.subr.bf16.mxu0 %v5821
    %5921 = vmatpush1.bf16.msra.mxu0 %v5820
    %5922 = vmatprep.subr.bf16.mxu0 %v5825
    %5923 = vmatpush1.bf16.msra.mxu0 %v5824
    %5924 = vmatprep.mubr.bf16.mxu0 %v5478
    %5925 = vmatmul.mubr.bf16.gmra.mrb[0].mxu0 %v5477
    %v5926 = vpop.f32.mrb[0].mxu0
    %v5927 = vadd.f32 %v5555, %v5926
    %v5928 = vpop.f32.mrb[0].mxu0
    %v5929 = vadd.f32 %v5559, %v5928
    %v5930 = vpop.f32.mrb[0].mxu0
    %v5931 = vadd.f32 %v5555, %v5930
    %v5932 = vpop.f32.mrb[0].mxu0
    %v5933 = vadd.f32 %v5559, %v5932
    %5934 = vmatprep.mubr.bf16.mxu0 %v5480
    %5935 = vmatmul.mubr.bf16.gmra.mrb[0].mxu0 %v5479
    %v5936 = vpop.f32.mrb[0].mxu0
    %v5937 = vadd.f32 %v5555, %v5936
    %v5938 = vpop.f32.mrb[0].mxu0
    %v5939 = vadd.f32 %v5559, %v5938
    %v5940 = vpop.f32.mrb[0].mxu0
    %v5941 = vadd.f32 %v5555, %v5940
    %v5942 = vpop.f32.mrb[0].mxu0
    %v5943 = vadd.f32 %v5559, %v5942
    %5944 = vmatprep.mubr.bf16.mxu0 %v5482
    %5945 = vmatmul.mubr.bf16.gmra.mrb[0].mxu0 %v5481
    %v5946 = vpop.f32.mrb[0].mxu0
    %v5947 = vadd.f32 %v5555, %v5946
    %v5948 = vpop.f32.mrb[0].mxu0
    %v5949 = vadd.f32 %v5559, %v5948
    %v5950 = vpop.f32.mrb[0].mxu0
    %v5951 = vadd.f32 %v5555, %v5950
    %v5952 = vpop.f32.mrb[0].mxu0
    %v5953 = vadd.f32 %v5559, %v5952
    %5954 = vmatprep.mubr.bf16.mxu0 %v5484
    %5955 = vmatmul.mubr.bf16.gmra.mrb[0].mxu0 %v5483
    %v5956 = vpop.f32.mrb[0].mxu0
    %v5957 = vadd.f32 %v5555, %v5956
    %v5958 = vpop.f32.mrb[0].mxu0
    %v5959 = vadd.f32 %v5559, %v5958
    %v5960 = vpop.f32.mrb[0].mxu0
    %v5961 = vadd.f32 %v5555, %v5960
    %v5962 = vpop.f32.mrb[0].mxu0
    %v5963 = vadd.f32 %v5559, %v5962
    %5964 = vdwg.mxu0
    %5965 = vmatprep.subr.bf16.mxu0 %v5767
    %5966 = vmatpush1.bf16.msra.mxu0 %v5766
    %5967 = vmatprep.subr.bf16.mxu0 %v5771
    %5968 = vmatpush1.bf16.msra.mxu0 %v5770
    %5969 = vmatprep.subr.bf16.mxu0 %v5775
    %5970 = vmatpush1.bf16.msra.mxu0 %v5774
    %5971 = vmatprep.subr.bf16.mxu0 %v5779
    %5972 = vmatpush1.bf16.msra.mxu0 %v5778
    %5973 = vmatprep.subr.bf16.mxu0 %v5783
    %5974 = vmatpush1.bf16.msra.mxu0 %v5782
    %5975 = vmatprep.subr.bf16.mxu0 %v5787
    %5976 = vmatpush1.bf16.msra.mxu0 %v5786
    %5977 = vmatprep.subr.bf16.mxu0 %v5791
    %5978 = vmatpush1.bf16.msra.mxu0 %v5790
    %5979 = vmatprep.subr.bf16.mxu0 %v5795
    %5980 = vmatpush1.bf16.msra.mxu0 %v5794
    %5981 = vmatprep.subr.bf16.mxu0 %v5799
    %5982 = vmatpush1.bf16.msra.mxu0 %v5798
    %5983 = vmatprep.subr.bf16.mxu0 %v5803
    %5984 = vmatpush1.bf16.msra.mxu0 %v5802
    %5985 = vmatprep.subr.bf16.mxu0 %v5807
    %5986 = vmatpush1.bf16.msra.mxu0 %v5806
    %5987 = vmatprep.subr.bf16.mxu0 %v5811
    %5988 = vmatpush1.bf16.msra.mxu0 %v5810
    %5989 = vmatprep.subr.bf16.mxu0 %v5815
    %5990 = vmatpush1.bf16.msra.mxu0 %v5814
    %5991 = vmatprep.subr.bf16.mxu0 %v5819
    %5992 = vmatpush1.bf16.msra.mxu0 %v5818
    %5993 = vmatprep.subr.bf16.mxu0 %v5823
    %5994 = vmatpush1.bf16.msra.mxu0 %v5822
    %5995 = vmatprep.subr.bf16.mxu0 %v5827
    %5996 = vmatpush1.bf16.msra.mxu0 %v5826
    %5997 = vmatprep.mubr.bf16.mxu0 %v5478
    %5998 = vmatmul.mubr.bf16.gmra.mrb[0].mxu0 %v5477
    %v5999 = vpop.f32.mrb[0].mxu0
    %v6000 = vadd.f32 %v5563, %v5999
    %v6001 = vpop.f32.mrb[0].mxu0
    %v6002 = vadd.f32 %v5567, %v6001
    %v6003 = vpop.f32.mrb[0].mxu0
    %v6004 = vadd.f32 %v5563, %v6003
    %v6005 = vpop.f32.mrb[0].mxu0
    %v6006 = vadd.f32 %v5567, %v6005
    %6007 = vmatprep.mubr.bf16.mxu0 %v5480
    %6008 = vmatmul.mubr.bf16.gmra.mrb[0].mxu0 %v5479
    %v6009 = vpop.f32.mrb[0].mxu0
    %v6010 = vadd.f32 %v5563, %v6009
    %v6011 = vpop.f32.mrb[0].mxu0
    %v6012 = vadd.f32 %v5567, %v6011
    %v6013 = vpop.f32.mrb[0].mxu0
    %v6014 = vadd.f32 %v5563, %v6013
    %v6015 = vpop.f32.mrb[0].mxu0
    %v6016 = vadd.f32 %v5567, %v6015
    %6017 = vmatprep.mubr.bf16.mxu0 %v5482
    %6018 = vmatmul.mubr.bf16.gmra.mrb[0].mxu0 %v5481
    %v6019 = vpop.f32.mrb[0].mxu0
    %v6020 = vadd.f32 %v5563, %v6019
    %v6021 = vpop.f32.mrb[0].mxu0
    %v6022 = vadd.f32 %v5567, %v6021
    %v6023 = vpop.f32.mrb[0].mxu0
    %v6024 = vadd.f32 %v5563, %v6023
    %v6025 = vpop.f32.mrb[0].mxu0
    %v6026 = vadd.f32 %v5567, %v6025
    %6027 = vmatprep.mubr.bf16.mxu0 %v5484
    %6028 = vmatmul.mubr.bf16.gmra.mrb[0].mxu0 %v5483
    %v6029 = vpop.f32.mrb[0].mxu0
    %v6030 = vadd.f32 %v5563, %v6029
    %v6031 = vpop.f32.mrb[0].mxu0
    %v6032 = vadd.f32 %v5567, %v6031
    %v6033 = vpop.f32.mrb[0].mxu0
    %v6034 = vadd.f32 %v5563, %v6033
    %v6035 = vpop.f32.mrb[0].mxu0
    %v6036 = vadd.f32 %v5567, %v6035
    %6037 = vdwg.mxu0
    %6038 = vst [vmem:[#allocation4] sm:$0xff] %v5927
    %6039 = vst [vmem:[#allocation4 + $0x8] sm:$0xff] %v5929
    %6040 = vst [vmem:[#allocation4 + $0x10] sm:$0xff] %v6000
    %6041 = vst [vmem:[#allocation4 + $0x18] sm:$0xff] %v6002
    %6042 = vst [vmem:[#allocation4 + $0x20] sm:$0xff] %v5931
    %6043 = vst [vmem:[#allocation4 + $0x28] sm:$0xff] %v5933
    %6044 = vst [vmem:[#allocation4 + $0x30] sm:$0xff] %v6004
    %6045 = vst [vmem:[#allocation4 + $0x38] sm:$0xff] %v6006
    %6046 = vst [vmem:[#allocation4 + $0x40] sm:$0xff] %v5937
    %6047 = vst [vmem:[#allocation4 + $0x48] sm:$0xff] %v5939
    %6048 = vst [vmem:[#allocation4 + $0x50] sm:$0xff] %v6010
    %6049 = vst [vmem:[#allocation4 + $0x58] sm:$0xff] %v6012
    %6050 = vst [vmem:[#allocation4 + $0x60] sm:$0xff] %v5941
    %6051 = vst [vmem:[#allocation4 + $0x68] sm:$0xff] %v5943
    %6052 = vst [vmem:[#allocation4 + $0x70] sm:$0xff] %v6014
    %6053 = vst [vmem:[#allocation4 + $0x78] sm:$0xff] %v6016
    %6054 = vst [vmem:[#allocation4 + $0x80] sm:$0xff] %v5947
    %6055 = vst [vmem:[#allocation4 + $0x88] sm:$0xff] %v5949
    %6056 = vst [vmem:[#allocation4 + $0x90] sm:$0xff] %v6020
    %6057 = vst [vmem:[#allocation4 + $0x98] sm:$0xff] %v6022
    %6058 = vst [vmem:[#allocation4 + $0xa0] sm:$0xff] %v5951
    %6059 = vst [vmem:[#allocation4 + $0xa8] sm:$0xff] %v5953
    %6060 = vst [vmem:[#allocation4 + $0xb0] sm:$0xff] %v6024
    %6061 = vst [vmem:[#allocation4 + $0xb8] sm:$0xff] %v6026
    %6062 = vst [vmem:[#allocation4 + $0xc0] sm:$0xff] %v5957
    %6063 = vst [vmem:[#allocation4 + $0xc8] sm:$0xff] %v5959
    %6064 = vst [vmem:[#allocation4 + $0xd0] sm:$0xff] %v6030
    %6065 = vst [vmem:[#allocation4 + $0xd8] sm:$0xff] %v6032
    %6066 = vst [vmem:[#allocation4 + $0xe0] sm:$0xff] %v5961
    %6067 = vst [vmem:[#allocation4 + $0xe8] sm:$0xff] %v5963
    %6068 = vst [vmem:[#allocation4 + $0xf0] sm:$0xff] %v6034
    %6069 = vst [vmem:[#allocation4 + $0xf8] sm:$0xff] %v6036
    %v6070 = vld [vmem:[#allocation4] sm:$0xff]
    %v6071 = vld [vmem:[#allocation4 + $0x8] sm:$0xff]
    %v6072 = vld [vmem:[#allocation4 + $0x10] sm:$0xff]
    %v6073 = vld [vmem:[#allocation4 + $0x18] sm:$0xff]
    %s6074 = scalar_lea.vmem [#allocation7], 512
    %v6075 = vld [vmem:[%s6074] sm:$0xff]
    %v6076 = vld [vmem:[%s6074 + $0x8] sm:$0xff]
    %v6077 = vld [vmem:[%s6074 + $0x10] sm:$0xff]
    %v6078 = vld [vmem:[%s6074 + $0x18] sm:$0xff]
    %v6079 = vld [vmem:[%s6074 + $0x20] sm:$0xff]
    %v6080 = vld [vmem:[%s6074 + $0x28] sm:$0xff]
    %v6081 = vld [vmem:[%s6074 + $0x30] sm:$0xff]
    %v6082 = vld [vmem:[%s6074 + $0x38] sm:$0xff]
    %v6083 = vld [vmem:[%s6074 + $0x40] sm:$0xff]
    %v6084 = vld [vmem:[%s6074 + $0x48] sm:$0xff]
    %v6085 = vld [vmem:[%s6074 + $0x50] sm:$0xff]
    %v6086 = vld [vmem:[%s6074 + $0x58] sm:$0xff]
    %v6087 = vld [vmem:[%s6074 + $0x60] sm:$0xff]
    %v6088 = vld [vmem:[%s6074 + $0x68] sm:$0xff]
    %v6089 = vld [vmem:[%s6074 + $0x70] sm:$0xff]
    %v6090 = vld [vmem:[%s6074 + $0x78] sm:$0xff]
    %v6091 = vld [vmem:[%s6074 + $0x80] sm:$0xff]
    %v6092 = vld [vmem:[%s6074 + $0x88] sm:$0xff]
    %v6093 = vld [vmem:[%s6074 + $0x90] sm:$0xff]
    %v6094 = vld [vmem:[%s6074 + $0x98] sm:$0xff]
    %v6095 = vld [vmem:[%s6074 + $0xa0] sm:$0xff]
    %v6096 = vld [vmem:[%s6074 + $0xa8] sm:$0xff]
    %v6097 = vld [vmem:[%s6074 + $0xb0] sm:$0xff]
    %v6098 = vld [vmem:[%s6074 + $0xb8] sm:$0xff]
    %v6099 = vld [vmem:[%s6074 + $0xc0] sm:$0xff]
    %v6100 = vld [vmem:[%s6074 + $0xc8] sm:$0xff]
    %v6101 = vld [vmem:[%s6074 + $0xd0] sm:$0xff]
    %v6102 = vld [vmem:[%s6074 + $0xd8] sm:$0xff]
    %v6103 = vld [vmem:[%s6074 + $0xe0] sm:$0xff]
    %v6104 = vld [vmem:[%s6074 + $0xe8] sm:$0xff]
    %v6105 = vld [vmem:[%s6074 + $0xf0] sm:$0xff]
    %v6106 = vld [vmem:[%s6074 + $0xf8] sm:$0xff]
    %v6139 = vunpack.c.l.b16 %v6075
    %v6140 = vunpack.c.h.b16 %v6075
    %v6141 = vunpack.c.l.b16 %v6076
    %v6142 = vunpack.c.h.b16 %v6076
    %v6143 = vunpack.c.l.b16 %v6077
    %v6144 = vunpack.c.h.b16 %v6077
    %v6145 = vunpack.c.l.b16 %v6078
    %v6146 = vunpack.c.h.b16 %v6078
    %v6147 = vunpack.c.l.b16 %v6079
    %v6148 = vunpack.c.h.b16 %v6079
    %v6149 = vunpack.c.l.b16 %v6080
    %v6150 = vunpack.c.h.b16 %v6080
    %v6151 = vunpack.c.l.b16 %v6081
    %v6152 = vunpack.c.h.b16 %v6081
    %v6153 = vunpack.c.l.b16 %v6082
    %v6154 = vunpack.c.h.b16 %v6082
    %v6155 = vunpack.c.l.b16 %v6083
    %v6156 = vunpack.c.h.b16 %v6083
    %v6157 = vunpack.c.l.b16 %v6084
    %v6158 = vunpack.c.h.b16 %v6084
    %v6159 = vunpack.c.l.b16 %v6085
    %v6160 = vunpack.c.h.b16 %v6085
    %v6161 = vunpack.c.l.b16 %v6086
    %v6162 = vunpack.c.h.b16 %v6086
    %v6163 = vunpack.c.l.b16 %v6087
    %v6164 = vunpack.c.h.b16 %v6087
    %v6165 = vunpack.c.l.b16 %v6088
    %v6166 = vunpack.c.h.b16 %v6088
    %v6167 = vunpack.c.l.b16 %v6089
    %v6168 = vunpack.c.h.b16 %v6089
    %v6169 = vunpack.c.l.b16 %v6090
    %v6170 = vunpack.c.h.b16 %v6090
    %v6171 = vunpack.c.l.b16 %v6091
    %v6172 = vunpack.c.h.b16 %v6091
    %v6173 = vunpack.c.l.b16 %v6092
    %v6174 = vunpack.c.h.b16 %v6092
    %v6175 = vunpack.c.l.b16 %v6093
    %v6176 = vunpack.c.h.b16 %v6093
    %v6177 = vunpack.c.l.b16 %v6094
    %v6178 = vunpack.c.h.b16 %v6094
    %v6179 = vunpack.c.l.b16 %v6095
    %v6180 = vunpack.c.h.b16 %v6095
    %v6181 = vunpack.c.l.b16 %v6096
    %v6182 = vunpack.c.h.b16 %v6096
    %v6183 = vunpack.c.l.b16 %v6097
    %v6184 = vunpack.c.h.b16 %v6097
    %v6185 = vunpack.c.l.b16 %v6098
    %v6186 = vunpack.c.h.b16 %v6098
    %v6187 = vunpack.c.l.b16 %v6099
    %v6188 = vunpack.c.h.b16 %v6099
    %v6189 = vunpack.c.l.b16 %v6100
    %v6190 = vunpack.c.h.b16 %v6100
    %v6191 = vunpack.c.l.b16 %v6101
    %v6192 = vunpack.c.h.b16 %v6101
    %v6193 = vunpack.c.l.b16 %v6102
    %v6194 = vunpack.c.h.b16 %v6102
    %v6195 = vunpack.c.l.b16 %v6103
    %v6196 = vunpack.c.h.b16 %v6103
    %v6197 = vunpack.c.l.b16 %v6104
    %v6198 = vunpack.c.h.b16 %v6104
    %v6199 = vunpack.c.l.b16 %v6105
    %v6200 = vunpack.c.h.b16 %v6105
    %v6201 = vunpack.c.l.b16 %v6106
    %v6202 = vunpack.c.h.b16 %v6106
    %v6203 = vpack.c.b16 %v6143, %v6139
    %v6204 = vpack.c.b16 %v6144, %v6140
    %v6205 = vpack.c.b16 %v6145, %v6141
    %v6206 = vpack.c.b16 %v6146, %v6142
    %v6207 = vpack.c.b16 %v6151, %v6147
    %v6208 = vpack.c.b16 %v6152, %v6148
    %v6209 = vpack.c.b16 %v6153, %v6149
    %v6210 = vpack.c.b16 %v6154, %v6150
    %v6211 = vpack.c.b16 %v6159, %v6155
    %v6212 = vpack.c.b16 %v6160, %v6156
    %v6213 = vpack.c.b16 %v6161, %v6157
    %v6214 = vpack.c.b16 %v6162, %v6158
    %v6215 = vpack.c.b16 %v6167, %v6163
    %v6216 = vpack.c.b16 %v6168, %v6164
    %v6217 = vpack.c.b16 %v6169, %v6165
    %v6218 = vpack.c.b16 %v6170, %v6166
    %v6219 = vpack.c.b16 %v6175, %v6171
    %v6220 = vpack.c.b16 %v6176, %v6172
    %v6221 = vpack.c.b16 %v6177, %v6173
    %v6222 = vpack.c.b16 %v6178, %v6174
    %v6223 = vpack.c.b16 %v6183, %v6179
    %v6224 = vpack.c.b16 %v6184, %v6180
    %v6225 = vpack.c.b16 %v6185, %v6181
    %v6226 = vpack.c.b16 %v6186, %v6182
    %v6227 = vpack.c.b16 %v6191, %v6187
    %v6228 = vpack.c.b16 %v6192, %v6188
    %v6229 = vpack.c.b16 %v6193, %v6189
    %v6230 = vpack.c.b16 %v6194, %v6190
    %v6231 = vpack.c.b16 %v6199, %v6195
    %v6232 = vpack.c.b16 %v6200, %v6196
    %v6233 = vpack.c.b16 %v6201, %v6197
    %v6234 = vpack.c.b16 %v6202, %v6198
    %6267 = vmatprep.subr.bf16.mxu0 %v6204
    %6268 = vmatpush1.bf16.msra.mxu0 %v6203
    %6269 = vmatprep.subr.bf16.mxu0 %v6208
    %6270 = vmatpush1.bf16.msra.mxu0 %v6207
    %6271 = vmatprep.subr.bf16.mxu0 %v6212
    %6272 = vmatpush1.bf16.msra.mxu0 %v6211
    %6273 = vmatprep.subr.bf16.mxu0 %v6216
    %6274 = vmatpush1.bf16.msra.mxu0 %v6215
    %6275 = vmatprep.subr.bf16.mxu0 %v6220
    %6276 = vmatpush1.bf16.msra.mxu0 %v6219
    %6277 = vmatprep.subr.bf16.mxu0 %v6224
    %6278 = vmatpush1.bf16.msra.mxu0 %v6223
    %6279 = vmatprep.subr.bf16.mxu0 %v6228
    %6280 = vmatpush1.bf16.msra.mxu0 %v6227
    %6281 = vmatprep.subr.bf16.mxu0 %v6232
    %6282 = vmatpush1.bf16.msra.mxu0 %v6231
    %6283 = vmatprep.subr.bf16.mxu0 0
    %6284 = vmatpush1.bf16.msra.mxu0 0
    %6285 = vmatprep.subr.bf16.mxu0 0
    %6286 = vmatpush1.bf16.msra.mxu0 0
    %6287 = vmatprep.subr.bf16.mxu0 0
    %6288 = vmatpush1.bf16.msra.mxu0 0
    %6289 = vmatprep.subr.bf16.mxu0 0
    %6290 = vmatpush1.bf16.msra.mxu0 0
    %6291 = vmatprep.subr.bf16.mxu0 0
    %6292 = vmatpush1.bf16.msra.mxu0 0
    %6293 = vmatprep.subr.bf16.mxu0 0
    %6294 = vmatpush1.bf16.msra.mxu0 0
    %6295 = vmatprep.subr.bf16.mxu0 0
    %6296 = vmatpush1.bf16.msra.mxu0 0
    %6297 = vmatprep.subr.bf16.mxu0 0
    %6298 = vmatpush1.bf16.msra.mxu0 0
    %6299 = vmatprep.mubr.bf16.mxu0 0
    %6300 = vmatmul.mubr.bf16.gmra.mrb[0].mxu0 0
    %v6301 = vpop.f32.mrb[0].mxu0
    %v6302 = vadd.f32 0.0, %v6301
    %v6303 = vpop.f32.mrb[0].mxu0
    %v6304 = vadd.f32 0.0, %v6303
    %v6305 = vpop.f32.mrb[0].mxu0
    %v6306 = vpop.f32.mrb[0].mxu0
    %6307 = vdwg.mxu0
    %6308 = vmatprep.subr.bf16.mxu0 %v6206
    %6309 = vmatpush1.bf16.msra.mxu0 %v6205
    %6310 = vmatprep.subr.bf16.mxu0 %v6210
    %6311 = vmatpush1.bf16.msra.mxu0 %v6209
    %6312 = vmatprep.subr.bf16.mxu0 %v6214
    %6313 = vmatpush1.bf16.msra.mxu0 %v6213
    %6314 = vmatprep.subr.bf16.mxu0 %v6218
    %6315 = vmatpush1.bf16.msra.mxu0 %v6217
    %6316 = vmatprep.subr.bf16.mxu0 %v6222
    %6317 = vmatpush1.bf16.msra.mxu0 %v6221
    %6318 = vmatprep.subr.bf16.mxu0 %v6226
    %6319 = vmatpush1.bf16.msra.mxu0 %v6225
    %6320 = vmatprep.subr.bf16.mxu0 %v6230
    %6321 = vmatpush1.bf16.msra.mxu0 %v6229
    %6322 = vmatprep.subr.bf16.mxu0 %v6234
    %6323 = vmatpush1.bf16.msra.mxu0 %v6233
    %6324 = vmatprep.subr.bf16.mxu0 0
    %6325 = vmatpush1.bf16.msra.mxu0 0
    %6326 = vmatprep.subr.bf16.mxu0 0
    %6327 = vmatpush1.bf16.msra.mxu0 0
    %6328 = vmatprep.subr.bf16.mxu0 0
    %6329 = vmatpush1.bf16.msra.mxu0 0
    %6330 = vmatprep.subr.bf16.mxu0 0
    %6331 = vmatpush1.bf16.msra.mxu0 0
    %6332 = vmatprep.subr.bf16.mxu0 0
    %6333 = vmatpush1.bf16.msra.mxu0 0
    %6334 = vmatprep.subr.bf16.mxu0 0
    %6335 = vmatpush1.bf16.msra.mxu0 0
    %6336 = vmatprep.subr.bf16.mxu0 0
    %6337 = vmatpush1.bf16.msra.mxu0 0
    %6338 = vmatprep.subr.bf16.mxu0 0
    %6339 = vmatpush1.bf16.msra.mxu0 0
    %6340 = vmatprep.mubr.bf16.mxu0 0
    %6341 = vmatmul.mubr.bf16.gmra.mrb[0].mxu0 0
    %v6342 = vpop.f32.mrb[0].mxu0
    %v6343 = vadd.f32 0.0, %v6342
    %v6344 = vpop.f32.mrb[0].mxu0
    %v6345 = vadd.f32 0.0, %v6344
    %v6346 = vpop.f32.mrb[0].mxu0
    %v6347 = vpop.f32.mrb[0].mxu0
    %6348 = vdwg.mxu0
    %v6349 = vadd.f32 %v6070, %v6302
    %v6350 = vadd.f32 %v6071, %v6304
    %v6351 = vadd.f32 %v6072, %v6343
    %v6352 = vadd.f32 %v6073, %v6345
    %v6353 = vxor.u32 %v6349, 2147483648
    %v6354 = vmul.f32 %v6353, 1.442695
    %v6355 = vpow.pop %v6354
    %v6356 = vadd.f32 %v6355, 1.0
    %v6357 = vrcp.pop %v6356
    %v6358 = vmul.f32 1.0, %v6357
    %v6359 = vxor.u32 %v6350, 2147483648
    %v6360 = vmul.f32 %v6359, 1.442695
    %v6361 = vpow.pop %v6360
    %v6362 = vadd.f32 %v6361, 1.0
    %v6363 = vrcp.pop %v6362
    %v6364 = vmul.f32 1.0, %v6363
    %v6365 = vtanh.pop %v6351
    %v6366 = vxor.u32 %v6352, 2147483648
    %v6367 = vmul.f32 %v6366, 1.442695
    %v6368 = vpow.pop %v6367
    %v6369 = vadd.f32 %v6368, 1.0
    %v6370 = vrcp.pop %v6369
    %v6371 = vmul.f32 1.0, %v6370
    %v6372 = vmul.f32 %v6364, 0.0
    %v6373 = vmul.f32 %v6358, %v6365
    %v6374 = vadd.f32 %v6372, %v6373
    %v6375 = vtanh.pop %v6374
    %v6376 = vmul.f32 %v6371, %v6375
    %v6377 = vld [vmem:[#allocation4 + $0x20] sm:$0xff]
    %v6378 = vld [vmem:[#allocation4 + $0x28] sm:$0xff]
    %v6379 = vld [vmem:[#allocation4 + $0x30] sm:$0xff]
    %v6380 = vld [vmem:[#allocation4 + $0x38] sm:$0xff]
    %v6381 = vpack.c.bf16 %v6376, %v6376
    %6382 = vmatprep.subr.bf16.mxu0 %v6204
    %6383 = vmatpush1.bf16.msra.mxu0 %v6203
    %6384 = vmatprep.subr.bf16.mxu0 %v6208
    %6385 = vmatpush1.bf16.msra.mxu0 %v6207
    %6386 = vmatprep.subr.bf16.mxu0 %v6212
    %6387 = vmatpush1.bf16.msra.mxu0 %v6211
    %6388 = vmatprep.subr.bf16.mxu0 %v6216
    %6389 = vmatpush1.bf16.msra.mxu0 %v6215
    %6390 = vmatprep.subr.bf16.mxu0 %v6220
    %6391 = vmatpush1.bf16.msra.mxu0 %v6219
    %6392 = vmatprep.subr.bf16.mxu0 %v6224
    %6393 = vmatpush1.bf16.msra.mxu0 %v6223
    %6394 = vmatprep.subr.bf16.mxu0 %v6228
    %6395 = vmatpush1.bf16.msra.mxu0 %v6227
    %6396 = vmatprep.subr.bf16.mxu0 %v6232
    %6397 = vmatpush1.bf16.msra.mxu0 %v6231
    %6398 = vmatprep.subr.bf16.mxu0 0
    %6399 = vmatpush1.bf16.msra.mxu0 0
    %6400 = vmatprep.subr.bf16.mxu0 0
    %6401 = vmatpush1.bf16.msra.mxu0 0
    %6402 = vmatprep.subr.bf16.mxu0 0
    %6403 = vmatpush1.bf16.msra.mxu0 0
    %6404 = vmatprep.subr.bf16.mxu0 0
    %6405 = vmatpush1.bf16.msra.mxu0 0
    %6406 = vmatprep.subr.bf16.mxu0 0
    %6407 = vmatpush1.bf16.msra.mxu0 0
    %6408 = vmatprep.subr.bf16.mxu0 0
    %6409 = vmatpush1.bf16.msra.mxu0 0
    %6410 = vmatprep.subr.bf16.mxu0 0
    %6411 = vmatpush1.bf16.msra.mxu0 0
    %6412 = vmatprep.subr.bf16.mxu0 0
    %6413 = vmatpush1.bf16.msra.mxu0 0
    %6414 = vmatprep.mubr.bf16.mxu0 0
    %6415 = vmatmul.mubr.bf16.gmra.mrb[0].mxu0 %v6381
    %v6416 = vpop.f32.mrb[0].mxu0
    %v6417 = vadd.f32 0.0, %v6416
    %v6418 = vpop.f32.mrb[0].mxu0
    %v6419 = vadd.f32 0.0, %v6418
    %v6420 = vpop.f32.mrb[0].mxu0
    %v6421 = vpop.f32.mrb[0].mxu0
    %6422 = vdwg.mxu0
    %6423 = vmatprep.subr.bf16.mxu0 %v6206
    %6424 = vmatpush1.bf16.msra.mxu0 %v6205
    %6425 = vmatprep.subr.bf16.mxu0 %v6210
    %6426 = vmatpush1.bf16.msra.mxu0 %v6209
    %6427 = vmatprep.subr.bf16.mxu0 %v6214
    %6428 = vmatpush1.bf16.msra.mxu0 %v6213
    %6429 = vmatprep.subr.bf16.mxu0 %v6218
    %6430 = vmatpush1.bf16.msra.mxu0 %v6217
    %6431 = vmatprep.subr.bf16.mxu0 %v6222
    %6432 = vmatpush1.bf16.msra.mxu0 %v6221
    %6433 = vmatprep.subr.bf16.mxu0 %v6226
    %6434 = vmatpush1.bf16.msra.mxu0 %v6225
    %6435 = vmatprep.subr.bf16.mxu0 %v6230
    %6436 = vmatpush1.bf16.msra.mxu0 %v6229
    %6437 = vmatprep.subr.bf16.mxu0 %v6234
    %6438 = vmatpush1.bf16.msra.mxu0 %v6233
    %6439 = vmatprep.subr.bf16.mxu0 0
    %6440 = vmatpush1.bf16.msra.mxu0 0
    %6441 = vmatprep.subr.bf16.mxu0 0
    %6442 = vmatpush1.bf16.msra.mxu0 0
    %6443 = vmatprep.subr.bf16.mxu0 0
    %6444 = vmatpush1.bf16.msra.mxu0 0
    %6445 = vmatprep.subr.bf16.mxu0 0
    %6446 = vmatpush1.bf16.msra.mxu0 0
    %6447 = vmatprep.subr.bf16.mxu0 0
    %6448 = vmatpush1.bf16.msra.mxu0 0
    %6449 = vmatprep.subr.bf16.mxu0 0
    %6450 = vmatpush1.bf16.msra.mxu0 0
    %6451 = vmatprep.subr.bf16.mxu0 0
    %6452 = vmatpush1.bf16.msra.mxu0 0
    %6453 = vmatprep.subr.bf16.mxu0 0
    %6454 = vmatpush1.bf16.msra.mxu0 0
    %6455 = vmatprep.mubr.bf16.mxu0 0
    %6456 = vmatmul.mubr.bf16.gmra.mrb[0].mxu0 %v6381
    %v6457 = vpop.f32.mrb[0].mxu0
    %v6458 = vadd.f32 0.0, %v6457
    %v6459 = vpop.f32.mrb[0].mxu0
    %v6460 = vadd.f32 0.0, %v6459
    %v6461 = vpop.f32.mrb[0].mxu0
    %v6462 = vpop.f32.mrb[0].mxu0
    %6463 = vdwg.mxu0
    %v6464 = vadd.f32 %v6377, %v6417
    %v6465 = vadd.f32 %v6378, %v6419
    %v6466 = vadd.f32 %v6379, %v6458
    %v6467 = vadd.f32 %v6380, %v6460
    %v6468 = vxor.u32 %v6464, 2147483648
    %v6469 = vmul.f32 %v6468, 1.442695
    %v6470 = vpow.pop %v6469
    %v6471 = vadd.f32 %v6470, 1.0
    %v6472 = vrcp.pop %v6471
    %v6473 = vmul.f32 1.0, %v6472
    %v6474 = vxor.u32 %v6465, 2147483648
    %v6475 = vmul.f32 %v6474, 1.442695
    %v6476 = vpow.pop %v6475
    %v6477 = vadd.f32 %v6476, 1.0
    %v6478 = vrcp.pop %v6477
    %v6479 = vmul.f32 1.0, %v6478
    %v6480 = vtanh.pop %v6466
    %v6481 = vxor.u32 %v6467, 2147483648
    %v6482 = vmul.f32 %v6481, 1.442695
    %v6483 = vpow.pop %v6482
    %v6484 = vadd.f32 %v6483, 1.0
    %v6485 = vrcp.pop %v6484
    %v6486 = vmul.f32 1.0, %v6485
    %v6487 = vmul.f32 %v6479, %v6374
    %v6488 = vmul.f32 %v6473, %v6480
    %v6489 = vadd.f32 %v6487, %v6488
    %v6490 = vtanh.pop %v6489
    %v6491 = vmul.f32 %v6486, %v6490
    %v6492 = vld [vmem:[#allocation4 + $0x40] sm:$0xff]
    %v6493 = vld [vmem:[#allocation4 + $0x48] sm:$0xff]
    %v6494 = vld [vmem:[#allocation4 + $0x50] sm:$0xff]
    %v6495 = vld [vmem:[#allocation4 + $0x58] sm:$0xff]
    %v6496 = vpack.c.bf16 %v6491, %v6491
    %6497 = vmatprep.subr.bf16.mxu0 %v6204
    %6498 = vmatpush1.bf16.msra.mxu0 %v6203
    %6499 = vmatprep.subr.bf16.mxu0 %v6208
    %6500 = vmatpush1.bf16.msra.mxu0 %v6207
    %6501 = vmatprep.subr.bf16.mxu0 %v6212
    %6502 = vmatpush1.bf16.msra.mxu0 %v6211
    %6503 = vmatprep.subr.bf16.mxu0 %v6216
    %6504 = vmatpush1.bf16.msra.mxu0 %v6215
    %6505 = vmatprep.subr.bf16.mxu0 %v6220
    %6506 = vmatpush1.bf16.msra.mxu0 %v6219
    %6507 = vmatprep.subr.bf16.mxu0 %v6224
    %6508 = vmatpush1.bf16.msra.mxu0 %v6223
    %6509 = vmatprep.subr.bf16.mxu0 %v6228
    %6510 = vmatpush1.bf16.msra.mxu0 %v6227
    %6511 = vmatprep.subr.bf16.mxu0 %v6232
    %6512 = vmatpush1.bf16.msra.mxu0 %v6231
    %6513 = vmatprep.subr.bf16.mxu0 0
    %6514 = vmatpush1.bf16.msra.mxu0 0
    %6515 = vmatprep.subr.bf16.mxu0 0
    %6516 = vmatpush1.bf16.msra.mxu0 0
    %6517 = vmatprep.subr.bf16.mxu0 0
    %6518 = vmatpush1.bf16.msra.mxu0 0
    %6519 = vmatprep.subr.bf16.mxu0 0
    %6520 = vmatpush1.bf16.msra.mxu0 0
    %6521 = vmatprep.subr.bf16.mxu0 0
    %6522 = vmatpush1.bf16.msra.mxu0 0
    %6523 = vmatprep.subr.bf16.mxu0 0
    %6524 = vmatpush1.bf16.msra.mxu0 0
    %6525 = vmatprep.subr.bf16.mxu0 0
    %6526 = vmatpush1.bf16.msra.mxu0 0
    %6527 = vmatprep.subr.bf16.mxu0 0
    %6528 = vmatpush1.bf16.msra.mxu0 0
    %6529 = vmatprep.mubr.bf16.mxu0 0
    %6530 = vmatmul.mubr.bf16.gmra.mrb[0].mxu0 %v6496
    %v6531 = vpop.f32.mrb[0].mxu0
    %v6532 = vadd.f32 0.0, %v6531
    %v6533 = vpop.f32.mrb[0].mxu0
    %v6534 = vadd.f32 0.0, %v6533
    %v6535 = vpop.f32.mrb[0].mxu0
    %v6536 = vpop.f32.mrb[0].mxu0
    %6537 = vdwg.mxu0
    %6538 = vmatprep.subr.bf16.mxu0 %v6206
    %6539 = vmatpush1.bf16.msra.mxu0 %v6205
    %6540 = vmatprep.subr.bf16.mxu0 %v6210
    %6541 = vmatpush1.bf16.msra.mxu0 %v6209
    %6542 = vmatprep.subr.bf16.mxu0 %v6214
    %6543 = vmatpush1.bf16.msra.mxu0 %v6213
    %6544 = vmatprep.subr.bf16.mxu0 %v6218
    %6545 = vmatpush1.bf16.msra.mxu0 %v6217
    %6546 = vmatprep.subr.bf16.mxu0 %v6222
    %6547 = vmatpush1.bf16.msra.mxu0 %v6221
    %6548 = vmatprep.subr.bf16.mxu0 %v6226
    %6549 = vmatpush1.bf16.msra.mxu0 %v6225
    %6550 = vmatprep.subr.bf16.mxu0 %v6230
    %6551 = vmatpush1.bf16.msra.mxu0 %v6229
    %6552 = vmatprep.subr.bf16.mxu0 %v6234
    %6553 = vmatpush1.bf16.msra.mxu0 %v6233
    %6554 = vmatprep.subr.bf16.mxu0 0
    %6555 = vmatpush1.bf16.msra.mxu0 0
    %6556 = vmatprep.subr.bf16.mxu0 0
    %6557 = vmatpush1.bf16.msra.mxu0 0
    %6558 = vmatprep.subr.bf16.mxu0 0
    %6559 = vmatpush1.bf16.msra.mxu0 0
    %6560 = vmatprep.subr.bf16.mxu0 0
    %6561 = vmatpush1.bf16.msra.mxu0 0
    %6562 = vmatprep.subr.bf16.mxu0 0
    %6563 = vmatpush1.bf16.msra.mxu0 0
    %6564 = vmatprep.subr.bf16.mxu0 0
    %6565 = vmatpush1.bf16.msra.mxu0 0
    %6566 = vmatprep.subr.bf16.mxu0 0
    %6567 = vmatpush1.bf16.msra.mxu0 0
    %6568 = vmatprep.subr.bf16.mxu0 0
    %6569 = vmatpush1.bf16.msra.mxu0 0
    %6570 = vmatprep.mubr.bf16.mxu0 0
    %6571 = vmatmul.mubr.bf16.gmra.mrb[0].mxu0 %v6496
    %v6572 = vpop.f32.mrb[0].mxu0
    %v6573 = vadd.f32 0.0, %v6572
    %v6574 = vpop.f32.mrb[0].mxu0
    %v6575 = vadd.f32 0.0, %v6574
    %v6576 = vpop.f32.mrb[0].mxu0
    %v6577 = vpop.f32.mrb[0].mxu0
    %6578 = vdwg.mxu0
    %v6579 = vadd.f32 %v6492, %v6532
    %v6580 = vadd.f32 %v6493, %v6534
    %v6581 = vadd.f32 %v6494, %v6573
    %v6582 = vadd.f32 %v6495, %v6575
    %v6583 = vxor.u32 %v6579, 2147483648
    %v6584 = vmul.f32 %v6583, 1.442695
    %v6585 = vpow.pop %v6584
    %v6586 = vadd.f32 %v6585, 1.0
    %v6587 = vrcp.pop %v6586
    %v6588 = vmul.f32 1.0, %v6587
    %v6589 = vxor.u32 %v6580, 2147483648
    %v6590 = vmul.f32 %v6589, 1.442695
    %v6591 = vpow.pop %v6590
    %v6592 = vadd.f32 %v6591, 1.0
    %v6593 = vrcp.pop %v6592
    %v6594 = vmul.f32 1.0, %v6593
    %v6595 = vtanh.pop %v6581
    %v6596 = vxor.u32 %v6582, 2147483648
    %v6597 = vmul.f32 %v6596, 1.442695
    %v6598 = vpow.pop %v6597
    %v6599 = vadd.f32 %v6598, 1.0
    %v6600 = vrcp.pop %v6599
    %v6601 = vmul.f32 1.0, %v6600
    %v6602 = vmul.f32 %v6594, %v6489
    %v6603 = vmul.f32 %v6588, %v6595
    %v6604 = vadd.f32 %v6602, %v6603
    %v6605 = vtanh.pop %v6604
    %v6606 = vmul.f32 %v6601, %v6605
    %v6607 = vld [vmem:[#allocation4 + $0x60] sm:$0xff]
    %v6608 = vld [vmem:[#allocation4 + $0x68] sm:$0xff]
    %v6609 = vld [vmem:[#allocation4 + $0x70] sm:$0xff]
    %v6610 = vld [vmem:[#allocation4 + $0x78] sm:$0xff]
    %v6611 = vpack.c.bf16 %v6606, %v6606
    %6612 = vmatprep.subr.bf16.mxu0 %v6204
    %6613 = vmatpush1.bf16.msra.mxu0 %v6203
    %6614 = vmatprep.subr.bf16.mxu0 %v6208
    %6615 = vmatpush1.bf16.msra.mxu0 %v6207
    %6616 = vmatprep.subr.bf16.mxu0 %v6212
    %6617 = vmatpush1.bf16.msra.mxu0 %v6211
    %6618 = vmatprep.subr.bf16.mxu0 %v6216
    %6619 = vmatpush1.bf16.msra.mxu0 %v6215
    %6620 = vmatprep.subr.bf16.mxu0 %v6220
    %6621 = vmatpush1.bf16.msra.mxu0 %v6219
    %6622 = vmatprep.subr.bf16.mxu0 %v6224
    %6623 = vmatpush1.bf16.msra.mxu0 %v6223
    %6624 = vmatprep.subr.bf16.mxu0 %v6228
    %6625 = vmatpush1.bf16.msra.mxu0 %v6227
    %6626 = vmatprep.subr.bf16.mxu0 %v6232
    %6627 = vmatpush1.bf16.msra.mxu0 %v6231
    %6628 = vmatprep.subr.bf16.mxu0 0
    %6629 = vmatpush1.bf16.msra.mxu0 0
    %6630 = vmatprep.subr.bf16.mxu0 0
    %6631 = vmatpush1.bf16.msra.mxu0 0
    %6632 = vmatprep.subr.bf16.mxu0 0
    %6633 = vmatpush1.bf16.msra.mxu0 0
    %6634 = vmatprep.subr.bf16.mxu0 0
    %6635 = vmatpush1.bf16.msra.mxu0 0
    %6636 = vmatprep.subr.bf16.mxu0 0
    %6637 = vmatpush1.bf16.msra.mxu0 0
    %6638 = vmatprep.subr.bf16.mxu0 0
    %6639 = vmatpush1.bf16.msra.mxu0 0
    %6640 = vmatprep.subr.bf16.mxu0 0
    %6641 = vmatpush1.bf16.msra.mxu0 0
    %6642 = vmatprep.subr.bf16.mxu0 0
    %6643 = vmatpush1.bf16.msra.mxu0 0
    %6644 = vmatprep.mubr.bf16.mxu0 0
    %6645 = vmatmul.mubr.bf16.gmra.mrb[0].mxu0 %v6611
    %v6646 = vpop.f32.mrb[0].mxu0
    %v6647 = vadd.f32 0.0, %v6646
    %v6648 = vpop.f32.mrb[0].mxu0
    %v6649 = vadd.f32 0.0, %v6648
    %v6650 = vpop.f32.mrb[0].mxu0
    %v6651 = vpop.f32.mrb[0].mxu0
    %6652 = vdwg.mxu0
    %6653 = vmatprep.subr.bf16.mxu0 %v6206
    %6654 = vmatpush1.bf16.msra.mxu0 %v6205
    %6655 = vmatprep.subr.bf16.mxu0 %v6210
    %6656 = vmatpush1.bf16.msra.mxu0 %v6209
    %6657 = vmatprep.subr.bf16.mxu0 %v6214
    %6658 = vmatpush1.bf16.msra.mxu0 %v6213
    %6659 = vmatprep.subr.bf16.mxu0 %v6218
    %6660 = vmatpush1.bf16.msra.mxu0 %v6217
    %6661 = vmatprep.subr.bf16.mxu0 %v6222
    %6662 = vmatpush1.bf16.msra.mxu0 %v6221
    %6663 = vmatprep.subr.bf16.mxu0 %v6226
    %6664 = vmatpush1.bf16.msra.mxu0 %v6225
    %6665 = vmatprep.subr.bf16.mxu0 %v6230
    %6666 = vmatpush1.bf16.msra.mxu0 %v6229
    %6667 = vmatprep.subr.bf16.mxu0 %v6234
    %6668 = vmatpush1.bf16.msra.mxu0 %v6233
    %6669 = vmatprep.subr.bf16.mxu0 0
    %6670 = vmatpush1.bf16.msra.mxu0 0
    %6671 = vmatprep.subr.bf16.mxu0 0
    %6672 = vmatpush1.bf16.msra.mxu0 0
    %6673 = vmatprep.subr.bf16.mxu0 0
    %6674 = vmatpush1.bf16.msra.mxu0 0
    %6675 = vmatprep.subr.bf16.mxu0 0
    %6676 = vmatpush1.bf16.msra.mxu0 0
    %6677 = vmatprep.subr.bf16.mxu0 0
    %6678 = vmatpush1.bf16.msra.mxu0 0
    %6679 = vmatprep.subr.bf16.mxu0 0
    %6680 = vmatpush1.bf16.msra.mxu0 0
    %6681 = vmatprep.subr.bf16.mxu0 0
    %6682 = vmatpush1.bf16.msra.mxu0 0
    %6683 = vmatprep.subr.bf16.mxu0 0
    %6684 = vmatpush1.bf16.msra.mxu0 0
    %6685 = vmatprep.mubr.bf16.mxu0 0
    %6686 = vmatmul.mubr.bf16.gmra.mrb[0].mxu0 %v6611
    %v6687 = vpop.f32.mrb[0].mxu0
    %v6688 = vadd.f32 0.0, %v6687
    %v6689 = vpop.f32.mrb[0].mxu0
    %v6690 = vadd.f32 0.0, %v6689
    %v6691 = vpop.f32.mrb[0].mxu0
    %v6692 = vpop.f32.mrb[0].mxu0
    %6693 = vdwg.mxu0
    %v6694 = vadd.f32 %v6607, %v6647
    %v6695 = vadd.f32 %v6608, %v6649
    %v6696 = vadd.f32 %v6609, %v6688
    %v6697 = vadd.f32 %v6610, %v6690
    %v6698 = vxor.u32 %v6694, 2147483648
    %v6699 = vmul.f32 %v6698, 1.442695
    %v6700 = vpow.pop %v6699
    %v6701 = vadd.f32 %v6700, 1.0
    %v6702 = vrcp.pop %v6701
    %v6703 = vmul.f32 1.0, %v6702
    %v6704 = vxor.u32 %v6695, 2147483648
    %v6705 = vmul.f32 %v6704, 1.442695
    %v6706 = vpow.pop %v6705
    %v6707 = vadd.f32 %v6706, 1.0
    %v6708 = vrcp.pop %v6707
    %v6709 = vmul.f32 1.0, %v6708
    %v6710 = vtanh.pop %v6696
    %v6711 = vxor.u32 %v6697, 2147483648
    %v6712 = vmul.f32 %v6711, 1.442695
    %v6713 = vpow.pop %v6712
    %v6714 = vadd.f32 %v6713, 1.0
    %v6715 = vrcp.pop %v6714
    %v6716 = vmul.f32 1.0, %v6715
    %v6717 = vmul.f32 %v6709, %v6604
    %v6718 = vmul.f32 %v6703, %v6710
    %v6719 = vadd.f32 %v6717, %v6718
    %v6720 = vtanh.pop %v6719
    %v6721 = vmul.f32 %v6716, %v6720
    %v6722 = vld [vmem:[#allocation4 + $0x80] sm:$0xff]
    %v6723 = vld [vmem:[#allocation4 + $0x88] sm:$0xff]
    %v6724 = vld [vmem:[#allocation4 + $0x90] sm:$0xff]
    %v6725 = vld [vmem:[#allocation4 + $0x98] sm:$0xff]
    %v6726 = vpack.c.bf16 %v6721, %v6721
    %6727 = vmatprep.subr.bf16.mxu0 %v6204
    %6728 = vmatpush1.bf16.msra.mxu0 %v6203
    %6729 = vmatprep.subr.bf16.mxu0 %v6208
    %6730 = vmatpush1.bf16.msra.mxu0 %v6207
    %6731 = vmatprep.subr.bf16.mxu0 %v6212
    %6732 = vmatpush1.bf16.msra.mxu0 %v6211
    %6733 = vmatprep.subr.bf16.mxu0 %v6216
    %6734 = vmatpush1.bf16.msra.mxu0 %v6215
    %6735 = vmatprep.subr.bf16.mxu0 %v6220
    %6736 = vmatpush1.bf16.msra.mxu0 %v6219
    %6737 = vmatprep.subr.bf16.mxu0 %v6224
    %6738 = vmatpush1.bf16.msra.mxu0 %v6223
    %6739 = vmatprep.subr.bf16.mxu0 %v6228
    %6740 = vmatpush1.bf16.msra.mxu0 %v6227
    %6741 = vmatprep.subr.bf16.mxu0 %v6232
    %6742 = vmatpush1.bf16.msra.mxu0 %v6231
    %6743 = vmatprep.subr.bf16.mxu0 0
    %6744 = vmatpush1.bf16.msra.mxu0 0
    %6745 = vmatprep.subr.bf16.mxu0 0
    %6746 = vmatpush1.bf16.msra.mxu0 0
    %6747 = vmatprep.subr.bf16.mxu0 0
    %6748 = vmatpush1.bf16.msra.mxu0 0
    %6749 = vmatprep.subr.bf16.mxu0 0
    %6750 = vmatpush1.bf16.msra.mxu0 0
    %6751 = vmatprep.subr.bf16.mxu0 0
    %6752 = vmatpush1.bf16.msra.mxu0 0
    %6753 = vmatprep.subr.bf16.mxu0 0
    %6754 = vmatpush1.bf16.msra.mxu0 0
    %6755 = vmatprep.subr.bf16.mxu0 0
    %6756 = vmatpush1.bf16.msra.mxu0 0
    %6757 = vmatprep.subr.bf16.mxu0 0
    %6758 = vmatpush1.bf16.msra.mxu0 0
    %6759 = vmatprep.mubr.bf16.mxu0 0
    %6760 = vmatmul.mubr.bf16.gmra.mrb[0].mxu0 %v6726
    %v6761 = vpop.f32.mrb[0].mxu0
    %v6762 = vadd.f32 0.0, %v6761
    %v6763 = vpop.f32.mrb[0].mxu0
    %v6764 = vadd.f32 0.0, %v6763
    %v6765 = vpop.f32.mrb[0].mxu0
    %v6766 = vpop.f32.mrb[0].mxu0
    %6767 = vdwg.mxu0
    %6768 = vmatprep.subr.bf16.mxu0 %v6206
    %6769 = vmatpush1.bf16.msra.mxu0 %v6205
    %6770 = vmatprep.subr.bf16.mxu0 %v6210
    %6771 = vmatpush1.bf16.msra.mxu0 %v6209
    %6772 = vmatprep.subr.bf16.mxu0 %v6214
    %6773 = vmatpush1.bf16.msra.mxu0 %v6213
    %6774 = vmatprep.subr.bf16.mxu0 %v6218
    %6775 = vmatpush1.bf16.msra.mxu0 %v6217
    %6776 = vmatprep.subr.bf16.mxu0 %v6222
    %6777 = vmatpush1.bf16.msra.mxu0 %v6221
    %6778 = vmatprep.subr.bf16.mxu0 %v6226
    %6779 = vmatpush1.bf16.msra.mxu0 %v6225
    %6780 = vmatprep.subr.bf16.mxu0 %v6230
    %6781 = vmatpush1.bf16.msra.mxu0 %v6229
    %6782 = vmatprep.subr.bf16.mxu0 %v6234
    %6783 = vmatpush1.bf16.msra.mxu0 %v6233
    %6784 = vmatprep.subr.bf16.mxu0 0
    %6785 = vmatpush1.bf16.msra.mxu0 0
    %6786 = vmatprep.subr.bf16.mxu0 0
    %6787 = vmatpush1.bf16.msra.mxu0 0
    %6788 = vmatprep.subr.bf16.mxu0 0
    %6789 = vmatpush1.bf16.msra.mxu0 0
    %6790 = vmatprep.subr.bf16.mxu0 0
    %6791 = vmatpush1.bf16.msra.mxu0 0
    %6792 = vmatprep.subr.bf16.mxu0 0
    %6793 = vmatpush1.bf16.msra.mxu0 0
    %6794 = vmatprep.subr.bf16.mxu0 0
    %6795 = vmatpush1.bf16.msra.mxu0 0
    %6796 = vmatprep.subr.bf16.mxu0 0
    %6797 = vmatpush1.bf16.msra.mxu0 0
    %6798 = vmatprep.subr.bf16.mxu0 0
    %6799 = vmatpush1.bf16.msra.mxu0 0
    %6800 = vmatprep.mubr.bf16.mxu0 0
    %6801 = vmatmul.mubr.bf16.gmra.mrb[0].mxu0 %v6726
    %v6802 = vpop.f32.mrb[0].mxu0
    %v6803 = vadd.f32 0.0, %v6802
    %v6804 = vpop.f32.mrb[0].mxu0
    %v6805 = vadd.f32 0.0, %v6804
    %v6806 = vpop.f32.mrb[0].mxu0
    %v6807 = vpop.f32.mrb[0].mxu0
    %6808 = vdwg.mxu0
    %v6809 = vadd.f32 %v6722, %v6762
    %v6810 = vadd.f32 %v6723, %v6764
    %v6811 = vadd.f32 %v6724, %v6803
    %v6812 = vadd.f32 %v6725, %v6805
    %v6813 = vxor.u32 %v6809, 2147483648
    %v6814 = vmul.f32 %v6813, 1.442695
    %v6815 = vpow.pop %v6814
    %v6816 = vadd.f32 %v6815, 1.0
    %v6817 = vrcp.pop %v6816
    %v6818 = vmul.f32 1.0, %v6817
    %v6819 = vxor.u32 %v6810, 2147483648
    %v6820 = vmul.f32 %v6819, 1.442695
    %v6821 = vpow.pop %v6820
    %v6822 = vadd.f32 %v6821, 1.0
    %v6823 = vrcp.pop %v6822
    %v6824 = vmul.f32 1.0, %v6823
    %v6825 = vtanh.pop %v6811
    %v6826 = vxor.u32 %v6812, 2147483648
    %v6827 = vmul.f32 %v6826, 1.442695
    %v6828 = vpow.pop %v6827
    %v6829 = vadd.f32 %v6828, 1.0
    %v6830 = vrcp.pop %v6829
    %v6831 = vmul.f32 1.0, %v6830
    %v6832 = vmul.f32 %v6824, %v6719
    %v6833 = vmul.f32 %v6818, %v6825
    %v6834 = vadd.f32 %v6832, %v6833
    %v6835 = vtanh.pop %v6834
    %v6836 = vmul.f32 %v6831, %v6835
    %v6837 = vld [vmem:[#allocation4 + $0xa0] sm:$0xff]
    %v6838 = vld [vmem:[#allocation4 + $0xa8] sm:$0xff]
    %v6839 = vld [vmem:[#allocation4 + $0xb0] sm:$0xff]
    %v6840 = vld [vmem:[#allocation4 + $0xb8] sm:$0xff]
    %v6841 = vpack.c.bf16 %v6836, %v6836
    %6842 = vmatprep.subr.bf16.mxu0 %v6204
    %6843 = vmatpush1.bf16.msra.mxu0 %v6203
    %6844 = vmatprep.subr.bf16.mxu0 %v6208
    %6845 = vmatpush1.bf16.msra.mxu0 %v6207
    %6846 = vmatprep.subr.bf16.mxu0 %v6212
    %6847 = vmatpush1.bf16.msra.mxu0 %v6211
    %6848 = vmatprep.subr.bf16.mxu0 %v6216
    %6849 = vmatpush1.bf16.msra.mxu0 %v6215
    %6850 = vmatprep.subr.bf16.mxu0 %v6220
    %6851 = vmatpush1.bf16.msra.mxu0 %v6219
    %6852 = vmatprep.subr.bf16.mxu0 %v6224
    %6853 = vmatpush1.bf16.msra.mxu0 %v6223
    %6854 = vmatprep.subr.bf16.mxu0 %v6228
    %6855 = vmatpush1.bf16.msra.mxu0 %v6227
    %6856 = vmatprep.subr.bf16.mxu0 %v6232
    %6857 = vmatpush1.bf16.msra.mxu0 %v6231
    %6858 = vmatprep.subr.bf16.mxu0 0
    %6859 = vmatpush1.bf16.msra.mxu0 0
    %6860 = vmatprep.subr.bf16.mxu0 0
    %6861 = vmatpush1.bf16.msra.mxu0 0
    %6862 = vmatprep.subr.bf16.mxu0 0
    %6863 = vmatpush1.bf16.msra.mxu0 0
    %6864 = vmatprep.subr.bf16.mxu0 0
    %6865 = vmatpush1.bf16.msra.mxu0 0
    %6866 = vmatprep.subr.bf16.mxu0 0
    %6867 = vmatpush1.bf16.msra.mxu0 0
    %6868 = vmatprep.subr.bf16.mxu0 0
    %6869 = vmatpush1.bf16.msra.mxu0 0
    %6870 = vmatprep.subr.bf16.mxu0 0
    %6871 = vmatpush1.bf16.msra.mxu0 0
    %6872 = vmatprep.subr.bf16.mxu0 0
    %6873 = vmatpush1.bf16.msra.mxu0 0
    %6874 = vmatprep.mubr.bf16.mxu0 0
    %6875 = vmatmul.mubr.bf16.gmra.mrb[0].mxu0 %v6841
    %v6876 = vpop.f32.mrb[0].mxu0
    %v6877 = vadd.f32 0.0, %v6876
    %v6878 = vpop.f32.mrb[0].mxu0
    %v6879 = vadd.f32 0.0, %v6878
    %v6880 = vpop.f32.mrb[0].mxu0
    %v6881 = vpop.f32.mrb[0].mxu0
    %6882 = vdwg.mxu0
    %6883 = vmatprep.subr.bf16.mxu0 %v6206
    %6884 = vmatpush1.bf16.msra.mxu0 %v6205
    %6885 = vmatprep.subr.bf16.mxu0 %v6210
    %6886 = vmatpush1.bf16.msra.mxu0 %v6209
    %6887 = vmatprep.subr.bf16.mxu0 %v6214
    %6888 = vmatpush1.bf16.msra.mxu0 %v6213
    %6889 = vmatprep.subr.bf16.mxu0 %v6218
    %6890 = vmatpush1.bf16.msra.mxu0 %v6217
    %6891 = vmatprep.subr.bf16.mxu0 %v6222
    %6892 = vmatpush1.bf16.msra.mxu0 %v6221
    %6893 = vmatprep.subr.bf16.mxu0 %v6226
    %6894 = vmatpush1.bf16.msra.mxu0 %v6225
    %6895 = vmatprep.subr.bf16.mxu0 %v6230
    %6896 = vmatpush1.bf16.msra.mxu0 %v6229
    %6897 = vmatprep.subr.bf16.mxu0 %v6234
    %6898 = vmatpush1.bf16.msra.mxu0 %v6233
    %6899 = vmatprep.subr.bf16.mxu0 0
    %6900 = vmatpush1.bf16.msra.mxu0 0
    %6901 = vmatprep.subr.bf16.mxu0 0
    %6902 = vmatpush1.bf16.msra.mxu0 0
    %6903 = vmatprep.subr.bf16.mxu0 0
    %6904 = vmatpush1.bf16.msra.mxu0 0
    %6905 = vmatprep.subr.bf16.mxu0 0
    %6906 = vmatpush1.bf16.msra.mxu0 0
    %6907 = vmatprep.subr.bf16.mxu0 0
    %6908 = vmatpush1.bf16.msra.mxu0 0
    %6909 = vmatprep.subr.bf16.mxu0 0
    %6910 = vmatpush1.bf16.msra.mxu0 0
    %6911 = vmatprep.subr.bf16.mxu0 0
    %6912 = vmatpush1.bf16.msra.mxu0 0
    %6913 = vmatprep.subr.bf16.mxu0 0
    %6914 = vmatpush1.bf16.msra.mxu0 0
    %6915 = vmatprep.mubr.bf16.mxu0 0
    %6916 = vmatmul.mubr.bf16.gmra.mrb[0].mxu0 %v6841
    %v6917 = vpop.f32.mrb[0].mxu0
    %v6918 = vadd.f32 0.0, %v6917
    %v6919 = vpop.f32.mrb[0].mxu0
    %v6920 = vadd.f32 0.0, %v6919
    %v6921 = vpop.f32.mrb[0].mxu0
    %v6922 = vpop.f32.mrb[0].mxu0
    %6923 = vdwg.mxu0
    %v6924 = vadd.f32 %v6837, %v6877
    %v6925 = vadd.f32 %v6838, %v6879
    %v6926 = vadd.f32 %v6839, %v6918
    %v6927 = vadd.f32 %v6840, %v6920
    %v6928 = vxor.u32 %v6924, 2147483648
    %v6929 = vmul.f32 %v6928, 1.442695
    %v6930 = vpow.pop %v6929
    %v6931 = vadd.f32 %v6930, 1.0
    %v6932 = vrcp.pop %v6931
    %v6933 = vmul.f32 1.0, %v6932
    %v6934 = vxor.u32 %v6925, 2147483648
    %v6935 = vmul.f32 %v6934, 1.442695
    %v6936 = vpow.pop %v6935
    %v6937 = vadd.f32 %v6936, 1.0
    %v6938 = vrcp.pop %v6937
    %v6939 = vmul.f32 1.0, %v6938
    %v6940 = vtanh.pop %v6926
    %v6941 = vxor.u32 %v6927, 2147483648
    %v6942 = vmul.f32 %v6941, 1.442695
    %v6943 = vpow.pop %v6942
    %v6944 = vadd.f32 %v6943, 1.0
    %v6945 = vrcp.pop %v6944
    %v6946 = vmul.f32 1.0, %v6945
    %v6947 = vmul.f32 %v6939, %v6834
    %v6948 = vmul.f32 %v6933, %v6940
    %v6949 = vadd.f32 %v6947, %v6948
    %v6950 = vtanh.pop %v6949
    %v6951 = vmul.f32 %v6946, %v6950
    %v6952 = vld [vmem:[#allocation4 + $0xc0] sm:$0xff]
    %v6953 = vld [vmem:[#allocation4 + $0xc8] sm:$0xff]
    %v6954 = vld [vmem:[#allocation4 + $0xd0] sm:$0xff]
    %v6955 = vld [vmem:[#allocation4 + $0xd8] sm:$0xff]
    %v6956 = vpack.c.bf16 %v6951, %v6951
    %6957 = vmatprep.subr.bf16.mxu0 %v6204
    %6958 = vmatpush1.bf16.msra.mxu0 %v6203
    %6959 = vmatprep.subr.bf16.mxu0 %v6208
    %6960 = vmatpush1.bf16.msra.mxu0 %v6207
    %6961 = vmatprep.subr.bf16.mxu0 %v6212
    %6962 = vmatpush1.bf16.msra.mxu0 %v6211
    %6963 = vmatprep.subr.bf16.mxu0 %v6216
    %6964 = vmatpush1.bf16.msra.mxu0 %v6215
    %6965 = vmatprep.subr.bf16.mxu0 %v6220
    %6966 = vmatpush1.bf16.msra.mxu0 %v6219
    %6967 = vmatprep.subr.bf16.mxu0 %v6224
    %6968 = vmatpush1.bf16.msra.mxu0 %v6223
    %6969 = vmatprep.subr.bf16.mxu0 %v6228
    %6970 = vmatpush1.bf16.msra.mxu0 %v6227
    %6971 = vmatprep.subr.bf16.mxu0 %v6232
    %6972 = vmatpush1.bf16.msra.mxu0 %v6231
    %6973 = vmatprep.subr.bf16.mxu0 0
    %6974 = vmatpush1.bf16.msra.mxu0 0
    %6975 = vmatprep.subr.bf16.mxu0 0
    %6976 = vmatpush1.bf16.msra.mxu0 0
    %6977 = vmatprep.subr.bf16.mxu0 0
    %6978 = vmatpush1.bf16.msra.mxu0 0
    %6979 = vmatprep.subr.bf16.mxu0 0
    %6980 = vmatpush1.bf16.msra.mxu0 0
    %6981 = vmatprep.subr.bf16.mxu0 0
    %6982 = vmatpush1.bf16.msra.mxu0 0
    %6983 = vmatprep.subr.bf16.mxu0 0
    %6984 = vmatpush1.bf16.msra.mxu0 0
    %6985 = vmatprep.subr.bf16.mxu0 0
    %6986 = vmatpush1.bf16.msra.mxu0 0
    %6987 = vmatprep.subr.bf16.mxu0 0
    %6988 = vmatpush1.bf16.msra.mxu0 0
    %6989 = vmatprep.mubr.bf16.mxu0 0
    %6990 = vmatmul.mubr.bf16.gmra.mrb[0].mxu0 %v6956
    %v6991 = vpop.f32.mrb[0].mxu0
    %v6992 = vadd.f32 0.0, %v6991
    %v6993 = vpop.f32.mrb[0].mxu0
    %v6994 = vadd.f32 0.0, %v6993
    %v6995 = vpop.f32.mrb[0].mxu0
    %v6996 = vpop.f32.mrb[0].mxu0
    %6997 = vdwg.mxu0
    %6998 = vmatprep.subr.bf16.mxu0 %v6206
    %6999 = vmatpush1.bf16.msra.mxu0 %v6205
    %7000 = vmatprep.subr.bf16.mxu0 %v6210
    %7001 = vmatpush1.bf16.msra.mxu0 %v6209
    %7002 = vmatprep.subr.bf16.mxu0 %v6214
    %7003 = vmatpush1.bf16.msra.mxu0 %v6213
    %7004 = vmatprep.subr.bf16.mxu0 %v6218
    %7005 = vmatpush1.bf16.msra.mxu0 %v6217
    %7006 = vmatprep.subr.bf16.mxu0 %v6222
    %7007 = vmatpush1.bf16.msra.mxu0 %v6221
    %7008 = vmatprep.subr.bf16.mxu0 %v6226
    %7009 = vmatpush1.bf16.msra.mxu0 %v6225
    %7010 = vmatprep.subr.bf16.mxu0 %v6230
    %7011 = vmatpush1.bf16.msra.mxu0 %v6229
    %7012 = vmatprep.subr.bf16.mxu0 %v6234
    %7013 = vmatpush1.bf16.msra.mxu0 %v6233
    %7014 = vmatprep.subr.bf16.mxu0 0
    %7015 = vmatpush1.bf16.msra.mxu0 0
    %7016 = vmatprep.subr.bf16.mxu0 0
    %7017 = vmatpush1.bf16.msra.mxu0 0
    %7018 = vmatprep.subr.bf16.mxu0 0
    %7019 = vmatpush1.bf16.msra.mxu0 0
    %7020 = vmatprep.subr.bf16.mxu0 0
    %7021 = vmatpush1.bf16.msra.mxu0 0
    %7022 = vmatprep.subr.bf16.mxu0 0
    %7023 = vmatpush1.bf16.msra.mxu0 0
    %7024 = vmatprep.subr.bf16.mxu0 0
    %7025 = vmatpush1.bf16.msra.mxu0 0
    %7026 = vmatprep.subr.bf16.mxu0 0
    %7027 = vmatpush1.bf16.msra.mxu0 0
    %7028 = vmatprep.subr.bf16.mxu0 0
    %7029 = vmatpush1.bf16.msra.mxu0 0
    %7030 = vmatprep.mubr.bf16.mxu0 0
    %7031 = vmatmul.mubr.bf16.gmra.mrb[0].mxu0 %v6956
    %v7032 = vpop.f32.mrb[0].mxu0
    %v7033 = vadd.f32 0.0, %v7032
    %v7034 = vpop.f32.mrb[0].mxu0
    %v7035 = vadd.f32 0.0, %v7034
    %v7036 = vpop.f32.mrb[0].mxu0
    %v7037 = vpop.f32.mrb[0].mxu0
    %7038 = vdwg.mxu0
    %v7039 = vadd.f32 %v6952, %v6992
    %v7040 = vadd.f32 %v6953, %v6994
    %v7041 = vadd.f32 %v6954, %v7033
    %v7042 = vadd.f32 %v6955, %v7035
    %v7043 = vxor.u32 %v7039, 2147483648
    %v7044 = vmul.f32 %v7043, 1.442695
    %v7045 = vpow.pop %v7044
    %v7046 = vadd.f32 %v7045, 1.0
    %v7047 = vrcp.pop %v7046
    %v7048 = vmul.f32 1.0, %v7047
    %v7049 = vxor.u32 %v7040, 2147483648
    %v7050 = vmul.f32 %v7049, 1.442695
    %v7051 = vpow.pop %v7050
    %v7052 = vadd.f32 %v7051, 1.0
    %v7053 = vrcp.pop %v7052
    %v7054 = vmul.f32 1.0, %v7053
    %v7055 = vtanh.pop %v7041
    %v7056 = vxor.u32 %v7042, 2147483648
    %v7057 = vmul.f32 %v7056, 1.442695
    %v7058 = vpow.pop %v7057
    %v7059 = vadd.f32 %v7058, 1.0
    %v7060 = vrcp.pop %v7059
    %v7061 = vmul.f32 1.0, %v7060
    %v7062 = vmul.f32 %v7054, %v6949
    %v7063 = vmul.f32 %v7048, %v7055
    %v7064 = vadd.f32 %v7062, %v7063
    %v7065 = vtanh.pop %v7064
    %v7066 = vmul.f32 %v7061, %v7065
    %v7067 = vld [vmem:[#allocation4 + $0xe0] sm:$0xff]
    %v7068 = vld [vmem:[#allocation4 + $0xe8] sm:$0xff]
    %v7069 = vld [vmem:[#allocation4 + $0xf0] sm:$0xff]
    %v7070 = vld [vmem:[#allocation4 + $0xf8] sm:$0xff]
    %v7071 = vpack.c.bf16 %v7066, %v7066
    %7072 = vmatprep.subr.bf16.mxu0 %v6204
    %7073 = vmatpush1.bf16.msra.mxu0 %v6203
    %7074 = vmatprep.subr.bf16.mxu0 %v6208
    %7075 = vmatpush1.bf16.msra.mxu0 %v6207
    %7076 = vmatprep.subr.bf16.mxu0 %v6212
    %7077 = vmatpush1.bf16.msra.mxu0 %v6211
    %7078 = vmatprep.subr.bf16.mxu0 %v6216
    %7079 = vmatpush1.bf16.msra.mxu0 %v6215
    %7080 = vmatprep.subr.bf16.mxu0 %v6220
    %7081 = vmatpush1.bf16.msra.mxu0 %v6219
    %7082 = vmatprep.subr.bf16.mxu0 %v6224
    %7083 = vmatpush1.bf16.msra.mxu0 %v6223
    %7084 = vmatprep.subr.bf16.mxu0 %v6228
    %7085 = vmatpush1.bf16.msra.mxu0 %v6227
    %7086 = vmatprep.subr.bf16.mxu0 %v6232
    %7087 = vmatpush1.bf16.msra.mxu0 %v6231
    %7088 = vmatprep.subr.bf16.mxu0 0
    %7089 = vmatpush1.bf16.msra.mxu0 0
    %7090 = vmatprep.subr.bf16.mxu0 0
    %7091 = vmatpush1.bf16.msra.mxu0 0
    %7092 = vmatprep.subr.bf16.mxu0 0
    %7093 = vmatpush1.bf16.msra.mxu0 0
    %7094 = vmatprep.subr.bf16.mxu0 0
    %7095 = vmatpush1.bf16.msra.mxu0 0
    %7096 = vmatprep.subr.bf16.mxu0 0
    %7097 = vmatpush1.bf16.msra.mxu0 0
    %7098 = vmatprep.subr.bf16.mxu0 0
    %7099 = vmatpush1.bf16.msra.mxu0 0
    %7100 = vmatprep.subr.bf16.mxu0 0
    %7101 = vmatpush1.bf16.msra.mxu0 0
    %7102 = vmatprep.subr.bf16.mxu0 0
    %7103 = vmatpush1.bf16.msra.mxu0 0
    %7104 = vmatprep.mubr.bf16.mxu0 0
    %7105 = vmatmul.mubr.bf16.gmra.mrb[0].mxu0 %v7071
    %v7106 = vpop.f32.mrb[0].mxu0
    %v7107 = vadd.f32 0.0, %v7106
    %v7108 = vpop.f32.mrb[0].mxu0
    %v7109 = vadd.f32 0.0, %v7108
    %v7110 = vpop.f32.mrb[0].mxu0
    %v7111 = vpop.f32.mrb[0].mxu0
    %7112 = vdwg.mxu0
    %7113 = vmatprep.subr.bf16.mxu0 %v6206
    %7114 = vmatpush1.bf16.msra.mxu0 %v6205
    %7115 = vmatprep.subr.bf16.mxu0 %v6210
    %7116 = vmatpush1.bf16.msra.mxu0 %v6209
    %7117 = vmatprep.subr.bf16.mxu0 %v6214
    %7118 = vmatpush1.bf16.msra.mxu0 %v6213
    %7119 = vmatprep.subr.bf16.mxu0 %v6218
    %7120 = vmatpush1.bf16.msra.mxu0 %v6217
    %7121 = vmatprep.subr.bf16.mxu0 %v6222
    %7122 = vmatpush1.bf16.msra.mxu0 %v6221
    %7123 = vmatprep.subr.bf16.mxu0 %v6226
    %7124 = vmatpush1.bf16.msra.mxu0 %v6225
    %7125 = vmatprep.subr.bf16.mxu0 %v6230
    %7126 = vmatpush1.bf16.msra.mxu0 %v6229
    %7127 = vmatprep.subr.bf16.mxu0 %v6234
    %7128 = vmatpush1.bf16.msra.mxu0 %v6233
    %7129 = vmatprep.subr.bf16.mxu0 0
    %7130 = vmatpush1.bf16.msra.mxu0 0
    %7131 = vmatprep.subr.bf16.mxu0 0
    %7132 = vmatpush1.bf16.msra.mxu0 0
    %7133 = vmatprep.subr.bf16.mxu0 0
    %7134 = vmatpush1.bf16.msra.mxu0 0
    %7135 = vmatprep.subr.bf16.mxu0 0
    %7136 = vmatpush1.bf16.msra.mxu0 0
    %7137 = vmatprep.subr.bf16.mxu0 0
    %7138 = vmatpush1.bf16.msra.mxu0 0
    %7139 = vmatprep.subr.bf16.mxu0 0
    %7140 = vmatpush1.bf16.msra.mxu0 0
    %7141 = vmatprep.subr.bf16.mxu0 0
    %7142 = vmatpush1.bf16.msra.mxu0 0
    %7143 = vmatprep.subr.bf16.mxu0 0
    %7144 = vmatpush1.bf16.msra.mxu0 0
    %7145 = vmatprep.mubr.bf16.mxu0 0
    %7146 = vmatmul.mubr.bf16.gmra.mrb[0].mxu0 %v7071
    %v7147 = vpop.f32.mrb[0].mxu0
    %v7148 = vadd.f32 0.0, %v7147
    %v7149 = vpop.f32.mrb[0].mxu0
    %v7150 = vadd.f32 0.0, %v7149
    %v7151 = vpop.f32.mrb[0].mxu0
    %v7152 = vpop.f32.mrb[0].mxu0
    %7153 = vdwg.mxu0
    %v7154 = vadd.f32 %v7067, %v7107
    %v7155 = vadd.f32 %v7068, %v7109
    %v7156 = vadd.f32 %v7069, %v7148
    %v7157 = vadd.f32 %v7070, %v7150
    %v7158 = vxor.u32 %v7154, 2147483648
    %v7159 = vmul.f32 %v7158, 1.442695
    %v7160 = vpow.pop %v7159
    %v7161 = vadd.f32 %v7160, 1.0
    %v7162 = vrcp.pop %v7161
    %v7163 = vmul.f32 1.0, %v7162
    %v7164 = vxor.u32 %v7155, 2147483648
    %v7165 = vmul.f32 %v7164, 1.442695
    %v7166 = vpow.pop %v7165
    %v7167 = vadd.f32 %v7166, 1.0
    %v7168 = vrcp.pop %v7167
    %v7169 = vmul.f32 1.0, %v7168
    %v7170 = vtanh.pop %v7156
    %v7171 = vxor.u32 %v7157, 2147483648
    %v7172 = vmul.f32 %v7171, 1.442695
    %v7173 = vpow.pop %v7172
    %v7174 = vadd.f32 %v7173, 1.0
    %v7175 = vrcp.pop %v7174
    %v7176 = vmul.f32 1.0, %v7175
    %v7177 = vmul.f32 %v7169, %v7064
    %v7178 = vmul.f32 %v7163, %v7170
    %v7179 = vadd.f32 %v7177, %v7178
    %v7180 = vtanh.pop %v7179
    %v7181 = vmul.f32 %v7176, %v7180
    %v7182 = vld [vmem:[%s4 + $0x2] ss:$0 sm:$0xff]
    %v7183 = vld [vmem:[%s4 + $0x3] ss:$0 sm:$0xff]
    %v7184 = vmul.f32 %v7181, %v7182
    %7185 = vadd.xlane.f32.xlu0 %v7184
    %v7186 = vpop.xlane.xlu0 %7185
    %v7187 = vadd.f32 %v7186, %v7183
    %vm7188 = vcmask 7168
    %7189 = vst.msk [vmem:[%s5] sm:$0xff] %vm7188, %v7187
    // Predicated region
    $region34: #{tpu_custom_call.1} parent=1 // pred_check
      _
    $region35: #{tpu_custom_call.1} parent=1 // pred_check_branch
      %7191 = sbr.rel (0) target = $region37
    $region36: #{tpu_custom_call.1} parent=1 // pred_region
      _
    $region37: #{tpu_custom_call.1} parent=1 // pred_fallthru
      _
    // Predicated region
    $region38: #{tpu_custom_call.1} parent=1 // pred_check
      _
    $region39: #{tpu_custom_call.1} parent=1 // pred_check_branch
      %7193 = sbr.rel (0) target = $region41
    $region40: #{tpu_custom_call.1} parent=1 // pred_region
      _
    $region41: #{tpu_custom_call.1} parent=1 // pred_fallthru
      _
    %7194 = vsyncpa [#allocation6], 1
    %7195 = vsyncpa [#allocation8], 1

</llo_original>
